<compile_context>
chip_gen: v7x
topology: tpu7x:2x2x1
jax: 0.10.0
libtpu: 0.0.40
codegen_flags: <defaults>
</compile_context>

<pallas_src>
import functools

import numpy as np
import jax
import jax.numpy as jnp
from jax.experimental import pallas as pl
from jax.experimental.pallas import tpu as pltpu

# ----------------------------------------------------------------------------
# Core Pallas kernel: fused (A @ W) * scale + bias, optional ReLU
# ----------------------------------------------------------------------------

_BN = 128            # N tile (lanes)
_BK = 128            # K tile for the (rare) K-loop path
_MAX_SINGLE_K = 1024  # if padded K <= this, do the whole K in one block


def _rup(x, m):
    return (x + m - 1) // m * m


def _pick_bm(m):
    """M tile: big tiles for roofline, but keep >=2 M-blocks when M >= 256
    so the ('parallel','parallel') grid can shard across TensorCores."""
    if m >= 1024:
        return 512
    if m >= 512:
        return 256
    return 128


def _mm_k1_kernel(a_ref, w_ref, s_ref, b_ref, o_ref, *, relu):
    """Single-K-block path: no accumulator scratch, 2-D grid."""
    y = jnp.dot(a_ref[...], w_ref[...], preferred_element_type=jnp.float32)
    y = y * s_ref[...] + b_ref[...]
    if relu:
        y = jnp.maximum(y, 0.0)
    o_ref[...] = y.astype(o_ref.dtype)


def _mm_kloop_kernel(a_ref, w_ref, s_ref, b_ref, o_ref, acc_ref, *, relu):
    """Generic path with a K reduction axis (3-D grid)."""
    k = pl.program_id(2)

    @pl.when(k == 0)
    def _init():
        acc_ref[...] = jnp.zeros_like(acc_ref)

    acc_ref[...] += jnp.dot(a_ref[...], w_ref[...],
                            preferred_element_type=jnp.float32)

    @pl.when(k == pl.num_programs(2) - 1)
    def _finish():
        y = acc_ref[...] * s_ref[...] + b_ref[...]
        if relu:
            y = jnp.maximum(y, 0.0)
        o_ref[...] = y.astype(o_ref.dtype)


def _matmul_core(a_p, w_p, s_p, b_p, *, relu, out_dtype, bm):
    """a_p (Mp,Kp) bf16, w_p (Kp,Np) bf16, s_p/b_p (1,Np) f32 -> (Mp,Np)."""
    Mp, Kp = a_p.shape
    Kp2, Np = w_p.shape
    assert Kp == Kp2

    if Kp <= _MAX_SINGLE_K:
        return pl.pallas_call(
            functools.partial(_mm_k1_kernel, relu=relu),
            out_shape=jax.ShapeDtypeStruct((Mp, Np), out_dtype),
            grid_spec=pltpu.PrefetchScalarGridSpec(
                num_scalar_prefetch=0,
                grid=(Mp // bm, Np // _BN),
                in_specs=[
                    pl.BlockSpec((bm, Kp), lambda i, j: (i, 0)),
                    pl.BlockSpec((Kp, _BN), lambda i, j: (0, j)),
                    pl.BlockSpec((1, _BN), lambda i, j: (0, j)),
                    pl.BlockSpec((1, _BN), lambda i, j: (0, j)),
                ],
                out_specs=pl.BlockSpec((bm, _BN), lambda i, j: (i, j)),
            ),
            compiler_params=pltpu.CompilerParams(
                dimension_semantics=("parallel", "parallel")),
        )(a_p, w_p, s_p, b_p)

    nk = Kp // _BK
    return pl.pallas_call(
        functools.partial(_mm_kloop_kernel, relu=relu),
        out_shape=jax.ShapeDtypeStruct((Mp, Np), out_dtype),
        grid_spec=pltpu.PrefetchScalarGridSpec(
            num_scalar_prefetch=0,
            grid=(Mp // bm, Np // _BN, nk),
            in_specs=[
                pl.BlockSpec((bm, _BK), lambda i, j, k: (i, k)),
                pl.BlockSpec((_BK, _BN), lambda i, j, k: (k, j)),
                pl.BlockSpec((1, _BN), lambda i, j, k: (0, j)),
                pl.BlockSpec((1, _BN), lambda i, j, k: (0, j)),
            ],
            out_specs=pl.BlockSpec((bm, _BN), lambda i, j, k: (i, j)),
            scratch_shapes=[pltpu.VMEM((bm, _BN), jnp.float32)],
        ),
        compiler_params=pltpu.CompilerParams(
            dimension_semantics=("parallel", "parallel", "arbitrary")),
    )(a_p, w_p, s_p, b_p)


def _matmul_prepared(a, prep, n_out, *, relu=False, out_dtype=jnp.bfloat16):
    """a: (M, Kp) already K-padded.  prep: pre-padded bf16 weight + f32 s/b."""
    M, Kp = a.shape
    assert Kp == prep["w"].shape[0]
    bm = _pick_bm(M)
    Mp = _rup(M, bm)
    a = a.astype(jnp.bfloat16)
    if Mp > M:
        a = jnp.pad(a, ((0, Mp - M), (0, 0)))
    out = _matmul_core(a, prep["w"], prep["s"], prep["b"],
                       relu=relu, out_dtype=out_dtype, bm=bm)
    return out[:M, :n_out]


# ----------------------------------------------------------------------------
# Parameter preparation (run ONCE, outside the jitted forward)
# ----------------------------------------------------------------------------

def _fold_bn(c_out, conv_bias, bn, eps=1e-5):
    scale = jnp.ones((c_out,), jnp.float32)
    shift = jnp.zeros((c_out,), jnp.float32)
    if conv_bias is not None:
        shift = shift + conv_bias.astype(jnp.float32)
    if bn is not None:
        s = bn["gamma"] / jnp.sqrt(bn["var"] + eps)
        shift = s * (shift - bn["mean"]) + bn["beta"]
        scale = scale * s
    return scale, shift


def _prep_linear(wmat, scale, shift):
    """Pad a (K, N) f32 weight to (Kp, Np) bf16 + padded f32 scale/shift."""
    K, N = wmat.shape
    Kp, Np = _rup(K, 128), _rup(N, _BN)
    w_p = jnp.zeros((Kp, Np), jnp.bfloat16).at[:K, :N].set(
        wmat.astype(jnp.bfloat16))
    s_p = jnp.zeros((1, Np), jnp.float32).at[0, :N].set(scale)
    b_p = jnp.zeros((1, Np), jnp.float32).at[0, :N].set(shift)
    return dict(w=w_p, s=s_p, b=b_p)


def prep_conv(weight, bias=None, bn=None):
    """Regular conv, PyTorch layout (C_out, C_in, kh, kw) -> prepared matmul."""
    Co, Ci, kh, kw = weight.shape
    wmat = jnp.transpose(weight, (2, 3, 1, 0)).reshape(kh * kw * Ci, Co)
    scale, shift = _fold_bn(Co, bias, bn)
    return _prep_linear(wmat, scale, shift)


def prep_sepconv(dw, pw, bn=None):
    """EXACT fusion of depthwise (C,1,kh,kw) + pointwise (Co,C,1,1) + BN into
    one matmul weight: Wc[(i*kw+j)*C + c, o] = dw[c,i,j] * pw[o,c]."""
    C, _, kh, kw = dw.shape
    Co = pw.shape[0]
    dwk = jnp.transpose(dw[:, 0], (1, 2, 0))          # (kh, kw, C)
    pwm = jnp.transpose(pw[:, :, 0, 0], (1, 0))       # (C, Co)
    wc = (dwk[..., None] * pwm[None, None, :, :]).reshape(kh * kw * C, Co)
    scale, shift = _fold_bn(Co, None, bn)
    return _prep_linear(wc, scale, shift)


# ----------------------------------------------------------------------------
# Conv / pooling / upsampling built on the Pallas matmul kernel
# ----------------------------------------------------------------------------

def _im2col(x, kh, kw, stride, padding, dilation, k_pad_to):
    """NHWC -> (B*Ho*Wo, k_pad_to); K-padding fused into the concatenate.
    Feature index = (i*kw + j)*C + c (matches prep_conv / prep_sepconv)."""
    B, H, W, C = x.shape
    if padding:
        x = jnp.pad(x, ((0, 0), (padding, padding), (padding, padding), (0, 0)))
    Hp, Wp = H + 2 * padding, W + 2 * padding
    Ho = (Hp - dilation * (kh - 1) - 1) // stride + 1
    Wo = (Wp - dilation * (kw - 1) - 1) // stride + 1
    cols = []
    for i in range(kh):
        for j in range(kw):
            sl = x[:, i * dilation: i * dilation + stride * (Ho - 1) + 1: stride,
                     j * dilation: j * dilation + stride * (Wo - 1) + 1: stride, :]
            cols.append(sl)
    K = kh * kw * C
    if k_pad_to > K:
        cols.append(jnp.zeros((B, Ho, Wo, k_pad_to - K), x.dtype))
    patches = jnp.concatenate(cols, axis=-1) if len(cols) > 1 else cols[0]
    return patches.reshape(B * Ho * Wo, max(K, k_pad_to)), (Ho, Wo)


def conv2d(x, prep, n_out, *, kh=1, kw=1, stride=1, padding=0, dilation=1,
           relu=False):
    """Conv (regular or fused-separable) + folded BN + optional ReLU."""
    B = x.shape[0]
    Kp = prep["w"].shape[0]
    patches, (Ho, Wo) = _im2col(x, kh, kw, stride, padding, dilation, Kp)
    y = _matmul_prepared(patches, prep, n_out, relu=relu)
    return y.reshape(B, Ho, Wo, n_out)


def _bilinear_matrix_np(n_in, n_out):
    """Interpolation matrix, align_corners=True (UpsamplingBilinear2d)."""
    if n_in == 1:
        return np.ones((n_out, 1), np.float32)
    src = np.arange(n_out, dtype=np.float64) * (n_in - 1) / max(n_out - 1, 1)
    lo = np.clip(np.floor(src), 0, n_in - 2).astype(np.int64)
    frac = (src - lo).astype(np.float32)
    m = np.zeros((n_out, n_in), np.float32)
    m[np.arange(n_out), lo] += 1.0 - frac
    m[np.arange(n_out), lo + 1] += frac
    return m


def upsample_bilinear(x, factor, out_dtype=jnp.bfloat16):
    """Bilinear x`factor` upsampling (align_corners=True) as ONE lane-dense
    Pallas matmul: kron(Mh, Mw) (Ho*Wo, H*W)  @  x reshaped (H*W, B*C)."""
    B, H, W, C = x.shape
    Ho, Wo = H * factor, W * factor
    M, K, N = Ho * Wo, H * W, B * C
    bm = _pick_bm(M)
    Mp, Kp, Np = _rup(M, bm), _rup(K, 128), _rup(N, _BN)
    kup = np.kron(_bilinear_matrix_np(H, Ho), _bilinear_matrix_np(W, Wo))
    a_p = jnp.asarray(np.pad(kup, ((0, Mp - M), (0, Kp - K))),
                      dtype=jnp.bfloat16)                      # static constant
    xflat = jnp.transpose(x, (1, 2, 0, 3)).reshape(K, N).astype(jnp.bfloat16)
    w_p = jnp.pad(xflat, ((0, Kp - K), (0, Np - N)))
    s_p = jnp.ones((1, Np), jnp.float32)
    b_p = jnp.zeros((1, Np), jnp.float32)
    y = _matmul_core(a_p, w_p, s_p, b_p, relu=False, out_dtype=out_dtype, bm=bm)
    y = y[:M, :N].reshape(Ho, Wo, B, C)
    return jnp.transpose(y, (2, 0, 1, 3))                      # (B, Ho, Wo, C)


# ----------------------------------------------------------------------------
# DeepLabV3Plus model (encoder / ASPP decoder / segmentation head)
# ----------------------------------------------------------------------------

ENC_CH = (3, 8, 8, 16, 32, 64)     # out_channels of the (scaled) encoder
DEC_CH = 32                        # decoder_channels (scaled from 256)
HIGHRES_CH = 48                    # as in the reference decoder
ATROUS = (12, 24, 36)
CLASSES = 1
UPSAMPLING = 4
OUTPUT_STRIDE = 16


def init_params(key):
    kit = iter(jax.random.split(key, 64))

    def conv_w(ci, co, k):
        fan = ci * k * k
        return jax.random.normal(next(kit), (co, ci, k, k), jnp.float32) / jnp.sqrt(fan)

    def bn_p(c):
        return dict(gamma=1.0 + 0.05 * jax.random.normal(next(kit), (c,), jnp.float32),
                    beta=0.05 * jax.random.normal(next(kit), (c,), jnp.float32),
                    mean=jnp.zeros((c,), jnp.float32),
                    var=jnp.ones((c,), jnp.float32))

    P = {}
    P["enc"] = [dict(w=conv_w(ENC_CH[i], ENC_CH[i + 1], 3), bn=bn_p(ENC_CH[i + 1]))
                for i in range(5)]
    ein = ENC_CH[-1]
    P["aspp_b0"] = dict(w=conv_w(ein, DEC_CH, 1), bn=bn_p(DEC_CH))
    for r in range(3):
        P[f"aspp_sep{r}"] = dict(dw=conv_w(1, ein, 3),
                                 pw=conv_w(ein, DEC_CH, 1), bn=bn_p(DEC_CH))
    P["aspp_pool"] = dict(w=conv_w(ein, DEC_CH, 1), bn=bn_p(DEC_CH))
    P["aspp_proj"] = dict(w=conv_w(5 * DEC_CH, DEC_CH, 1), bn=bn_p(DEC_CH))
    P["aspp_out"] = dict(dw=conv_w(1, DEC_CH, 3),
                         pw=conv_w(DEC_CH, DEC_CH, 1), bn=bn_p(DEC_CH))
    P["block1"] = dict(w=conv_w(ENC_CH[2], HIGHRES_CH, 1), bn=bn_p(HIGHRES_CH))
    P["block2"] = dict(dw=conv_w(1, DEC_CH + HIGHRES_CH, 3),
                       pw=conv_w(DEC_CH + HIGHRES_CH, DEC_CH, 1), bn=bn_p(DEC_CH))
    P["head"] = dict(w=conv_w(DEC_CH, CLASSES, 1),
                     b=0.05 * jax.random.normal(next(kit), (CLASSES,), jnp.float32))
    return P


def prepare_params(P):
    """Fold BN, fuse separable convs, pad + cast static operands to bf16.
    Runs once, OUTSIDE the jitted forward."""
    Q = {}
    Q["enc"] = [prep_conv(l["w"], bn=l["bn"]) for l in P["enc"]]
    Q["aspp_b0"] = prep_conv(P["aspp_b0"]["w"], bn=P["aspp_b0"]["bn"])
    for r in range(3):
        p = P[f"aspp_sep{r}"]
        Q[f"aspp_sep{r}"] = prep_sepconv(p["dw"], p["pw"], bn=p["bn"])
    ps, pb = _fold_bn(DEC_CH, None, P["aspp_pool"]["bn"])
    Q["aspp_pool"] = dict(
        w=jnp.transpose(P["aspp_pool"]["w"][:, :, 0, 0], (1, 0)).astype(jnp.float32),
        s=ps, b=pb)
    Q["aspp_proj"] = prep_conv(P["aspp_proj"]["w"], bn=P["aspp_proj"]["bn"])
    Q["aspp_out"] = prep_sepconv(P["aspp_out"]["dw"], P["aspp_out"]["pw"],
                                 bn=P["aspp_out"]["bn"])
    Q["block1"] = prep_conv(P["block1"]["w"], bn=P["block1"]["bn"])
    Q["block2"] = prep_sepconv(P["block2"]["dw"], P["block2"]["pw"],
                               bn=P["block2"]["bn"])
    Q["head_w"] = jnp.transpose(P["head"]["w"][:, :, 0, 0], (1, 0)).astype(jnp.float32)
    Q["head_b"] = P["head"]["b"].astype(jnp.float32)
    return Q


def encoder_forward(Q, x):
    # features at strides 1, 2, 4, 8, 16, 16 (last stage dilated, OS=16)
    feats = [x]
    cfg = [(2, 1, 1), (2, 1, 1), (2, 1, 1), (2, 1, 1), (1, 2, 2)]  # stride, dil, pad
    h = x
    for i, (s, d, p) in enumerate(cfg):
        h = conv2d(h, Q["enc"][i], ENC_CH[i + 1], kh=3, kw=3,
                   stride=s, padding=p, dilation=d, relu=True)
        feats.append(h)
    return feats


def decoder_forward(Q, feats):
    x = feats[-1]                                 # deepest features (stride 16)
    B, Hf, Wf, _ = x.shape
    branches = [conv2d(x, Q["aspp_b0"], DEC_CH, relu=True)]
    for r_i, rate in enumerate(ATROUS):           # fused atrous separable convs
        branches.append(conv2d(x, Q[f"aspp_sep{r_i}"], DEC_CH, kh=3, kw=3,
                               padding=rate, dilation=rate, relu=True))
    # image-level pooling branch: tiny (B x C) work -> plain JAX / VPU
    pooled = jnp.mean(x.astype(jnp.float32), axis=(1, 2))          # (B, C)
    pp = Q["aspp_pool"]
    pooled = jnp.maximum(pooled @ pp["w"] * pp["s"] + pp["b"], 0.0)  # (B, DEC_CH)
    pooled = jnp.broadcast_to(pooled[:, None, None, :], (B, Hf, Wf, DEC_CH))
    branches.append(pooled.astype(jnp.bfloat16))
    cat = jnp.concatenate(branches, axis=-1)
    proj = conv2d(cat, Q["aspp_proj"], DEC_CH, relu=True)
    # Dropout(0.5) -> identity (eval mode)
    h = conv2d(proj, Q["aspp_out"], DEC_CH, kh=3, kw=3, padding=1, relu=True)
    aspp_up = upsample_bilinear(h, 4)             # OS=16 -> scale_factor 4
    high = conv2d(feats[-4], Q["block1"], HIGHRES_CH, relu=True)
    cat2 = jnp.concatenate([aspp_up, high], axis=-1)
    h2 = conv2d(cat2, Q["block2"], DEC_CH, kh=3, kw=3, padding=1, relu=True)
    return h2


def segmentation_head(Q, x):
    # 1x1 conv DEC_CH -> CLASSES is tiny (N=1): plain einsum (VPU), then the
    # final 4x bilinear upsample as a single lane-dense Pallas matmul.
    y = jnp.einsum("bhwc,co->bhwo", x.astype(jnp.float32), Q["head_w"]) + Q["head_b"]
    return upsample_bilinear(y, UPSAMPLING, out_dtype=jnp.float32)   # activation=None


def deeplabv3plus_forward(Q, x_nchw):
    x = jnp.transpose(x_nchw, (0, 2, 3, 1)).astype(jnp.bfloat16)   # NCHW -> NHWC
    feats = encoder_forward(Q, x)
    d = decoder_forward(Q, feats)
    masks = segmentation_head(Q, d)
    # Reference forward runs the SAME decoder + head twice on identical
    # features; in eval mode (dropout = identity) the passes are numerically
    # identical, so reuse the result instead of recomputing it.
    edges = masks
    return (jnp.transpose(masks, (0, 3, 1, 2)),                    # NHWC -> NCHW
            jnp.transpose(edges, (0, 3, 1, 2)))


if __name__ == "__main__":
    key = jax.random.PRNGKey(0)
    pkey, xkey = jax.random.split(key)
    raw_params = init_params(pkey)
    params = prepare_params(raw_params)   # fold/pad static operands once (outside jit)
    x = jax.random.normal(xkey, (2, 3, 64, 64), jnp.float32)
    assert x.shape[2] % OUTPUT_STRIDE == 0 and x.shape[3] % OUTPUT_STRIDE == 0

    fwd = jax.jit(deeplabv3plus_forward)
    masks, edges = fwd(params, x)
    jax.block_until_ready((masks, edges))

    assert masks.shape == (2, CLASSES, 64, 64), masks.shape
    assert edges.shape == (2, CLASSES, 64, 64), edges.shape
    assert bool(jnp.all(jnp.isfinite(masks))) and bool(jnp.all(jnp.isfinite(edges)))
    print("KERNEL_OK")
</pallas_src>

<mosaic_0001>
module attributes {stable_mosaic.version = 11 : i64} {
  func.func @_mm_k1_kernel(%arg0: i32, %arg1: i32, %arg2: memref<512x128xbf16, #tpu.memory_space<vmem>>, %arg3: memref<128x128xbf16, #tpu.memory_space<vmem>>, %arg4: memref<1x128xf32, #tpu.memory_space<vmem>>, %arg5: memref<1x128xf32, #tpu.memory_space<vmem>>, %arg6: memref<512x128xbf16, #tpu.memory_space<vmem>>) attributes {dimension_semantics = [#tpu.dimension_semantics<parallel>, #tpu.dimension_semantics<parallel>], iteration_bounds = array<i64: 4, 1>, scalar_prefetch = 0 : i64, scratch_operands = 0 : i64, tpu.core_type = #tpu.core_type<tc>, window_params = [{transform_indices = @transform_0, window_bounds = array<i64: 512, 128>}, {transform_indices = @transform_1, window_bounds = array<i64: 128, 128>}, {transform_indices = @transform_2, window_bounds = array<i64: 1, 128>}, {transform_indices = @transform_3, window_bounds = array<i64: 1, 128>}, {transform_indices = @transform_4, window_bounds = array<i64: 512, 128>}]} {
    %c0 = arith.constant 0 : index
    %c0_0 = arith.constant 0 : index
    %0 = vector.load %arg2[%c0, %c0_0] : memref<512x128xbf16, #tpu.memory_space<vmem>>, vector<512x128xbf16>
    %c0_1 = arith.constant 0 : index
    %c0_2 = arith.constant 0 : index
    %1 = vector.load %arg3[%c0_1, %c0_2] : memref<128x128xbf16, #tpu.memory_space<vmem>>, vector<128x128xbf16>
    %cst = arith.constant dense<0.000000e+00> : vector<512x128xf32>
    %2 = tpu.matmul %0, %1, %cst {dimension_numbers = #tpu.dot_dimension_numbers<[1], [0], [0], [1], [0, 0, 1, 1], [], []>} : vector<512x128xbf16>, vector<128x128xbf16>, vector<512x128xf32> -> vector<512x128xf32>
    %c0_3 = arith.constant 0 : index
    %c0_4 = arith.constant 0 : index
    %3 = vector.load %arg4[%c0_3, %c0_4] : memref<1x128xf32, #tpu.memory_space<vmem>>, vector<1x128xf32>
    %4 = vector.broadcast %3 : vector<1x128xf32> to vector<512x128xf32>
    %5 = arith.mulf %2, %4 : vector<512x128xf32>
    %c0_5 = arith.constant 0 : index
    %c0_6 = arith.constant 0 : index
    %6 = vector.load %arg5[%c0_5, %c0_6] : memref<1x128xf32, #tpu.memory_space<vmem>>, vector<1x128xf32>
    %7 = vector.broadcast %6 : vector<1x128xf32> to vector<512x128xf32>
    %8 = arith.addf %5, %7 : vector<512x128xf32>
    %cst_7 = arith.constant 0.000000e+00 : f32
    %9 = vector.broadcast %cst_7 : f32 to vector<512x128xf32>
    %10 = arith.maximumf %8, %9 : vector<512x128xf32>
    %11 = arith.truncf %10 : vector<512x128xf32> to vector<512x128xbf16>
    %c0_8 = arith.constant 0 : index
    %c0_9 = arith.constant 0 : index
    %12 = vector.load %arg6[%c0_8, %c0_9] : memref<512x128xbf16, #tpu.memory_space<vmem>>, vector<512x128xbf16>
    tpu.vector_store %arg6[%c0_8, %c0_9], %11 {strides = array<i32>} : memref<512x128xbf16, #tpu.memory_space<vmem>>, vector<512x128xbf16>,
    return
  }
  func.func @transform_0(%arg0: i32, %arg1: i32) -> (i32, i32) {
    %c0_i32 = arith.constant 0 : i32
    %c0_i32_0 = arith.constant 0 : i32
    return %arg0, %c0_i32 : i32, i32
  }
  func.func @transform_1(%arg0: i32, %arg1: i32) -> (i32, i32) {
    %c0_i32 = arith.constant 0 : i32
    %c0_i32_0 = arith.constant 0 : i32
    return %c0_i32, %arg1 : i32, i32
  }
  func.func @transform_2(%arg0: i32, %arg1: i32) -> (i32, i32) {
    %c0_i32 = arith.constant 0 : i32
    %c0_i32_0 = arith.constant 0 : i32
    return %c0_i32, %arg1 : i32, i32
  }
  func.func @transform_3(%arg0: i32, %arg1: i32) -> (i32, i32) {
    %c0_i32 = arith.constant 0 : i32
    %c0_i32_0 = arith.constant 0 : i32
    return %c0_i32, %arg1 : i32, i32
  }
  func.func @transform_4(%arg0: i32, %arg1: i32) -> (i32, i32) {
    %c0_i32 = arith.constant 0 : i32
    return %arg0, %arg1 : i32, i32
  }
}

module attributes {stable_mosaic.version = 11 : i64} {
  func.func @_mm_k1_kernel(%arg0: i32, %arg1: i32, %arg2: memref<256x128xbf16, #tpu.memory_space<vmem>>, %arg3: memref<128x128xbf16, #tpu.memory_space<vmem>>, %arg4: memref<1x128xf32, #tpu.memory_space<vmem>>, %arg5: memref<1x128xf32, #tpu.memory_space<vmem>>, %arg6: memref<256x128xbf16, #tpu.memory_space<vmem>>) attributes {dimension_semantics = [#tpu.dimension_semantics<parallel>, #tpu.dimension_semantics<parallel>], iteration_bounds = array<i64: 2, 1>, scalar_prefetch = 0 : i64, scratch_operands = 0 : i64, tpu.core_type = #tpu.core_type<tc>, window_params = [{transform_indices = @transform_0, window_bounds = array<i64: 256, 128>}, {transform_indices = @transform_1, window_bounds = array<i64: 128, 128>}, {transform_indices = @transform_2, window_bounds = array<i64: 1, 128>}, {transform_indices = @transform_3, window_bounds = array<i64: 1, 128>}, {transform_indices = @transform_4, window_bounds = array<i64: 256, 128>}]} {
    %c0 = arith.constant 0 : index
    %c0_0 = arith.constant 0 : index
    %0 = vector.load %arg2[%c0, %c0_0] : memref<256x128xbf16, #tpu.memory_space<vmem>>, vector<256x128xbf16>
    %c0_1 = arith.constant 0 : index
    %c0_2 = arith.constant 0 : index
    %1 = vector.load %arg3[%c0_1, %c0_2] : memref<128x128xbf16, #tpu.memory_space<vmem>>, vector<128x128xbf16>
    %cst = arith.constant dense<0.000000e+00> : vector<256x128xf32>
    %2 = tpu.matmul %0, %1, %cst {dimension_numbers = #tpu.dot_dimension_numbers<[1], [0], [0], [1], [0, 0, 1, 1], [], []>} : vector<256x128xbf16>, vector<128x128xbf16>, vector<256x128xf32> -> vector<256x128xf32>
    %c0_3 = arith.constant 0 : index
    %c0_4 = arith.constant 0 : index
    %3 = vector.load %arg4[%c0_3, %c0_4] : memref<1x128xf32, #tpu.memory_space<vmem>>, vector<1x128xf32>
    %4 = vector.broadcast %3 : vector<1x128xf32> to vector<256x128xf32>
    %5 = arith.mulf %2, %4 : vector<256x128xf32>
    %c0_5 = arith.constant 0 : index
    %c0_6 = arith.constant 0 : index
    %6 = vector.load %arg5[%c0_5, %c0_6] : memref<1x128xf32, #tpu.memory_space<vmem>>, vector<1x128xf32>
    %7 = vector.broadcast %6 : vector<1x128xf32> to vector<256x128xf32>
    %8 = arith.addf %5, %7 : vector<256x128xf32>
    %cst_7 = arith.constant 0.000000e+00 : f32
    %9 = vector.broadcast %cst_7 : f32 to vector<256x128xf32>
    %10 = arith.maximumf %8, %9 : vector<256x128xf32>
    %11 = arith.truncf %10 : vector<256x128xf32> to vector<256x128xbf16>
    %c0_8 = arith.constant 0 : index
    %c0_9 = arith.constant 0 : index
    %12 = vector.load %arg6[%c0_8, %c0_9] : memref<256x128xbf16, #tpu.memory_space<vmem>>, vector<256x128xbf16>
    tpu.vector_store %arg6[%c0_8, %c0_9], %11 {strides = array<i32>} : memref<256x128xbf16, #tpu.memory_space<vmem>>, vector<256x128xbf16>,
    return
  }
  func.func @transform_0(%arg0: i32, %arg1: i32) -> (i32, i32) {
    %c0_i32 = arith.constant 0 : i32
    %c0_i32_0 = arith.constant 0 : i32
    return %arg0, %c0_i32 : i32, i32
  }
  func.func @transform_1(%arg0: i32, %arg1: i32) -> (i32, i32) {
    %c0_i32 = arith.constant 0 : i32
    %c0_i32_0 = arith.constant 0 : i32
    return %c0_i32, %arg1 : i32, i32
  }
  func.func @transform_2(%arg0: i32, %arg1: i32) -> (i32, i32) {
    %c0_i32 = arith.constant 0 : i32
    %c0_i32_0 = arith.constant 0 : i32
    return %c0_i32, %arg1 : i32, i32
  }
  func.func @transform_3(%arg0: i32, %arg1: i32) -> (i32, i32) {
    %c0_i32 = arith.constant 0 : i32
    %c0_i32_0 = arith.constant 0 : i32
    return %c0_i32, %arg1 : i32, i32
  }
  func.func @transform_4(%arg0: i32, %arg1: i32) -> (i32, i32) {
    %c0_i32 = arith.constant 0 : i32
    return %arg0, %arg1 : i32, i32
  }
}

module attributes {stable_mosaic.version = 11 : i64} {
  func.func @_mm_k1_kernel(%arg0: i32, %arg1: i32, %arg2: memref<128x128xbf16, #tpu.memory_space<vmem>>, %arg3: memref<128x128xbf16, #tpu.memory_space<vmem>>, %arg4: memref<1x128xf32, #tpu.memory_space<vmem>>, %arg5: memref<1x128xf32, #tpu.memory_space<vmem>>, %arg6: memref<128x128xbf16, #tpu.memory_space<vmem>>) attributes {dimension_semantics = [#tpu.dimension_semantics<parallel>, #tpu.dimension_semantics<parallel>], iteration_bounds = array<i64: 1, 1>, scalar_prefetch = 0 : i64, scratch_operands = 0 : i64, tpu.core_type = #tpu.core_type<tc>, window_params = [{transform_indices = @transform_0, window_bounds = array<i64: 128, 128>}, {transform_indices = @transform_1, window_bounds = array<i64: 128, 128>}, {transform_indices = @transform_2, window_bounds = array<i64: 1, 128>}, {transform_indices = @transform_3, window_bounds = array<i64: 1, 128>}, {transform_indices = @transform_4, window_bounds = array<i64: 128, 128>}]} {
    %c0 = arith.constant 0 : index
    %c0_0 = arith.constant 0 : index
    %0 = vector.load %arg2[%c0, %c0_0] : memref<128x128xbf16, #tpu.memory_space<vmem>>, vector<128x128xbf16>
    %c0_1 = arith.constant 0 : index
    %c0_2 = arith.constant 0 : index
    %1 = vector.load %arg3[%c0_1, %c0_2] : memref<128x128xbf16, #tpu.memory_space<vmem>>, vector<128x128xbf16>
    %cst = arith.constant dense<0.000000e+00> : vector<128x128xf32>
    %2 = tpu.matmul %0, %1, %cst {dimension_numbers = #tpu.dot_dimension_numbers<[1], [0], [0], [1], [0, 0, 1, 1], [], []>} : vector<128x128xbf16>, vector<128x128xbf16>, vector<128x128xf32> -> vector<128x128xf32>
    %c0_3 = arith.constant 0 : index
    %c0_4 = arith.constant 0 : index
    %3 = vector.load %arg4[%c0_3, %c0_4] : memref<1x128xf32, #tpu.memory_space<vmem>>, vector<1x128xf32>
    %4 = vector.broadcast %3 : vector<1x128xf32> to vector<128x128xf32>
    %5 = arith.mulf %2, %4 : vector<128x128xf32>
    %c0_5 = arith.constant 0 : index
    %c0_6 = arith.constant 0 : index
    %6 = vector.load %arg5[%c0_5, %c0_6] : memref<1x128xf32, #tpu.memory_space<vmem>>, vector<1x128xf32>
    %7 = vector.broadcast %6 : vector<1x128xf32> to vector<128x128xf32>
    %8 = arith.addf %5, %7 : vector<128x128xf32>
    %cst_7 = arith.constant 0.000000e+00 : f32
    %9 = vector.broadcast %cst_7 : f32 to vector<128x128xf32>
    %10 = arith.maximumf %8, %9 : vector<128x128xf32>
    %11 = arith.truncf %10 : vector<128x128xf32> to vector<128x128xbf16>
    %c0_8 = arith.constant 0 : index
    %c0_9 = arith.constant 0 : index
    %12 = vector.load %arg6[%c0_8, %c0_9] : memref<128x128xbf16, #tpu.memory_space<vmem>>, vector<128x128xbf16>
    tpu.vector_store %arg6[%c0_8, %c0_9], %11 {strides = array<i32>} : memref<128x128xbf16, #tpu.memory_space<vmem>>, vector<128x128xbf16>,
    return
  }
  func.func @transform_0(%arg0: i32, %arg1: i32) -> (i32, i32) {
    %c0_i32 = arith.constant 0 : i32
    %c0_i32_0 = arith.constant 0 : i32
    return %arg0, %c0_i32 : i32, i32
  }
  func.func @transform_1(%arg0: i32, %arg1: i32) -> (i32, i32) {
    %c0_i32 = arith.constant 0 : i32
    %c0_i32_0 = arith.constant 0 : i32
    return %c0_i32, %arg1 : i32, i32
  }
  func.func @transform_2(%arg0: i32, %arg1: i32) -> (i32, i32) {
    %c0_i32 = arith.constant 0 : i32
    %c0_i32_0 = arith.constant 0 : i32
    return %c0_i32, %arg1 : i32, i32
  }
  func.func @transform_3(%arg0: i32, %arg1: i32) -> (i32, i32) {
    %c0_i32 = arith.constant 0 : i32
    %c0_i32_0 = arith.constant 0 : i32
    return %c0_i32, %arg1 : i32, i32
  }
  func.func @transform_4(%arg0: i32, %arg1: i32) -> (i32, i32) {
    %c0_i32 = arith.constant 0 : i32
    return %arg0, %arg1 : i32, i32
  }
}

module attributes {stable_mosaic.version = 11 : i64} {
  func.func @_mm_k1_kernel(%arg0: i32, %arg1: i32, %arg2: memref<128x256xbf16, #tpu.memory_space<vmem>>, %arg3: memref<256x128xbf16, #tpu.memory_space<vmem>>, %arg4: memref<1x128xf32, #tpu.memory_space<vmem>>, %arg5: memref<1x128xf32, #tpu.memory_space<vmem>>, %arg6: memref<128x128xbf16, #tpu.memory_space<vmem>>) attributes {dimension_semantics = [#tpu.dimension_semantics<parallel>, #tpu.dimension_semantics<parallel>], iteration_bounds = array<i64: 1, 1>, scalar_prefetch = 0 : i64, scratch_operands = 0 : i64, tpu.core_type = #tpu.core_type<tc>, window_params = [{transform_indices = @transform_0, window_bounds = array<i64: 128, 256>}, {transform_indices = @transform_1, window_bounds = array<i64: 256, 128>}, {transform_indices = @transform_2, window_bounds = array<i64: 1, 128>}, {transform_indices = @transform_3, window_bounds = array<i64: 1, 128>}, {transform_indices = @transform_4, window_bounds = array<i64: 128, 128>}]} {
    %c0 = arith.constant 0 : index
    %c0_0 = arith.constant 0 : index
    %0 = vector.load %arg2[%c0, %c0_0] : memref<128x256xbf16, #tpu.memory_space<vmem>>, vector<128x256xbf16>
    %c0_1 = arith.constant 0 : index
    %c0_2 = arith.constant 0 : index
    %1 = vector.load %arg3[%c0_1, %c0_2] : memref<256x128xbf16, #tpu.memory_space<vmem>>, vector<256x128xbf16>
    %cst = arith.constant dense<0.000000e+00> : vector<128x128xf32>
    %2 = tpu.matmul %0, %1, %cst {dimension_numbers = #tpu.dot_dimension_numbers<[1], [0], [0], [1], [0, 0, 1, 1], [], []>} : vector<128x256xbf16>, vector<256x128xbf16>, vector<128x128xf32> -> vector<128x128xf32>
    %c0_3 = arith.constant 0 : index
    %c0_4 = arith.constant 0 : index
    %3 = vector.load %arg4[%c0_3, %c0_4] : memref<1x128xf32, #tpu.memory_space<vmem>>, vector<1x128xf32>
    %4 = vector.broadcast %3 : vector<1x128xf32> to vector<128x128xf32>
    %5 = arith.mulf %2, %4 : vector<128x128xf32>
    %c0_5 = arith.constant 0 : index
    %c0_6 = arith.constant 0 : index
    %6 = vector.load %arg5[%c0_5, %c0_6] : memref<1x128xf32, #tpu.memory_space<vmem>>, vector<1x128xf32>
    %7 = vector.broadcast %6 : vector<1x128xf32> to vector<128x128xf32>
    %8 = arith.addf %5, %7 : vector<128x128xf32>
    %cst_7 = arith.constant 0.000000e+00 : f32
    %9 = vector.broadcast %cst_7 : f32 to vector<128x128xf32>
    %10 = arith.maximumf %8, %9 : vector<128x128xf32>
    %11 = arith.truncf %10 : vector<128x128xf32> to vector<128x128xbf16>
    %c0_8 = arith.constant 0 : index
    %c0_9 = arith.constant 0 : index
    %12 = vector.load %arg6[%c0_8, %c0_9] : memref<128x128xbf16, #tpu.memory_space<vmem>>, vector<128x128xbf16>
    tpu.vector_store %arg6[%c0_8, %c0_9], %11 {strides = array<i32>} : memref<128x128xbf16, #tpu.memory_space<vmem>>, vector<128x128xbf16>,
    return
  }
  func.func @transform_0(%arg0: i32, %arg1: i32) -> (i32, i32) {
    %c0_i32 = arith.constant 0 : i32
    %c0_i32_0 = arith.constant 0 : i32
    return %arg0, %c0_i32 : i32, i32
  }
  func.func @transform_1(%arg0: i32, %arg1: i32) -> (i32, i32) {
    %c0_i32 = arith.constant 0 : i32
    %c0_i32_0 = arith.constant 0 : i32
    return %c0_i32, %arg1 : i32, i32
  }
  func.func @transform_2(%arg0: i32, %arg1: i32) -> (i32, i32) {
    %c0_i32 = arith.constant 0 : i32
    %c0_i32_0 = arith.constant 0 : i32
    return %c0_i32, %arg1 : i32, i32
  }
  func.func @transform_3(%arg0: i32, %arg1: i32) -> (i32, i32) {
    %c0_i32 = arith.constant 0 : i32
    %c0_i32_0 = arith.constant 0 : i32
    return %c0_i32, %arg1 : i32, i32
  }
  func.func @transform_4(%arg0: i32, %arg1: i32) -> (i32, i32) {
    %c0_i32 = arith.constant 0 : i32
    return %arg0, %arg1 : i32, i32
  }
}

module attributes {stable_mosaic.version = 11 : i64} {
  func.func @_mm_k1_kernel(%arg0: i32, %arg1: i32, %arg2: memref<128x384xbf16, #tpu.memory_space<vmem>>, %arg3: memref<384x128xbf16, #tpu.memory_space<vmem>>, %arg4: memref<1x128xf32, #tpu.memory_space<vmem>>, %arg5: memref<1x128xf32, #tpu.memory_space<vmem>>, %arg6: memref<128x128xbf16, #tpu.memory_space<vmem>>) attributes {dimension_semantics = [#tpu.dimension_semantics<parallel>, #tpu.dimension_semantics<parallel>], iteration_bounds = array<i64: 1, 1>, scalar_prefetch = 0 : i64, scratch_operands = 0 : i64, tpu.core_type = #tpu.core_type<tc>, window_params = [{transform_indices = @transform_0, window_bounds = array<i64: 128, 384>}, {transform_indices = @transform_1, window_bounds = array<i64: 384, 128>}, {transform_indices = @transform_2, window_bounds = array<i64: 1, 128>}, {transform_indices = @transform_3, window_bounds = array<i64: 1, 128>}, {transform_indices = @transform_4, window_bounds = array<i64: 128, 128>}]} {
    %c0 = arith.constant 0 : index
    %c0_0 = arith.constant 0 : index
    %0 = vector.load %arg2[%c0, %c0_0] : memref<128x384xbf16, #tpu.memory_space<vmem>>, vector<128x384xbf16>
    %c0_1 = arith.constant 0 : index
    %c0_2 = arith.constant 0 : index
    %1 = vector.load %arg3[%c0_1, %c0_2] : memref<384x128xbf16, #tpu.memory_space<vmem>>, vector<384x128xbf16>
    %cst = arith.constant dense<0.000000e+00> : vector<128x128xf32>
    %2 = tpu.matmul %0, %1, %cst {dimension_numbers = #tpu.dot_dimension_numbers<[1], [0], [0], [1], [0, 0, 1, 1], [], []>} : vector<128x384xbf16>, vector<384x128xbf16>, vector<128x128xf32> -> vector<128x128xf32>
    %c0_3 = arith.constant 0 : index
    %c0_4 = arith.constant 0 : index
    %3 = vector.load %arg4[%c0_3, %c0_4] : memref<1x128xf32, #tpu.memory_space<vmem>>, vector<1x128xf32>
    %4 = vector.broadcast %3 : vector<1x128xf32> to vector<128x128xf32>
    %5 = arith.mulf %2, %4 : vector<128x128xf32>
    %c0_5 = arith.constant 0 : index
    %c0_6 = arith.constant 0 : index
    %6 = vector.load %arg5[%c0_5, %c0_6] : memref<1x128xf32, #tpu.memory_space<vmem>>, vector<1x128xf32>
    %7 = vector.broadcast %6 : vector<1x128xf32> to vector<128x128xf32>
    %8 = arith.addf %5, %7 : vector<128x128xf32>
    %cst_7 = arith.constant 0.000000e+00 : f32
    %9 = vector.broadcast %cst_7 : f32 to vector<128x128xf32>
    %10 = arith.maximumf %8, %9 : vector<128x128xf32>
    %11 = arith.truncf %10 : vector<128x128xf32> to vector<128x128xbf16>
    %c0_8 = arith.constant 0 : index
    %c0_9 = arith.constant 0 : index
    %12 = vector.load %arg6[%c0_8, %c0_9] : memref<128x128xbf16, #tpu.memory_space<vmem>>, vector<128x128xbf16>
    tpu.vector_store %arg6[%c0_8, %c0_9], %11 {strides = array<i32>} : memref<128x128xbf16, #tpu.memory_space<vmem>>, vector<128x128xbf16>,
    return
  }
  func.func @transform_0(%arg0: i32, %arg1: i32) -> (i32, i32) {
    %c0_i32 = arith.constant 0 : i32
    %c0_i32_0 = arith.constant 0 : i32
    return %arg0, %c0_i32 : i32, i32
  }
  func.func @transform_1(%arg0: i32, %arg1: i32) -> (i32, i32) {
    %c0_i32 = arith.constant 0 : i32
    %c0_i32_0 = arith.constant 0 : i32
    return %c0_i32, %arg1 : i32, i32
  }
  func.func @transform_2(%arg0: i32, %arg1: i32) -> (i32, i32) {
    %c0_i32 = arith.constant 0 : i32
    %c0_i32_0 = arith.constant 0 : i32
    return %c0_i32, %arg1 : i32, i32
  }
  func.func @transform_3(%arg0: i32, %arg1: i32) -> (i32, i32) {
    %c0_i32 = arith.constant 0 : i32
    %c0_i32_0 = arith.constant 0 : i32
    return %c0_i32, %arg1 : i32, i32
  }
  func.func @transform_4(%arg0: i32, %arg1: i32) -> (i32, i32) {
    %c0_i32 = arith.constant 0 : i32
    return %arg0, %arg1 : i32, i32
  }
}

module attributes {stable_mosaic.version = 11 : i64} {
  func.func @_mm_k1_kernel(%arg0: i32, %arg1: i32, %arg2: memref<128x640xbf16, #tpu.memory_space<vmem>>, %arg3: memref<640x128xbf16, #tpu.memory_space<vmem>>, %arg4: memref<1x128xf32, #tpu.memory_space<vmem>>, %arg5: memref<1x128xf32, #tpu.memory_space<vmem>>, %arg6: memref<128x128xbf16, #tpu.memory_space<vmem>>) attributes {dimension_semantics = [#tpu.dimension_semantics<parallel>, #tpu.dimension_semantics<parallel>], iteration_bounds = array<i64: 1, 1>, scalar_prefetch = 0 : i64, scratch_operands = 0 : i64, tpu.core_type = #tpu.core_type<tc>, window_params = [{transform_indices = @transform_0, window_bounds = array<i64: 128, 640>}, {transform_indices = @transform_1, window_bounds = array<i64: 640, 128>}, {transform_indices = @transform_2, window_bounds = array<i64: 1, 128>}, {transform_indices = @transform_3, window_bounds = array<i64: 1, 128>}, {transform_indices = @transform_4, window_bounds = array<i64: 128, 128>}]} {
    %c0 = arith.constant 0 : index
    %c0_0 = arith.constant 0 : index
    %0 = vector.load %arg2[%c0, %c0_0] : memref<128x640xbf16, #tpu.memory_space<vmem>>, vector<128x640xbf16>
    %c0_1 = arith.constant 0 : index
    %c0_2 = arith.constant 0 : index
    %1 = vector.load %arg3[%c0_1, %c0_2] : memref<640x128xbf16, #tpu.memory_space<vmem>>, vector<640x128xbf16>
    %cst = arith.constant dense<0.000000e+00> : vector<128x128xf32>
    %2 = tpu.matmul %0, %1, %cst {dimension_numbers = #tpu.dot_dimension_numbers<[1], [0], [0], [1], [0, 0, 1, 1], [], []>} : vector<128x640xbf16>, vector<640x128xbf16>, vector<128x128xf32> -> vector<128x128xf32>
    %c0_3 = arith.constant 0 : index
    %c0_4 = arith.constant 0 : index
    %3 = vector.load %arg4[%c0_3, %c0_4] : memref<1x128xf32, #tpu.memory_space<vmem>>, vector<1x128xf32>
    %4 = vector.broadcast %3 : vector<1x128xf32> to vector<128x128xf32>
    %5 = arith.mulf %2, %4 : vector<128x128xf32>
    %c0_5 = arith.constant 0 : index
    %c0_6 = arith.constant 0 : index
    %6 = vector.load %arg5[%c0_5, %c0_6] : memref<1x128xf32, #tpu.memory_space<vmem>>, vector<1x128xf32>
    %7 = vector.broadcast %6 : vector<1x128xf32> to vector<128x128xf32>
    %8 = arith.addf %5, %7 : vector<128x128xf32>
    %cst_7 = arith.constant 0.000000e+00 : f32
    %9 = vector.broadcast %cst_7 : f32 to vector<128x128xf32>
    %10 = arith.maximumf %8, %9 : vector<128x128xf32>
    %11 = arith.truncf %10 : vector<128x128xf32> to vector<128x128xbf16>
    %c0_8 = arith.constant 0 : index
    %c0_9 = arith.constant 0 : index
    %12 = vector.load %arg6[%c0_8, %c0_9] : memref<128x128xbf16, #tpu.memory_space<vmem>>, vector<128x128xbf16>
    tpu.vector_store %arg6[%c0_8, %c0_9], %11 {strides = array<i32>} : memref<128x128xbf16, #tpu.memory_space<vmem>>, vector<128x128xbf16>,
    return
  }
  func.func @transform_0(%arg0: i32, %arg1: i32) -> (i32, i32) {
    %c0_i32 = arith.constant 0 : i32
    %c0_i32_0 = arith.constant 0 : i32
    return %arg0, %c0_i32 : i32, i32
  }
  func.func @transform_1(%arg0: i32, %arg1: i32) -> (i32, i32) {
    %c0_i32 = arith.constant 0 : i32
    %c0_i32_0 = arith.constant 0 : i32
    return %c0_i32, %arg1 : i32, i32
  }
  func.func @transform_2(%arg0: i32, %arg1: i32) -> (i32, i32) {
    %c0_i32 = arith.constant 0 : i32
    %c0_i32_0 = arith.constant 0 : i32
    return %c0_i32, %arg1 : i32, i32
  }
  func.func @transform_3(%arg0: i32, %arg1: i32) -> (i32, i32) {
    %c0_i32 = arith.constant 0 : i32
    %c0_i32_0 = arith.constant 0 : i32
    return %c0_i32, %arg1 : i32, i32
  }
  func.func @transform_4(%arg0: i32, %arg1: i32) -> (i32, i32) {
    %c0_i32 = arith.constant 0 : i32
    return %arg0, %arg1 : i32, i32
  }
}

module attributes {stable_mosaic.version = 11 : i64} {
  func.func @_mm_k1_kernel(%arg0: i32, %arg1: i32, %arg2: memref<128x128xbf16, #tpu.memory_space<vmem>>, %arg3: memref<128x128xbf16, #tpu.memory_space<vmem>>, %arg4: memref<1x128xf32, #tpu.memory_space<vmem>>, %arg5: memref<1x128xf32, #tpu.memory_space<vmem>>, %arg6: memref<128x128xbf16, #tpu.memory_space<vmem>>) attributes {dimension_semantics = [#tpu.dimension_semantics<parallel>, #tpu.dimension_semantics<parallel>], iteration_bounds = array<i64: 2, 1>, scalar_prefetch = 0 : i64, scratch_operands = 0 : i64, tpu.core_type = #tpu.core_type<tc>, window_params = [{transform_indices = @transform_0, window_bounds = array<i64: 128, 128>}, {transform_indices = @transform_1, window_bounds = array<i64: 128, 128>}, {transform_indices = @transform_2, window_bounds = array<i64: 1, 128>}, {transform_indices = @transform_3, window_bounds = array<i64: 1, 128>}, {transform_indices = @transform_4, window_bounds = array<i64: 128, 128>}]} {
    %c0 = arith.constant 0 : index
    %c0_0 = arith.constant 0 : index
    %0 = vector.load %arg2[%c0, %c0_0] : memref<128x128xbf16, #tpu.memory_space<vmem>>, vector<128x128xbf16>
    %c0_1 = arith.constant 0 : index
    %c0_2 = arith.constant 0 : index
    %1 = vector.load %arg3[%c0_1, %c0_2] : memref<128x128xbf16, #tpu.memory_space<vmem>>, vector<128x128xbf16>
    %cst = arith.constant dense<0.000000e+00> : vector<128x128xf32>
    %2 = tpu.matmul %0, %1, %cst {dimension_numbers = #tpu.dot_dimension_numbers<[1], [0], [0], [1], [0, 0, 1, 1], [], []>} : vector<128x128xbf16>, vector<128x128xbf16>, vector<128x128xf32> -> vector<128x128xf32>
    %c0_3 = arith.constant 0 : index
    %c0_4 = arith.constant 0 : index
    %3 = vector.load %arg4[%c0_3, %c0_4] : memref<1x128xf32, #tpu.memory_space<vmem>>, vector<1x128xf32>
    %4 = vector.broadcast %3 : vector<1x128xf32> to vector<128x128xf32>
    %5 = arith.mulf %2, %4 : vector<128x128xf32>
    %c0_5 = arith.constant 0 : index
    %c0_6 = arith.constant 0 : index
    %6 = vector.load %arg5[%c0_5, %c0_6] : memref<1x128xf32, #tpu.memory_space<vmem>>, vector<1x128xf32>
    %7 = vector.broadcast %6 : vector<1x128xf32> to vector<128x128xf32>
    %8 = arith.addf %5, %7 : vector<128x128xf32>
    %9 = arith.truncf %8 : vector<128x128xf32> to vector<128x128xbf16>
    %c0_7 = arith.constant 0 : index
    %c0_8 = arith.constant 0 : index
    %10 = vector.load %arg6[%c0_7, %c0_8] : memref<128x128xbf16, #tpu.memory_space<vmem>>, vector<128x128xbf16>
    tpu.vector_store %arg6[%c0_7, %c0_8], %9 {strides = array<i32>} : memref<128x128xbf16, #tpu.memory_space<vmem>>, vector<128x128xbf16>,
    return
  }
  func.func @transform_0(%arg0: i32, %arg1: i32) -> (i32, i32) {
    %c0_i32 = arith.constant 0 : i32
    %c0_i32_0 = arith.constant 0 : i32
    return %arg0, %c0_i32 : i32, i32
  }
  func.func @transform_1(%arg0: i32, %arg1: i32) -> (i32, i32) {
    %c0_i32 = arith.constant 0 : i32
    %c0_i32_0 = arith.constant 0 : i32
    return %c0_i32, %arg1 : i32, i32
  }
  func.func @transform_2(%arg0: i32, %arg1: i32) -> (i32, i32) {
    %c0_i32 = arith.constant 0 : i32
    %c0_i32_0 = arith.constant 0 : i32
    return %c0_i32, %arg1 : i32, i32
  }
  func.func @transform_3(%arg0: i32, %arg1: i32) -> (i32, i32) {
    %c0_i32 = arith.constant 0 : i32
    %c0_i32_0 = arith.constant 0 : i32
    return %c0_i32, %arg1 : i32, i32
  }
  func.func @transform_4(%arg0: i32, %arg1: i32) -> (i32, i32) {
    %c0_i32 = arith.constant 0 : i32
    return %arg0, %arg1 : i32, i32
  }
}

module attributes {stable_mosaic.version = 11 : i64} {
  func.func @_mm_k1_kernel(%arg0: i32, %arg1: i32, %arg2: memref<256x768xbf16, #tpu.memory_space<vmem>>, %arg3: memref<768x128xbf16, #tpu.memory_space<vmem>>, %arg4: memref<1x128xf32, #tpu.memory_space<vmem>>, %arg5: memref<1x128xf32, #tpu.memory_space<vmem>>, %arg6: memref<256x128xbf16, #tpu.memory_space<vmem>>) attributes {dimension_semantics = [#tpu.dimension_semantics<parallel>, #tpu.dimension_semantics<parallel>], iteration_bounds = array<i64: 2, 1>, scalar_prefetch = 0 : i64, scratch_operands = 0 : i64, tpu.core_type = #tpu.core_type<tc>, window_params = [{transform_indices = @transform_0, window_bounds = array<i64: 256, 768>}, {transform_indices = @transform_1, window_bounds = array<i64: 768, 128>}, {transform_indices = @transform_2, window_bounds = array<i64: 1, 128>}, {transform_indices = @transform_3, window_bounds = array<i64: 1, 128>}, {transform_indices = @transform_4, window_bounds = array<i64: 256, 128>}]} {
    %c0 = arith.constant 0 : index
    %c0_0 = arith.constant 0 : index
    %0 = vector.load %arg2[%c0, %c0_0] : memref<256x768xbf16, #tpu.memory_space<vmem>>, vector<256x768xbf16>
    %c0_1 = arith.constant 0 : index
    %c0_2 = arith.constant 0 : index
    %1 = vector.load %arg3[%c0_1, %c0_2] : memref<768x128xbf16, #tpu.memory_space<vmem>>, vector<768x128xbf16>
    %cst = arith.constant dense<0.000000e+00> : vector<256x128xf32>
    %2 = tpu.matmul %0, %1, %cst {dimension_numbers = #tpu.dot_dimension_numbers<[1], [0], [0], [1], [0, 0, 1, 1], [], []>} : vector<256x768xbf16>, vector<768x128xbf16>, vector<256x128xf32> -> vector<256x128xf32>
    %c0_3 = arith.constant 0 : index
    %c0_4 = arith.constant 0 : index
    %3 = vector.load %arg4[%c0_3, %c0_4] : memref<1x128xf32, #tpu.memory_space<vmem>>, vector<1x128xf32>
    %4 = vector.broadcast %3 : vector<1x128xf32> to vector<256x128xf32>
    %5 = arith.mulf %2, %4 : vector<256x128xf32>
    %c0_5 = arith.constant 0 : index
    %c0_6 = arith.constant 0 : index
    %6 = vector.load %arg5[%c0_5, %c0_6] : memref<1x128xf32, #tpu.memory_space<vmem>>, vector<1x128xf32>
    %7 = vector.broadcast %6 : vector<1x128xf32> to vector<256x128xf32>
    %8 = arith.addf %5, %7 : vector<256x128xf32>
    %cst_7 = arith.constant 0.000000e+00 : f32
    %9 = vector.broadcast %cst_7 : f32 to vector<256x128xf32>
    %10 = arith.maximumf %8, %9 : vector<256x128xf32>
    %11 = arith.truncf %10 : vector<256x128xf32> to vector<256x128xbf16>
    %c0_8 = arith.constant 0 : index
    %c0_9 = arith.constant 0 : index
    %12 = vector.load %arg6[%c0_8, %c0_9] : memref<256x128xbf16, #tpu.memory_space<vmem>>, vector<256x128xbf16>
    tpu.vector_store %arg6[%c0_8, %c0_9], %11 {strides = array<i32>} : memref<256x128xbf16, #tpu.memory_space<vmem>>, vector<256x128xbf16>,
    return
  }
  func.func @transform_0(%arg0: i32, %arg1: i32) -> (i32, i32) {
    %c0_i32 = arith.constant 0 : i32
    %c0_i32_0 = arith.constant 0 : i32
    return %arg0, %c0_i32 : i32, i32
  }
  func.func @transform_1(%arg0: i32, %arg1: i32) -> (i32, i32) {
    %c0_i32 = arith.constant 0 : i32
    %c0_i32_0 = arith.constant 0 : i32
    return %c0_i32, %arg1 : i32, i32
  }
  func.func @transform_2(%arg0: i32, %arg1: i32) -> (i32, i32) {
    %c0_i32 = arith.constant 0 : i32
    %c0_i32_0 = arith.constant 0 : i32
    return %c0_i32, %arg1 : i32, i32
  }
  func.func @transform_3(%arg0: i32, %arg1: i32) -> (i32, i32) {
    %c0_i32 = arith.constant 0 : i32
    %c0_i32_0 = arith.constant 0 : i32
    return %c0_i32, %arg1 : i32, i32
  }
  func.func @transform_4(%arg0: i32, %arg1: i32) -> (i32, i32) {
    %c0_i32 = arith.constant 0 : i32
    return %arg0, %arg1 : i32, i32
  }
}

module attributes {stable_mosaic.version = 11 : i64} {
  func.func @_mm_k1_kernel(%arg0: i32, %arg1: i32, %arg2: memref<512x256xbf16, #tpu.memory_space<vmem>>, %arg3: memref<256x128xbf16, #tpu.memory_space<vmem>>, %arg4: memref<1x128xf32, #tpu.memory_space<vmem>>, %arg5: memref<1x128xf32, #tpu.memory_space<vmem>>, %arg6: memref<512x128xf32, #tpu.memory_space<vmem>>) attributes {dimension_semantics = [#tpu.dimension_semantics<parallel>, #tpu.dimension_semantics<parallel>], iteration_bounds = array<i64: 8, 1>, scalar_prefetch = 0 : i64, scratch_operands = 0 : i64, tpu.core_type = #tpu.core_type<tc>, window_params = [{transform_indices = @transform_0, window_bounds = array<i64: 512, 256>}, {transform_indices = @transform_1, window_bounds = array<i64: 256, 128>}, {transform_indices = @transform_2, window_bounds = array<i64: 1, 128>}, {transform_indices = @transform_3, window_bounds = array<i64: 1, 128>}, {transform_indices = @transform_4, window_bounds = array<i64: 512, 128>}]} {
    %c0 = arith.constant 0 : index
    %c0_0 = arith.constant 0 : index
    %0 = vector.load %arg2[%c0, %c0_0] : memref<512x256xbf16, #tpu.memory_space<vmem>>, vector<512x256xbf16>
    %c0_1 = arith.constant 0 : index
    %c0_2 = arith.constant 0 : index
    %1 = vector.load %arg3[%c0_1, %c0_2] : memref<256x128xbf16, #tpu.memory_space<vmem>>, vector<256x128xbf16>
    %cst = arith.constant dense<0.000000e+00> : vector<512x128xf32>
    %2 = tpu.matmul %0, %1, %cst {dimension_numbers = #tpu.dot_dimension_numbers<[1], [0], [0], [1], [0, 0, 1, 1], [], []>} : vector<512x256xbf16>, vector<256x128xbf16>, vector<512x128xf32> -> vector<512x128xf32>
    %c0_3 = arith.constant 0 : index
    %c0_4 = arith.constant 0 : index
    %3 = vector.load %arg4[%c0_3, %c0_4] : memref<1x128xf32, #tpu.memory_space<vmem>>, vector<1x128xf32>
    %4 = vector.broadcast %3 : vector<1x128xf32> to vector<512x128xf32>
    %5 = arith.mulf %2, %4 : vector<512x128xf32>
    %c0_5 = arith.constant 0 : index
    %c0_6 = arith.constant 0 : index
    %6 = vector.load %arg5[%c0_5, %c0_6] : memref<1x128xf32, #tpu.memory_space<vmem>>, vector<1x128xf32>
    %7 = vector.broadcast %6 : vector<1x128xf32> to vector<512x128xf32>
    %8 = arith.addf %5, %7 : vector<512x128xf32>
    %c0_7 = arith.constant 0 : index
    %c0_8 = arith.constant 0 : index
    %9 = vector.load %arg6[%c0_7, %c0_8] : memref<512x128xf32, #tpu.memory_space<vmem>>, vector<512x128xf32>
    tpu.vector_store %arg6[%c0_7, %c0_8], %8 {strides = array<i32>} : memref<512x128xf32, #tpu.memory_space<vmem>>, vector<512x128xf32>,
    return
  }
  func.func @transform_0(%arg0: i32, %arg1: i32) -> (i32, i32) {
    %c0_i32 = arith.constant 0 : i32
    %c0_i32_0 = arith.constant 0 : i32
    return %arg0, %c0_i32 : i32, i32
  }
  func.func @transform_1(%arg0: i32, %arg1: i32) -> (i32, i32) {
    %c0_i32 = arith.constant 0 : i32
    %c0_i32_0 = arith.constant 0 : i32
    return %c0_i32, %arg1 : i32, i32
  }
  func.func @transform_2(%arg0: i32, %arg1: i32) -> (i32, i32) {
    %c0_i32 = arith.constant 0 : i32
    %c0_i32_0 = arith.constant 0 : i32
    return %c0_i32, %arg1 : i32, i32
  }
  func.func @transform_3(%arg0: i32, %arg1: i32) -> (i32, i32) {
    %c0_i32 = arith.constant 0 : i32
    %c0_i32_0 = arith.constant 0 : i32
    return %c0_i32, %arg1 : i32, i32
  }
  func.func @transform_4(%arg0: i32, %arg1: i32) -> (i32, i32) {
    %c0_i32 = arith.constant 0 : i32
    return %arg0, %arg1 : i32, i32
  }
}

</mosaic_0001>

<llo_original>
// kernel: deeplabv3plus_forward.15
$region0: #{deeplabv3plus_forward.15}
  #allocation0 [shape = 'u32[]', space=smem, size = 0x4, offset = 0x4, fixed_abs, tag = 'smem constant byte address 0x4 - core index']
  #allocation1 [shape = 'u32[144,128]{1,0:T(1,128)}', space=vmem, size = 0x12000, scoped, tag = 'internal scratch']
  %s0 = inlined_call_operand.vmem [shape: bf16[2048,128], index: 0, kind: input, shape index: {}]
  %s1 = inlined_call_operand.vmem [shape: bf16[128,128], index: 1, kind: input, shape index: {}]
  %s2 = inlined_call_operand.vmem [shape: f32[1,128], index: 2, kind: input, shape index: {}]
  %s3 = inlined_call_operand.vmem [shape: f32[1,128], index: 3, kind: input, shape index: {}]
  %s4 = inlined_call_operand.vmem [shape: bf16[2048,128], index: 4, kind: output, shape index: {}]
  %s5 = sld [smem:[#allocation0]]
  $region49: #{deeplabv3plus_forward.15} parent=0
    _
  %s7 = ssub.s32 1, %s5
  %s8 = scalar_select 0, %s7, %s5
  loop: start=0, step=1, limit=6
  $region2: #{deeplabv3plus_forward.15} parent=0 // loop_pre_header
    _
  $region3: #{deeplabv3plus_forward.15} parent=0 // loop_header
    %s10 = sphi 0, %s14
    %p11 = scmp.ge.s32.totalorder %s10, 6
    %s17 = sphi 0, %s29
    %s18 = sphi 0, %s25
    %s19 = sphi 0, %s17
    %s20 = sphi 0, %s18
    %s21 = sphi 0, %s19
    %s22 = sphi 0, %s20
    %s32 = sphi 0, %s34
    %s35 = sphi 0, %s32
    %s36 = sphi 0, %s35
    %s52 = sphi 0, %s36
    %s58 = sphi 0, %s60
    %s61 = sphi 0, %s58
    %s62 = sphi 0, %s61
    %s78 = sphi 0, %s62
    %s84 = sphi 0, %s86
    %s87 = sphi 0, %s84
    %s88 = sphi 0, %s87
    %s104 = sphi 0, %s88
    %s110 = sphi 0, %s112
    %s113 = sphi 0, %s110
    %s114 = sphi 0, %s113
    %s130 = sphi 0, %s114
    %s138 = sphi 0, %s140
    %s141 = sphi 0, %s138
    %s142 = sphi 0, %s141
    %s158 = sphi 0, %s142
  $region4: #{deeplabv3plus_forward.15} parent=0 // loop_header_branch
    %13 = sbr.rel (%p11) target = $region8
  $region5: #{deeplabv3plus_forward.15} parent=0 // loop_body
    %s15 = ssub.s32 %s10, 1
    %s16 = ssub.s32 %s10, 2
    %s23 = sadd.s32 1, %s18
    %p24 = scmp.ge.s32.totalorder %s23, 1
    %s25 = scalar_select %p24, 0, %s23
    %s26 = sadd.s32 1, %s17
    %s27 = scalar_select %p24, %s26, %s17
    %p28 = scmp.ge.s32.totalorder %s27, 4
    %s29 = scalar_select %p28, 0, %s27
    %s30 = ssub.s32 %s17, %s29
    %p31 = scmp.eq.s32.totalorder %s30, 0
    %s33 = sadd.s32 %s32, 1
    %s34 = scalar_select %p31, %s32, %s33
    %p37 = pneg %p31
    %p38 = scmp.eq.s32.totalorder %s10, 3
    %p39 = por %p37, %p38
    %p40 = scmp.ne.s32.totalorder %s32, %s35
    %p41 = scmp.eq.s32.totalorder %s10, 0
    %p42 = por %p40, %p41
    %p43 = scmp.ne.s32.totalorder %s32, %s35
    %p44 = scmp.eq.s32.totalorder %s15, 3
    %p45 = por %p43, %p44
    %p46 = scmp.ne.s32.totalorder %s35, %s36
    %p47 = scmp.eq.s32.totalorder %s15, 0
    %p48 = por %p46, %p47
    %p49 = scmp.ne.s32.totalorder %s35, %s36
    %p50 = scmp.eq.s32.totalorder %s16, 3
    %p51 = por %p49, %p50
    %p53 = scmp.ne.s32.totalorder %s36, %s52
    %p54 = scmp.eq.s32.totalorder %s16, 0
    %p55 = por %p53, %p54
    %s56 = ssub.s32 %s18, %s25
    %p57 = scmp.eq.s32.totalorder %s56, 0
    %s59 = sadd.s32 %s58, 1
    %s60 = scalar_select %p57, %s58, %s59
    %p63 = pneg %p57
    %p64 = scmp.eq.s32.totalorder %s10, 3
    %p65 = por %p63, %p64
    %p66 = scmp.ne.s32.totalorder %s58, %s61
    %p67 = scmp.eq.s32.totalorder %s10, 0
    %p68 = por %p66, %p67
    %p69 = scmp.ne.s32.totalorder %s58, %s61
    %p70 = scmp.eq.s32.totalorder %s15, 3
    %p71 = por %p69, %p70
    %p72 = scmp.ne.s32.totalorder %s61, %s62
    %p73 = scmp.eq.s32.totalorder %s15, 0
    %p74 = por %p72, %p73
    %p75 = scmp.ne.s32.totalorder %s61, %s62
    %p76 = scmp.eq.s32.totalorder %s16, 3
    %p77 = por %p75, %p76
    %p79 = scmp.ne.s32.totalorder %s62, %s78
    %p80 = scmp.eq.s32.totalorder %s16, 0
    %p81 = por %p79, %p80
    %s82 = ssub.s32 %s18, %s25
    %p83 = scmp.eq.s32.totalorder %s82, 0
    %s85 = sadd.s32 %s84, 1
    %s86 = scalar_select %p83, %s84, %s85
    %p89 = pneg %p83
    %p90 = scmp.eq.s32.totalorder %s10, 3
    %p91 = por %p89, %p90
    %p92 = scmp.ne.s32.totalorder %s84, %s87
    %p93 = scmp.eq.s32.totalorder %s10, 0
    %p94 = por %p92, %p93
    %p95 = scmp.ne.s32.totalorder %s84, %s87
    %p96 = scmp.eq.s32.totalorder %s15, 3
    %p97 = por %p95, %p96
    %p98 = scmp.ne.s32.totalorder %s87, %s88
    %p99 = scmp.eq.s32.totalorder %s15, 0
    %p100 = por %p98, %p99
    %p101 = scmp.ne.s32.totalorder %s87, %s88
    %p102 = scmp.eq.s32.totalorder %s16, 3
    %p103 = por %p101, %p102
    %p105 = scmp.ne.s32.totalorder %s88, %s104
    %p106 = scmp.eq.s32.totalorder %s16, 0
    %p107 = por %p105, %p106
    %s108 = ssub.s32 %s18, %s25
    %p109 = scmp.eq.s32.totalorder %s108, 0
    %s111 = sadd.s32 %s110, 1
    %s112 = scalar_select %p109, %s110, %s111
    %p115 = pneg %p109
    %p116 = scmp.eq.s32.totalorder %s10, 3
    %p117 = por %p115, %p116
    %p118 = scmp.ne.s32.totalorder %s110, %s113
    %p119 = scmp.eq.s32.totalorder %s10, 0
    %p120 = por %p118, %p119
    %p121 = scmp.ne.s32.totalorder %s110, %s113
    %p122 = scmp.eq.s32.totalorder %s15, 3
    %p123 = por %p121, %p122
    %p124 = scmp.ne.s32.totalorder %s113, %s114
    %p125 = scmp.eq.s32.totalorder %s15, 0
    %p126 = por %p124, %p125
    %p127 = scmp.ne.s32.totalorder %s113, %s114
    %p128 = scmp.eq.s32.totalorder %s16, 3
    %p129 = por %p127, %p128
    %p131 = scmp.ne.s32.totalorder %s114, %s130
    %p132 = scmp.eq.s32.totalorder %s16, 0
    %p133 = por %p131, %p132
    %s134 = ssub.s32 %s17, %s29
    %s135 = ssub.s32 %s18, %s25
    %s136 = sor.u32 %s134, %s135
    %p137 = scmp.eq.s32.totalorder %s136, 0
    %s139 = sadd.s32 %s138, 1
    %s140 = scalar_select %p137, %s138, %s139
    %p143 = pneg %p137
    %p144 = scmp.eq.s32.totalorder %s10, 3
    %p145 = por %p143, %p144
    %p146 = scmp.ne.s32.totalorder %s138, %s141
    %p147 = scmp.eq.s32.totalorder %s10, 0
    %p148 = por %p146, %p147
    %p149 = scmp.ne.s32.totalorder %s138, %s141
    %p150 = scmp.eq.s32.totalorder %s15, 3
    %p151 = por %p149, %p150
    %p152 = scmp.ne.s32.totalorder %s141, %s142
    %p153 = scmp.eq.s32.totalorder %s15, 0
    %p154 = por %p152, %p153
    %p155 = scmp.ne.s32.totalorder %s141, %s142
    %p156 = scmp.eq.s32.totalorder %s16, 3
    %p157 = por %p155, %p156
    %p159 = scmp.ne.s32.totalorder %s142, %s158
    %p160 = scmp.eq.s32.totalorder %s16, 0
    %p161 = por %p159, %p160
    %p162 = scmp.le.s32.totalorder 1, %s10
    %p163 = scmp.lt.s32.totalorder %s10, 5
    %p164 = pnand %p162, %p163
    %p165 = pneg %p164
    // Predicated region
    $region9: #{deeplabv3plus_forward.15} parent=5 // pred_check
      _
    $region10: #{deeplabv3plus_forward.15} parent=5 // pred_check_branch
      %167 = sbr.rel (%p164) target = $region12
    $region11: #{deeplabv3plus_forward.15} parent=5 // pred_region
      %s168 = ssub.s32 %s10, 1
      // Predicated region
      $region13: #{deeplabv3plus_forward.15} parent=11 // pred_check
        %p169 = pneg %p74
      $region14: #{deeplabv3plus_forward.15} parent=11 // pred_check_branch
        %171 = sbr.rel (%p169) target = $region16
      $region15: #{deeplabv3plus_forward.15} parent=11 // pred_region
        %p172 = scmp.lt.s32.totalorder %s20, 0
        %s173 = scalar_select %p172, %s20, 0
        %s174 = smul.addr %s173, 4
        %s175 = scalar_lea.vmem %s1, %s174
      $region16: #{deeplabv3plus_forward.15} parent=11 // pred_fallthru
        _
      // Predicated region
      $region17: #{deeplabv3plus_forward.15} parent=11 // pred_check
        %p176 = pneg %p100
      $region18: #{deeplabv3plus_forward.15} parent=11 // pred_check_branch
        %178 = sbr.rel (%p176) target = $region20
      $region19: #{deeplabv3plus_forward.15} parent=11 // pred_region
        %p179 = scmp.lt.s32.totalorder %s20, 0
        %s180 = scalar_select %p179, %s20, 0
        %s181 = scalar_lea.vmem %s2, %s180
      $region20: #{deeplabv3plus_forward.15} parent=11 // pred_fallthru
        _
      // Predicated region
      $region21: #{deeplabv3plus_forward.15} parent=11 // pred_check
        %p182 = pneg %p126
      $region22: #{deeplabv3plus_forward.15} parent=11 // pred_check_branch
        %184 = sbr.rel (%p182) target = $region24
      $region23: #{deeplabv3plus_forward.15} parent=11 // pred_region
        %p185 = scmp.lt.s32.totalorder %s20, 0
        %s186 = scalar_select %p185, %s20, 0
        %s187 = scalar_lea.vmem %s3, %s186
      $region24: #{deeplabv3plus_forward.15} parent=11 // pred_fallthru
        _
    $region12: #{deeplabv3plus_forward.15} parent=5 // pred_fallthru
      _
    %p188 = scmp.lt.s32.totalorder %s10, 4
    // Predicated region
    $region25: #{deeplabv3plus_forward.15} parent=5 // pred_check
      %p189 = pneg %p188
    $region26: #{deeplabv3plus_forward.15} parent=5 // pred_check_branch
      %191 = sbr.rel (%p189) target = $region28
    $region27: #{deeplabv3plus_forward.15} parent=5 // pred_region
      // Predicated region
      $region29: #{deeplabv3plus_forward.15} parent=27 // pred_check
        %p192 = pneg %p42
      $region30: #{deeplabv3plus_forward.15} parent=27 // pred_check_branch
        %194 = sbr.rel (%p192) target = $region32
      $region31: #{deeplabv3plus_forward.15} parent=27 // pred_region
        %s195 = smul.u32 64, %s17
        %p196 = scmp.lt.s32.totalorder %s195, 255
        %s197 = scalar_select %p196, %s195, 255
        %s198 = smul.addr %s197, 4
        %s199 = scalar_lea.vmem %s0, %s198
        %s200 = smul.u32 64, %s17
      $region32: #{deeplabv3plus_forward.15} parent=27 // pred_fallthru
        _
    $region28: #{deeplabv3plus_forward.15} parent=5 // pred_fallthru
      _
    %p201 = scmp.le.s32.totalorder 1, %s10
    %p202 = scmp.lt.s32.totalorder %s10, 5
    %p203 = pnand %p201, %p202
    %p204 = pneg %p203
    // Predicated region
    $region33: #{deeplabv3plus_forward.15} parent=5 // pred_check
      _
    $region34: #{deeplabv3plus_forward.15} parent=5 // pred_check_branch
      %206 = sbr.rel (%p203) target = $region36
    $region35: #{deeplabv3plus_forward.15} parent=5 // pred_region
      %s207 = ssub.s32 %s10, 1
      %s208 = smul.u32 64, %s19
      %p209 = scmp.lt.s32.totalorder %s208, 255
      %s210 = scalar_select %p209, %s208, 255
      %s211 = smul.addr %s210, 4
      %s212 = scalar_lea.vmem %s0, %s211
      %p213 = pneg %p48
      %p214 = pneg %p45
      %p215 = scmp.lt.s32.totalorder %s20, 0
      %s216 = scalar_select %p215, %s20, 0
      %s217 = smul.addr %s216, 4
      %s218 = scalar_lea.vmem %s1, %s217
      %p219 = pneg %p74
      %p220 = pneg %p71
      %p221 = scmp.lt.s32.totalorder %s20, 0
      %s222 = scalar_select %p221, %s20, 0
      %s223 = scalar_lea.vmem %s2, %s222
      %p224 = pneg %p100
      %p225 = pneg %p97
      %p226 = scmp.lt.s32.totalorder %s20, 0
      %s227 = scalar_select %p226, %s20, 0
      %s228 = scalar_lea.vmem %s3, %s227
      %p229 = pneg %p126
      %p230 = pneg %p123
      %p231 = pneg %p154
      %p232 = pneg %p151
      %s233 = smul.u32 64, %s19
      %p234 = scmp.lt.s32.totalorder %s233, 255
      %s235 = scalar_select %p234, %s233, 255
      %p236 = scmp.lt.s32.totalorder %s20, 0
      %s237 = scalar_select %p236, %s20, 0
      %s238 = sadd.s32 %s237, %s235
      %s239 = smul.addr %s238, 4
      %s240 = scalar_lea.vmem %s4, %s239
      %s241 = smul.u32 64, %s19
      %p242 = scmp.lt.s32.totalorder %s241, 255
      %s243 = scalar_select %p242, %s241, 255
      %s244 = smul.addr %s243, 4
      %s245 = scalar_lea.vmem %s0, %s244
      %s246 = smul.u32 64, %s19
      %p247 = scmp.lt.s32.totalorder %s20, 0
      %s248 = scalar_select %p247, %s20, 0
      %s249 = smul.addr %s248, 4
      %s250 = scalar_lea.vmem %s1, %s249
      %p251 = scmp.lt.s32.totalorder %s20, 0
      %s252 = scalar_select %p251, %s20, 0
      %s253 = scalar_lea.vmem %s2, %s252
      %p254 = scmp.lt.s32.totalorder %s20, 0
      %s255 = scalar_select %p254, %s20, 0
      %s256 = scalar_lea.vmem %s3, %s255
      %s257 = smul.u32 64, %s19
      %p258 = scmp.lt.s32.totalorder %s257, 255
      %s259 = scalar_select %p258, %s257, 255
      %p260 = scmp.lt.s32.totalorder %s20, 0
      %s261 = scalar_select %p260, %s20, 0
      %s262 = sadd.s32 %s261, %s259
      %s263 = smul.addr %s262, 4
      %s264 = scalar_lea.vmem %s4, %s263
      %s265 = smul.u32 64, %s19
      %v267 = vld [vmem:[%s245] sm:$0xf]
      %v268 = vld [vmem:[%s245 + $0x4] sm:$0xf]
      %v269 = vld [vmem:[%s245 + $0x8] sm:$0xf]
      %v270 = vld [vmem:[%s245 + $0xc] sm:$0xf]
      %v271 = vld [vmem:[%s245 + $0x10] sm:$0xf]
      %v272 = vld [vmem:[%s245 + $0x14] sm:$0xf]
      %v273 = vld [vmem:[%s245 + $0x18] sm:$0xf]
      %v274 = vld [vmem:[%s245 + $0x1c] sm:$0xf]
      %v275 = vld [vmem:[%s245 + $0x20] sm:$0xf]
      %v276 = vld [vmem:[%s245 + $0x24] sm:$0xf]
      %v277 = vld [vmem:[%s245 + $0x28] sm:$0xf]
      %v278 = vld [vmem:[%s245 + $0x2c] sm:$0xf]
      %v279 = vld [vmem:[%s245 + $0x30] sm:$0xf]
      %v280 = vld [vmem:[%s245 + $0x34] sm:$0xf]
      %v281 = vld [vmem:[%s245 + $0x38] sm:$0xf]
      %v282 = vld [vmem:[%s245 + $0x3c] sm:$0xf]
      %v283 = vld [vmem:[%s245 + $0x40] sm:$0xf]
      %v284 = vld [vmem:[%s245 + $0x44] sm:$0xf]
      %v285 = vld [vmem:[%s245 + $0x48] sm:$0xf]
      %v286 = vld [vmem:[%s245 + $0x4c] sm:$0xf]
      %v287 = vld [vmem:[%s245 + $0x50] sm:$0xf]
      %v288 = vld [vmem:[%s245 + $0x54] sm:$0xf]
      %v289 = vld [vmem:[%s245 + $0x58] sm:$0xf]
      %v290 = vld [vmem:[%s245 + $0x5c] sm:$0xf]
      %v291 = vld [vmem:[%s245 + $0x60] sm:$0xf]
      %v292 = vld [vmem:[%s245 + $0x64] sm:$0xf]
      %v293 = vld [vmem:[%s245 + $0x68] sm:$0xf]
      %v294 = vld [vmem:[%s245 + $0x6c] sm:$0xf]
      %v295 = vld [vmem:[%s245 + $0x70] sm:$0xf]
      %v296 = vld [vmem:[%s245 + $0x74] sm:$0xf]
      %v297 = vld [vmem:[%s245 + $0x78] sm:$0xf]
      %v298 = vld [vmem:[%s245 + $0x7c] sm:$0xf]
      %v299 = vld [vmem:[%s245 + $0x80] sm:$0xf]
      %v300 = vld [vmem:[%s245 + $0x84] sm:$0xf]
      %v301 = vld [vmem:[%s245 + $0x88] sm:$0xf]
      %v302 = vld [vmem:[%s245 + $0x8c] sm:$0xf]
      %v303 = vld [vmem:[%s245 + $0x90] sm:$0xf]
      %v304 = vld [vmem:[%s245 + $0x94] sm:$0xf]
      %v305 = vld [vmem:[%s245 + $0x98] sm:$0xf]
      %v306 = vld [vmem:[%s245 + $0x9c] sm:$0xf]
      %v307 = vld [vmem:[%s245 + $0xa0] sm:$0xf]
      %v308 = vld [vmem:[%s245 + $0xa4] sm:$0xf]
      %v309 = vld [vmem:[%s245 + $0xa8] sm:$0xf]
      %v310 = vld [vmem:[%s245 + $0xac] sm:$0xf]
      %v311 = vld [vmem:[%s245 + $0xb0] sm:$0xf]
      %v312 = vld [vmem:[%s245 + $0xb4] sm:$0xf]
      %v313 = vld [vmem:[%s245 + $0xb8] sm:$0xf]
      %v314 = vld [vmem:[%s245 + $0xbc] sm:$0xf]
      %v315 = vld [vmem:[%s245 + $0xc0] sm:$0xf]
      %v316 = vld [vmem:[%s245 + $0xc4] sm:$0xf]
      %v317 = vld [vmem:[%s245 + $0xc8] sm:$0xf]
      %v318 = vld [vmem:[%s245 + $0xcc] sm:$0xf]
      %v319 = vld [vmem:[%s245 + $0xd0] sm:$0xf]
      %v320 = vld [vmem:[%s245 + $0xd4] sm:$0xf]
      %v321 = vld [vmem:[%s245 + $0xd8] sm:$0xf]
      %v322 = vld [vmem:[%s245 + $0xdc] sm:$0xf]
      %v323 = vld [vmem:[%s245 + $0xe0] sm:$0xf]
      %v324 = vld [vmem:[%s245 + $0xe4] sm:$0xf]
      %v325 = vld [vmem:[%s245 + $0xe8] sm:$0xf]
      %v326 = vld [vmem:[%s245 + $0xec] sm:$0xf]
      %v327 = vld [vmem:[%s245 + $0xf0] sm:$0xf]
      %v328 = vld [vmem:[%s245 + $0xf4] sm:$0xf]
      %v329 = vld [vmem:[%s245 + $0xf8] sm:$0xf]
      %v330 = vld [vmem:[%s245 + $0xfc] sm:$0xf]
      %v331 = vld [vmem:[%s250] sm:$0xf]
      %v332 = vld [vmem:[%s250 + $0x4] sm:$0xf]
      %v333 = vld [vmem:[%s250 + $0x8] sm:$0xf]
      %v334 = vld [vmem:[%s250 + $0xc] sm:$0xf]
      %v335 = vld [vmem:[%s250 + $0x10] sm:$0xf]
      %v336 = vld [vmem:[%s250 + $0x14] sm:$0xf]
      %v337 = vld [vmem:[%s250 + $0x18] sm:$0xf]
      %v338 = vld [vmem:[%s250 + $0x1c] sm:$0xf]
      %v339 = vld [vmem:[%s250 + $0x20] sm:$0xf]
      %v340 = vld [vmem:[%s250 + $0x24] sm:$0xf]
      %v341 = vld [vmem:[%s250 + $0x28] sm:$0xf]
      %v342 = vld [vmem:[%s250 + $0x2c] sm:$0xf]
      %v343 = vld [vmem:[%s250 + $0x30] sm:$0xf]
      %v344 = vld [vmem:[%s250 + $0x34] sm:$0xf]
      %v345 = vld [vmem:[%s250 + $0x38] sm:$0xf]
      %v346 = vld [vmem:[%s250 + $0x3c] sm:$0xf]
      %v411 = vunpack.c.l.b16 %v267
      %v412 = vunpack.c.l.b16 %v268
      %v413 = vunpack.c.l.b16 %v269
      %v414 = vunpack.c.l.b16 %v270
      %v415 = vunpack.c.l.b16 %v271
      %v416 = vunpack.c.l.b16 %v272
      %v417 = vunpack.c.l.b16 %v273
      %v418 = vunpack.c.l.b16 %v274
      %v419 = vunpack.c.l.b16 %v275
      %v420 = vunpack.c.l.b16 %v276
      %v421 = vunpack.c.l.b16 %v277
      %v422 = vunpack.c.l.b16 %v278
      %v423 = vunpack.c.l.b16 %v279
      %v424 = vunpack.c.l.b16 %v280
      %v425 = vunpack.c.l.b16 %v281
      %v426 = vunpack.c.l.b16 %v282
      %v427 = vunpack.c.l.b16 %v283
      %v428 = vunpack.c.l.b16 %v284
      %v429 = vunpack.c.l.b16 %v285
      %v430 = vunpack.c.l.b16 %v286
      %v431 = vunpack.c.l.b16 %v287
      %v432 = vunpack.c.l.b16 %v288
      %v433 = vunpack.c.l.b16 %v289
      %v434 = vunpack.c.l.b16 %v290
      %v435 = vunpack.c.l.b16 %v291
      %v436 = vunpack.c.l.b16 %v292
      %v437 = vunpack.c.l.b16 %v293
      %v438 = vunpack.c.l.b16 %v294
      %v439 = vunpack.c.l.b16 %v295
      %v440 = vunpack.c.l.b16 %v296
      %v441 = vunpack.c.l.b16 %v297
      %v442 = vunpack.c.l.b16 %v298
      %v443 = vunpack.c.l.b16 %v299
      %v444 = vunpack.c.l.b16 %v300
      %v445 = vunpack.c.l.b16 %v301
      %v446 = vunpack.c.l.b16 %v302
      %v447 = vunpack.c.l.b16 %v303
      %v448 = vunpack.c.l.b16 %v304
      %v449 = vunpack.c.l.b16 %v305
      %v450 = vunpack.c.l.b16 %v306
      %v451 = vunpack.c.l.b16 %v307
      %v452 = vunpack.c.l.b16 %v308
      %v453 = vunpack.c.l.b16 %v309
      %v454 = vunpack.c.l.b16 %v310
      %v455 = vunpack.c.l.b16 %v311
      %v456 = vunpack.c.l.b16 %v312
      %v457 = vunpack.c.l.b16 %v313
      %v458 = vunpack.c.l.b16 %v314
      %v459 = vunpack.c.l.b16 %v315
      %v460 = vunpack.c.l.b16 %v316
      %v461 = vunpack.c.l.b16 %v317
      %v462 = vunpack.c.l.b16 %v318
      %v463 = vunpack.c.l.b16 %v319
      %v464 = vunpack.c.l.b16 %v320
      %v465 = vunpack.c.l.b16 %v321
      %v466 = vunpack.c.l.b16 %v322
      %v467 = vunpack.c.l.b16 %v323
      %v468 = vunpack.c.l.b16 %v324
      %v469 = vunpack.c.l.b16 %v325
      %v470 = vunpack.c.l.b16 %v326
      %v471 = vunpack.c.l.b16 %v327
      %v472 = vunpack.c.l.b16 %v328
      %v473 = vunpack.c.l.b16 %v329
      %v474 = vunpack.c.l.b16 %v330
      %v475 = vpack.c.b16 %v412, %v411
      %v476 = vpack.c.b16 %v414, %v413
      %v477 = vpack.c.b16 %v416, %v415
      %v478 = vpack.c.b16 %v418, %v417
      %v479 = vpack.c.b16 %v420, %v419
      %v480 = vpack.c.b16 %v422, %v421
      %v481 = vpack.c.b16 %v424, %v423
      %v482 = vpack.c.b16 %v426, %v425
      %v483 = vpack.c.b16 %v428, %v427
      %v484 = vpack.c.b16 %v430, %v429
      %v485 = vpack.c.b16 %v432, %v431
      %v486 = vpack.c.b16 %v434, %v433
      %v487 = vpack.c.b16 %v436, %v435
      %v488 = vpack.c.b16 %v438, %v437
      %v489 = vpack.c.b16 %v440, %v439
      %v490 = vpack.c.b16 %v442, %v441
      %v491 = vpack.c.b16 %v444, %v443
      %v492 = vpack.c.b16 %v446, %v445
      %v493 = vpack.c.b16 %v448, %v447
      %v494 = vpack.c.b16 %v450, %v449
      %v495 = vpack.c.b16 %v452, %v451
      %v496 = vpack.c.b16 %v454, %v453
      %v497 = vpack.c.b16 %v456, %v455
      %v498 = vpack.c.b16 %v458, %v457
      %v499 = vpack.c.b16 %v460, %v459
      %v500 = vpack.c.b16 %v462, %v461
      %v501 = vpack.c.b16 %v464, %v463
      %v502 = vpack.c.b16 %v466, %v465
      %v503 = vpack.c.b16 %v468, %v467
      %v504 = vpack.c.b16 %v470, %v469
      %v505 = vpack.c.b16 %v472, %v471
      %v506 = vpack.c.b16 %v474, %v473
      %v555 = vunpack.c.l.b16 %v331
      %v556 = vunpack.c.l.b16 %v332
      %v557 = vunpack.c.l.b16 %v333
      %v558 = vunpack.c.l.b16 %v334
      %v559 = vunpack.c.l.b16 %v335
      %v560 = vunpack.c.l.b16 %v336
      %v561 = vunpack.c.l.b16 %v337
      %v562 = vunpack.c.l.b16 %v338
      %v563 = vunpack.c.l.b16 %v339
      %v564 = vunpack.c.l.b16 %v340
      %v565 = vunpack.c.l.b16 %v341
      %v566 = vunpack.c.l.b16 %v342
      %v567 = vunpack.c.l.b16 %v343
      %v568 = vunpack.c.l.b16 %v344
      %v569 = vunpack.c.l.b16 %v345
      %v570 = vunpack.c.l.b16 %v346
      %v571 = vpack.c.b16 %v556, %v555
      %v572 = vpack.c.b16 %v558, %v557
      %v573 = vpack.c.b16 %v560, %v559
      %v574 = vpack.c.b16 %v562, %v561
      %v575 = vpack.c.b16 %v564, %v563
      %v576 = vpack.c.b16 %v566, %v565
      %v577 = vpack.c.b16 %v568, %v567
      %v578 = vpack.c.b16 %v570, %v569
      %587 = vmatprep.subr.bf16.mxu0 0
      %588 = vmatpush1.bf16.msra.mxu0 %v571
      %589 = vmatprep.subr.bf16.mxu0 0
      %590 = vmatpush1.bf16.msra.mxu0 %v572
      %591 = vmatprep.subr.bf16.mxu0 0
      %592 = vmatpush1.bf16.msra.mxu0 %v573
      %593 = vmatprep.subr.bf16.mxu0 0
      %594 = vmatpush1.bf16.msra.mxu0 %v574
      %595 = vmatprep.subr.bf16.mxu0 0
      %596 = vmatpush1.bf16.msra.mxu0 %v575
      %597 = vmatprep.subr.bf16.mxu0 0
      %598 = vmatpush1.bf16.msra.mxu0 %v576
      %599 = vmatprep.subr.bf16.mxu0 0
      %600 = vmatpush1.bf16.msra.mxu0 %v577
      %601 = vmatprep.subr.bf16.mxu0 0
      %602 = vmatpush1.bf16.msra.mxu0 %v578
      %603 = vmatprep.subr.bf16.mxu0 0
      %604 = vmatpush1.bf16.msra.mxu0 0
      %605 = vmatprep.subr.bf16.mxu0 0
      %606 = vmatpush1.bf16.msra.mxu0 0
      %607 = vmatprep.subr.bf16.mxu0 0
      %608 = vmatpush1.bf16.msra.mxu0 0
      %609 = vmatprep.subr.bf16.mxu0 0
      %610 = vmatpush1.bf16.msra.mxu0 0
      %611 = vmatprep.subr.bf16.mxu0 0
      %612 = vmatpush1.bf16.msra.mxu0 0
      %613 = vmatprep.subr.bf16.mxu0 0
      %614 = vmatpush1.bf16.msra.mxu0 0
      %615 = vmatprep.subr.bf16.mxu0 0
      %616 = vmatpush1.bf16.msra.mxu0 0
      %617 = vmatprep.subr.bf16.mxu0 0
      %618 = vmatpush1.bf16.msra.mxu0 0
      %619 = vmatprep.mubr.bf16.mxu0 0
      %620 = vmatmul.mubr.bf16.gmra.mrb[0].mxu0 %v475
      %v621 = vpop.f32.mrb[0].mxu0
      %v622 = vadd.f32 0.0, %v621
      %v623 = vpop.f32.mrb[0].mxu0
      %v624 = vpop.f32.mrb[0].mxu0
      %v625 = vadd.f32 0.0, %v624
      %v626 = vpop.f32.mrb[0].mxu0
      %627 = vmatprep.mubr.bf16.mxu0 0
      %628 = vmatmul.mubr.bf16.gmra.mrb[0].mxu0 %v476
      %v629 = vpop.f32.mrb[0].mxu0
      %v630 = vadd.f32 0.0, %v629
      %v631 = vpop.f32.mrb[0].mxu0
      %v632 = vpop.f32.mrb[0].mxu0
      %v633 = vadd.f32 0.0, %v632
      %v634 = vpop.f32.mrb[0].mxu0
      %635 = vmatprep.mubr.bf16.mxu0 0
      %636 = vmatmul.mubr.bf16.gmra.mrb[0].mxu0 %v477
      %v637 = vpop.f32.mrb[0].mxu0
      %v638 = vadd.f32 0.0, %v637
      %v639 = vpop.f32.mrb[0].mxu0
      %v640 = vpop.f32.mrb[0].mxu0
      %v641 = vadd.f32 0.0, %v640
      %v642 = vpop.f32.mrb[0].mxu0
      %643 = vmatprep.mubr.bf16.mxu0 0
      %644 = vmatmul.mubr.bf16.gmra.mrb[0].mxu0 %v478
      %v645 = vpop.f32.mrb[0].mxu0
      %v646 = vadd.f32 0.0, %v645
      %v647 = vpop.f32.mrb[0].mxu0
      %v648 = vpop.f32.mrb[0].mxu0
      %v649 = vadd.f32 0.0, %v648
      %v650 = vpop.f32.mrb[0].mxu0
      %651 = vmatprep.mubr.bf16.mxu0 0
      %652 = vmatmul.mubr.bf16.gmra.mrb[0].mxu0 %v479
      %v653 = vpop.f32.mrb[0].mxu0
      %v654 = vadd.f32 0.0, %v653
      %v655 = vpop.f32.mrb[0].mxu0
      %v656 = vpop.f32.mrb[0].mxu0
      %v657 = vadd.f32 0.0, %v656
      %v658 = vpop.f32.mrb[0].mxu0
      %659 = vmatprep.mubr.bf16.mxu0 0
      %660 = vmatmul.mubr.bf16.gmra.mrb[0].mxu0 %v480
      %v661 = vpop.f32.mrb[0].mxu0
      %v662 = vadd.f32 0.0, %v661
      %v663 = vpop.f32.mrb[0].mxu0
      %v664 = vpop.f32.mrb[0].mxu0
      %v665 = vadd.f32 0.0, %v664
      %v666 = vpop.f32.mrb[0].mxu0
      %667 = vmatprep.mubr.bf16.mxu0 0
      %668 = vmatmul.mubr.bf16.gmra.mrb[0].mxu0 %v481
      %v669 = vpop.f32.mrb[0].mxu0
      %v670 = vadd.f32 0.0, %v669
      %v671 = vpop.f32.mrb[0].mxu0
      %v672 = vpop.f32.mrb[0].mxu0
      %v673 = vadd.f32 0.0, %v672
      %v674 = vpop.f32.mrb[0].mxu0
      %675 = vmatprep.mubr.bf16.mxu0 0
      %676 = vmatmul.mubr.bf16.gmra.mrb[0].mxu0 %v482
      %v677 = vpop.f32.mrb[0].mxu0
      %v678 = vadd.f32 0.0, %v677
      %v679 = vpop.f32.mrb[0].mxu0
      %v680 = vpop.f32.mrb[0].mxu0
      %v681 = vadd.f32 0.0, %v680
      %v682 = vpop.f32.mrb[0].mxu0
      %683 = vmatprep.mubr.bf16.mxu0 0
      %684 = vmatmul.mubr.bf16.gmra.mrb[0].mxu0 %v483
      %v685 = vpop.f32.mrb[0].mxu0
      %v686 = vadd.f32 0.0, %v685
      %v687 = vpop.f32.mrb[0].mxu0
      %v688 = vpop.f32.mrb[0].mxu0
      %v689 = vadd.f32 0.0, %v688
      %v690 = vpop.f32.mrb[0].mxu0
      %691 = vmatprep.mubr.bf16.mxu0 0
      %692 = vmatmul.mubr.bf16.gmra.mrb[0].mxu0 %v484
      %v693 = vpop.f32.mrb[0].mxu0
      %v694 = vadd.f32 0.0, %v693
      %v695 = vpop.f32.mrb[0].mxu0
      %v696 = vpop.f32.mrb[0].mxu0
      %v697 = vadd.f32 0.0, %v696
      %v698 = vpop.f32.mrb[0].mxu0
      %699 = vmatprep.mubr.bf16.mxu0 0
      %700 = vmatmul.mubr.bf16.gmra.mrb[0].mxu0 %v485
      %v701 = vpop.f32.mrb[0].mxu0
      %v702 = vadd.f32 0.0, %v701
      %v703 = vpop.f32.mrb[0].mxu0
      %v704 = vpop.f32.mrb[0].mxu0
      %v705 = vadd.f32 0.0, %v704
      %v706 = vpop.f32.mrb[0].mxu0
      %707 = vmatprep.mubr.bf16.mxu0 0
      %708 = vmatmul.mubr.bf16.gmra.mrb[0].mxu0 %v486
      %v709 = vpop.f32.mrb[0].mxu0
      %v710 = vadd.f32 0.0, %v709
      %v711 = vpop.f32.mrb[0].mxu0
      %v712 = vpop.f32.mrb[0].mxu0
      %v713 = vadd.f32 0.0, %v712
      %v714 = vpop.f32.mrb[0].mxu0
      %715 = vmatprep.mubr.bf16.mxu0 0
      %716 = vmatmul.mubr.bf16.gmra.mrb[0].mxu0 %v487
      %v717 = vpop.f32.mrb[0].mxu0
      %v718 = vadd.f32 0.0, %v717
      %v719 = vpop.f32.mrb[0].mxu0
      %v720 = vpop.f32.mrb[0].mxu0
      %v721 = vadd.f32 0.0, %v720
      %v722 = vpop.f32.mrb[0].mxu0
      %723 = vmatprep.mubr.bf16.mxu0 0
      %724 = vmatmul.mubr.bf16.gmra.mrb[0].mxu0 %v488
      %v725 = vpop.f32.mrb[0].mxu0
      %v726 = vadd.f32 0.0, %v725
      %v727 = vpop.f32.mrb[0].mxu0
      %v728 = vpop.f32.mrb[0].mxu0
      %v729 = vadd.f32 0.0, %v728
      %v730 = vpop.f32.mrb[0].mxu0
      %731 = vmatprep.mubr.bf16.mxu0 0
      %732 = vmatmul.mubr.bf16.gmra.mrb[0].mxu0 %v489
      %v733 = vpop.f32.mrb[0].mxu0
      %v734 = vadd.f32 0.0, %v733
      %v735 = vpop.f32.mrb[0].mxu0
      %v736 = vpop.f32.mrb[0].mxu0
      %v737 = vadd.f32 0.0, %v736
      %v738 = vpop.f32.mrb[0].mxu0
      %739 = vmatprep.mubr.bf16.mxu0 0
      %740 = vmatmul.mubr.bf16.gmra.mrb[0].mxu0 %v490
      %v741 = vpop.f32.mrb[0].mxu0
      %v742 = vadd.f32 0.0, %v741
      %v743 = vpop.f32.mrb[0].mxu0
      %v744 = vpop.f32.mrb[0].mxu0
      %v745 = vadd.f32 0.0, %v744
      %v746 = vpop.f32.mrb[0].mxu0
      %747 = vmatprep.mubr.bf16.mxu0 0
      %748 = vmatmul.mubr.bf16.gmra.mrb[0].mxu0 %v491
      %v749 = vpop.f32.mrb[0].mxu0
      %v750 = vadd.f32 0.0, %v749
      %v751 = vpop.f32.mrb[0].mxu0
      %v752 = vpop.f32.mrb[0].mxu0
      %v753 = vadd.f32 0.0, %v752
      %v754 = vpop.f32.mrb[0].mxu0
      %755 = vmatprep.mubr.bf16.mxu0 0
      %756 = vmatmul.mubr.bf16.gmra.mrb[0].mxu0 %v492
      %v757 = vpop.f32.mrb[0].mxu0
      %v758 = vadd.f32 0.0, %v757
      %v759 = vpop.f32.mrb[0].mxu0
      %v760 = vpop.f32.mrb[0].mxu0
      %v761 = vadd.f32 0.0, %v760
      %v762 = vpop.f32.mrb[0].mxu0
      %763 = vmatprep.mubr.bf16.mxu0 0
      %764 = vmatmul.mubr.bf16.gmra.mrb[0].mxu0 %v493
      %v765 = vpop.f32.mrb[0].mxu0
      %v766 = vadd.f32 0.0, %v765
      %v767 = vpop.f32.mrb[0].mxu0
      %v768 = vpop.f32.mrb[0].mxu0
      %v769 = vadd.f32 0.0, %v768
      %v770 = vpop.f32.mrb[0].mxu0
      %771 = vmatprep.mubr.bf16.mxu0 0
      %772 = vmatmul.mubr.bf16.gmra.mrb[0].mxu0 %v494
      %v773 = vpop.f32.mrb[0].mxu0
      %v774 = vadd.f32 0.0, %v773
      %v775 = vpop.f32.mrb[0].mxu0
      %v776 = vpop.f32.mrb[0].mxu0
      %v777 = vadd.f32 0.0, %v776
      %v778 = vpop.f32.mrb[0].mxu0
      %779 = vmatprep.mubr.bf16.mxu0 0
      %780 = vmatmul.mubr.bf16.gmra.mrb[0].mxu0 %v495
      %v781 = vpop.f32.mrb[0].mxu0
      %v782 = vadd.f32 0.0, %v781
      %v783 = vpop.f32.mrb[0].mxu0
      %v784 = vpop.f32.mrb[0].mxu0
      %v785 = vadd.f32 0.0, %v784
      %v786 = vpop.f32.mrb[0].mxu0
      %787 = vmatprep.mubr.bf16.mxu0 0
      %788 = vmatmul.mubr.bf16.gmra.mrb[0].mxu0 %v496
      %v789 = vpop.f32.mrb[0].mxu0
      %v790 = vadd.f32 0.0, %v789
      %v791 = vpop.f32.mrb[0].mxu0
      %v792 = vpop.f32.mrb[0].mxu0
      %v793 = vadd.f32 0.0, %v792
      %v794 = vpop.f32.mrb[0].mxu0
      %795 = vmatprep.mubr.bf16.mxu0 0
      %796 = vmatmul.mubr.bf16.gmra.mrb[0].mxu0 %v497
      %v797 = vpop.f32.mrb[0].mxu0
      %v798 = vadd.f32 0.0, %v797
      %v799 = vpop.f32.mrb[0].mxu0
      %v800 = vpop.f32.mrb[0].mxu0
      %v801 = vadd.f32 0.0, %v800
      %v802 = vpop.f32.mrb[0].mxu0
      %803 = vmatprep.mubr.bf16.mxu0 0
      %804 = vmatmul.mubr.bf16.gmra.mrb[0].mxu0 %v498
      %v805 = vpop.f32.mrb[0].mxu0
      %v806 = vadd.f32 0.0, %v805
      %v807 = vpop.f32.mrb[0].mxu0
      %v808 = vpop.f32.mrb[0].mxu0
      %v809 = vadd.f32 0.0, %v808
      %v810 = vpop.f32.mrb[0].mxu0
      %811 = vmatprep.mubr.bf16.mxu0 0
      %812 = vmatmul.mubr.bf16.gmra.mrb[0].mxu0 %v499
      %v813 = vpop.f32.mrb[0].mxu0
      %v814 = vadd.f32 0.0, %v813
      %v815 = vpop.f32.mrb[0].mxu0
      %v816 = vpop.f32.mrb[0].mxu0
      %v817 = vadd.f32 0.0, %v816
      %v818 = vpop.f32.mrb[0].mxu0
      %819 = vmatprep.mubr.bf16.mxu0 0
      %820 = vmatmul.mubr.bf16.gmra.mrb[0].mxu0 %v500
      %v821 = vpop.f32.mrb[0].mxu0
      %v822 = vadd.f32 0.0, %v821
      %v823 = vpop.f32.mrb[0].mxu0
      %v824 = vpop.f32.mrb[0].mxu0
      %v825 = vadd.f32 0.0, %v824
      %v826 = vpop.f32.mrb[0].mxu0
      %827 = vmatprep.mubr.bf16.mxu0 0
      %828 = vmatmul.mubr.bf16.gmra.mrb[0].mxu0 %v501
      %v829 = vpop.f32.mrb[0].mxu0
      %v830 = vadd.f32 0.0, %v829
      %v831 = vpop.f32.mrb[0].mxu0
      %v832 = vpop.f32.mrb[0].mxu0
      %v833 = vadd.f32 0.0, %v832
      %v834 = vpop.f32.mrb[0].mxu0
      %835 = vmatprep.mubr.bf16.mxu0 0
      %836 = vmatmul.mubr.bf16.gmra.mrb[0].mxu0 %v502
      %v837 = vpop.f32.mrb[0].mxu0
      %v838 = vadd.f32 0.0, %v837
      %v839 = vpop.f32.mrb[0].mxu0
      %v840 = vpop.f32.mrb[0].mxu0
      %v841 = vadd.f32 0.0, %v840
      %v842 = vpop.f32.mrb[0].mxu0
      %843 = vmatprep.mubr.bf16.mxu0 0
      %844 = vmatmul.mubr.bf16.gmra.mrb[0].mxu0 %v503
      %v845 = vpop.f32.mrb[0].mxu0
      %v846 = vadd.f32 0.0, %v845
      %v847 = vpop.f32.mrb[0].mxu0
      %v848 = vpop.f32.mrb[0].mxu0
      %v849 = vadd.f32 0.0, %v848
      %v850 = vpop.f32.mrb[0].mxu0
      %851 = vmatprep.mubr.bf16.mxu0 0
      %852 = vmatmul.mubr.bf16.gmra.mrb[0].mxu0 %v504
      %v853 = vpop.f32.mrb[0].mxu0
      %v854 = vadd.f32 0.0, %v853
      %v855 = vpop.f32.mrb[0].mxu0
      %v856 = vpop.f32.mrb[0].mxu0
      %v857 = vadd.f32 0.0, %v856
      %v858 = vpop.f32.mrb[0].mxu0
      %859 = vmatprep.mubr.bf16.mxu0 0
      %860 = vmatmul.mubr.bf16.gmra.mrb[0].mxu0 %v505
      %v861 = vpop.f32.mrb[0].mxu0
      %v862 = vadd.f32 0.0, %v861
      %v863 = vpop.f32.mrb[0].mxu0
      %v864 = vpop.f32.mrb[0].mxu0
      %v865 = vadd.f32 0.0, %v864
      %v866 = vpop.f32.mrb[0].mxu0
      %867 = vmatprep.mubr.bf16.mxu0 0
      %868 = vmatmul.mubr.bf16.gmra.mrb[0].mxu0 %v506
      %v869 = vpop.f32.mrb[0].mxu0
      %v870 = vadd.f32 0.0, %v869
      %v871 = vpop.f32.mrb[0].mxu0
      %v872 = vpop.f32.mrb[0].mxu0
      %v873 = vadd.f32 0.0, %v872
      %v874 = vpop.f32.mrb[0].mxu0
      %875 = vdwg.mxu0
      %v876 = vld [vmem:[%s253] sm:$0x1]
      %v878 = vlaneseq
      %v879 = vshrl.u32 %v878, 7
      %v880 = vsub.s32 0, %v879
      %v881 = vrot.slane %v876, %v880
      %v883 = vmul.f32 %v622, %v881
      %v884 = vmul.f32 %v625, %v881
      %v885 = vmul.f32 %v630, %v881
      %v886 = vmul.f32 %v633, %v881
      %v887 = vmul.f32 %v638, %v881
      %v888 = vmul.f32 %v641, %v881
      %v889 = vmul.f32 %v646, %v881
      %v890 = vmul.f32 %v649, %v881
      %v891 = vmul.f32 %v654, %v881
      %v892 = vmul.f32 %v657, %v881
      %v893 = vmul.f32 %v662, %v881
      %v894 = vmul.f32 %v665, %v881
      %v895 = vmul.f32 %v670, %v881
      %v896 = vmul.f32 %v673, %v881
      %v897 = vmul.f32 %v678, %v881
      %v898 = vmul.f32 %v681, %v881
      %v899 = vmul.f32 %v686, %v881
      %v900 = vmul.f32 %v689, %v881
      %v901 = vmul.f32 %v694, %v881
      %v902 = vmul.f32 %v697, %v881
      %v903 = vmul.f32 %v702, %v881
      %v904 = vmul.f32 %v705, %v881
      %v905 = vmul.f32 %v710, %v881
      %v906 = vmul.f32 %v713, %v881
      %v907 = vmul.f32 %v718, %v881
      %v908 = vmul.f32 %v721, %v881
      %v909 = vmul.f32 %v726, %v881
      %v910 = vmul.f32 %v729, %v881
      %v911 = vmul.f32 %v734, %v881
      %v912 = vmul.f32 %v737, %v881
      %v913 = vmul.f32 %v742, %v881
      %v914 = vmul.f32 %v745, %v881
      %v915 = vmul.f32 %v750, %v881
      %v916 = vmul.f32 %v753, %v881
      %v917 = vmul.f32 %v758, %v881
      %v918 = vmul.f32 %v761, %v881
      %v919 = vmul.f32 %v766, %v881
      %v920 = vmul.f32 %v769, %v881
      %v921 = vmul.f32 %v774, %v881
      %v922 = vmul.f32 %v777, %v881
      %v923 = vmul.f32 %v782, %v881
      %v924 = vmul.f32 %v785, %v881
      %v925 = vmul.f32 %v790, %v881
      %v926 = vmul.f32 %v793, %v881
      %v927 = vmul.f32 %v798, %v881
      %v928 = vmul.f32 %v801, %v881
      %v929 = vmul.f32 %v806, %v881
      %v930 = vmul.f32 %v809, %v881
      %v931 = vmul.f32 %v814, %v881
      %v932 = vmul.f32 %v817, %v881
      %v933 = vmul.f32 %v822, %v881
      %v934 = vmul.f32 %v825, %v881
      %v935 = vmul.f32 %v830, %v881
      %v936 = vmul.f32 %v833, %v881
      %v937 = vmul.f32 %v838, %v881
      %v938 = vmul.f32 %v841, %v881
      %v939 = vmul.f32 %v846, %v881
      %v940 = vmul.f32 %v849, %v881
      %v941 = vmul.f32 %v854, %v881
      %v942 = vmul.f32 %v857, %v881
      %v943 = vmul.f32 %v862, %v881
      %v944 = vmul.f32 %v865, %v881
      %v945 = vmul.f32 %v870, %v881
      %v946 = vmul.f32 %v873, %v881
      %v947 = vld [vmem:[%s256] sm:$0x1]
      %v949 = vlaneseq
      %v950 = vshrl.u32 %v949, 7
      %v951 = vsub.s32 0, %v950
      %v952 = vrot.slane %v947, %v951
      %v954 = vadd.f32 %v883, %v952
      %v955 = vadd.f32 %v884, %v952
      %v956 = vadd.f32 %v885, %v952
      %v957 = vadd.f32 %v886, %v952
      %v958 = vadd.f32 %v887, %v952
      %v959 = vadd.f32 %v888, %v952
      %v960 = vadd.f32 %v889, %v952
      %v961 = vadd.f32 %v890, %v952
      %v962 = vadd.f32 %v891, %v952
      %v963 = vadd.f32 %v892, %v952
      %v964 = vadd.f32 %v893, %v952
      %v965 = vadd.f32 %v894, %v952
      %v966 = vadd.f32 %v895, %v952
      %v967 = vadd.f32 %v896, %v952
      %v968 = vadd.f32 %v897, %v952
      %v969 = vadd.f32 %v898, %v952
      %v970 = vadd.f32 %v899, %v952
      %v971 = vadd.f32 %v900, %v952
      %v972 = vadd.f32 %v901, %v952
      %v973 = vadd.f32 %v902, %v952
      %v974 = vadd.f32 %v903, %v952
      %v975 = vadd.f32 %v904, %v952
      %v976 = vadd.f32 %v905, %v952
      %v977 = vadd.f32 %v906, %v952
      %v978 = vadd.f32 %v907, %v952
      %v979 = vadd.f32 %v908, %v952
      %v980 = vadd.f32 %v909, %v952
      %v981 = vadd.f32 %v910, %v952
      %v982 = vadd.f32 %v911, %v952
      %v983 = vadd.f32 %v912, %v952
      %v984 = vadd.f32 %v913, %v952
      %v985 = vadd.f32 %v914, %v952
      %v986 = vadd.f32 %v915, %v952
      %v987 = vadd.f32 %v916, %v952
      %v988 = vadd.f32 %v917, %v952
      %v989 = vadd.f32 %v918, %v952
      %v990 = vadd.f32 %v919, %v952
      %v991 = vadd.f32 %v920, %v952
      %v992 = vadd.f32 %v921, %v952
      %v993 = vadd.f32 %v922, %v952
      %v994 = vadd.f32 %v923, %v952
      %v995 = vadd.f32 %v924, %v952
      %v996 = vadd.f32 %v925, %v952
      %v997 = vadd.f32 %v926, %v952
      %v998 = vadd.f32 %v927, %v952
      %v999 = vadd.f32 %v928, %v952
      %v1000 = vadd.f32 %v929, %v952
      %v1001 = vadd.f32 %v930, %v952
      %v1002 = vadd.f32 %v931, %v952
      %v1003 = vadd.f32 %v932, %v952
      %v1004 = vadd.f32 %v933, %v952
      %v1005 = vadd.f32 %v934, %v952
      %v1006 = vadd.f32 %v935, %v952
      %v1007 = vadd.f32 %v936, %v952
      %v1008 = vadd.f32 %v937, %v952
      %v1009 = vadd.f32 %v938, %v952
      %v1010 = vadd.f32 %v939, %v952
      %v1011 = vadd.f32 %v940, %v952
      %v1012 = vadd.f32 %v941, %v952
      %v1013 = vadd.f32 %v942, %v952
      %v1014 = vadd.f32 %v943, %v952
      %v1015 = vadd.f32 %v944, %v952
      %v1016 = vadd.f32 %v945, %v952
      %v1017 = vadd.f32 %v946, %v952
      %v1018 = vmax.f32 %v954, 0.0
      %v1019 = vmax.f32 %v955, 0.0
      %v1020 = vmax.f32 %v956, 0.0
      %v1021 = vmax.f32 %v957, 0.0
      %v1022 = vmax.f32 %v958, 0.0
      %v1023 = vmax.f32 %v959, 0.0
      %v1024 = vmax.f32 %v960, 0.0
      %v1025 = vmax.f32 %v961, 0.0
      %v1026 = vmax.f32 %v962, 0.0
      %v1027 = vmax.f32 %v963, 0.0
      %v1028 = vmax.f32 %v964, 0.0
      %v1029 = vmax.f32 %v965, 0.0
      %v1030 = vmax.f32 %v966, 0.0
      %v1031 = vmax.f32 %v967, 0.0
      %v1032 = vmax.f32 %v968, 0.0
      %v1033 = vmax.f32 %v969, 0.0
      %v1034 = vmax.f32 %v970, 0.0
      %v1035 = vmax.f32 %v971, 0.0
      %v1036 = vmax.f32 %v972, 0.0
      %v1037 = vmax.f32 %v973, 0.0
      %v1038 = vmax.f32 %v974, 0.0
      %v1039 = vmax.f32 %v975, 0.0
      %v1040 = vmax.f32 %v976, 0.0
      %v1041 = vmax.f32 %v977, 0.0
      %v1042 = vmax.f32 %v978, 0.0
      %v1043 = vmax.f32 %v979, 0.0
      %v1044 = vmax.f32 %v980, 0.0
      %v1045 = vmax.f32 %v981, 0.0
      %v1046 = vmax.f32 %v982, 0.0
      %v1047 = vmax.f32 %v983, 0.0
      %v1048 = vmax.f32 %v984, 0.0
      %v1049 = vmax.f32 %v985, 0.0
      %v1050 = vmax.f32 %v986, 0.0
      %v1051 = vmax.f32 %v987, 0.0
      %v1052 = vmax.f32 %v988, 0.0
      %v1053 = vmax.f32 %v989, 0.0
      %v1054 = vmax.f32 %v990, 0.0
      %v1055 = vmax.f32 %v991, 0.0
      %v1056 = vmax.f32 %v992, 0.0
      %v1057 = vmax.f32 %v993, 0.0
      %v1058 = vmax.f32 %v994, 0.0
      %v1059 = vmax.f32 %v995, 0.0
      %v1060 = vmax.f32 %v996, 0.0
      %v1061 = vmax.f32 %v997, 0.0
      %v1062 = vmax.f32 %v998, 0.0
      %v1063 = vmax.f32 %v999, 0.0
      %v1064 = vmax.f32 %v1000, 0.0
      %v1065 = vmax.f32 %v1001, 0.0
      %v1066 = vmax.f32 %v1002, 0.0
      %v1067 = vmax.f32 %v1003, 0.0
      %v1068 = vmax.f32 %v1004, 0.0
      %v1069 = vmax.f32 %v1005, 0.0
      %v1070 = vmax.f32 %v1006, 0.0
      %v1071 = vmax.f32 %v1007, 0.0
      %v1072 = vmax.f32 %v1008, 0.0
      %v1073 = vmax.f32 %v1009, 0.0
      %v1074 = vmax.f32 %v1010, 0.0
      %v1075 = vmax.f32 %v1011, 0.0
      %v1076 = vmax.f32 %v1012, 0.0
      %v1077 = vmax.f32 %v1013, 0.0
      %v1078 = vmax.f32 %v1014, 0.0
      %v1079 = vmax.f32 %v1015, 0.0
      %v1080 = vmax.f32 %v1016, 0.0
      %v1081 = vmax.f32 %v1017, 0.0
      %v1082 = vpack.c.bf16 %v1019, %v1018
      %v1083 = vpack.c.bf16 %v1021, %v1020
      %v1084 = vpack.c.bf16 %v1023, %v1022
      %v1085 = vpack.c.bf16 %v1025, %v1024
      %v1086 = vpack.c.bf16 %v1027, %v1026
      %v1087 = vpack.c.bf16 %v1029, %v1028
      %v1088 = vpack.c.bf16 %v1031, %v1030
      %v1089 = vpack.c.bf16 %v1033, %v1032
      %v1090 = vpack.c.bf16 %v1035, %v1034
      %v1091 = vpack.c.bf16 %v1037, %v1036
      %v1092 = vpack.c.bf16 %v1039, %v1038
      %v1093 = vpack.c.bf16 %v1041, %v1040
      %v1094 = vpack.c.bf16 %v1043, %v1042
      %v1095 = vpack.c.bf16 %v1045, %v1044
      %v1096 = vpack.c.bf16 %v1047, %v1046
      %v1097 = vpack.c.bf16 %v1049, %v1048
      %v1098 = vpack.c.bf16 %v1051, %v1050
      %v1099 = vpack.c.bf16 %v1053, %v1052
      %v1100 = vpack.c.bf16 %v1055, %v1054
      %v1101 = vpack.c.bf16 %v1057, %v1056
      %v1102 = vpack.c.bf16 %v1059, %v1058
      %v1103 = vpack.c.bf16 %v1061, %v1060
      %v1104 = vpack.c.bf16 %v1063, %v1062
      %v1105 = vpack.c.bf16 %v1065, %v1064
      %v1106 = vpack.c.bf16 %v1067, %v1066
      %v1107 = vpack.c.bf16 %v1069, %v1068
      %v1108 = vpack.c.bf16 %v1071, %v1070
      %v1109 = vpack.c.bf16 %v1073, %v1072
      %v1110 = vpack.c.bf16 %v1075, %v1074
      %v1111 = vpack.c.bf16 %v1077, %v1076
      %v1112 = vpack.c.bf16 %v1079, %v1078
      %v1113 = vpack.c.bf16 %v1081, %v1080
      %v1146 = vunpack.c.l.b16 %v1082
      %v1147 = vunpack.c.h.b16 %v1082
      %v1148 = vunpack.c.l.b16 %v1083
      %v1149 = vunpack.c.h.b16 %v1083
      %v1150 = vunpack.c.l.b16 %v1084
      %v1151 = vunpack.c.h.b16 %v1084
      %v1152 = vunpack.c.l.b16 %v1085
      %v1153 = vunpack.c.h.b16 %v1085
      %v1154 = vunpack.c.l.b16 %v1086
      %v1155 = vunpack.c.h.b16 %v1086
      %v1156 = vunpack.c.l.b16 %v1087
      %v1157 = vunpack.c.h.b16 %v1087
      %v1158 = vunpack.c.l.b16 %v1088
      %v1159 = vunpack.c.h.b16 %v1088
      %v1160 = vunpack.c.l.b16 %v1089
      %v1161 = vunpack.c.h.b16 %v1089
      %v1162 = vunpack.c.l.b16 %v1090
      %v1163 = vunpack.c.h.b16 %v1090
      %v1164 = vunpack.c.l.b16 %v1091
      %v1165 = vunpack.c.h.b16 %v1091
      %v1166 = vunpack.c.l.b16 %v1092
      %v1167 = vunpack.c.h.b16 %v1092
      %v1168 = vunpack.c.l.b16 %v1093
      %v1169 = vunpack.c.h.b16 %v1093
      %v1170 = vunpack.c.l.b16 %v1094
      %v1171 = vunpack.c.h.b16 %v1094
      %v1172 = vunpack.c.l.b16 %v1095
      %v1173 = vunpack.c.h.b16 %v1095
      %v1174 = vunpack.c.l.b16 %v1096
      %v1175 = vunpack.c.h.b16 %v1096
      %v1176 = vunpack.c.l.b16 %v1097
      %v1177 = vunpack.c.h.b16 %v1097
      %v1178 = vunpack.c.l.b16 %v1098
      %v1179 = vunpack.c.h.b16 %v1098
      %v1180 = vunpack.c.l.b16 %v1099
      %v1181 = vunpack.c.h.b16 %v1099
      %v1182 = vunpack.c.l.b16 %v1100
      %v1183 = vunpack.c.h.b16 %v1100
      %v1184 = vunpack.c.l.b16 %v1101
      %v1185 = vunpack.c.h.b16 %v1101
      %v1186 = vunpack.c.l.b16 %v1102
      %v1187 = vunpack.c.h.b16 %v1102
      %v1188 = vunpack.c.l.b16 %v1103
      %v1189 = vunpack.c.h.b16 %v1103
      %v1190 = vunpack.c.l.b16 %v1104
      %v1191 = vunpack.c.h.b16 %v1104
      %v1192 = vunpack.c.l.b16 %v1105
      %v1193 = vunpack.c.h.b16 %v1105
      %v1194 = vunpack.c.l.b16 %v1106
      %v1195 = vunpack.c.h.b16 %v1106
      %v1196 = vunpack.c.l.b16 %v1107
      %v1197 = vunpack.c.h.b16 %v1107
      %v1198 = vunpack.c.l.b16 %v1108
      %v1199 = vunpack.c.h.b16 %v1108
      %v1200 = vunpack.c.l.b16 %v1109
      %v1201 = vunpack.c.h.b16 %v1109
      %v1202 = vunpack.c.l.b16 %v1110
      %v1203 = vunpack.c.h.b16 %v1110
      %v1204 = vunpack.c.l.b16 %v1111
      %v1205 = vunpack.c.h.b16 %v1111
      %v1206 = vunpack.c.l.b16 %v1112
      %v1207 = vunpack.c.h.b16 %v1112
      %v1208 = vunpack.c.l.b16 %v1113
      %v1209 = vunpack.c.h.b16 %v1113
      %v1210 = vpack.c.b16 %v1146, %v1146
      %v1211 = vpack.c.b16 %v1147, %v1147
      %v1212 = vpack.c.b16 %v1148, %v1148
      %v1213 = vpack.c.b16 %v1149, %v1149
      %v1214 = vpack.c.b16 %v1150, %v1150
      %v1215 = vpack.c.b16 %v1151, %v1151
      %v1216 = vpack.c.b16 %v1152, %v1152
      %v1217 = vpack.c.b16 %v1153, %v1153
      %v1218 = vpack.c.b16 %v1154, %v1154
      %v1219 = vpack.c.b16 %v1155, %v1155
      %v1220 = vpack.c.b16 %v1156, %v1156
      %v1221 = vpack.c.b16 %v1157, %v1157
      %v1222 = vpack.c.b16 %v1158, %v1158
      %v1223 = vpack.c.b16 %v1159, %v1159
      %v1224 = vpack.c.b16 %v1160, %v1160
      %v1225 = vpack.c.b16 %v1161, %v1161
      %v1226 = vpack.c.b16 %v1162, %v1162
      %v1227 = vpack.c.b16 %v1163, %v1163
      %v1228 = vpack.c.b16 %v1164, %v1164
      %v1229 = vpack.c.b16 %v1165, %v1165
      %v1230 = vpack.c.b16 %v1166, %v1166
      %v1231 = vpack.c.b16 %v1167, %v1167
      %v1232 = vpack.c.b16 %v1168, %v1168
      %v1233 = vpack.c.b16 %v1169, %v1169
      %v1234 = vpack.c.b16 %v1170, %v1170
      %v1235 = vpack.c.b16 %v1171, %v1171
      %v1236 = vpack.c.b16 %v1172, %v1172
      %v1237 = vpack.c.b16 %v1173, %v1173
      %v1238 = vpack.c.b16 %v1174, %v1174
      %v1239 = vpack.c.b16 %v1175, %v1175
      %v1240 = vpack.c.b16 %v1176, %v1176
      %v1241 = vpack.c.b16 %v1177, %v1177
      %v1242 = vpack.c.b16 %v1178, %v1178
      %v1243 = vpack.c.b16 %v1179, %v1179
      %v1244 = vpack.c.b16 %v1180, %v1180
      %v1245 = vpack.c.b16 %v1181, %v1181
      %v1246 = vpack.c.b16 %v1182, %v1182
      %v1247 = vpack.c.b16 %v1183, %v1183
      %v1248 = vpack.c.b16 %v1184, %v1184
      %v1249 = vpack.c.b16 %v1185, %v1185
      %v1250 = vpack.c.b16 %v1186, %v1186
      %v1251 = vpack.c.b16 %v1187, %v1187
      %v1252 = vpack.c.b16 %v1188, %v1188
      %v1253 = vpack.c.b16 %v1189, %v1189
      %v1254 = vpack.c.b16 %v1190, %v1190
      %v1255 = vpack.c.b16 %v1191, %v1191
      %v1256 = vpack.c.b16 %v1192, %v1192
      %v1257 = vpack.c.b16 %v1193, %v1193
      %v1258 = vpack.c.b16 %v1194, %v1194
      %v1259 = vpack.c.b16 %v1195, %v1195
      %v1260 = vpack.c.b16 %v1196, %v1196
      %v1261 = vpack.c.b16 %v1197, %v1197
      %v1262 = vpack.c.b16 %v1198, %v1198
      %v1263 = vpack.c.b16 %v1199, %v1199
      %v1264 = vpack.c.b16 %v1200, %v1200
      %v1265 = vpack.c.b16 %v1201, %v1201
      %v1266 = vpack.c.b16 %v1202, %v1202
      %v1267 = vpack.c.b16 %v1203, %v1203
      %v1268 = vpack.c.b16 %v1204, %v1204
      %v1269 = vpack.c.b16 %v1205, %v1205
      %v1270 = vpack.c.b16 %v1206, %v1206
      %v1271 = vpack.c.b16 %v1207, %v1207
      %v1272 = vpack.c.b16 %v1208, %v1208
      %v1273 = vpack.c.b16 %v1209, %v1209
      %1338 = vst [vmem:[%s264] sm:$0xf] %v1210
      %1339 = vst [vmem:[%s264 + $0x4] sm:$0xf] %v1211
      %1340 = vst [vmem:[%s264 + $0x8] sm:$0xf] %v1212
      %1341 = vst [vmem:[%s264 + $0xc] sm:$0xf] %v1213
      %1342 = vst [vmem:[%s264 + $0x10] sm:$0xf] %v1214
      %1343 = vst [vmem:[%s264 + $0x14] sm:$0xf] %v1215
      %1344 = vst [vmem:[%s264 + $0x18] sm:$0xf] %v1216
      %1345 = vst [vmem:[%s264 + $0x1c] sm:$0xf] %v1217
      %1346 = vst [vmem:[%s264 + $0x20] sm:$0xf] %v1218
      %1347 = vst [vmem:[%s264 + $0x24] sm:$0xf] %v1219
      %1348 = vst [vmem:[%s264 + $0x28] sm:$0xf] %v1220
      %1349 = vst [vmem:[%s264 + $0x2c] sm:$0xf] %v1221
      %1350 = vst [vmem:[%s264 + $0x30] sm:$0xf] %v1222
      %1351 = vst [vmem:[%s264 + $0x34] sm:$0xf] %v1223
      %1352 = vst [vmem:[%s264 + $0x38] sm:$0xf] %v1224
      %1353 = vst [vmem:[%s264 + $0x3c] sm:$0xf] %v1225
      %1354 = vst [vmem:[%s264 + $0x40] sm:$0xf] %v1226
      %1355 = vst [vmem:[%s264 + $0x44] sm:$0xf] %v1227
      %1356 = vst [vmem:[%s264 + $0x48] sm:$0xf] %v1228
      %1357 = vst [vmem:[%s264 + $0x4c] sm:$0xf] %v1229
      %1358 = vst [vmem:[%s264 + $0x50] sm:$0xf] %v1230
      %1359 = vst [vmem:[%s264 + $0x54] sm:$0xf] %v1231
      %1360 = vst [vmem:[%s264 + $0x58] sm:$0xf] %v1232
      %1361 = vst [vmem:[%s264 + $0x5c] sm:$0xf] %v1233
      %1362 = vst [vmem:[%s264 + $0x60] sm:$0xf] %v1234
      %1363 = vst [vmem:[%s264 + $0x64] sm:$0xf] %v1235
      %1364 = vst [vmem:[%s264 + $0x68] sm:$0xf] %v1236
      %1365 = vst [vmem:[%s264 + $0x6c] sm:$0xf] %v1237
      %1366 = vst [vmem:[%s264 + $0x70] sm:$0xf] %v1238
      %1367 = vst [vmem:[%s264 + $0x74] sm:$0xf] %v1239
      %1368 = vst [vmem:[%s264 + $0x78] sm:$0xf] %v1240
      %1369 = vst [vmem:[%s264 + $0x7c] sm:$0xf] %v1241
      %1370 = vst [vmem:[%s264 + $0x80] sm:$0xf] %v1242
      %1371 = vst [vmem:[%s264 + $0x84] sm:$0xf] %v1243
      %1372 = vst [vmem:[%s264 + $0x88] sm:$0xf] %v1244
      %1373 = vst [vmem:[%s264 + $0x8c] sm:$0xf] %v1245
      %1374 = vst [vmem:[%s264 + $0x90] sm:$0xf] %v1246
      %1375 = vst [vmem:[%s264 + $0x94] sm:$0xf] %v1247
      %1376 = vst [vmem:[%s264 + $0x98] sm:$0xf] %v1248
      %1377 = vst [vmem:[%s264 + $0x9c] sm:$0xf] %v1249
      %1378 = vst [vmem:[%s264 + $0xa0] sm:$0xf] %v1250
      %1379 = vst [vmem:[%s264 + $0xa4] sm:$0xf] %v1251
      %1380 = vst [vmem:[%s264 + $0xa8] sm:$0xf] %v1252
      %1381 = vst [vmem:[%s264 + $0xac] sm:$0xf] %v1253
      %1382 = vst [vmem:[%s264 + $0xb0] sm:$0xf] %v1254
      %1383 = vst [vmem:[%s264 + $0xb4] sm:$0xf] %v1255
      %1384 = vst [vmem:[%s264 + $0xb8] sm:$0xf] %v1256
      %1385 = vst [vmem:[%s264 + $0xbc] sm:$0xf] %v1257
      %1386 = vst [vmem:[%s264 + $0xc0] sm:$0xf] %v1258
      %1387 = vst [vmem:[%s264 + $0xc4] sm:$0xf] %v1259
      %1388 = vst [vmem:[%s264 + $0xc8] sm:$0xf] %v1260
      %1389 = vst [vmem:[%s264 + $0xcc] sm:$0xf] %v1261
      %1390 = vst [vmem:[%s264 + $0xd0] sm:$0xf] %v1262
      %1391 = vst [vmem:[%s264 + $0xd4] sm:$0xf] %v1263
      %1392 = vst [vmem:[%s264 + $0xd8] sm:$0xf] %v1264
      %1393 = vst [vmem:[%s264 + $0xdc] sm:$0xf] %v1265
      %1394 = vst [vmem:[%s264 + $0xe0] sm:$0xf] %v1266
      %1395 = vst [vmem:[%s264 + $0xe4] sm:$0xf] %v1267
      %1396 = vst [vmem:[%s264 + $0xe8] sm:$0xf] %v1268
      %1397 = vst [vmem:[%s264 + $0xec] sm:$0xf] %v1269
      %1398 = vst [vmem:[%s264 + $0xf0] sm:$0xf] %v1270
      %1399 = vst [vmem:[%s264 + $0xf4] sm:$0xf] %v1271
      %1400 = vst [vmem:[%s264 + $0xf8] sm:$0xf] %v1272
      %1401 = vst [vmem:[%s264 + $0xfc] sm:$0xf] %v1273
      %s1402 = smul.u32 64, %s19
      %p1403 = scmp.lt.s32.totalorder %s1402, 255
      %s1404 = scalar_select %p1403, %s1402, 255
      %p1405 = scmp.lt.s32.totalorder %s20, 0
      %s1406 = scalar_select %p1405, %s20, 0
      %s1407 = sadd.s32 %s1406, %s1404
      %s1408 = smul.addr %s1407, 4
      %s1409 = scalar_lea.vmem %s4, %s1408
      // Predicated region
      $region37: #{deeplabv3plus_forward.15} parent=35 // pred_check
        %p1410 = pneg %p151
      $region38: #{deeplabv3plus_forward.15} parent=35 // pred_check_branch
        %1412 = sbr.rel (%p1410) target = $region40
      $region39: #{deeplabv3plus_forward.15} parent=35 // pred_region
        %s1413 = smul.u32 64, %s19
      $region40: #{deeplabv3plus_forward.15} parent=35 // pred_fallthru
        _
    $region36: #{deeplabv3plus_forward.15} parent=5 // pred_fallthru
      _
    %p1414 = scmp.le.s32.totalorder 2, %s10
    // Predicated region
    $region41: #{deeplabv3plus_forward.15} parent=5 // pred_check
      %p1415 = pneg %p1414
    $region42: #{deeplabv3plus_forward.15} parent=5 // pred_check_branch
      %1417 = sbr.rel (%p1415) target = $region44
    $region43: #{deeplabv3plus_forward.15} parent=5 // pred_region
      %s1418 = ssub.s32 %s10, 2
      // Predicated region
      $region45: #{deeplabv3plus_forward.15} parent=43 // pred_check
        %p1419 = pneg %p157
      $region46: #{deeplabv3plus_forward.15} parent=43 // pred_check_branch
        %1421 = sbr.rel (%p1419) target = $region48
      $region47: #{deeplabv3plus_forward.15} parent=43 // pred_region
        %s1422 = smul.u32 64, %s21
        %p1423 = scmp.lt.s32.totalorder %s1422, 255
        %s1424 = scalar_select %p1423, %s1422, 255
        %p1425 = scmp.lt.s32.totalorder %s22, 0
        %s1426 = scalar_select %p1425, %s22, 0
        %s1427 = sadd.s32 %s1426, %s1424
        %s1428 = smul.addr %s1427, 4
        %s1429 = scalar_lea.vmem %s4, %s1428
      $region48: #{deeplabv3plus_forward.15} parent=43 // pred_fallthru
        _
    $region44: #{deeplabv3plus_forward.15} parent=5 // pred_fallthru
      _
  $region6: #{deeplabv3plus_forward.15} parent=0 // loop_footer
    %s14 = sadd.s32 1, %s10
  $region7: #{deeplabv3plus_forward.15} parent=0 // loop_footer_branch
    %9 = sbr.rel target = $region3
  $region8: #{deeplabv3plus_forward.15} parent=0 // loop_exit
    _

// kernel: deeplabv3plus_forward.16
$region0: #{deeplabv3plus_forward.16}
  #allocation0 [shape = 'u32[]', space=smem, size = 0x4, offset = 0x4, fixed_abs, tag = 'smem constant byte address 0x4 - core index']
  #allocation1 [shape = 'u32[144,128]{1,0:T(1,128)}', space=vmem, size = 0x12000, scoped, tag = 'internal scratch']
  %s0 = inlined_call_operand.vmem [shape: bf16[512,128], index: 0, kind: input, shape index: {}]
  %s1 = inlined_call_operand.vmem [shape: bf16[128,128], index: 1, kind: input, shape index: {}]
  %s2 = inlined_call_operand.vmem [shape: f32[1,128], index: 2, kind: input, shape index: {}]
  %s3 = inlined_call_operand.vmem [shape: f32[1,128], index: 3, kind: input, shape index: {}]
  %s4 = inlined_call_operand.vmem [shape: bf16[512,128], index: 4, kind: output, shape index: {}]
  %s5 = sld [smem:[#allocation0]]
  $region49: #{deeplabv3plus_forward.16} parent=0
    _
  %s7 = ssub.s32 1, %s5
  %s8 = scalar_select 0, %s7, %s5
  loop: start=0, step=1, limit=4
  $region2: #{deeplabv3plus_forward.16} parent=0 // loop_pre_header
    _
  $region3: #{deeplabv3plus_forward.16} parent=0 // loop_header
    %s10 = sphi 0, %s14
    %p11 = scmp.ge.s32.totalorder %s10, 4
    %s17 = sphi 0, %s29
    %s18 = sphi 0, %s25
    %s19 = sphi 0, %s17
    %s20 = sphi 0, %s18
    %s21 = sphi 0, %s19
    %s22 = sphi 0, %s20
    %s32 = sphi 0, %s34
    %s35 = sphi 0, %s32
    %s36 = sphi 0, %s35
    %s52 = sphi 0, %s36
    %s58 = sphi 0, %s60
    %s61 = sphi 0, %s58
    %s62 = sphi 0, %s61
    %s78 = sphi 0, %s62
    %s84 = sphi 0, %s86
    %s87 = sphi 0, %s84
    %s88 = sphi 0, %s87
    %s104 = sphi 0, %s88
    %s110 = sphi 0, %s112
    %s113 = sphi 0, %s110
    %s114 = sphi 0, %s113
    %s130 = sphi 0, %s114
    %s138 = sphi 0, %s140
    %s141 = sphi 0, %s138
    %s142 = sphi 0, %s141
    %s158 = sphi 0, %s142
  $region4: #{deeplabv3plus_forward.16} parent=0 // loop_header_branch
    %13 = sbr.rel (%p11) target = $region8
  $region5: #{deeplabv3plus_forward.16} parent=0 // loop_body
    %s15 = ssub.s32 %s10, 1
    %s16 = ssub.s32 %s10, 2
    %s23 = sadd.s32 1, %s18
    %p24 = scmp.ge.s32.totalorder %s23, 1
    %s25 = scalar_select %p24, 0, %s23
    %s26 = sadd.s32 1, %s17
    %s27 = scalar_select %p24, %s26, %s17
    %p28 = scmp.ge.s32.totalorder %s27, 2
    %s29 = scalar_select %p28, 0, %s27
    %s30 = ssub.s32 %s17, %s29
    %p31 = scmp.eq.s32.totalorder %s30, 0
    %s33 = sadd.s32 %s32, 1
    %s34 = scalar_select %p31, %s32, %s33
    %p37 = pneg %p31
    %p38 = scmp.eq.s32.totalorder %s10, 1
    %p39 = por %p37, %p38
    %p40 = scmp.ne.s32.totalorder %s32, %s35
    %p41 = scmp.eq.s32.totalorder %s10, 0
    %p42 = por %p40, %p41
    %p43 = scmp.ne.s32.totalorder %s32, %s35
    %p44 = scmp.eq.s32.totalorder %s15, 1
    %p45 = por %p43, %p44
    %p46 = scmp.ne.s32.totalorder %s35, %s36
    %p47 = scmp.eq.s32.totalorder %s15, 0
    %p48 = por %p46, %p47
    %p49 = scmp.ne.s32.totalorder %s35, %s36
    %p50 = scmp.eq.s32.totalorder %s16, 1
    %p51 = por %p49, %p50
    %p53 = scmp.ne.s32.totalorder %s36, %s52
    %p54 = scmp.eq.s32.totalorder %s16, 0
    %p55 = por %p53, %p54
    %s56 = ssub.s32 %s18, %s25
    %p57 = scmp.eq.s32.totalorder %s56, 0
    %s59 = sadd.s32 %s58, 1
    %s60 = scalar_select %p57, %s58, %s59
    %p63 = pneg %p57
    %p64 = scmp.eq.s32.totalorder %s10, 1
    %p65 = por %p63, %p64
    %p66 = scmp.ne.s32.totalorder %s58, %s61
    %p67 = scmp.eq.s32.totalorder %s10, 0
    %p68 = por %p66, %p67
    %p69 = scmp.ne.s32.totalorder %s58, %s61
    %p70 = scmp.eq.s32.totalorder %s15, 1
    %p71 = por %p69, %p70
    %p72 = scmp.ne.s32.totalorder %s61, %s62
    %p73 = scmp.eq.s32.totalorder %s15, 0
    %p74 = por %p72, %p73
    %p75 = scmp.ne.s32.totalorder %s61, %s62
    %p76 = scmp.eq.s32.totalorder %s16, 1
    %p77 = por %p75, %p76
    %p79 = scmp.ne.s32.totalorder %s62, %s78
    %p80 = scmp.eq.s32.totalorder %s16, 0
    %p81 = por %p79, %p80
    %s82 = ssub.s32 %s18, %s25
    %p83 = scmp.eq.s32.totalorder %s82, 0
    %s85 = sadd.s32 %s84, 1
    %s86 = scalar_select %p83, %s84, %s85
    %p89 = pneg %p83
    %p90 = scmp.eq.s32.totalorder %s10, 1
    %p91 = por %p89, %p90
    %p92 = scmp.ne.s32.totalorder %s84, %s87
    %p93 = scmp.eq.s32.totalorder %s10, 0
    %p94 = por %p92, %p93
    %p95 = scmp.ne.s32.totalorder %s84, %s87
    %p96 = scmp.eq.s32.totalorder %s15, 1
    %p97 = por %p95, %p96
    %p98 = scmp.ne.s32.totalorder %s87, %s88
    %p99 = scmp.eq.s32.totalorder %s15, 0
    %p100 = por %p98, %p99
    %p101 = scmp.ne.s32.totalorder %s87, %s88
    %p102 = scmp.eq.s32.totalorder %s16, 1
    %p103 = por %p101, %p102
    %p105 = scmp.ne.s32.totalorder %s88, %s104
    %p106 = scmp.eq.s32.totalorder %s16, 0
    %p107 = por %p105, %p106
    %s108 = ssub.s32 %s18, %s25
    %p109 = scmp.eq.s32.totalorder %s108, 0
    %s111 = sadd.s32 %s110, 1
    %s112 = scalar_select %p109, %s110, %s111
    %p115 = pneg %p109
    %p116 = scmp.eq.s32.totalorder %s10, 1
    %p117 = por %p115, %p116
    %p118 = scmp.ne.s32.totalorder %s110, %s113
    %p119 = scmp.eq.s32.totalorder %s10, 0
    %p120 = por %p118, %p119
    %p121 = scmp.ne.s32.totalorder %s110, %s113
    %p122 = scmp.eq.s32.totalorder %s15, 1
    %p123 = por %p121, %p122
    %p124 = scmp.ne.s32.totalorder %s113, %s114
    %p125 = scmp.eq.s32.totalorder %s15, 0
    %p126 = por %p124, %p125
    %p127 = scmp.ne.s32.totalorder %s113, %s114
    %p128 = scmp.eq.s32.totalorder %s16, 1
    %p129 = por %p127, %p128
    %p131 = scmp.ne.s32.totalorder %s114, %s130
    %p132 = scmp.eq.s32.totalorder %s16, 0
    %p133 = por %p131, %p132
    %s134 = ssub.s32 %s17, %s29
    %s135 = ssub.s32 %s18, %s25
    %s136 = sor.u32 %s134, %s135
    %p137 = scmp.eq.s32.totalorder %s136, 0
    %s139 = sadd.s32 %s138, 1
    %s140 = scalar_select %p137, %s138, %s139
    %p143 = pneg %p137
    %p144 = scmp.eq.s32.totalorder %s10, 1
    %p145 = por %p143, %p144
    %p146 = scmp.ne.s32.totalorder %s138, %s141
    %p147 = scmp.eq.s32.totalorder %s10, 0
    %p148 = por %p146, %p147
    %p149 = scmp.ne.s32.totalorder %s138, %s141
    %p150 = scmp.eq.s32.totalorder %s15, 1
    %p151 = por %p149, %p150
    %p152 = scmp.ne.s32.totalorder %s141, %s142
    %p153 = scmp.eq.s32.totalorder %s15, 0
    %p154 = por %p152, %p153
    %p155 = scmp.ne.s32.totalorder %s141, %s142
    %p156 = scmp.eq.s32.totalorder %s16, 1
    %p157 = por %p155, %p156
    %p159 = scmp.ne.s32.totalorder %s142, %s158
    %p160 = scmp.eq.s32.totalorder %s16, 0
    %p161 = por %p159, %p160
    %p162 = scmp.le.s32.totalorder 1, %s10
    %p163 = scmp.lt.s32.totalorder %s10, 3
    %p164 = pnand %p162, %p163
    %p165 = pneg %p164
    // Predicated region
    $region9: #{deeplabv3plus_forward.16} parent=5 // pred_check
      _
    $region10: #{deeplabv3plus_forward.16} parent=5 // pred_check_branch
      %167 = sbr.rel (%p164) target = $region12
    $region11: #{deeplabv3plus_forward.16} parent=5 // pred_region
      %s168 = ssub.s32 %s10, 1
      // Predicated region
      $region13: #{deeplabv3plus_forward.16} parent=11 // pred_check
        %p169 = pneg %p74
      $region14: #{deeplabv3plus_forward.16} parent=11 // pred_check_branch
        %171 = sbr.rel (%p169) target = $region16
      $region15: #{deeplabv3plus_forward.16} parent=11 // pred_region
        %p172 = scmp.lt.s32.totalorder %s20, 0
        %s173 = scalar_select %p172, %s20, 0
        %s174 = smul.addr %s173, 4
        %s175 = scalar_lea.vmem %s1, %s174
      $region16: #{deeplabv3plus_forward.16} parent=11 // pred_fallthru
        _
      // Predicated region
      $region17: #{deeplabv3plus_forward.16} parent=11 // pred_check
        %p176 = pneg %p100
      $region18: #{deeplabv3plus_forward.16} parent=11 // pred_check_branch
        %178 = sbr.rel (%p176) target = $region20
      $region19: #{deeplabv3plus_forward.16} parent=11 // pred_region
        %p179 = scmp.lt.s32.totalorder %s20, 0
        %s180 = scalar_select %p179, %s20, 0
        %s181 = scalar_lea.vmem %s2, %s180
      $region20: #{deeplabv3plus_forward.16} parent=11 // pred_fallthru
        _
      // Predicated region
      $region21: #{deeplabv3plus_forward.16} parent=11 // pred_check
        %p182 = pneg %p126
      $region22: #{deeplabv3plus_forward.16} parent=11 // pred_check_branch
        %184 = sbr.rel (%p182) target = $region24
      $region23: #{deeplabv3plus_forward.16} parent=11 // pred_region
        %p185 = scmp.lt.s32.totalorder %s20, 0
        %s186 = scalar_select %p185, %s20, 0
        %s187 = scalar_lea.vmem %s3, %s186
      $region24: #{deeplabv3plus_forward.16} parent=11 // pred_fallthru
        _
    $region12: #{deeplabv3plus_forward.16} parent=5 // pred_fallthru
      _
    %p188 = scmp.lt.s32.totalorder %s10, 2
    // Predicated region
    $region25: #{deeplabv3plus_forward.16} parent=5 // pred_check
      %p189 = pneg %p188
    $region26: #{deeplabv3plus_forward.16} parent=5 // pred_check_branch
      %191 = sbr.rel (%p189) target = $region28
    $region27: #{deeplabv3plus_forward.16} parent=5 // pred_region
      // Predicated region
      $region29: #{deeplabv3plus_forward.16} parent=27 // pred_check
        %p192 = pneg %p42
      $region30: #{deeplabv3plus_forward.16} parent=27 // pred_check_branch
        %194 = sbr.rel (%p192) target = $region32
      $region31: #{deeplabv3plus_forward.16} parent=27 // pred_region
        %s195 = smul.u32 32, %s17
        %p196 = scmp.lt.s32.totalorder %s195, 63
        %s197 = scalar_select %p196, %s195, 63
        %s198 = smul.addr %s197, 4
        %s199 = scalar_lea.vmem %s0, %s198
        %s200 = smul.u32 32, %s17
      $region32: #{deeplabv3plus_forward.16} parent=27 // pred_fallthru
        _
    $region28: #{deeplabv3plus_forward.16} parent=5 // pred_fallthru
      _
    %p201 = scmp.le.s32.totalorder 1, %s10
    %p202 = scmp.lt.s32.totalorder %s10, 3
    %p203 = pnand %p201, %p202
    %p204 = pneg %p203
    // Predicated region
    $region33: #{deeplabv3plus_forward.16} parent=5 // pred_check
      _
    $region34: #{deeplabv3plus_forward.16} parent=5 // pred_check_branch
      %206 = sbr.rel (%p203) target = $region36
    $region35: #{deeplabv3plus_forward.16} parent=5 // pred_region
      %s207 = ssub.s32 %s10, 1
      %s208 = smul.u32 32, %s19
      %p209 = scmp.lt.s32.totalorder %s208, 63
      %s210 = scalar_select %p209, %s208, 63
      %s211 = smul.addr %s210, 4
      %s212 = scalar_lea.vmem %s0, %s211
      %p213 = pneg %p48
      %p214 = pneg %p45
      %p215 = scmp.lt.s32.totalorder %s20, 0
      %s216 = scalar_select %p215, %s20, 0
      %s217 = smul.addr %s216, 4
      %s218 = scalar_lea.vmem %s1, %s217
      %p219 = pneg %p74
      %p220 = pneg %p71
      %p221 = scmp.lt.s32.totalorder %s20, 0
      %s222 = scalar_select %p221, %s20, 0
      %s223 = scalar_lea.vmem %s2, %s222
      %p224 = pneg %p100
      %p225 = pneg %p97
      %p226 = scmp.lt.s32.totalorder %s20, 0
      %s227 = scalar_select %p226, %s20, 0
      %s228 = scalar_lea.vmem %s3, %s227
      %p229 = pneg %p126
      %p230 = pneg %p123
      %p231 = pneg %p154
      %p232 = pneg %p151
      %s233 = smul.u32 32, %s19
      %p234 = scmp.lt.s32.totalorder %s233, 63
      %s235 = scalar_select %p234, %s233, 63
      %p236 = scmp.lt.s32.totalorder %s20, 0
      %s237 = scalar_select %p236, %s20, 0
      %s238 = sadd.s32 %s237, %s235
      %s239 = smul.addr %s238, 4
      %s240 = scalar_lea.vmem %s4, %s239
      %s241 = smul.u32 32, %s19
      %p242 = scmp.lt.s32.totalorder %s241, 63
      %s243 = scalar_select %p242, %s241, 63
      %s244 = smul.addr %s243, 4
      %s245 = scalar_lea.vmem %s0, %s244
      %s246 = smul.u32 32, %s19
      %p247 = scmp.lt.s32.totalorder %s20, 0
      %s248 = scalar_select %p247, %s20, 0
      %s249 = smul.addr %s248, 4
      %s250 = scalar_lea.vmem %s1, %s249
      %p251 = scmp.lt.s32.totalorder %s20, 0
      %s252 = scalar_select %p251, %s20, 0
      %s253 = scalar_lea.vmem %s2, %s252
      %p254 = scmp.lt.s32.totalorder %s20, 0
      %s255 = scalar_select %p254, %s20, 0
      %s256 = scalar_lea.vmem %s3, %s255
      %s257 = smul.u32 32, %s19
      %p258 = scmp.lt.s32.totalorder %s257, 63
      %s259 = scalar_select %p258, %s257, 63
      %p260 = scmp.lt.s32.totalorder %s20, 0
      %s261 = scalar_select %p260, %s20, 0
      %s262 = sadd.s32 %s261, %s259
      %s263 = smul.addr %s262, 4
      %s264 = scalar_lea.vmem %s4, %s263
      %s265 = smul.u32 32, %s19
      %v267 = vld [vmem:[%s245] sm:$0xf]
      %v268 = vld [vmem:[%s245 + $0x4] sm:$0xf]
      %v269 = vld [vmem:[%s245 + $0x8] sm:$0xf]
      %v270 = vld [vmem:[%s245 + $0xc] sm:$0xf]
      %v271 = vld [vmem:[%s245 + $0x10] sm:$0xf]
      %v272 = vld [vmem:[%s245 + $0x14] sm:$0xf]
      %v273 = vld [vmem:[%s245 + $0x18] sm:$0xf]
      %v274 = vld [vmem:[%s245 + $0x1c] sm:$0xf]
      %v275 = vld [vmem:[%s245 + $0x20] sm:$0xf]
      %v276 = vld [vmem:[%s245 + $0x24] sm:$0xf]
      %v277 = vld [vmem:[%s245 + $0x28] sm:$0xf]
      %v278 = vld [vmem:[%s245 + $0x2c] sm:$0xf]
      %v279 = vld [vmem:[%s245 + $0x30] sm:$0xf]
      %v280 = vld [vmem:[%s245 + $0x34] sm:$0xf]
      %v281 = vld [vmem:[%s245 + $0x38] sm:$0xf]
      %v282 = vld [vmem:[%s245 + $0x3c] sm:$0xf]
      %v283 = vld [vmem:[%s245 + $0x40] sm:$0xf]
      %v284 = vld [vmem:[%s245 + $0x44] sm:$0xf]
      %v285 = vld [vmem:[%s245 + $0x48] sm:$0xf]
      %v286 = vld [vmem:[%s245 + $0x4c] sm:$0xf]
      %v287 = vld [vmem:[%s245 + $0x50] sm:$0xf]
      %v288 = vld [vmem:[%s245 + $0x54] sm:$0xf]
      %v289 = vld [vmem:[%s245 + $0x58] sm:$0xf]
      %v290 = vld [vmem:[%s245 + $0x5c] sm:$0xf]
      %v291 = vld [vmem:[%s245 + $0x60] sm:$0xf]
      %v292 = vld [vmem:[%s245 + $0x64] sm:$0xf]
      %v293 = vld [vmem:[%s245 + $0x68] sm:$0xf]
      %v294 = vld [vmem:[%s245 + $0x6c] sm:$0xf]
      %v295 = vld [vmem:[%s245 + $0x70] sm:$0xf]
      %v296 = vld [vmem:[%s245 + $0x74] sm:$0xf]
      %v297 = vld [vmem:[%s245 + $0x78] sm:$0xf]
      %v298 = vld [vmem:[%s245 + $0x7c] sm:$0xf]
      %v299 = vld [vmem:[%s250] sm:$0xf]
      %v300 = vld [vmem:[%s250 + $0x4] sm:$0xf]
      %v301 = vld [vmem:[%s250 + $0x8] sm:$0xf]
      %v302 = vld [vmem:[%s250 + $0xc] sm:$0xf]
      %v303 = vld [vmem:[%s250 + $0x10] sm:$0xf]
      %v304 = vld [vmem:[%s250 + $0x14] sm:$0xf]
      %v305 = vld [vmem:[%s250 + $0x18] sm:$0xf]
      %v306 = vld [vmem:[%s250 + $0x1c] sm:$0xf]
      %v307 = vld [vmem:[%s250 + $0x20] sm:$0xf]
      %v308 = vld [vmem:[%s250 + $0x24] sm:$0xf]
      %v309 = vld [vmem:[%s250 + $0x28] sm:$0xf]
      %v310 = vld [vmem:[%s250 + $0x2c] sm:$0xf]
      %v311 = vld [vmem:[%s250 + $0x30] sm:$0xf]
      %v312 = vld [vmem:[%s250 + $0x34] sm:$0xf]
      %v313 = vld [vmem:[%s250 + $0x38] sm:$0xf]
      %v314 = vld [vmem:[%s250 + $0x3c] sm:$0xf]
      %v347 = vunpack.c.l.b16 %v267
      %v348 = vunpack.c.l.b16 %v268
      %v349 = vunpack.c.l.b16 %v269
      %v350 = vunpack.c.l.b16 %v270
      %v351 = vunpack.c.l.b16 %v271
      %v352 = vunpack.c.l.b16 %v272
      %v353 = vunpack.c.l.b16 %v273
      %v354 = vunpack.c.l.b16 %v274
      %v355 = vunpack.c.l.b16 %v275
      %v356 = vunpack.c.l.b16 %v276
      %v357 = vunpack.c.l.b16 %v277
      %v358 = vunpack.c.l.b16 %v278
      %v359 = vunpack.c.l.b16 %v279
      %v360 = vunpack.c.l.b16 %v280
      %v361 = vunpack.c.l.b16 %v281
      %v362 = vunpack.c.l.b16 %v282
      %v363 = vunpack.c.l.b16 %v283
      %v364 = vunpack.c.l.b16 %v284
      %v365 = vunpack.c.l.b16 %v285
      %v366 = vunpack.c.l.b16 %v286
      %v367 = vunpack.c.l.b16 %v287
      %v368 = vunpack.c.l.b16 %v288
      %v369 = vunpack.c.l.b16 %v289
      %v370 = vunpack.c.l.b16 %v290
      %v371 = vunpack.c.l.b16 %v291
      %v372 = vunpack.c.l.b16 %v292
      %v373 = vunpack.c.l.b16 %v293
      %v374 = vunpack.c.l.b16 %v294
      %v375 = vunpack.c.l.b16 %v295
      %v376 = vunpack.c.l.b16 %v296
      %v377 = vunpack.c.l.b16 %v297
      %v378 = vunpack.c.l.b16 %v298
      %v379 = vpack.c.b16 %v348, %v347
      %v380 = vpack.c.b16 %v350, %v349
      %v381 = vpack.c.b16 %v352, %v351
      %v382 = vpack.c.b16 %v354, %v353
      %v383 = vpack.c.b16 %v356, %v355
      %v384 = vpack.c.b16 %v358, %v357
      %v385 = vpack.c.b16 %v360, %v359
      %v386 = vpack.c.b16 %v362, %v361
      %v387 = vpack.c.b16 %v364, %v363
      %v388 = vpack.c.b16 %v366, %v365
      %v389 = vpack.c.b16 %v368, %v367
      %v390 = vpack.c.b16 %v370, %v369
      %v391 = vpack.c.b16 %v372, %v371
      %v392 = vpack.c.b16 %v374, %v373
      %v393 = vpack.c.b16 %v376, %v375
      %v394 = vpack.c.b16 %v378, %v377
      %v427 = vunpack.c.l.b16 %v299
      %v428 = vunpack.c.l.b16 %v300
      %v429 = vunpack.c.l.b16 %v301
      %v430 = vunpack.c.l.b16 %v302
      %v431 = vunpack.c.l.b16 %v303
      %v432 = vunpack.c.l.b16 %v304
      %v433 = vunpack.c.l.b16 %v305
      %v434 = vunpack.c.l.b16 %v306
      %v435 = vunpack.c.l.b16 %v307
      %v436 = vunpack.c.l.b16 %v308
      %v437 = vunpack.c.l.b16 %v309
      %v438 = vunpack.c.l.b16 %v310
      %v439 = vunpack.c.l.b16 %v311
      %v440 = vunpack.c.l.b16 %v312
      %v441 = vunpack.c.l.b16 %v313
      %v442 = vunpack.c.l.b16 %v314
      %v443 = vpack.c.b16 %v428, %v427
      %v444 = vpack.c.b16 %v430, %v429
      %v445 = vpack.c.b16 %v432, %v431
      %v446 = vpack.c.b16 %v434, %v433
      %v447 = vpack.c.b16 %v436, %v435
      %v448 = vpack.c.b16 %v438, %v437
      %v449 = vpack.c.b16 %v440, %v439
      %v450 = vpack.c.b16 %v442, %v441
      %459 = vmatprep.subr.bf16.mxu0 0
      %460 = vmatpush1.bf16.msra.mxu0 %v443
      %461 = vmatprep.subr.bf16.mxu0 0
      %462 = vmatpush1.bf16.msra.mxu0 %v444
      %463 = vmatprep.subr.bf16.mxu0 0
      %464 = vmatpush1.bf16.msra.mxu0 %v445
      %465 = vmatprep.subr.bf16.mxu0 0
      %466 = vmatpush1.bf16.msra.mxu0 %v446
      %467 = vmatprep.subr.bf16.mxu0 0
      %468 = vmatpush1.bf16.msra.mxu0 %v447
      %469 = vmatprep.subr.bf16.mxu0 0
      %470 = vmatpush1.bf16.msra.mxu0 %v448
      %471 = vmatprep.subr.bf16.mxu0 0
      %472 = vmatpush1.bf16.msra.mxu0 %v449
      %473 = vmatprep.subr.bf16.mxu0 0
      %474 = vmatpush1.bf16.msra.mxu0 %v450
      %475 = vmatprep.subr.bf16.mxu0 0
      %476 = vmatpush1.bf16.msra.mxu0 0
      %477 = vmatprep.subr.bf16.mxu0 0
      %478 = vmatpush1.bf16.msra.mxu0 0
      %479 = vmatprep.subr.bf16.mxu0 0
      %480 = vmatpush1.bf16.msra.mxu0 0
      %481 = vmatprep.subr.bf16.mxu0 0
      %482 = vmatpush1.bf16.msra.mxu0 0
      %483 = vmatprep.subr.bf16.mxu0 0
      %484 = vmatpush1.bf16.msra.mxu0 0
      %485 = vmatprep.subr.bf16.mxu0 0
      %486 = vmatpush1.bf16.msra.mxu0 0
      %487 = vmatprep.subr.bf16.mxu0 0
      %488 = vmatpush1.bf16.msra.mxu0 0
      %489 = vmatprep.subr.bf16.mxu0 0
      %490 = vmatpush1.bf16.msra.mxu0 0
      %491 = vmatprep.mubr.bf16.mxu0 0
      %492 = vmatmul.mubr.bf16.gmra.mrb[0].mxu0 %v379
      %v493 = vpop.f32.mrb[0].mxu0
      %v494 = vadd.f32 0.0, %v493
      %v495 = vpop.f32.mrb[0].mxu0
      %v496 = vpop.f32.mrb[0].mxu0
      %v497 = vadd.f32 0.0, %v496
      %v498 = vpop.f32.mrb[0].mxu0
      %499 = vmatprep.mubr.bf16.mxu0 0
      %500 = vmatmul.mubr.bf16.gmra.mrb[0].mxu0 %v380
      %v501 = vpop.f32.mrb[0].mxu0
      %v502 = vadd.f32 0.0, %v501
      %v503 = vpop.f32.mrb[0].mxu0
      %v504 = vpop.f32.mrb[0].mxu0
      %v505 = vadd.f32 0.0, %v504
      %v506 = vpop.f32.mrb[0].mxu0
      %507 = vmatprep.mubr.bf16.mxu0 0
      %508 = vmatmul.mubr.bf16.gmra.mrb[0].mxu0 %v381
      %v509 = vpop.f32.mrb[0].mxu0
      %v510 = vadd.f32 0.0, %v509
      %v511 = vpop.f32.mrb[0].mxu0
      %v512 = vpop.f32.mrb[0].mxu0
      %v513 = vadd.f32 0.0, %v512
      %v514 = vpop.f32.mrb[0].mxu0
      %515 = vmatprep.mubr.bf16.mxu0 0
      %516 = vmatmul.mubr.bf16.gmra.mrb[0].mxu0 %v382
      %v517 = vpop.f32.mrb[0].mxu0
      %v518 = vadd.f32 0.0, %v517
      %v519 = vpop.f32.mrb[0].mxu0
      %v520 = vpop.f32.mrb[0].mxu0
      %v521 = vadd.f32 0.0, %v520
      %v522 = vpop.f32.mrb[0].mxu0
      %523 = vmatprep.mubr.bf16.mxu0 0
      %524 = vmatmul.mubr.bf16.gmra.mrb[0].mxu0 %v383
      %v525 = vpop.f32.mrb[0].mxu0
      %v526 = vadd.f32 0.0, %v525
      %v527 = vpop.f32.mrb[0].mxu0
      %v528 = vpop.f32.mrb[0].mxu0
      %v529 = vadd.f32 0.0, %v528
      %v530 = vpop.f32.mrb[0].mxu0
      %531 = vmatprep.mubr.bf16.mxu0 0
      %532 = vmatmul.mubr.bf16.gmra.mrb[0].mxu0 %v384
      %v533 = vpop.f32.mrb[0].mxu0
      %v534 = vadd.f32 0.0, %v533
      %v535 = vpop.f32.mrb[0].mxu0
      %v536 = vpop.f32.mrb[0].mxu0
      %v537 = vadd.f32 0.0, %v536
      %v538 = vpop.f32.mrb[0].mxu0
      %539 = vmatprep.mubr.bf16.mxu0 0
      %540 = vmatmul.mubr.bf16.gmra.mrb[0].mxu0 %v385
      %v541 = vpop.f32.mrb[0].mxu0
      %v542 = vadd.f32 0.0, %v541
      %v543 = vpop.f32.mrb[0].mxu0
      %v544 = vpop.f32.mrb[0].mxu0
      %v545 = vadd.f32 0.0, %v544
      %v546 = vpop.f32.mrb[0].mxu0
      %547 = vmatprep.mubr.bf16.mxu0 0
      %548 = vmatmul.mubr.bf16.gmra.mrb[0].mxu0 %v386
      %v549 = vpop.f32.mrb[0].mxu0
      %v550 = vadd.f32 0.0, %v549
      %v551 = vpop.f32.mrb[0].mxu0
      %v552 = vpop.f32.mrb[0].mxu0
      %v553 = vadd.f32 0.0, %v552
      %v554 = vpop.f32.mrb[0].mxu0
      %555 = vmatprep.mubr.bf16.mxu0 0
      %556 = vmatmul.mubr.bf16.gmra.mrb[0].mxu0 %v387
      %v557 = vpop.f32.mrb[0].mxu0
      %v558 = vadd.f32 0.0, %v557
      %v559 = vpop.f32.mrb[0].mxu0
      %v560 = vpop.f32.mrb[0].mxu0
      %v561 = vadd.f32 0.0, %v560
      %v562 = vpop.f32.mrb[0].mxu0
      %563 = vmatprep.mubr.bf16.mxu0 0
      %564 = vmatmul.mubr.bf16.gmra.mrb[0].mxu0 %v388
      %v565 = vpop.f32.mrb[0].mxu0
      %v566 = vadd.f32 0.0, %v565
      %v567 = vpop.f32.mrb[0].mxu0
      %v568 = vpop.f32.mrb[0].mxu0
      %v569 = vadd.f32 0.0, %v568
      %v570 = vpop.f32.mrb[0].mxu0
      %571 = vmatprep.mubr.bf16.mxu0 0
      %572 = vmatmul.mubr.bf16.gmra.mrb[0].mxu0 %v389
      %v573 = vpop.f32.mrb[0].mxu0
      %v574 = vadd.f32 0.0, %v573
      %v575 = vpop.f32.mrb[0].mxu0
      %v576 = vpop.f32.mrb[0].mxu0
      %v577 = vadd.f32 0.0, %v576
      %v578 = vpop.f32.mrb[0].mxu0
      %579 = vmatprep.mubr.bf16.mxu0 0
      %580 = vmatmul.mubr.bf16.gmra.mrb[0].mxu0 %v390
      %v581 = vpop.f32.mrb[0].mxu0
      %v582 = vadd.f32 0.0, %v581
      %v583 = vpop.f32.mrb[0].mxu0
      %v584 = vpop.f32.mrb[0].mxu0
      %v585 = vadd.f32 0.0, %v584
      %v586 = vpop.f32.mrb[0].mxu0
      %587 = vmatprep.mubr.bf16.mxu0 0
      %588 = vmatmul.mubr.bf16.gmra.mrb[0].mxu0 %v391
      %v589 = vpop.f32.mrb[0].mxu0
      %v590 = vadd.f32 0.0, %v589
      %v591 = vpop.f32.mrb[0].mxu0
      %v592 = vpop.f32.mrb[0].mxu0
      %v593 = vadd.f32 0.0, %v592
      %v594 = vpop.f32.mrb[0].mxu0
      %595 = vmatprep.mubr.bf16.mxu0 0
      %596 = vmatmul.mubr.bf16.gmra.mrb[0].mxu0 %v392
      %v597 = vpop.f32.mrb[0].mxu0
      %v598 = vadd.f32 0.0, %v597
      %v599 = vpop.f32.mrb[0].mxu0
      %v600 = vpop.f32.mrb[0].mxu0
      %v601 = vadd.f32 0.0, %v600
      %v602 = vpop.f32.mrb[0].mxu0
      %603 = vmatprep.mubr.bf16.mxu0 0
      %604 = vmatmul.mubr.bf16.gmra.mrb[0].mxu0 %v393
      %v605 = vpop.f32.mrb[0].mxu0
      %v606 = vadd.f32 0.0, %v605
      %v607 = vpop.f32.mrb[0].mxu0
      %v608 = vpop.f32.mrb[0].mxu0
      %v609 = vadd.f32 0.0, %v608
      %v610 = vpop.f32.mrb[0].mxu0
      %611 = vmatprep.mubr.bf16.mxu0 0
      %612 = vmatmul.mubr.bf16.gmra.mrb[0].mxu0 %v394
      %v613 = vpop.f32.mrb[0].mxu0
      %v614 = vadd.f32 0.0, %v613
      %v615 = vpop.f32.mrb[0].mxu0
      %v616 = vpop.f32.mrb[0].mxu0
      %v617 = vadd.f32 0.0, %v616
      %v618 = vpop.f32.mrb[0].mxu0
      %619 = vdwg.mxu0
      %v620 = vld [vmem:[%s253] sm:$0x1]
      %v622 = vlaneseq
      %v623 = vshrl.u32 %v622, 7
      %v624 = vsub.s32 0, %v623
      %v625 = vrot.slane %v620, %v624
      %v627 = vmul.f32 %v494, %v625
      %v628 = vmul.f32 %v497, %v625
      %v629 = vmul.f32 %v502, %v625
      %v630 = vmul.f32 %v505, %v625
      %v631 = vmul.f32 %v510, %v625
      %v632 = vmul.f32 %v513, %v625
      %v633 = vmul.f32 %v518, %v625
      %v634 = vmul.f32 %v521, %v625
      %v635 = vmul.f32 %v526, %v625
      %v636 = vmul.f32 %v529, %v625
      %v637 = vmul.f32 %v534, %v625
      %v638 = vmul.f32 %v537, %v625
      %v639 = vmul.f32 %v542, %v625
      %v640 = vmul.f32 %v545, %v625
      %v641 = vmul.f32 %v550, %v625
      %v642 = vmul.f32 %v553, %v625
      %v643 = vmul.f32 %v558, %v625
      %v644 = vmul.f32 %v561, %v625
      %v645 = vmul.f32 %v566, %v625
      %v646 = vmul.f32 %v569, %v625
      %v647 = vmul.f32 %v574, %v625
      %v648 = vmul.f32 %v577, %v625
      %v649 = vmul.f32 %v582, %v625
      %v650 = vmul.f32 %v585, %v625
      %v651 = vmul.f32 %v590, %v625
      %v652 = vmul.f32 %v593, %v625
      %v653 = vmul.f32 %v598, %v625
      %v654 = vmul.f32 %v601, %v625
      %v655 = vmul.f32 %v606, %v625
      %v656 = vmul.f32 %v609, %v625
      %v657 = vmul.f32 %v614, %v625
      %v658 = vmul.f32 %v617, %v625
      %v659 = vld [vmem:[%s256] sm:$0x1]
      %v661 = vlaneseq
      %v662 = vshrl.u32 %v661, 7
      %v663 = vsub.s32 0, %v662
      %v664 = vrot.slane %v659, %v663
      %v666 = vadd.f32 %v627, %v664
      %v667 = vadd.f32 %v628, %v664
      %v668 = vadd.f32 %v629, %v664
      %v669 = vadd.f32 %v630, %v664
      %v670 = vadd.f32 %v631, %v664
      %v671 = vadd.f32 %v632, %v664
      %v672 = vadd.f32 %v633, %v664
      %v673 = vadd.f32 %v634, %v664
      %v674 = vadd.f32 %v635, %v664
      %v675 = vadd.f32 %v636, %v664
      %v676 = vadd.f32 %v637, %v664
      %v677 = vadd.f32 %v638, %v664
      %v678 = vadd.f32 %v639, %v664
      %v679 = vadd.f32 %v640, %v664
      %v680 = vadd.f32 %v641, %v664
      %v681 = vadd.f32 %v642, %v664
      %v682 = vadd.f32 %v643, %v664
      %v683 = vadd.f32 %v644, %v664
      %v684 = vadd.f32 %v645, %v664
      %v685 = vadd.f32 %v646, %v664
      %v686 = vadd.f32 %v647, %v664
      %v687 = vadd.f32 %v648, %v664
      %v688 = vadd.f32 %v649, %v664
      %v689 = vadd.f32 %v650, %v664
      %v690 = vadd.f32 %v651, %v664
      %v691 = vadd.f32 %v652, %v664
      %v692 = vadd.f32 %v653, %v664
      %v693 = vadd.f32 %v654, %v664
      %v694 = vadd.f32 %v655, %v664
      %v695 = vadd.f32 %v656, %v664
      %v696 = vadd.f32 %v657, %v664
      %v697 = vadd.f32 %v658, %v664
      %v698 = vmax.f32 %v666, 0.0
      %v699 = vmax.f32 %v667, 0.0
      %v700 = vmax.f32 %v668, 0.0
      %v701 = vmax.f32 %v669, 0.0
      %v702 = vmax.f32 %v670, 0.0
      %v703 = vmax.f32 %v671, 0.0
      %v704 = vmax.f32 %v672, 0.0
      %v705 = vmax.f32 %v673, 0.0
      %v706 = vmax.f32 %v674, 0.0
      %v707 = vmax.f32 %v675, 0.0
      %v708 = vmax.f32 %v676, 0.0
      %v709 = vmax.f32 %v677, 0.0
      %v710 = vmax.f32 %v678, 0.0
      %v711 = vmax.f32 %v679, 0.0
      %v712 = vmax.f32 %v680, 0.0
      %v713 = vmax.f32 %v681, 0.0
      %v714 = vmax.f32 %v682, 0.0
      %v715 = vmax.f32 %v683, 0.0
      %v716 = vmax.f32 %v684, 0.0
      %v717 = vmax.f32 %v685, 0.0
      %v718 = vmax.f32 %v686, 0.0
      %v719 = vmax.f32 %v687, 0.0
      %v720 = vmax.f32 %v688, 0.0
      %v721 = vmax.f32 %v689, 0.0
      %v722 = vmax.f32 %v690, 0.0
      %v723 = vmax.f32 %v691, 0.0
      %v724 = vmax.f32 %v692, 0.0
      %v725 = vmax.f32 %v693, 0.0
      %v726 = vmax.f32 %v694, 0.0
      %v727 = vmax.f32 %v695, 0.0
      %v728 = vmax.f32 %v696, 0.0
      %v729 = vmax.f32 %v697, 0.0
      %v730 = vpack.c.bf16 %v699, %v698
      %v731 = vpack.c.bf16 %v701, %v700
      %v732 = vpack.c.bf16 %v703, %v702
      %v733 = vpack.c.bf16 %v705, %v704
      %v734 = vpack.c.bf16 %v707, %v706
      %v735 = vpack.c.bf16 %v709, %v708
      %v736 = vpack.c.bf16 %v711, %v710
      %v737 = vpack.c.bf16 %v713, %v712
      %v738 = vpack.c.bf16 %v715, %v714
      %v739 = vpack.c.bf16 %v717, %v716
      %v740 = vpack.c.bf16 %v719, %v718
      %v741 = vpack.c.bf16 %v721, %v720
      %v742 = vpack.c.bf16 %v723, %v722
      %v743 = vpack.c.bf16 %v725, %v724
      %v744 = vpack.c.bf16 %v727, %v726
      %v745 = vpack.c.bf16 %v729, %v728
      %v762 = vunpack.c.l.b16 %v730
      %v763 = vunpack.c.h.b16 %v730
      %v764 = vunpack.c.l.b16 %v731
      %v765 = vunpack.c.h.b16 %v731
      %v766 = vunpack.c.l.b16 %v732
      %v767 = vunpack.c.h.b16 %v732
      %v768 = vunpack.c.l.b16 %v733
      %v769 = vunpack.c.h.b16 %v733
      %v770 = vunpack.c.l.b16 %v734
      %v771 = vunpack.c.h.b16 %v734
      %v772 = vunpack.c.l.b16 %v735
      %v773 = vunpack.c.h.b16 %v735
      %v774 = vunpack.c.l.b16 %v736
      %v775 = vunpack.c.h.b16 %v736
      %v776 = vunpack.c.l.b16 %v737
      %v777 = vunpack.c.h.b16 %v737
      %v778 = vunpack.c.l.b16 %v738
      %v779 = vunpack.c.h.b16 %v738
      %v780 = vunpack.c.l.b16 %v739
      %v781 = vunpack.c.h.b16 %v739
      %v782 = vunpack.c.l.b16 %v740
      %v783 = vunpack.c.h.b16 %v740
      %v784 = vunpack.c.l.b16 %v741
      %v785 = vunpack.c.h.b16 %v741
      %v786 = vunpack.c.l.b16 %v742
      %v787 = vunpack.c.h.b16 %v742
      %v788 = vunpack.c.l.b16 %v743
      %v789 = vunpack.c.h.b16 %v743
      %v790 = vunpack.c.l.b16 %v744
      %v791 = vunpack.c.h.b16 %v744
      %v792 = vunpack.c.l.b16 %v745
      %v793 = vunpack.c.h.b16 %v745
      %v794 = vpack.c.b16 %v762, %v762
      %v795 = vpack.c.b16 %v763, %v763
      %v796 = vpack.c.b16 %v764, %v764
      %v797 = vpack.c.b16 %v765, %v765
      %v798 = vpack.c.b16 %v766, %v766
      %v799 = vpack.c.b16 %v767, %v767
      %v800 = vpack.c.b16 %v768, %v768
      %v801 = vpack.c.b16 %v769, %v769
      %v802 = vpack.c.b16 %v770, %v770
      %v803 = vpack.c.b16 %v771, %v771
      %v804 = vpack.c.b16 %v772, %v772
      %v805 = vpack.c.b16 %v773, %v773
      %v806 = vpack.c.b16 %v774, %v774
      %v807 = vpack.c.b16 %v775, %v775
      %v808 = vpack.c.b16 %v776, %v776
      %v809 = vpack.c.b16 %v777, %v777
      %v810 = vpack.c.b16 %v778, %v778
      %v811 = vpack.c.b16 %v779, %v779
      %v812 = vpack.c.b16 %v780, %v780
      %v813 = vpack.c.b16 %v781, %v781
      %v814 = vpack.c.b16 %v782, %v782
      %v815 = vpack.c.b16 %v783, %v783
      %v816 = vpack.c.b16 %v784, %v784
      %v817 = vpack.c.b16 %v785, %v785
      %v818 = vpack.c.b16 %v786, %v786
      %v819 = vpack.c.b16 %v787, %v787
      %v820 = vpack.c.b16 %v788, %v788
      %v821 = vpack.c.b16 %v789, %v789
      %v822 = vpack.c.b16 %v790, %v790
      %v823 = vpack.c.b16 %v791, %v791
      %v824 = vpack.c.b16 %v792, %v792
      %v825 = vpack.c.b16 %v793, %v793
      %858 = vst [vmem:[%s264] sm:$0xf] %v794
      %859 = vst [vmem:[%s264 + $0x4] sm:$0xf] %v795
      %860 = vst [vmem:[%s264 + $0x8] sm:$0xf] %v796
      %861 = vst [vmem:[%s264 + $0xc] sm:$0xf] %v797
      %862 = vst [vmem:[%s264 + $0x10] sm:$0xf] %v798
      %863 = vst [vmem:[%s264 + $0x14] sm:$0xf] %v799
      %864 = vst [vmem:[%s264 + $0x18] sm:$0xf] %v800
      %865 = vst [vmem:[%s264 + $0x1c] sm:$0xf] %v801
      %866 = vst [vmem:[%s264 + $0x20] sm:$0xf] %v802
      %867 = vst [vmem:[%s264 + $0x24] sm:$0xf] %v803
      %868 = vst [vmem:[%s264 + $0x28] sm:$0xf] %v804
      %869 = vst [vmem:[%s264 + $0x2c] sm:$0xf] %v805
      %870 = vst [vmem:[%s264 + $0x30] sm:$0xf] %v806
      %871 = vst [vmem:[%s264 + $0x34] sm:$0xf] %v807
      %872 = vst [vmem:[%s264 + $0x38] sm:$0xf] %v808
      %873 = vst [vmem:[%s264 + $0x3c] sm:$0xf] %v809
      %874 = vst [vmem:[%s264 + $0x40] sm:$0xf] %v810
      %875 = vst [vmem:[%s264 + $0x44] sm:$0xf] %v811
      %876 = vst [vmem:[%s264 + $0x48] sm:$0xf] %v812
      %877 = vst [vmem:[%s264 + $0x4c] sm:$0xf] %v813
      %878 = vst [vmem:[%s264 + $0x50] sm:$0xf] %v814
      %879 = vst [vmem:[%s264 + $0x54] sm:$0xf] %v815
      %880 = vst [vmem:[%s264 + $0x58] sm:$0xf] %v816
      %881 = vst [vmem:[%s264 + $0x5c] sm:$0xf] %v817
      %882 = vst [vmem:[%s264 + $0x60] sm:$0xf] %v818
      %883 = vst [vmem:[%s264 + $0x64] sm:$0xf] %v819
      %884 = vst [vmem:[%s264 + $0x68] sm:$0xf] %v820
      %885 = vst [vmem:[%s264 + $0x6c] sm:$0xf] %v821
      %886 = vst [vmem:[%s264 + $0x70] sm:$0xf] %v822
      %887 = vst [vmem:[%s264 + $0x74] sm:$0xf] %v823
      %888 = vst [vmem:[%s264 + $0x78] sm:$0xf] %v824
      %889 = vst [vmem:[%s264 + $0x7c] sm:$0xf] %v825
      %s890 = smul.u32 32, %s19
      %p891 = scmp.lt.s32.totalorder %s890, 63
      %s892 = scalar_select %p891, %s890, 63
      %p893 = scmp.lt.s32.totalorder %s20, 0
      %s894 = scalar_select %p893, %s20, 0
      %s895 = sadd.s32 %s894, %s892
      %s896 = smul.addr %s895, 4
      %s897 = scalar_lea.vmem %s4, %s896
      // Predicated region
      $region37: #{deeplabv3plus_forward.16} parent=35 // pred_check
        %p898 = pneg %p151
      $region38: #{deeplabv3plus_forward.16} parent=35 // pred_check_branch
        %900 = sbr.rel (%p898) target = $region40
      $region39: #{deeplabv3plus_forward.16} parent=35 // pred_region
        %s901 = smul.u32 32, %s19
      $region40: #{deeplabv3plus_forward.16} parent=35 // pred_fallthru
        _
    $region36: #{deeplabv3plus_forward.16} parent=5 // pred_fallthru
      _
    %p902 = scmp.le.s32.totalorder 2, %s10
    // Predicated region
    $region41: #{deeplabv3plus_forward.16} parent=5 // pred_check
      %p903 = pneg %p902
    $region42: #{deeplabv3plus_forward.16} parent=5 // pred_check_branch
      %905 = sbr.rel (%p903) target = $region44
    $region43: #{deeplabv3plus_forward.16} parent=5 // pred_region
      %s906 = ssub.s32 %s10, 2
      // Predicated region
      $region45: #{deeplabv3plus_forward.16} parent=43 // pred_check
        %p907 = pneg %p157
      $region46: #{deeplabv3plus_forward.16} parent=43 // pred_check_branch
        %909 = sbr.rel (%p907) target = $region48
      $region47: #{deeplabv3plus_forward.16} parent=43 // pred_region
        %s910 = smul.u32 32, %s21
        %p911 = scmp.lt.s32.totalorder %s910, 63
        %s912 = scalar_select %p911, %s910, 63
        %p913 = scmp.lt.s32.totalorder %s22, 0
        %s914 = scalar_select %p913, %s22, 0
        %s915 = sadd.s32 %s914, %s912
        %s916 = smul.addr %s915, 4
        %s917 = scalar_lea.vmem %s4, %s916
      $region48: #{deeplabv3plus_forward.16} parent=43 // pred_fallthru
        _
    $region44: #{deeplabv3plus_forward.16} parent=5 // pred_fallthru
      _
  $region6: #{deeplabv3plus_forward.16} parent=0 // loop_footer
    %s14 = sadd.s32 1, %s10
  $region7: #{deeplabv3plus_forward.16} parent=0 // loop_footer_branch
    %9 = sbr.rel target = $region3
  $region8: #{deeplabv3plus_forward.16} parent=0 // loop_exit
    _

// kernel: deeplabv3plus_forward.17
$region0: #{deeplabv3plus_forward.17}
  #allocation0 [shape = 'u32[]', space=smem, size = 0x4, offset = 0x4, fixed_abs, tag = 'smem constant byte address 0x4 - core index']
  #allocation1 [shape = 'u32[144,128]{1,0:T(1,128)}', space=vmem, size = 0x12000, scoped, tag = 'internal scratch']
  %s0 = inlined_call_operand.vmem [shape: bf16[128,128], index: 0, kind: input, shape index: {}]
  %s1 = inlined_call_operand.vmem [shape: bf16[128,128], index: 1, kind: input, shape index: {}]
  %s2 = inlined_call_operand.vmem [shape: f32[1,128], index: 2, kind: input, shape index: {}]
  %s3 = inlined_call_operand.vmem [shape: f32[1,128], index: 3, kind: input, shape index: {}]
  %s4 = inlined_call_operand.vmem [shape: bf16[128,128], index: 4, kind: output, shape index: {}]
  %s5 = sld [smem:[#allocation0]]
  $region26: #{deeplabv3plus_forward.17} parent=0
    _
  %s7 = ssub.s32 1, %s5
  %s8 = scalar_select 0, %s7, %s5
  // Predicated region
  $region2: #{deeplabv3plus_forward.17} parent=0 // pred_check
    _
  $region3: #{deeplabv3plus_forward.17} parent=0 // pred_check_branch
    %10 = sbr.rel (0) target = $region5
  $region4: #{deeplabv3plus_forward.17} parent=0 // pred_region
    _
  $region5: #{deeplabv3plus_forward.17} parent=0 // pred_fallthru
    _
  // Predicated region
  $region6: #{deeplabv3plus_forward.17} parent=0 // pred_check
    _
  $region7: #{deeplabv3plus_forward.17} parent=0 // pred_check_branch
    %12 = sbr.rel (0) target = $region9
  $region8: #{deeplabv3plus_forward.17} parent=0 // pred_region
    _
  $region9: #{deeplabv3plus_forward.17} parent=0 // pred_fallthru
    _
  // Predicated region
  $region10: #{deeplabv3plus_forward.17} parent=0 // pred_check
    _
  $region11: #{deeplabv3plus_forward.17} parent=0 // pred_check_branch
    %14 = sbr.rel (0) target = $region13
  $region12: #{deeplabv3plus_forward.17} parent=0 // pred_region
    _
  $region13: #{deeplabv3plus_forward.17} parent=0 // pred_fallthru
    _
  // Predicated region
  $region14: #{deeplabv3plus_forward.17} parent=0 // pred_check
    _
  $region15: #{deeplabv3plus_forward.17} parent=0 // pred_check_branch
    %16 = sbr.rel (0) target = $region17
  $region16: #{deeplabv3plus_forward.17} parent=0 // pred_region
    _
  $region17: #{deeplabv3plus_forward.17} parent=0 // pred_fallthru
    _
  %v18 = vld [vmem:[%s0] sm:$0xf]
  %v19 = vld [vmem:[%s0 + $0x4] sm:$0xf]
  %v20 = vld [vmem:[%s0 + $0x8] sm:$0xf]
  %v21 = vld [vmem:[%s0 + $0xc] sm:$0xf]
  %v22 = vld [vmem:[%s0 + $0x10] sm:$0xf]
  %v23 = vld [vmem:[%s0 + $0x14] sm:$0xf]
  %v24 = vld [vmem:[%s0 + $0x18] sm:$0xf]
  %v25 = vld [vmem:[%s0 + $0x1c] sm:$0xf]
  %v26 = vld [vmem:[%s0 + $0x20] sm:$0xf]
  %v27 = vld [vmem:[%s0 + $0x24] sm:$0xf]
  %v28 = vld [vmem:[%s0 + $0x28] sm:$0xf]
  %v29 = vld [vmem:[%s0 + $0x2c] sm:$0xf]
  %v30 = vld [vmem:[%s0 + $0x30] sm:$0xf]
  %v31 = vld [vmem:[%s0 + $0x34] sm:$0xf]
  %v32 = vld [vmem:[%s0 + $0x38] sm:$0xf]
  %v33 = vld [vmem:[%s0 + $0x3c] sm:$0xf]
  %v34 = vld [vmem:[%s1] sm:$0xf]
  %v35 = vld [vmem:[%s1 + $0x4] sm:$0xf]
  %v36 = vld [vmem:[%s1 + $0x8] sm:$0xf]
  %v37 = vld [vmem:[%s1 + $0xc] sm:$0xf]
  %v38 = vld [vmem:[%s1 + $0x10] sm:$0xf]
  %v39 = vld [vmem:[%s1 + $0x14] sm:$0xf]
  %v40 = vld [vmem:[%s1 + $0x18] sm:$0xf]
  %v41 = vld [vmem:[%s1 + $0x1c] sm:$0xf]
  %v42 = vld [vmem:[%s1 + $0x20] sm:$0xf]
  %v43 = vld [vmem:[%s1 + $0x24] sm:$0xf]
  %v44 = vld [vmem:[%s1 + $0x28] sm:$0xf]
  %v45 = vld [vmem:[%s1 + $0x2c] sm:$0xf]
  %v46 = vld [vmem:[%s1 + $0x30] sm:$0xf]
  %v47 = vld [vmem:[%s1 + $0x34] sm:$0xf]
  %v48 = vld [vmem:[%s1 + $0x38] sm:$0xf]
  %v49 = vld [vmem:[%s1 + $0x3c] sm:$0xf]
  %v66 = vunpack.c.l.b16 %v18
  %v67 = vunpack.c.l.b16 %v19
  %v68 = vunpack.c.l.b16 %v20
  %v69 = vunpack.c.l.b16 %v21
  %v70 = vunpack.c.l.b16 %v22
  %v71 = vunpack.c.l.b16 %v23
  %v72 = vunpack.c.l.b16 %v24
  %v73 = vunpack.c.l.b16 %v25
  %v74 = vunpack.c.l.b16 %v26
  %v75 = vunpack.c.l.b16 %v27
  %v76 = vunpack.c.l.b16 %v28
  %v77 = vunpack.c.l.b16 %v29
  %v78 = vunpack.c.l.b16 %v30
  %v79 = vunpack.c.l.b16 %v31
  %v80 = vunpack.c.l.b16 %v32
  %v81 = vunpack.c.l.b16 %v33
  %v82 = vpack.c.b16 %v67, %v66
  %v83 = vpack.c.b16 %v69, %v68
  %v84 = vpack.c.b16 %v71, %v70
  %v85 = vpack.c.b16 %v73, %v72
  %v86 = vpack.c.b16 %v75, %v74
  %v87 = vpack.c.b16 %v77, %v76
  %v88 = vpack.c.b16 %v79, %v78
  %v89 = vpack.c.b16 %v81, %v80
  %v114 = vunpack.c.l.b16 %v34
  %v115 = vunpack.c.l.b16 %v35
  %v116 = vunpack.c.l.b16 %v36
  %v117 = vunpack.c.l.b16 %v37
  %v118 = vunpack.c.l.b16 %v38
  %v119 = vunpack.c.l.b16 %v39
  %v120 = vunpack.c.l.b16 %v40
  %v121 = vunpack.c.l.b16 %v41
  %v122 = vunpack.c.l.b16 %v42
  %v123 = vunpack.c.l.b16 %v43
  %v124 = vunpack.c.l.b16 %v44
  %v125 = vunpack.c.l.b16 %v45
  %v126 = vunpack.c.l.b16 %v46
  %v127 = vunpack.c.l.b16 %v47
  %v128 = vunpack.c.l.b16 %v48
  %v129 = vunpack.c.l.b16 %v49
  %v130 = vpack.c.b16 %v115, %v114
  %v131 = vpack.c.b16 %v117, %v116
  %v132 = vpack.c.b16 %v119, %v118
  %v133 = vpack.c.b16 %v121, %v120
  %v134 = vpack.c.b16 %v123, %v122
  %v135 = vpack.c.b16 %v125, %v124
  %v136 = vpack.c.b16 %v127, %v126
  %v137 = vpack.c.b16 %v129, %v128
  %146 = vmatprep.subr.bf16.mxu0 0
  %147 = vmatpush1.bf16.msra.mxu0 %v130
  %148 = vmatprep.subr.bf16.mxu0 0
  %149 = vmatpush1.bf16.msra.mxu0 %v131
  %150 = vmatprep.subr.bf16.mxu0 0
  %151 = vmatpush1.bf16.msra.mxu0 %v132
  %152 = vmatprep.subr.bf16.mxu0 0
  %153 = vmatpush1.bf16.msra.mxu0 %v133
  %154 = vmatprep.subr.bf16.mxu0 0
  %155 = vmatpush1.bf16.msra.mxu0 %v134
  %156 = vmatprep.subr.bf16.mxu0 0
  %157 = vmatpush1.bf16.msra.mxu0 %v135
  %158 = vmatprep.subr.bf16.mxu0 0
  %159 = vmatpush1.bf16.msra.mxu0 %v136
  %160 = vmatprep.subr.bf16.mxu0 0
  %161 = vmatpush1.bf16.msra.mxu0 %v137
  %162 = vmatprep.subr.bf16.mxu0 0
  %163 = vmatpush1.bf16.msra.mxu0 0
  %164 = vmatprep.subr.bf16.mxu0 0
  %165 = vmatpush1.bf16.msra.mxu0 0
  %166 = vmatprep.subr.bf16.mxu0 0
  %167 = vmatpush1.bf16.msra.mxu0 0
  %168 = vmatprep.subr.bf16.mxu0 0
  %169 = vmatpush1.bf16.msra.mxu0 0
  %170 = vmatprep.subr.bf16.mxu0 0
  %171 = vmatpush1.bf16.msra.mxu0 0
  %172 = vmatprep.subr.bf16.mxu0 0
  %173 = vmatpush1.bf16.msra.mxu0 0
  %174 = vmatprep.subr.bf16.mxu0 0
  %175 = vmatpush1.bf16.msra.mxu0 0
  %176 = vmatprep.subr.bf16.mxu0 0
  %177 = vmatpush1.bf16.msra.mxu0 0
  %178 = vmatprep.mubr.bf16.mxu0 0
  %179 = vmatmul.mubr.bf16.gmra.mrb[0].mxu0 %v82
  %v180 = vpop.f32.mrb[0].mxu0
  %v181 = vadd.f32 0.0, %v180
  %v182 = vpop.f32.mrb[0].mxu0
  %v183 = vpop.f32.mrb[0].mxu0
  %v184 = vadd.f32 0.0, %v183
  %v185 = vpop.f32.mrb[0].mxu0
  %186 = vmatprep.mubr.bf16.mxu0 0
  %187 = vmatmul.mubr.bf16.gmra.mrb[0].mxu0 %v83
  %v188 = vpop.f32.mrb[0].mxu0
  %v189 = vadd.f32 0.0, %v188
  %v190 = vpop.f32.mrb[0].mxu0
  %v191 = vpop.f32.mrb[0].mxu0
  %v192 = vadd.f32 0.0, %v191
  %v193 = vpop.f32.mrb[0].mxu0
  %194 = vmatprep.mubr.bf16.mxu0 0
  %195 = vmatmul.mubr.bf16.gmra.mrb[0].mxu0 %v84
  %v196 = vpop.f32.mrb[0].mxu0
  %v197 = vadd.f32 0.0, %v196
  %v198 = vpop.f32.mrb[0].mxu0
  %v199 = vpop.f32.mrb[0].mxu0
  %v200 = vadd.f32 0.0, %v199
  %v201 = vpop.f32.mrb[0].mxu0
  %202 = vmatprep.mubr.bf16.mxu0 0
  %203 = vmatmul.mubr.bf16.gmra.mrb[0].mxu0 %v85
  %v204 = vpop.f32.mrb[0].mxu0
  %v205 = vadd.f32 0.0, %v204
  %v206 = vpop.f32.mrb[0].mxu0
  %v207 = vpop.f32.mrb[0].mxu0
  %v208 = vadd.f32 0.0, %v207
  %v209 = vpop.f32.mrb[0].mxu0
  %210 = vmatprep.mubr.bf16.mxu0 0
  %211 = vmatmul.mubr.bf16.gmra.mrb[0].mxu0 %v86
  %v212 = vpop.f32.mrb[0].mxu0
  %v213 = vadd.f32 0.0, %v212
  %v214 = vpop.f32.mrb[0].mxu0
  %v215 = vpop.f32.mrb[0].mxu0
  %v216 = vadd.f32 0.0, %v215
  %v217 = vpop.f32.mrb[0].mxu0
  %218 = vmatprep.mubr.bf16.mxu0 0
  %219 = vmatmul.mubr.bf16.gmra.mrb[0].mxu0 %v87
  %v220 = vpop.f32.mrb[0].mxu0
  %v221 = vadd.f32 0.0, %v220
  %v222 = vpop.f32.mrb[0].mxu0
  %v223 = vpop.f32.mrb[0].mxu0
  %v224 = vadd.f32 0.0, %v223
  %v225 = vpop.f32.mrb[0].mxu0
  %226 = vmatprep.mubr.bf16.mxu0 0
  %227 = vmatmul.mubr.bf16.gmra.mrb[0].mxu0 %v88
  %v228 = vpop.f32.mrb[0].mxu0
  %v229 = vadd.f32 0.0, %v228
  %v230 = vpop.f32.mrb[0].mxu0
  %v231 = vpop.f32.mrb[0].mxu0
  %v232 = vadd.f32 0.0, %v231
  %v233 = vpop.f32.mrb[0].mxu0
  %234 = vmatprep.mubr.bf16.mxu0 0
  %235 = vmatmul.mubr.bf16.gmra.mrb[0].mxu0 %v89
  %v236 = vpop.f32.mrb[0].mxu0
  %v237 = vadd.f32 0.0, %v236
  %v238 = vpop.f32.mrb[0].mxu0
  %v239 = vpop.f32.mrb[0].mxu0
  %v240 = vadd.f32 0.0, %v239
  %v241 = vpop.f32.mrb[0].mxu0
  %242 = vdwg.mxu0
  %v243 = vld [vmem:[%s2] sm:$0x1]
  %v245 = vlaneseq
  %v246 = vshrl.u32 %v245, 7
  %v247 = vsub.s32 0, %v246
  %v248 = vrot.slane %v243, %v247
  %v250 = vmul.f32 %v181, %v248
  %v251 = vmul.f32 %v184, %v248
  %v252 = vmul.f32 %v189, %v248
  %v253 = vmul.f32 %v192, %v248
  %v254 = vmul.f32 %v197, %v248
  %v255 = vmul.f32 %v200, %v248
  %v256 = vmul.f32 %v205, %v248
  %v257 = vmul.f32 %v208, %v248
  %v258 = vmul.f32 %v213, %v248
  %v259 = vmul.f32 %v216, %v248
  %v260 = vmul.f32 %v221, %v248
  %v261 = vmul.f32 %v224, %v248
  %v262 = vmul.f32 %v229, %v248
  %v263 = vmul.f32 %v232, %v248
  %v264 = vmul.f32 %v237, %v248
  %v265 = vmul.f32 %v240, %v248
  %v266 = vld [vmem:[%s3] sm:$0x1]
  %v268 = vlaneseq
  %v269 = vshrl.u32 %v268, 7
  %v270 = vsub.s32 0, %v269
  %v271 = vrot.slane %v266, %v270
  %v273 = vadd.f32 %v250, %v271
  %v274 = vadd.f32 %v251, %v271
  %v275 = vadd.f32 %v252, %v271
  %v276 = vadd.f32 %v253, %v271
  %v277 = vadd.f32 %v254, %v271
  %v278 = vadd.f32 %v255, %v271
  %v279 = vadd.f32 %v256, %v271
  %v280 = vadd.f32 %v257, %v271
  %v281 = vadd.f32 %v258, %v271
  %v282 = vadd.f32 %v259, %v271
  %v283 = vadd.f32 %v260, %v271
  %v284 = vadd.f32 %v261, %v271
  %v285 = vadd.f32 %v262, %v271
  %v286 = vadd.f32 %v263, %v271
  %v287 = vadd.f32 %v264, %v271
  %v288 = vadd.f32 %v265, %v271
  %v289 = vmax.f32 %v273, 0.0
  %v290 = vmax.f32 %v274, 0.0
  %v291 = vmax.f32 %v275, 0.0
  %v292 = vmax.f32 %v276, 0.0
  %v293 = vmax.f32 %v277, 0.0
  %v294 = vmax.f32 %v278, 0.0
  %v295 = vmax.f32 %v279, 0.0
  %v296 = vmax.f32 %v280, 0.0
  %v297 = vmax.f32 %v281, 0.0
  %v298 = vmax.f32 %v282, 0.0
  %v299 = vmax.f32 %v283, 0.0
  %v300 = vmax.f32 %v284, 0.0
  %v301 = vmax.f32 %v285, 0.0
  %v302 = vmax.f32 %v286, 0.0
  %v303 = vmax.f32 %v287, 0.0
  %v304 = vmax.f32 %v288, 0.0
  %v305 = vpack.c.bf16 %v290, %v289
  %v306 = vpack.c.bf16 %v292, %v291
  %v307 = vpack.c.bf16 %v294, %v293
  %v308 = vpack.c.bf16 %v296, %v295
  %v309 = vpack.c.bf16 %v298, %v297
  %v310 = vpack.c.bf16 %v300, %v299
  %v311 = vpack.c.bf16 %v302, %v301
  %v312 = vpack.c.bf16 %v304, %v303
  %v321 = vunpack.c.l.b16 %v305
  %v322 = vunpack.c.h.b16 %v305
  %v323 = vunpack.c.l.b16 %v306
  %v324 = vunpack.c.h.b16 %v306
  %v325 = vunpack.c.l.b16 %v307
  %v326 = vunpack.c.h.b16 %v307
  %v327 = vunpack.c.l.b16 %v308
  %v328 = vunpack.c.h.b16 %v308
  %v329 = vunpack.c.l.b16 %v309
  %v330 = vunpack.c.h.b16 %v309
  %v331 = vunpack.c.l.b16 %v310
  %v332 = vunpack.c.h.b16 %v310
  %v333 = vunpack.c.l.b16 %v311
  %v334 = vunpack.c.h.b16 %v311
  %v335 = vunpack.c.l.b16 %v312
  %v336 = vunpack.c.h.b16 %v312
  %v337 = vpack.c.b16 %v321, %v321
  %v338 = vpack.c.b16 %v322, %v322
  %v339 = vpack.c.b16 %v323, %v323
  %v340 = vpack.c.b16 %v324, %v324
  %v341 = vpack.c.b16 %v325, %v325
  %v342 = vpack.c.b16 %v326, %v326
  %v343 = vpack.c.b16 %v327, %v327
  %v344 = vpack.c.b16 %v328, %v328
  %v345 = vpack.c.b16 %v329, %v329
  %v346 = vpack.c.b16 %v330, %v330
  %v347 = vpack.c.b16 %v331, %v331
  %v348 = vpack.c.b16 %v332, %v332
  %v349 = vpack.c.b16 %v333, %v333
  %v350 = vpack.c.b16 %v334, %v334
  %v351 = vpack.c.b16 %v335, %v335
  %v352 = vpack.c.b16 %v336, %v336
  %369 = vst [vmem:[%s4] sm:$0xf] %v337
  %370 = vst [vmem:[%s4 + $0x4] sm:$0xf] %v338
  %371 = vst [vmem:[%s4 + $0x8] sm:$0xf] %v339
  %372 = vst [vmem:[%s4 + $0xc] sm:$0xf] %v340
  %373 = vst [vmem:[%s4 + $0x10] sm:$0xf] %v341
  %374 = vst [vmem:[%s4 + $0x14] sm:$0xf] %v342
  %375 = vst [vmem:[%s4 + $0x18] sm:$0xf] %v343
  %376 = vst [vmem:[%s4 + $0x1c] sm:$0xf] %v344
  %377 = vst [vmem:[%s4 + $0x20] sm:$0xf] %v345
  %378 = vst [vmem:[%s4 + $0x24] sm:$0xf] %v346
  %379 = vst [vmem:[%s4 + $0x28] sm:$0xf] %v347
  %380 = vst [vmem:[%s4 + $0x2c] sm:$0xf] %v348
  %381 = vst [vmem:[%s4 + $0x30] sm:$0xf] %v349
  %382 = vst [vmem:[%s4 + $0x34] sm:$0xf] %v350
  %383 = vst [vmem:[%s4 + $0x38] sm:$0xf] %v351
  %384 = vst [vmem:[%s4 + $0x3c] sm:$0xf] %v352
  // Predicated region
  $region18: #{deeplabv3plus_forward.17} parent=0 // pred_check
    _
  $region19: #{deeplabv3plus_forward.17} parent=0 // pred_check_branch
    %386 = sbr.rel (0) target = $region21
  $region20: #{deeplabv3plus_forward.17} parent=0 // pred_region
    _
  $region21: #{deeplabv3plus_forward.17} parent=0 // pred_fallthru
    _
  // Predicated region
  $region22: #{deeplabv3plus_forward.17} parent=0 // pred_check
    _
  $region23: #{deeplabv3plus_forward.17} parent=0 // pred_check_branch
    %388 = sbr.rel (0) target = $region25
  $region24: #{deeplabv3plus_forward.17} parent=0 // pred_region
    _
  $region25: #{deeplabv3plus_forward.17} parent=0 // pred_fallthru
    _

// kernel: deeplabv3plus_forward.18
$region0: #{deeplabv3plus_forward.18}
  #allocation0 [shape = 'u32[]', space=smem, size = 0x4, offset = 0x4, fixed_abs, tag = 'smem constant byte address 0x4 - core index']
  #allocation1 [shape = 'u32[144,128]{1,0:T(1,128)}', space=vmem, size = 0x12000, scoped, tag = 'internal scratch']
  %s0 = inlined_call_operand.vmem [shape: bf16[128,256], index: 0, kind: input, shape index: {}]
  %s1 = inlined_call_operand.vmem [shape: bf16[256,128], index: 1, kind: input, shape index: {}]
  %s2 = inlined_call_operand.vmem [shape: f32[1,128], index: 2, kind: input, shape index: {}]
  %s3 = inlined_call_operand.vmem [shape: f32[1,128], index: 3, kind: input, shape index: {}]
  %s4 = inlined_call_operand.vmem [shape: bf16[128,128], index: 4, kind: output, shape index: {}]
  %s5 = sld [smem:[#allocation0]]
  $region26: #{deeplabv3plus_forward.18} parent=0
    _
  %s7 = ssub.s32 1, %s5
  %s8 = scalar_select 0, %s7, %s5
  // Predicated region
  $region2: #{deeplabv3plus_forward.18} parent=0 // pred_check
    _
  $region3: #{deeplabv3plus_forward.18} parent=0 // pred_check_branch
    %10 = sbr.rel (0) target = $region5
  $region4: #{deeplabv3plus_forward.18} parent=0 // pred_region
    _
  $region5: #{deeplabv3plus_forward.18} parent=0 // pred_fallthru
    _
  // Predicated region
  $region6: #{deeplabv3plus_forward.18} parent=0 // pred_check
    _
  $region7: #{deeplabv3plus_forward.18} parent=0 // pred_check_branch
    %12 = sbr.rel (0) target = $region9
  $region8: #{deeplabv3plus_forward.18} parent=0 // pred_region
    _
  $region9: #{deeplabv3plus_forward.18} parent=0 // pred_fallthru
    _
  // Predicated region
  $region10: #{deeplabv3plus_forward.18} parent=0 // pred_check
    _
  $region11: #{deeplabv3plus_forward.18} parent=0 // pred_check_branch
    %14 = sbr.rel (0) target = $region13
  $region12: #{deeplabv3plus_forward.18} parent=0 // pred_region
    _
  $region13: #{deeplabv3plus_forward.18} parent=0 // pred_fallthru
    _
  // Predicated region
  $region14: #{deeplabv3plus_forward.18} parent=0 // pred_check
    _
  $region15: #{deeplabv3plus_forward.18} parent=0 // pred_check_branch
    %16 = sbr.rel (0) target = $region17
  $region16: #{deeplabv3plus_forward.18} parent=0 // pred_region
    _
  $region17: #{deeplabv3plus_forward.18} parent=0 // pred_fallthru
    _
  %v18 = vld [vmem:[%s0] sm:$0xff]
  %v19 = vld [vmem:[%s0 + $0x8] sm:$0xff]
  %v20 = vld [vmem:[%s0 + $0x10] sm:$0xff]
  %v21 = vld [vmem:[%s0 + $0x18] sm:$0xff]
  %v22 = vld [vmem:[%s0 + $0x20] sm:$0xff]
  %v23 = vld [vmem:[%s0 + $0x28] sm:$0xff]
  %v24 = vld [vmem:[%s0 + $0x30] sm:$0xff]
  %v25 = vld [vmem:[%s0 + $0x38] sm:$0xff]
  %v26 = vld [vmem:[%s0 + $0x40] sm:$0xff]
  %v27 = vld [vmem:[%s0 + $0x48] sm:$0xff]
  %v28 = vld [vmem:[%s0 + $0x50] sm:$0xff]
  %v29 = vld [vmem:[%s0 + $0x58] sm:$0xff]
  %v30 = vld [vmem:[%s0 + $0x60] sm:$0xff]
  %v31 = vld [vmem:[%s0 + $0x68] sm:$0xff]
  %v32 = vld [vmem:[%s0 + $0x70] sm:$0xff]
  %v33 = vld [vmem:[%s0 + $0x78] sm:$0xff]
  %v34 = vld [vmem:[%s1] sm:$0xf]
  %v35 = vld [vmem:[%s1 + $0x4] sm:$0xf]
  %v36 = vld [vmem:[%s1 + $0x8] sm:$0xf]
  %v37 = vld [vmem:[%s1 + $0xc] sm:$0xf]
  %v38 = vld [vmem:[%s1 + $0x10] sm:$0xf]
  %v39 = vld [vmem:[%s1 + $0x14] sm:$0xf]
  %v40 = vld [vmem:[%s1 + $0x18] sm:$0xf]
  %v41 = vld [vmem:[%s1 + $0x1c] sm:$0xf]
  %v42 = vld [vmem:[%s1 + $0x20] sm:$0xf]
  %v43 = vld [vmem:[%s1 + $0x24] sm:$0xf]
  %v44 = vld [vmem:[%s1 + $0x28] sm:$0xf]
  %v45 = vld [vmem:[%s1 + $0x2c] sm:$0xf]
  %v46 = vld [vmem:[%s1 + $0x30] sm:$0xf]
  %v47 = vld [vmem:[%s1 + $0x34] sm:$0xf]
  %v48 = vld [vmem:[%s1 + $0x38] sm:$0xf]
  %v49 = vld [vmem:[%s1 + $0x3c] sm:$0xf]
  %v50 = vld [vmem:[%s1 + $0x40] sm:$0xf]
  %v51 = vld [vmem:[%s1 + $0x44] sm:$0xf]
  %v52 = vld [vmem:[%s1 + $0x48] sm:$0xf]
  %v53 = vld [vmem:[%s1 + $0x4c] sm:$0xf]
  %v54 = vld [vmem:[%s1 + $0x50] sm:$0xf]
  %v55 = vld [vmem:[%s1 + $0x54] sm:$0xf]
  %v56 = vld [vmem:[%s1 + $0x58] sm:$0xf]
  %v57 = vld [vmem:[%s1 + $0x5c] sm:$0xf]
  %v58 = vld [vmem:[%s1 + $0x60] sm:$0xf]
  %v59 = vld [vmem:[%s1 + $0x64] sm:$0xf]
  %v60 = vld [vmem:[%s1 + $0x68] sm:$0xf]
  %v61 = vld [vmem:[%s1 + $0x6c] sm:$0xf]
  %v62 = vld [vmem:[%s1 + $0x70] sm:$0xf]
  %v63 = vld [vmem:[%s1 + $0x74] sm:$0xf]
  %v64 = vld [vmem:[%s1 + $0x78] sm:$0xf]
  %v65 = vld [vmem:[%s1 + $0x7c] sm:$0xf]
  %v82 = vunpack.c.l.b16 %v18
  %v83 = vunpack.c.h.b16 %v18
  %v84 = vunpack.c.l.b16 %v19
  %v85 = vunpack.c.h.b16 %v19
  %v86 = vunpack.c.l.b16 %v20
  %v87 = vunpack.c.h.b16 %v20
  %v88 = vunpack.c.l.b16 %v21
  %v89 = vunpack.c.h.b16 %v21
  %v90 = vunpack.c.l.b16 %v22
  %v91 = vunpack.c.h.b16 %v22
  %v92 = vunpack.c.l.b16 %v23
  %v93 = vunpack.c.h.b16 %v23
  %v94 = vunpack.c.l.b16 %v24
  %v95 = vunpack.c.h.b16 %v24
  %v96 = vunpack.c.l.b16 %v25
  %v97 = vunpack.c.h.b16 %v25
  %v98 = vunpack.c.l.b16 %v26
  %v99 = vunpack.c.h.b16 %v26
  %v100 = vunpack.c.l.b16 %v27
  %v101 = vunpack.c.h.b16 %v27
  %v102 = vunpack.c.l.b16 %v28
  %v103 = vunpack.c.h.b16 %v28
  %v104 = vunpack.c.l.b16 %v29
  %v105 = vunpack.c.h.b16 %v29
  %v106 = vunpack.c.l.b16 %v30
  %v107 = vunpack.c.h.b16 %v30
  %v108 = vunpack.c.l.b16 %v31
  %v109 = vunpack.c.h.b16 %v31
  %v110 = vunpack.c.l.b16 %v32
  %v111 = vunpack.c.h.b16 %v32
  %v112 = vunpack.c.l.b16 %v33
  %v113 = vunpack.c.h.b16 %v33
  %v114 = vpack.c.b16 %v84, %v82
  %v115 = vpack.c.b16 %v85, %v83
  %v116 = vpack.c.b16 %v88, %v86
  %v117 = vpack.c.b16 %v89, %v87
  %v118 = vpack.c.b16 %v92, %v90
  %v119 = vpack.c.b16 %v93, %v91
  %v120 = vpack.c.b16 %v96, %v94
  %v121 = vpack.c.b16 %v97, %v95
  %v122 = vpack.c.b16 %v100, %v98
  %v123 = vpack.c.b16 %v101, %v99
  %v124 = vpack.c.b16 %v104, %v102
  %v125 = vpack.c.b16 %v105, %v103
  %v126 = vpack.c.b16 %v108, %v106
  %v127 = vpack.c.b16 %v109, %v107
  %v128 = vpack.c.b16 %v112, %v110
  %v129 = vpack.c.b16 %v113, %v111
  %v178 = vunpack.c.l.b16 %v34
  %v179 = vunpack.c.l.b16 %v35
  %v180 = vunpack.c.l.b16 %v36
  %v181 = vunpack.c.l.b16 %v37
  %v182 = vunpack.c.l.b16 %v38
  %v183 = vunpack.c.l.b16 %v39
  %v184 = vunpack.c.l.b16 %v40
  %v185 = vunpack.c.l.b16 %v41
  %v186 = vunpack.c.l.b16 %v42
  %v187 = vunpack.c.l.b16 %v43
  %v188 = vunpack.c.l.b16 %v44
  %v189 = vunpack.c.l.b16 %v45
  %v190 = vunpack.c.l.b16 %v46
  %v191 = vunpack.c.l.b16 %v47
  %v192 = vunpack.c.l.b16 %v48
  %v193 = vunpack.c.l.b16 %v49
  %v194 = vunpack.c.l.b16 %v50
  %v195 = vunpack.c.l.b16 %v51
  %v196 = vunpack.c.l.b16 %v52
  %v197 = vunpack.c.l.b16 %v53
  %v198 = vunpack.c.l.b16 %v54
  %v199 = vunpack.c.l.b16 %v55
  %v200 = vunpack.c.l.b16 %v56
  %v201 = vunpack.c.l.b16 %v57
  %v202 = vunpack.c.l.b16 %v58
  %v203 = vunpack.c.l.b16 %v59
  %v204 = vunpack.c.l.b16 %v60
  %v205 = vunpack.c.l.b16 %v61
  %v206 = vunpack.c.l.b16 %v62
  %v207 = vunpack.c.l.b16 %v63
  %v208 = vunpack.c.l.b16 %v64
  %v209 = vunpack.c.l.b16 %v65
  %v210 = vpack.c.b16 %v179, %v178
  %v211 = vpack.c.b16 %v181, %v180
  %v212 = vpack.c.b16 %v183, %v182
  %v213 = vpack.c.b16 %v185, %v184
  %v214 = vpack.c.b16 %v187, %v186
  %v215 = vpack.c.b16 %v189, %v188
  %v216 = vpack.c.b16 %v191, %v190
  %v217 = vpack.c.b16 %v193, %v192
  %v218 = vpack.c.b16 %v195, %v194
  %v219 = vpack.c.b16 %v197, %v196
  %v220 = vpack.c.b16 %v199, %v198
  %v221 = vpack.c.b16 %v201, %v200
  %v222 = vpack.c.b16 %v203, %v202
  %v223 = vpack.c.b16 %v205, %v204
  %v224 = vpack.c.b16 %v207, %v206
  %v225 = vpack.c.b16 %v209, %v208
  %242 = vmatprep.subr.bf16.mxu0 0
  %243 = vmatpush1.bf16.msra.mxu0 %v210
  %244 = vmatprep.subr.bf16.mxu0 0
  %245 = vmatpush1.bf16.msra.mxu0 %v211
  %246 = vmatprep.subr.bf16.mxu0 0
  %247 = vmatpush1.bf16.msra.mxu0 %v212
  %248 = vmatprep.subr.bf16.mxu0 0
  %249 = vmatpush1.bf16.msra.mxu0 %v213
  %250 = vmatprep.subr.bf16.mxu0 0
  %251 = vmatpush1.bf16.msra.mxu0 %v214
  %252 = vmatprep.subr.bf16.mxu0 0
  %253 = vmatpush1.bf16.msra.mxu0 %v215
  %254 = vmatprep.subr.bf16.mxu0 0
  %255 = vmatpush1.bf16.msra.mxu0 %v216
  %256 = vmatprep.subr.bf16.mxu0 0
  %257 = vmatpush1.bf16.msra.mxu0 %v217
  %258 = vmatprep.subr.bf16.mxu0 0
  %259 = vmatpush1.bf16.msra.mxu0 %v218
  %260 = vmatprep.subr.bf16.mxu0 0
  %261 = vmatpush1.bf16.msra.mxu0 %v219
  %262 = vmatprep.subr.bf16.mxu0 0
  %263 = vmatpush1.bf16.msra.mxu0 %v220
  %264 = vmatprep.subr.bf16.mxu0 0
  %265 = vmatpush1.bf16.msra.mxu0 %v221
  %266 = vmatprep.subr.bf16.mxu0 0
  %267 = vmatpush1.bf16.msra.mxu0 %v222
  %268 = vmatprep.subr.bf16.mxu0 0
  %269 = vmatpush1.bf16.msra.mxu0 %v223
  %270 = vmatprep.subr.bf16.mxu0 0
  %271 = vmatpush1.bf16.msra.mxu0 %v224
  %272 = vmatprep.subr.bf16.mxu0 0
  %273 = vmatpush1.bf16.msra.mxu0 %v225
  %274 = vmatprep.mubr.bf16.mxu0 %v115
  %275 = vmatmul.mubr.bf16.gmra.mrb[0].mxu0 %v114
  %v276 = vpop.f32.mrb[0].mxu0
  %v277 = vadd.f32 0.0, %v276
  %v278 = vpop.f32.mrb[0].mxu0
  %v279 = vpop.f32.mrb[0].mxu0
  %v280 = vadd.f32 0.0, %v279
  %v281 = vpop.f32.mrb[0].mxu0
  %282 = vmatprep.mubr.bf16.mxu0 %v117
  %283 = vmatmul.mubr.bf16.gmra.mrb[0].mxu0 %v116
  %v284 = vpop.f32.mrb[0].mxu0
  %v285 = vadd.f32 0.0, %v284
  %v286 = vpop.f32.mrb[0].mxu0
  %v287 = vpop.f32.mrb[0].mxu0
  %v288 = vadd.f32 0.0, %v287
  %v289 = vpop.f32.mrb[0].mxu0
  %290 = vmatprep.mubr.bf16.mxu0 %v119
  %291 = vmatmul.mubr.bf16.gmra.mrb[0].mxu0 %v118
  %v292 = vpop.f32.mrb[0].mxu0
  %v293 = vadd.f32 0.0, %v292
  %v294 = vpop.f32.mrb[0].mxu0
  %v295 = vpop.f32.mrb[0].mxu0
  %v296 = vadd.f32 0.0, %v295
  %v297 = vpop.f32.mrb[0].mxu0
  %298 = vmatprep.mubr.bf16.mxu0 %v121
  %299 = vmatmul.mubr.bf16.gmra.mrb[0].mxu0 %v120
  %v300 = vpop.f32.mrb[0].mxu0
  %v301 = vadd.f32 0.0, %v300
  %v302 = vpop.f32.mrb[0].mxu0
  %v303 = vpop.f32.mrb[0].mxu0
  %v304 = vadd.f32 0.0, %v303
  %v305 = vpop.f32.mrb[0].mxu0
  %306 = vmatprep.mubr.bf16.mxu0 %v123
  %307 = vmatmul.mubr.bf16.gmra.mrb[0].mxu0 %v122
  %v308 = vpop.f32.mrb[0].mxu0
  %v309 = vadd.f32 0.0, %v308
  %v310 = vpop.f32.mrb[0].mxu0
  %v311 = vpop.f32.mrb[0].mxu0
  %v312 = vadd.f32 0.0, %v311
  %v313 = vpop.f32.mrb[0].mxu0
  %314 = vmatprep.mubr.bf16.mxu0 %v125
  %315 = vmatmul.mubr.bf16.gmra.mrb[0].mxu0 %v124
  %v316 = vpop.f32.mrb[0].mxu0
  %v317 = vadd.f32 0.0, %v316
  %v318 = vpop.f32.mrb[0].mxu0
  %v319 = vpop.f32.mrb[0].mxu0
  %v320 = vadd.f32 0.0, %v319
  %v321 = vpop.f32.mrb[0].mxu0
  %322 = vmatprep.mubr.bf16.mxu0 %v127
  %323 = vmatmul.mubr.bf16.gmra.mrb[0].mxu0 %v126
  %v324 = vpop.f32.mrb[0].mxu0
  %v325 = vadd.f32 0.0, %v324
  %v326 = vpop.f32.mrb[0].mxu0
  %v327 = vpop.f32.mrb[0].mxu0
  %v328 = vadd.f32 0.0, %v327
  %v329 = vpop.f32.mrb[0].mxu0
  %330 = vmatprep.mubr.bf16.mxu0 %v129
  %331 = vmatmul.mubr.bf16.gmra.mrb[0].mxu0 %v128
  %v332 = vpop.f32.mrb[0].mxu0
  %v333 = vadd.f32 0.0, %v332
  %v334 = vpop.f32.mrb[0].mxu0
  %v335 = vpop.f32.mrb[0].mxu0
  %v336 = vadd.f32 0.0, %v335
  %v337 = vpop.f32.mrb[0].mxu0
  %338 = vdwg.mxu0
  %v339 = vld [vmem:[%s2] sm:$0x1]
  %v341 = vlaneseq
  %v342 = vshrl.u32 %v341, 7
  %v343 = vsub.s32 0, %v342
  %v344 = vrot.slane %v339, %v343
  %v346 = vmul.f32 %v277, %v344
  %v347 = vmul.f32 %v280, %v344
  %v348 = vmul.f32 %v285, %v344
  %v349 = vmul.f32 %v288, %v344
  %v350 = vmul.f32 %v293, %v344
  %v351 = vmul.f32 %v296, %v344
  %v352 = vmul.f32 %v301, %v344
  %v353 = vmul.f32 %v304, %v344
  %v354 = vmul.f32 %v309, %v344
  %v355 = vmul.f32 %v312, %v344
  %v356 = vmul.f32 %v317, %v344
  %v357 = vmul.f32 %v320, %v344
  %v358 = vmul.f32 %v325, %v344
  %v359 = vmul.f32 %v328, %v344
  %v360 = vmul.f32 %v333, %v344
  %v361 = vmul.f32 %v336, %v344
  %v362 = vld [vmem:[%s3] sm:$0x1]
  %v364 = vlaneseq
  %v365 = vshrl.u32 %v364, 7
  %v366 = vsub.s32 0, %v365
  %v367 = vrot.slane %v362, %v366
  %v369 = vadd.f32 %v346, %v367
  %v370 = vadd.f32 %v347, %v367
  %v371 = vadd.f32 %v348, %v367
  %v372 = vadd.f32 %v349, %v367
  %v373 = vadd.f32 %v350, %v367
  %v374 = vadd.f32 %v351, %v367
  %v375 = vadd.f32 %v352, %v367
  %v376 = vadd.f32 %v353, %v367
  %v377 = vadd.f32 %v354, %v367
  %v378 = vadd.f32 %v355, %v367
  %v379 = vadd.f32 %v356, %v367
  %v380 = vadd.f32 %v357, %v367
  %v381 = vadd.f32 %v358, %v367
  %v382 = vadd.f32 %v359, %v367
  %v383 = vadd.f32 %v360, %v367
  %v384 = vadd.f32 %v361, %v367
  %v385 = vmax.f32 %v369, 0.0
  %v386 = vmax.f32 %v370, 0.0
  %v387 = vmax.f32 %v371, 0.0
  %v388 = vmax.f32 %v372, 0.0
  %v389 = vmax.f32 %v373, 0.0
  %v390 = vmax.f32 %v374, 0.0
  %v391 = vmax.f32 %v375, 0.0
  %v392 = vmax.f32 %v376, 0.0
  %v393 = vmax.f32 %v377, 0.0
  %v394 = vmax.f32 %v378, 0.0
  %v395 = vmax.f32 %v379, 0.0
  %v396 = vmax.f32 %v380, 0.0
  %v397 = vmax.f32 %v381, 0.0
  %v398 = vmax.f32 %v382, 0.0
  %v399 = vmax.f32 %v383, 0.0
  %v400 = vmax.f32 %v384, 0.0
  %v401 = vpack.c.bf16 %v386, %v385
  %v402 = vpack.c.bf16 %v388, %v387
  %v403 = vpack.c.bf16 %v390, %v389
  %v404 = vpack.c.bf16 %v392, %v391
  %v405 = vpack.c.bf16 %v394, %v393
  %v406 = vpack.c.bf16 %v396, %v395
  %v407 = vpack.c.bf16 %v398, %v397
  %v408 = vpack.c.bf16 %v400, %v399
  %v417 = vunpack.c.l.b16 %v401
  %v418 = vunpack.c.h.b16 %v401
  %v419 = vunpack.c.l.b16 %v402
  %v420 = vunpack.c.h.b16 %v402
  %v421 = vunpack.c.l.b16 %v403
  %v422 = vunpack.c.h.b16 %v403
  %v423 = vunpack.c.l.b16 %v404
  %v424 = vunpack.c.h.b16 %v404
  %v425 = vunpack.c.l.b16 %v405
  %v426 = vunpack.c.h.b16 %v405
  %v427 = vunpack.c.l.b16 %v406
  %v428 = vunpack.c.h.b16 %v406
  %v429 = vunpack.c.l.b16 %v407
  %v430 = vunpack.c.h.b16 %v407
  %v431 = vunpack.c.l.b16 %v408
  %v432 = vunpack.c.h.b16 %v408
  %v433 = vpack.c.b16 %v417, %v417
  %v434 = vpack.c.b16 %v418, %v418
  %v435 = vpack.c.b16 %v419, %v419
  %v436 = vpack.c.b16 %v420, %v420
  %v437 = vpack.c.b16 %v421, %v421
  %v438 = vpack.c.b16 %v422, %v422
  %v439 = vpack.c.b16 %v423, %v423
  %v440 = vpack.c.b16 %v424, %v424
  %v441 = vpack.c.b16 %v425, %v425
  %v442 = vpack.c.b16 %v426, %v426
  %v443 = vpack.c.b16 %v427, %v427
  %v444 = vpack.c.b16 %v428, %v428
  %v445 = vpack.c.b16 %v429, %v429
  %v446 = vpack.c.b16 %v430, %v430
  %v447 = vpack.c.b16 %v431, %v431
  %v448 = vpack.c.b16 %v432, %v432
  %465 = vst [vmem:[%s4] sm:$0xf] %v433
  %466 = vst [vmem:[%s4 + $0x4] sm:$0xf] %v434
  %467 = vst [vmem:[%s4 + $0x8] sm:$0xf] %v435
  %468 = vst [vmem:[%s4 + $0xc] sm:$0xf] %v436
  %469 = vst [vmem:[%s4 + $0x10] sm:$0xf] %v437
  %470 = vst [vmem:[%s4 + $0x14] sm:$0xf] %v438
  %471 = vst [vmem:[%s4 + $0x18] sm:$0xf] %v439
  %472 = vst [vmem:[%s4 + $0x1c] sm:$0xf] %v440
  %473 = vst [vmem:[%s4 + $0x20] sm:$0xf] %v441
  %474 = vst [vmem:[%s4 + $0x24] sm:$0xf] %v442
  %475 = vst [vmem:[%s4 + $0x28] sm:$0xf] %v443
  %476 = vst [vmem:[%s4 + $0x2c] sm:$0xf] %v444
  %477 = vst [vmem:[%s4 + $0x30] sm:$0xf] %v445
  %478 = vst [vmem:[%s4 + $0x34] sm:$0xf] %v446
  %479 = vst [vmem:[%s4 + $0x38] sm:$0xf] %v447
  %480 = vst [vmem:[%s4 + $0x3c] sm:$0xf] %v448
  // Predicated region
  $region18: #{deeplabv3plus_forward.18} parent=0 // pred_check
    _
  $region19: #{deeplabv3plus_forward.18} parent=0 // pred_check_branch
    %482 = sbr.rel (0) target = $region21
  $region20: #{deeplabv3plus_forward.18} parent=0 // pred_region
    _
  $region21: #{deeplabv3plus_forward.18} parent=0 // pred_fallthru
    _
  // Predicated region
  $region22: #{deeplabv3plus_forward.18} parent=0 // pred_check
    _
  $region23: #{deeplabv3plus_forward.18} parent=0 // pred_check_branch
    %484 = sbr.rel (0) target = $region25
  $region24: #{deeplabv3plus_forward.18} parent=0 // pred_region
    _
  $region25: #{deeplabv3plus_forward.18} parent=0 // pred_fallthru
    _

// kernel: deeplabv3plus_forward.19
$region0: #{deeplabv3plus_forward.19}
  #allocation0 [shape = 'u32[]', space=smem, size = 0x4, offset = 0x4, fixed_abs, tag = 'smem constant byte address 0x4 - core index']
  #allocation1 [shape = 'u32[144,128]{1,0:T(1,128)}', space=vmem, size = 0x12000, scoped, tag = 'internal scratch']
  %s0 = inlined_call_operand.vmem [shape: bf16[128,384], index: 0, kind: input, shape index: {}]
  %s1 = inlined_call_operand.vmem [shape: bf16[384,128], index: 1, kind: input, shape index: {}]
  %s2 = inlined_call_operand.vmem [shape: f32[1,128], index: 2, kind: input, shape index: {}]
  %s3 = inlined_call_operand.vmem [shape: f32[1,128], index: 3, kind: input, shape index: {}]
  %s4 = inlined_call_operand.vmem [shape: bf16[128,128], index: 4, kind: output, shape index: {}]
  %s5 = sld [smem:[#allocation0]]
  $region26: #{deeplabv3plus_forward.19} parent=0
    _
  %s7 = ssub.s32 1, %s5
  %s8 = scalar_select 0, %s7, %s5
  // Predicated region
  $region2: #{deeplabv3plus_forward.19} parent=0 // pred_check
    _
  $region3: #{deeplabv3plus_forward.19} parent=0 // pred_check_branch
    %10 = sbr.rel (0) target = $region5
  $region4: #{deeplabv3plus_forward.19} parent=0 // pred_region
    _
  $region5: #{deeplabv3plus_forward.19} parent=0 // pred_fallthru
    _
  // Predicated region
  $region6: #{deeplabv3plus_forward.19} parent=0 // pred_check
    _
  $region7: #{deeplabv3plus_forward.19} parent=0 // pred_check_branch
    %12 = sbr.rel (0) target = $region9
  $region8: #{deeplabv3plus_forward.19} parent=0 // pred_region
    _
  $region9: #{deeplabv3plus_forward.19} parent=0 // pred_fallthru
    _
  // Predicated region
  $region10: #{deeplabv3plus_forward.19} parent=0 // pred_check
    _
  $region11: #{deeplabv3plus_forward.19} parent=0 // pred_check_branch
    %14 = sbr.rel (0) target = $region13
  $region12: #{deeplabv3plus_forward.19} parent=0 // pred_region
    _
  $region13: #{deeplabv3plus_forward.19} parent=0 // pred_fallthru
    _
  // Predicated region
  $region14: #{deeplabv3plus_forward.19} parent=0 // pred_check
    _
  $region15: #{deeplabv3plus_forward.19} parent=0 // pred_check_branch
    %16 = sbr.rel (0) target = $region17
  $region16: #{deeplabv3plus_forward.19} parent=0 // pred_region
    _
  $region17: #{deeplabv3plus_forward.19} parent=0 // pred_fallthru
    _
  %v18 = vld [vmem:[%s0] sm:$0xff]
  %v19 = vld [vmem:[%s0 + $0x8] sm:$0xf]
  %v20 = vld [vmem:[%s0 + $0xc] sm:$0xff]
  %v21 = vld [vmem:[%s0 + $0x14] sm:$0xf]
  %v22 = vld [vmem:[%s0 + $0x18] sm:$0xff]
  %v23 = vld [vmem:[%s0 + $0x20] sm:$0xf]
  %v24 = vld [vmem:[%s0 + $0x24] sm:$0xff]
  %v25 = vld [vmem:[%s0 + $0x2c] sm:$0xf]
  %v26 = vld [vmem:[%s0 + $0x30] sm:$0xff]
  %v27 = vld [vmem:[%s0 + $0x38] sm:$0xf]
  %v28 = vld [vmem:[%s0 + $0x3c] sm:$0xff]
  %v29 = vld [vmem:[%s0 + $0x44] sm:$0xf]
  %v30 = vld [vmem:[%s0 + $0x48] sm:$0xff]
  %v31 = vld [vmem:[%s0 + $0x50] sm:$0xf]
  %v32 = vld [vmem:[%s0 + $0x54] sm:$0xff]
  %v33 = vld [vmem:[%s0 + $0x5c] sm:$0xf]
  %v34 = vld [vmem:[%s0 + $0x60] sm:$0xff]
  %v35 = vld [vmem:[%s0 + $0x68] sm:$0xf]
  %v36 = vld [vmem:[%s0 + $0x6c] sm:$0xff]
  %v37 = vld [vmem:[%s0 + $0x74] sm:$0xf]
  %v38 = vld [vmem:[%s0 + $0x78] sm:$0xff]
  %v39 = vld [vmem:[%s0 + $0x80] sm:$0xf]
  %v40 = vld [vmem:[%s0 + $0x84] sm:$0xff]
  %v41 = vld [vmem:[%s0 + $0x8c] sm:$0xf]
  %v42 = vld [vmem:[%s0 + $0x90] sm:$0xff]
  %v43 = vld [vmem:[%s0 + $0x98] sm:$0xf]
  %v44 = vld [vmem:[%s0 + $0x9c] sm:$0xff]
  %v45 = vld [vmem:[%s0 + $0xa4] sm:$0xf]
  %v46 = vld [vmem:[%s0 + $0xa8] sm:$0xff]
  %v47 = vld [vmem:[%s0 + $0xb0] sm:$0xf]
  %v48 = vld [vmem:[%s0 + $0xb4] sm:$0xff]
  %v49 = vld [vmem:[%s0 + $0xbc] sm:$0xf]
  %v50 = vld [vmem:[%s1] sm:$0xf]
  %v51 = vld [vmem:[%s1 + $0x4] sm:$0xf]
  %v52 = vld [vmem:[%s1 + $0x8] sm:$0xf]
  %v53 = vld [vmem:[%s1 + $0xc] sm:$0xf]
  %v54 = vld [vmem:[%s1 + $0x10] sm:$0xf]
  %v55 = vld [vmem:[%s1 + $0x14] sm:$0xf]
  %v56 = vld [vmem:[%s1 + $0x18] sm:$0xf]
  %v57 = vld [vmem:[%s1 + $0x1c] sm:$0xf]
  %v58 = vld [vmem:[%s1 + $0x20] sm:$0xf]
  %v59 = vld [vmem:[%s1 + $0x24] sm:$0xf]
  %v60 = vld [vmem:[%s1 + $0x28] sm:$0xf]
  %v61 = vld [vmem:[%s1 + $0x2c] sm:$0xf]
  %v62 = vld [vmem:[%s1 + $0x30] sm:$0xf]
  %v63 = vld [vmem:[%s1 + $0x34] sm:$0xf]
  %v64 = vld [vmem:[%s1 + $0x38] sm:$0xf]
  %v65 = vld [vmem:[%s1 + $0x3c] sm:$0xf]
  %v66 = vld [vmem:[%s1 + $0x40] sm:$0xf]
  %v67 = vld [vmem:[%s1 + $0x44] sm:$0xf]
  %v68 = vld [vmem:[%s1 + $0x48] sm:$0xf]
  %v69 = vld [vmem:[%s1 + $0x4c] sm:$0xf]
  %v70 = vld [vmem:[%s1 + $0x50] sm:$0xf]
  %v71 = vld [vmem:[%s1 + $0x54] sm:$0xf]
  %v72 = vld [vmem:[%s1 + $0x58] sm:$0xf]
  %v73 = vld [vmem:[%s1 + $0x5c] sm:$0xf]
  %v74 = vld [vmem:[%s1 + $0x60] sm:$0xf]
  %v75 = vld [vmem:[%s1 + $0x64] sm:$0xf]
  %v76 = vld [vmem:[%s1 + $0x68] sm:$0xf]
  %v77 = vld [vmem:[%s1 + $0x6c] sm:$0xf]
  %v78 = vld [vmem:[%s1 + $0x70] sm:$0xf]
  %v79 = vld [vmem:[%s1 + $0x74] sm:$0xf]
  %v80 = vld [vmem:[%s1 + $0x78] sm:$0xf]
  %v81 = vld [vmem:[%s1 + $0x7c] sm:$0xf]
  %v82 = vld [vmem:[%s1 + $0x80] sm:$0xf]
  %v83 = vld [vmem:[%s1 + $0x84] sm:$0xf]
  %v84 = vld [vmem:[%s1 + $0x88] sm:$0xf]
  %v85 = vld [vmem:[%s1 + $0x8c] sm:$0xf]
  %v86 = vld [vmem:[%s1 + $0x90] sm:$0xf]
  %v87 = vld [vmem:[%s1 + $0x94] sm:$0xf]
  %v88 = vld [vmem:[%s1 + $0x98] sm:$0xf]
  %v89 = vld [vmem:[%s1 + $0x9c] sm:$0xf]
  %v90 = vld [vmem:[%s1 + $0xa0] sm:$0xf]
  %v91 = vld [vmem:[%s1 + $0xa4] sm:$0xf]
  %v92 = vld [vmem:[%s1 + $0xa8] sm:$0xf]
  %v93 = vld [vmem:[%s1 + $0xac] sm:$0xf]
  %v94 = vld [vmem:[%s1 + $0xb0] sm:$0xf]
  %v95 = vld [vmem:[%s1 + $0xb4] sm:$0xf]
  %v96 = vld [vmem:[%s1 + $0xb8] sm:$0xf]
  %v97 = vld [vmem:[%s1 + $0xbc] sm:$0xf]
  %v130 = vunpack.c.l.b16 %v18
  %v131 = vunpack.c.h.b16 %v18
  %v132 = vunpack.c.l.b16 %v19
  %v133 = vunpack.c.l.b16 %v20
  %v134 = vunpack.c.h.b16 %v20
  %v135 = vunpack.c.l.b16 %v21
  %v136 = vunpack.c.l.b16 %v22
  %v137 = vunpack.c.h.b16 %v22
  %v138 = vunpack.c.l.b16 %v23
  %v139 = vunpack.c.l.b16 %v24
  %v140 = vunpack.c.h.b16 %v24
  %v141 = vunpack.c.l.b16 %v25
  %v142 = vunpack.c.l.b16 %v26
  %v143 = vunpack.c.h.b16 %v26
  %v144 = vunpack.c.l.b16 %v27
  %v145 = vunpack.c.l.b16 %v28
  %v146 = vunpack.c.h.b16 %v28
  %v147 = vunpack.c.l.b16 %v29
  %v148 = vunpack.c.l.b16 %v30
  %v149 = vunpack.c.h.b16 %v30
  %v150 = vunpack.c.l.b16 %v31
  %v151 = vunpack.c.l.b16 %v32
  %v152 = vunpack.c.h.b16 %v32
  %v153 = vunpack.c.l.b16 %v33
  %v154 = vunpack.c.l.b16 %v34
  %v155 = vunpack.c.h.b16 %v34
  %v156 = vunpack.c.l.b16 %v35
  %v157 = vunpack.c.l.b16 %v36
  %v158 = vunpack.c.h.b16 %v36
  %v159 = vunpack.c.l.b16 %v37
  %v160 = vunpack.c.l.b16 %v38
  %v161 = vunpack.c.h.b16 %v38
  %v162 = vunpack.c.l.b16 %v39
  %v163 = vunpack.c.l.b16 %v40
  %v164 = vunpack.c.h.b16 %v40
  %v165 = vunpack.c.l.b16 %v41
  %v166 = vunpack.c.l.b16 %v42
  %v167 = vunpack.c.h.b16 %v42
  %v168 = vunpack.c.l.b16 %v43
  %v169 = vunpack.c.l.b16 %v44
  %v170 = vunpack.c.h.b16 %v44
  %v171 = vunpack.c.l.b16 %v45
  %v172 = vunpack.c.l.b16 %v46
  %v173 = vunpack.c.h.b16 %v46
  %v174 = vunpack.c.l.b16 %v47
  %v175 = vunpack.c.l.b16 %v48
  %v176 = vunpack.c.h.b16 %v48
  %v177 = vunpack.c.l.b16 %v49
  %v178 = vpack.c.b16 %v133, %v130
  %v179 = vpack.c.b16 %v134, %v131
  %v180 = vpack.c.b16 %v135, %v132
  %v181 = vpack.c.b16 %v139, %v136
  %v182 = vpack.c.b16 %v140, %v137
  %v183 = vpack.c.b16 %v141, %v138
  %v184 = vpack.c.b16 %v145, %v142
  %v185 = vpack.c.b16 %v146, %v143
  %v186 = vpack.c.b16 %v147, %v144
  %v187 = vpack.c.b16 %v151, %v148
  %v188 = vpack.c.b16 %v152, %v149
  %v189 = vpack.c.b16 %v153, %v150
  %v190 = vpack.c.b16 %v157, %v154
  %v191 = vpack.c.b16 %v158, %v155
  %v192 = vpack.c.b16 %v159, %v156
  %v193 = vpack.c.b16 %v163, %v160
  %v194 = vpack.c.b16 %v164, %v161
  %v195 = vpack.c.b16 %v165, %v162
  %v196 = vpack.c.b16 %v169, %v166
  %v197 = vpack.c.b16 %v170, %v167
  %v198 = vpack.c.b16 %v171, %v168
  %v199 = vpack.c.b16 %v175, %v172
  %v200 = vpack.c.b16 %v176, %v173
  %v201 = vpack.c.b16 %v177, %v174
  %v274 = vunpack.c.l.b16 %v50
  %v275 = vunpack.c.l.b16 %v51
  %v276 = vunpack.c.l.b16 %v52
  %v277 = vunpack.c.l.b16 %v53
  %v278 = vunpack.c.l.b16 %v54
  %v279 = vunpack.c.l.b16 %v55
  %v280 = vunpack.c.l.b16 %v56
  %v281 = vunpack.c.l.b16 %v57
  %v282 = vunpack.c.l.b16 %v58
  %v283 = vunpack.c.l.b16 %v59
  %v284 = vunpack.c.l.b16 %v60
  %v285 = vunpack.c.l.b16 %v61
  %v286 = vunpack.c.l.b16 %v62
  %v287 = vunpack.c.l.b16 %v63
  %v288 = vunpack.c.l.b16 %v64
  %v289 = vunpack.c.l.b16 %v65
  %v290 = vunpack.c.l.b16 %v66
  %v291 = vunpack.c.l.b16 %v67
  %v292 = vunpack.c.l.b16 %v68
  %v293 = vunpack.c.l.b16 %v69
  %v294 = vunpack.c.l.b16 %v70
  %v295 = vunpack.c.l.b16 %v71
  %v296 = vunpack.c.l.b16 %v72
  %v297 = vunpack.c.l.b16 %v73
  %v298 = vunpack.c.l.b16 %v74
  %v299 = vunpack.c.l.b16 %v75
  %v300 = vunpack.c.l.b16 %v76
  %v301 = vunpack.c.l.b16 %v77
  %v302 = vunpack.c.l.b16 %v78
  %v303 = vunpack.c.l.b16 %v79
  %v304 = vunpack.c.l.b16 %v80
  %v305 = vunpack.c.l.b16 %v81
  %v306 = vunpack.c.l.b16 %v82
  %v307 = vunpack.c.l.b16 %v83
  %v308 = vunpack.c.l.b16 %v84
  %v309 = vunpack.c.l.b16 %v85
  %v310 = vunpack.c.l.b16 %v86
  %v311 = vunpack.c.l.b16 %v87
  %v312 = vunpack.c.l.b16 %v88
  %v313 = vunpack.c.l.b16 %v89
  %v314 = vunpack.c.l.b16 %v90
  %v315 = vunpack.c.l.b16 %v91
  %v316 = vunpack.c.l.b16 %v92
  %v317 = vunpack.c.l.b16 %v93
  %v318 = vunpack.c.l.b16 %v94
  %v319 = vunpack.c.l.b16 %v95
  %v320 = vunpack.c.l.b16 %v96
  %v321 = vunpack.c.l.b16 %v97
  %v322 = vpack.c.b16 %v275, %v274
  %v323 = vpack.c.b16 %v277, %v276
  %v324 = vpack.c.b16 %v279, %v278
  %v325 = vpack.c.b16 %v281, %v280
  %v326 = vpack.c.b16 %v283, %v282
  %v327 = vpack.c.b16 %v285, %v284
  %v328 = vpack.c.b16 %v287, %v286
  %v329 = vpack.c.b16 %v289, %v288
  %v330 = vpack.c.b16 %v291, %v290
  %v331 = vpack.c.b16 %v293, %v292
  %v332 = vpack.c.b16 %v295, %v294
  %v333 = vpack.c.b16 %v297, %v296
  %v334 = vpack.c.b16 %v299, %v298
  %v335 = vpack.c.b16 %v301, %v300
  %v336 = vpack.c.b16 %v303, %v302
  %v337 = vpack.c.b16 %v305, %v304
  %v338 = vpack.c.b16 %v307, %v306
  %v339 = vpack.c.b16 %v309, %v308
  %v340 = vpack.c.b16 %v311, %v310
  %v341 = vpack.c.b16 %v313, %v312
  %v342 = vpack.c.b16 %v315, %v314
  %v343 = vpack.c.b16 %v317, %v316
  %v344 = vpack.c.b16 %v319, %v318
  %v345 = vpack.c.b16 %v321, %v320
  %370 = vmatprep.subr.bf16.mxu0 0
  %371 = vmatpush1.bf16.msra.mxu0 %v322
  %372 = vmatprep.subr.bf16.mxu0 0
  %373 = vmatpush1.bf16.msra.mxu0 %v323
  %374 = vmatprep.subr.bf16.mxu0 0
  %375 = vmatpush1.bf16.msra.mxu0 %v324
  %376 = vmatprep.subr.bf16.mxu0 0
  %377 = vmatpush1.bf16.msra.mxu0 %v325
  %378 = vmatprep.subr.bf16.mxu0 0
  %379 = vmatpush1.bf16.msra.mxu0 %v326
  %380 = vmatprep.subr.bf16.mxu0 0
  %381 = vmatpush1.bf16.msra.mxu0 %v327
  %382 = vmatprep.subr.bf16.mxu0 0
  %383 = vmatpush1.bf16.msra.mxu0 %v328
  %384 = vmatprep.subr.bf16.mxu0 0
  %385 = vmatpush1.bf16.msra.mxu0 %v329
  %386 = vmatprep.subr.bf16.mxu0 0
  %387 = vmatpush1.bf16.msra.mxu0 %v330
  %388 = vmatprep.subr.bf16.mxu0 0
  %389 = vmatpush1.bf16.msra.mxu0 %v331
  %390 = vmatprep.subr.bf16.mxu0 0
  %391 = vmatpush1.bf16.msra.mxu0 %v332
  %392 = vmatprep.subr.bf16.mxu0 0
  %393 = vmatpush1.bf16.msra.mxu0 %v333
  %394 = vmatprep.subr.bf16.mxu0 0
  %395 = vmatpush1.bf16.msra.mxu0 %v334
  %396 = vmatprep.subr.bf16.mxu0 0
  %397 = vmatpush1.bf16.msra.mxu0 %v335
  %398 = vmatprep.subr.bf16.mxu0 0
  %399 = vmatpush1.bf16.msra.mxu0 %v336
  %400 = vmatprep.subr.bf16.mxu0 0
  %401 = vmatpush1.bf16.msra.mxu0 %v337
  %402 = vmatprep.mubr.bf16.mxu0 %v179
  %403 = vmatmul.mubr.bf16.gmra.mrb[0].mxu0 %v178
  %v404 = vpop.f32.mrb[0].mxu0
  %v405 = vadd.f32 0.0, %v404
  %v406 = vpop.f32.mrb[0].mxu0
  %v407 = vpop.f32.mrb[0].mxu0
  %v408 = vadd.f32 0.0, %v407
  %v409 = vpop.f32.mrb[0].mxu0
  %410 = vmatprep.mubr.bf16.mxu0 %v182
  %411 = vmatmul.mubr.bf16.gmra.mrb[0].mxu0 %v181
  %v412 = vpop.f32.mrb[0].mxu0
  %v413 = vadd.f32 0.0, %v412
  %v414 = vpop.f32.mrb[0].mxu0
  %v415 = vpop.f32.mrb[0].mxu0
  %v416 = vadd.f32 0.0, %v415
  %v417 = vpop.f32.mrb[0].mxu0
  %418 = vmatprep.mubr.bf16.mxu0 %v185
  %419 = vmatmul.mubr.bf16.gmra.mrb[0].mxu0 %v184
  %v420 = vpop.f32.mrb[0].mxu0
  %v421 = vadd.f32 0.0, %v420
  %v422 = vpop.f32.mrb[0].mxu0
  %v423 = vpop.f32.mrb[0].mxu0
  %v424 = vadd.f32 0.0, %v423
  %v425 = vpop.f32.mrb[0].mxu0
  %426 = vmatprep.mubr.bf16.mxu0 %v188
  %427 = vmatmul.mubr.bf16.gmra.mrb[0].mxu0 %v187
  %v428 = vpop.f32.mrb[0].mxu0
  %v429 = vadd.f32 0.0, %v428
  %v430 = vpop.f32.mrb[0].mxu0
  %v431 = vpop.f32.mrb[0].mxu0
  %v432 = vadd.f32 0.0, %v431
  %v433 = vpop.f32.mrb[0].mxu0
  %434 = vmatprep.mubr.bf16.mxu0 %v191
  %435 = vmatmul.mubr.bf16.gmra.mrb[0].mxu0 %v190
  %v436 = vpop.f32.mrb[0].mxu0
  %v437 = vadd.f32 0.0, %v436
  %v438 = vpop.f32.mrb[0].mxu0
  %v439 = vpop.f32.mrb[0].mxu0
  %v440 = vadd.f32 0.0, %v439
  %v441 = vpop.f32.mrb[0].mxu0
  %442 = vmatprep.mubr.bf16.mxu0 %v194
  %443 = vmatmul.mubr.bf16.gmra.mrb[0].mxu0 %v193
  %v444 = vpop.f32.mrb[0].mxu0
  %v445 = vadd.f32 0.0, %v444
  %v446 = vpop.f32.mrb[0].mxu0
  %v447 = vpop.f32.mrb[0].mxu0
  %v448 = vadd.f32 0.0, %v447
  %v449 = vpop.f32.mrb[0].mxu0
  %450 = vmatprep.mubr.bf16.mxu0 %v197
  %451 = vmatmul.mubr.bf16.gmra.mrb[0].mxu0 %v196
  %v452 = vpop.f32.mrb[0].mxu0
  %v453 = vadd.f32 0.0, %v452
  %v454 = vpop.f32.mrb[0].mxu0
  %v455 = vpop.f32.mrb[0].mxu0
  %v456 = vadd.f32 0.0, %v455
  %v457 = vpop.f32.mrb[0].mxu0
  %458 = vmatprep.mubr.bf16.mxu0 %v200
  %459 = vmatmul.mubr.bf16.gmra.mrb[0].mxu0 %v199
  %v460 = vpop.f32.mrb[0].mxu0
  %v461 = vadd.f32 0.0, %v460
  %v462 = vpop.f32.mrb[0].mxu0
  %v463 = vpop.f32.mrb[0].mxu0
  %v464 = vadd.f32 0.0, %v463
  %v465 = vpop.f32.mrb[0].mxu0
  %466 = vdwg.mxu0
  %467 = vmatprep.subr.bf16.mxu0 0
  %468 = vmatpush1.bf16.msra.mxu0 %v338
  %469 = vmatprep.subr.bf16.mxu0 0
  %470 = vmatpush1.bf16.msra.mxu0 %v339
  %471 = vmatprep.subr.bf16.mxu0 0
  %472 = vmatpush1.bf16.msra.mxu0 %v340
  %473 = vmatprep.subr.bf16.mxu0 0
  %474 = vmatpush1.bf16.msra.mxu0 %v341
  %475 = vmatprep.subr.bf16.mxu0 0
  %476 = vmatpush1.bf16.msra.mxu0 %v342
  %477 = vmatprep.subr.bf16.mxu0 0
  %478 = vmatpush1.bf16.msra.mxu0 %v343
  %479 = vmatprep.subr.bf16.mxu0 0
  %480 = vmatpush1.bf16.msra.mxu0 %v344
  %481 = vmatprep.subr.bf16.mxu0 0
  %482 = vmatpush1.bf16.msra.mxu0 %v345
  %483 = vmatprep.subr.bf16.mxu0 0
  %484 = vmatpush1.bf16.msra.mxu0 0
  %485 = vmatprep.subr.bf16.mxu0 0
  %486 = vmatpush1.bf16.msra.mxu0 0
  %487 = vmatprep.subr.bf16.mxu0 0
  %488 = vmatpush1.bf16.msra.mxu0 0
  %489 = vmatprep.subr.bf16.mxu0 0
  %490 = vmatpush1.bf16.msra.mxu0 0
  %491 = vmatprep.subr.bf16.mxu0 0
  %492 = vmatpush1.bf16.msra.mxu0 0
  %493 = vmatprep.subr.bf16.mxu0 0
  %494 = vmatpush1.bf16.msra.mxu0 0
  %495 = vmatprep.subr.bf16.mxu0 0
  %496 = vmatpush1.bf16.msra.mxu0 0
  %497 = vmatprep.subr.bf16.mxu0 0
  %498 = vmatpush1.bf16.msra.mxu0 0
  %499 = vmatprep.mubr.bf16.mxu0 0
  %500 = vmatmul.mubr.bf16.gmra.mrb[0].mxu0 %v180
  %v501 = vpop.f32.mrb[0].mxu0
  %v502 = vadd.f32 %v405, %v501
  %v503 = vpop.f32.mrb[0].mxu0
  %v504 = vpop.f32.mrb[0].mxu0
  %v505 = vadd.f32 %v408, %v504
  %v506 = vpop.f32.mrb[0].mxu0
  %507 = vmatprep.mubr.bf16.mxu0 0
  %508 = vmatmul.mubr.bf16.gmra.mrb[0].mxu0 %v183
  %v509 = vpop.f32.mrb[0].mxu0
  %v510 = vadd.f32 %v413, %v509
  %v511 = vpop.f32.mrb[0].mxu0
  %v512 = vpop.f32.mrb[0].mxu0
  %v513 = vadd.f32 %v416, %v512
  %v514 = vpop.f32.mrb[0].mxu0
  %515 = vmatprep.mubr.bf16.mxu0 0
  %516 = vmatmul.mubr.bf16.gmra.mrb[0].mxu0 %v186
  %v517 = vpop.f32.mrb[0].mxu0
  %v518 = vadd.f32 %v421, %v517
  %v519 = vpop.f32.mrb[0].mxu0
  %v520 = vpop.f32.mrb[0].mxu0
  %v521 = vadd.f32 %v424, %v520
  %v522 = vpop.f32.mrb[0].mxu0
  %523 = vmatprep.mubr.bf16.mxu0 0
  %524 = vmatmul.mubr.bf16.gmra.mrb[0].mxu0 %v189
  %v525 = vpop.f32.mrb[0].mxu0
  %v526 = vadd.f32 %v429, %v525
  %v527 = vpop.f32.mrb[0].mxu0
  %v528 = vpop.f32.mrb[0].mxu0
  %v529 = vadd.f32 %v432, %v528
  %v530 = vpop.f32.mrb[0].mxu0
  %531 = vmatprep.mubr.bf16.mxu0 0
  %532 = vmatmul.mubr.bf16.gmra.mrb[0].mxu0 %v192
  %v533 = vpop.f32.mrb[0].mxu0
  %v534 = vadd.f32 %v437, %v533
  %v535 = vpop.f32.mrb[0].mxu0
  %v536 = vpop.f32.mrb[0].mxu0
  %v537 = vadd.f32 %v440, %v536
  %v538 = vpop.f32.mrb[0].mxu0
  %539 = vmatprep.mubr.bf16.mxu0 0
  %540 = vmatmul.mubr.bf16.gmra.mrb[0].mxu0 %v195
  %v541 = vpop.f32.mrb[0].mxu0
  %v542 = vadd.f32 %v445, %v541
  %v543 = vpop.f32.mrb[0].mxu0
  %v544 = vpop.f32.mrb[0].mxu0
  %v545 = vadd.f32 %v448, %v544
  %v546 = vpop.f32.mrb[0].mxu0
  %547 = vmatprep.mubr.bf16.mxu0 0
  %548 = vmatmul.mubr.bf16.gmra.mrb[0].mxu0 %v198
  %v549 = vpop.f32.mrb[0].mxu0
  %v550 = vadd.f32 %v453, %v549
  %v551 = vpop.f32.mrb[0].mxu0
  %v552 = vpop.f32.mrb[0].mxu0
  %v553 = vadd.f32 %v456, %v552
  %v554 = vpop.f32.mrb[0].mxu0
  %555 = vmatprep.mubr.bf16.mxu0 0
  %556 = vmatmul.mubr.bf16.gmra.mrb[0].mxu0 %v201
  %v557 = vpop.f32.mrb[0].mxu0
  %v558 = vadd.f32 %v461, %v557
  %v559 = vpop.f32.mrb[0].mxu0
  %v560 = vpop.f32.mrb[0].mxu0
  %v561 = vadd.f32 %v464, %v560
  %v562 = vpop.f32.mrb[0].mxu0
  %563 = vdwg.mxu0
  %v564 = vld [vmem:[%s2] sm:$0x1]
  %v566 = vlaneseq
  %v567 = vshrl.u32 %v566, 7
  %v568 = vsub.s32 0, %v567
  %v569 = vrot.slane %v564, %v568
  %v571 = vmul.f32 %v502, %v569
  %v572 = vmul.f32 %v505, %v569
  %v573 = vmul.f32 %v510, %v569
  %v574 = vmul.f32 %v513, %v569
  %v575 = vmul.f32 %v518, %v569
  %v576 = vmul.f32 %v521, %v569
  %v577 = vmul.f32 %v526, %v569
  %v578 = vmul.f32 %v529, %v569
  %v579 = vmul.f32 %v534, %v569
  %v580 = vmul.f32 %v537, %v569
  %v581 = vmul.f32 %v542, %v569
  %v582 = vmul.f32 %v545, %v569
  %v583 = vmul.f32 %v550, %v569
  %v584 = vmul.f32 %v553, %v569
  %v585 = vmul.f32 %v558, %v569
  %v586 = vmul.f32 %v561, %v569
  %v587 = vld [vmem:[%s3] sm:$0x1]
  %v589 = vlaneseq
  %v590 = vshrl.u32 %v589, 7
  %v591 = vsub.s32 0, %v590
  %v592 = vrot.slane %v587, %v591
  %v594 = vadd.f32 %v571, %v592
  %v595 = vadd.f32 %v572, %v592
  %v596 = vadd.f32 %v573, %v592
  %v597 = vadd.f32 %v574, %v592
  %v598 = vadd.f32 %v575, %v592
  %v599 = vadd.f32 %v576, %v592
  %v600 = vadd.f32 %v577, %v592
  %v601 = vadd.f32 %v578, %v592
  %v602 = vadd.f32 %v579, %v592
  %v603 = vadd.f32 %v580, %v592
  %v604 = vadd.f32 %v581, %v592
  %v605 = vadd.f32 %v582, %v592
  %v606 = vadd.f32 %v583, %v592
  %v607 = vadd.f32 %v584, %v592
  %v608 = vadd.f32 %v585, %v592
  %v609 = vadd.f32 %v586, %v592
  %v610 = vmax.f32 %v594, 0.0
  %v611 = vmax.f32 %v595, 0.0
  %v612 = vmax.f32 %v596, 0.0
  %v613 = vmax.f32 %v597, 0.0
  %v614 = vmax.f32 %v598, 0.0
  %v615 = vmax.f32 %v599, 0.0
  %v616 = vmax.f32 %v600, 0.0
  %v617 = vmax.f32 %v601, 0.0
  %v618 = vmax.f32 %v602, 0.0
  %v619 = vmax.f32 %v603, 0.0
  %v620 = vmax.f32 %v604, 0.0
  %v621 = vmax.f32 %v605, 0.0
  %v622 = vmax.f32 %v606, 0.0
  %v623 = vmax.f32 %v607, 0.0
  %v624 = vmax.f32 %v608, 0.0
  %v625 = vmax.f32 %v609, 0.0
  %v626 = vpack.c.bf16 %v611, %v610
  %v627 = vpack.c.bf16 %v613, %v612
  %v628 = vpack.c.bf16 %v615, %v614
  %v629 = vpack.c.bf16 %v617, %v616
  %v630 = vpack.c.bf16 %v619, %v618
  %v631 = vpack.c.bf16 %v621, %v620
  %v632 = vpack.c.bf16 %v623, %v622
  %v633 = vpack.c.bf16 %v625, %v624
  %v642 = vunpack.c.l.b16 %v626
  %v643 = vunpack.c.h.b16 %v626
  %v644 = vunpack.c.l.b16 %v627
  %v645 = vunpack.c.h.b16 %v627
  %v646 = vunpack.c.l.b16 %v628
  %v647 = vunpack.c.h.b16 %v628
  %v648 = vunpack.c.l.b16 %v629
  %v649 = vunpack.c.h.b16 %v629
  %v650 = vunpack.c.l.b16 %v630
  %v651 = vunpack.c.h.b16 %v630
  %v652 = vunpack.c.l.b16 %v631
  %v653 = vunpack.c.h.b16 %v631
  %v654 = vunpack.c.l.b16 %v632
  %v655 = vunpack.c.h.b16 %v632
  %v656 = vunpack.c.l.b16 %v633
  %v657 = vunpack.c.h.b16 %v633
  %v658 = vpack.c.b16 %v642, %v642
  %v659 = vpack.c.b16 %v643, %v643
  %v660 = vpack.c.b16 %v644, %v644
  %v661 = vpack.c.b16 %v645, %v645
  %v662 = vpack.c.b16 %v646, %v646
  %v663 = vpack.c.b16 %v647, %v647
  %v664 = vpack.c.b16 %v648, %v648
  %v665 = vpack.c.b16 %v649, %v649
  %v666 = vpack.c.b16 %v650, %v650
  %v667 = vpack.c.b16 %v651, %v651
  %v668 = vpack.c.b16 %v652, %v652
  %v669 = vpack.c.b16 %v653, %v653
  %v670 = vpack.c.b16 %v654, %v654
  %v671 = vpack.c.b16 %v655, %v655
  %v672 = vpack.c.b16 %v656, %v656
  %v673 = vpack.c.b16 %v657, %v657
  %690 = vst [vmem:[%s4] sm:$0xf] %v658
  %691 = vst [vmem:[%s4 + $0x4] sm:$0xf] %v659
  %692 = vst [vmem:[%s4 + $0x8] sm:$0xf] %v660
  %693 = vst [vmem:[%s4 + $0xc] sm:$0xf] %v661
  %694 = vst [vmem:[%s4 + $0x10] sm:$0xf] %v662
  %695 = vst [vmem:[%s4 + $0x14] sm:$0xf] %v663
  %696 = vst [vmem:[%s4 + $0x18] sm:$0xf] %v664
  %697 = vst [vmem:[%s4 + $0x1c] sm:$0xf] %v665
  %698 = vst [vmem:[%s4 + $0x20] sm:$0xf] %v666
  %699 = vst [vmem:[%s4 + $0x24] sm:$0xf] %v667
  %700 = vst [vmem:[%s4 + $0x28] sm:$0xf] %v668
  %701 = vst [vmem:[%s4 + $0x2c] sm:$0xf] %v669
  %702 = vst [vmem:[%s4 + $0x30] sm:$0xf] %v670
  %703 = vst [vmem:[%s4 + $0x34] sm:$0xf] %v671
  %704 = vst [vmem:[%s4 + $0x38] sm:$0xf] %v672
  %705 = vst [vmem:[%s4 + $0x3c] sm:$0xf] %v673
  // Predicated region
  $region18: #{deeplabv3plus_forward.19} parent=0 // pred_check
    _
  $region19: #{deeplabv3plus_forward.19} parent=0 // pred_check_branch
    %707 = sbr.rel (0) target = $region21
  $region20: #{deeplabv3plus_forward.19} parent=0 // pred_region
    _
  $region21: #{deeplabv3plus_forward.19} parent=0 // pred_fallthru
    _
  // Predicated region
  $region22: #{deeplabv3plus_forward.19} parent=0 // pred_check
    _
  $region23: #{deeplabv3plus_forward.19} parent=0 // pred_check_branch
    %709 = sbr.rel (0) target = $region25
  $region24: #{deeplabv3plus_forward.19} parent=0 // pred_region
    _
  $region25: #{deeplabv3plus_forward.19} parent=0 // pred_fallthru
    _

// kernel: deeplabv3plus_forward.21
$region0: #{deeplabv3plus_forward.21}
  #allocation0 [shape = 'u32[]', space=smem, size = 0x4, offset = 0x4, fixed_abs, tag = 'smem constant byte address 0x4 - core index']
  #allocation1 [shape = 'u32[144,128]{1,0:T(1,128)}', space=vmem, size = 0x12000, scoped, tag = 'internal scratch']
  %s0 = inlined_call_operand.vmem [shape: bf16[128,640], index: 0, kind: input, shape index: {}]
  %s1 = inlined_call_operand.vmem [shape: bf16[640,128], index: 1, kind: input, shape index: {}]
  %s2 = inlined_call_operand.vmem [shape: f32[1,128], index: 2, kind: input, shape index: {}]
  %s3 = inlined_call_operand.vmem [shape: f32[1,128], index: 3, kind: input, shape index: {}]
  %s4 = inlined_call_operand.vmem [shape: bf16[128,128], index: 4, kind: output, shape index: {}]
  %s5 = sld [smem:[#allocation0]]
  $region26: #{deeplabv3plus_forward.21} parent=0
    _
  %s7 = ssub.s32 1, %s5
  %s8 = scalar_select 0, %s7, %s5
  // Predicated region
  $region2: #{deeplabv3plus_forward.21} parent=0 // pred_check
    _
  $region3: #{deeplabv3plus_forward.21} parent=0 // pred_check_branch
    %10 = sbr.rel (0) target = $region5
  $region4: #{deeplabv3plus_forward.21} parent=0 // pred_region
    _
  $region5: #{deeplabv3plus_forward.21} parent=0 // pred_fallthru
    _
  // Predicated region
  $region6: #{deeplabv3plus_forward.21} parent=0 // pred_check
    _
  $region7: #{deeplabv3plus_forward.21} parent=0 // pred_check_branch
    %12 = sbr.rel (0) target = $region9
  $region8: #{deeplabv3plus_forward.21} parent=0 // pred_region
    _
  $region9: #{deeplabv3plus_forward.21} parent=0 // pred_fallthru
    _
  // Predicated region
  $region10: #{deeplabv3plus_forward.21} parent=0 // pred_check
    _
  $region11: #{deeplabv3plus_forward.21} parent=0 // pred_check_branch
    %14 = sbr.rel (0) target = $region13
  $region12: #{deeplabv3plus_forward.21} parent=0 // pred_region
    _
  $region13: #{deeplabv3plus_forward.21} parent=0 // pred_fallthru
    _
  // Predicated region
  $region14: #{deeplabv3plus_forward.21} parent=0 // pred_check
    _
  $region15: #{deeplabv3plus_forward.21} parent=0 // pred_check_branch
    %16 = sbr.rel (0) target = $region17
  $region16: #{deeplabv3plus_forward.21} parent=0 // pred_region
    _
  $region17: #{deeplabv3plus_forward.21} parent=0 // pred_fallthru
    _
  %v18 = vld [vmem:[%s0] sm:$0xff]
  %v19 = vld [vmem:[%s0 + $0x8] sm:$0xff]
  %v20 = vld [vmem:[%s0 + $0x10] sm:$0xf]
  %v21 = vld [vmem:[%s0 + $0x14] sm:$0xff]
  %v22 = vld [vmem:[%s0 + $0x1c] sm:$0xff]
  %v23 = vld [vmem:[%s0 + $0x24] sm:$0xf]
  %v24 = vld [vmem:[%s0 + $0x28] sm:$0xff]
  %v25 = vld [vmem:[%s0 + $0x30] sm:$0xff]
  %v26 = vld [vmem:[%s0 + $0x38] sm:$0xf]
  %v27 = vld [vmem:[%s0 + $0x3c] sm:$0xff]
  %v28 = vld [vmem:[%s0 + $0x44] sm:$0xff]
  %v29 = vld [vmem:[%s0 + $0x4c] sm:$0xf]
  %v30 = vld [vmem:[%s0 + $0x50] sm:$0xff]
  %v31 = vld [vmem:[%s0 + $0x58] sm:$0xff]
  %v32 = vld [vmem:[%s0 + $0x60] sm:$0xf]
  %v33 = vld [vmem:[%s0 + $0x64] sm:$0xff]
  %v34 = vld [vmem:[%s0 + $0x6c] sm:$0xff]
  %v35 = vld [vmem:[%s0 + $0x74] sm:$0xf]
  %v36 = vld [vmem:[%s0 + $0x78] sm:$0xff]
  %v37 = vld [vmem:[%s0 + $0x80] sm:$0xff]
  %v38 = vld [vmem:[%s0 + $0x88] sm:$0xf]
  %v39 = vld [vmem:[%s0 + $0x8c] sm:$0xff]
  %v40 = vld [vmem:[%s0 + $0x94] sm:$0xff]
  %v41 = vld [vmem:[%s0 + $0x9c] sm:$0xf]
  %v42 = vld [vmem:[%s0 + $0xa0] sm:$0xff]
  %v43 = vld [vmem:[%s0 + $0xa8] sm:$0xff]
  %v44 = vld [vmem:[%s0 + $0xb0] sm:$0xf]
  %v45 = vld [vmem:[%s0 + $0xb4] sm:$0xff]
  %v46 = vld [vmem:[%s0 + $0xbc] sm:$0xff]
  %v47 = vld [vmem:[%s0 + $0xc4] sm:$0xf]
  %v48 = vld [vmem:[%s0 + $0xc8] sm:$0xff]
  %v49 = vld [vmem:[%s0 + $0xd0] sm:$0xff]
  %v50 = vld [vmem:[%s0 + $0xd8] sm:$0xf]
  %v51 = vld [vmem:[%s0 + $0xdc] sm:$0xff]
  %v52 = vld [vmem:[%s0 + $0xe4] sm:$0xff]
  %v53 = vld [vmem:[%s0 + $0xec] sm:$0xf]
  %v54 = vld [vmem:[%s0 + $0xf0] sm:$0xff]
  %v55 = vld [vmem:[%s0 + $0xf8] sm:$0xff]
  %v56 = vld [vmem:[%s0 + $0x100] sm:$0xf]
  %v57 = vld [vmem:[%s0 + $0x104] sm:$0xff]
  %v58 = vld [vmem:[%s0 + $0x10c] sm:$0xff]
  %v59 = vld [vmem:[%s0 + $0x114] sm:$0xf]
  %v60 = vld [vmem:[%s0 + $0x118] sm:$0xff]
  %v61 = vld [vmem:[%s0 + $0x120] sm:$0xff]
  %v62 = vld [vmem:[%s0 + $0x128] sm:$0xf]
  %v63 = vld [vmem:[%s0 + $0x12c] sm:$0xff]
  %v64 = vld [vmem:[%s0 + $0x134] sm:$0xff]
  %v65 = vld [vmem:[%s0 + $0x13c] sm:$0xf]
  %v66 = vld [vmem:[%s1] sm:$0xf]
  %v67 = vld [vmem:[%s1 + $0x4] sm:$0xf]
  %v68 = vld [vmem:[%s1 + $0x8] sm:$0xf]
  %v69 = vld [vmem:[%s1 + $0xc] sm:$0xf]
  %v70 = vld [vmem:[%s1 + $0x10] sm:$0xf]
  %v71 = vld [vmem:[%s1 + $0x14] sm:$0xf]
  %v72 = vld [vmem:[%s1 + $0x18] sm:$0xf]
  %v73 = vld [vmem:[%s1 + $0x1c] sm:$0xf]
  %v74 = vld [vmem:[%s1 + $0x20] sm:$0xf]
  %v75 = vld [vmem:[%s1 + $0x24] sm:$0xf]
  %v76 = vld [vmem:[%s1 + $0x28] sm:$0xf]
  %v77 = vld [vmem:[%s1 + $0x2c] sm:$0xf]
  %v78 = vld [vmem:[%s1 + $0x30] sm:$0xf]
  %v79 = vld [vmem:[%s1 + $0x34] sm:$0xf]
  %v80 = vld [vmem:[%s1 + $0x38] sm:$0xf]
  %v81 = vld [vmem:[%s1 + $0x3c] sm:$0xf]
  %v82 = vld [vmem:[%s1 + $0x40] sm:$0xf]
  %v83 = vld [vmem:[%s1 + $0x44] sm:$0xf]
  %v84 = vld [vmem:[%s1 + $0x48] sm:$0xf]
  %v85 = vld [vmem:[%s1 + $0x4c] sm:$0xf]
  %v86 = vld [vmem:[%s1 + $0x50] sm:$0xf]
  %v87 = vld [vmem:[%s1 + $0x54] sm:$0xf]
  %v88 = vld [vmem:[%s1 + $0x58] sm:$0xf]
  %v89 = vld [vmem:[%s1 + $0x5c] sm:$0xf]
  %v90 = vld [vmem:[%s1 + $0x60] sm:$0xf]
  %v91 = vld [vmem:[%s1 + $0x64] sm:$0xf]
  %v92 = vld [vmem:[%s1 + $0x68] sm:$0xf]
  %v93 = vld [vmem:[%s1 + $0x6c] sm:$0xf]
  %v94 = vld [vmem:[%s1 + $0x70] sm:$0xf]
  %v95 = vld [vmem:[%s1 + $0x74] sm:$0xf]
  %v96 = vld [vmem:[%s1 + $0x78] sm:$0xf]
  %v97 = vld [vmem:[%s1 + $0x7c] sm:$0xf]
  %v98 = vld [vmem:[%s1 + $0x80] sm:$0xf]
  %v99 = vld [vmem:[%s1 + $0x84] sm:$0xf]
  %v100 = vld [vmem:[%s1 + $0x88] sm:$0xf]
  %v101 = vld [vmem:[%s1 + $0x8c] sm:$0xf]
  %v102 = vld [vmem:[%s1 + $0x90] sm:$0xf]
  %v103 = vld [vmem:[%s1 + $0x94] sm:$0xf]
  %v104 = vld [vmem:[%s1 + $0x98] sm:$0xf]
  %v105 = vld [vmem:[%s1 + $0x9c] sm:$0xf]
  %v106 = vld [vmem:[%s1 + $0xa0] sm:$0xf]
  %v107 = vld [vmem:[%s1 + $0xa4] sm:$0xf]
  %v108 = vld [vmem:[%s1 + $0xa8] sm:$0xf]
  %v109 = vld [vmem:[%s1 + $0xac] sm:$0xf]
  %v110 = vld [vmem:[%s1 + $0xb0] sm:$0xf]
  %v111 = vld [vmem:[%s1 + $0xb4] sm:$0xf]
  %v112 = vld [vmem:[%s1 + $0xb8] sm:$0xf]
  %v113 = vld [vmem:[%s1 + $0xbc] sm:$0xf]
  %v114 = vld [vmem:[%s1 + $0xc0] sm:$0xf]
  %v115 = vld [vmem:[%s1 + $0xc4] sm:$0xf]
  %v116 = vld [vmem:[%s1 + $0xc8] sm:$0xf]
  %v117 = vld [vmem:[%s1 + $0xcc] sm:$0xf]
  %v118 = vld [vmem:[%s1 + $0xd0] sm:$0xf]
  %v119 = vld [vmem:[%s1 + $0xd4] sm:$0xf]
  %v120 = vld [vmem:[%s1 + $0xd8] sm:$0xf]
  %v121 = vld [vmem:[%s1 + $0xdc] sm:$0xf]
  %v122 = vld [vmem:[%s1 + $0xe0] sm:$0xf]
  %v123 = vld [vmem:[%s1 + $0xe4] sm:$0xf]
  %v124 = vld [vmem:[%s1 + $0xe8] sm:$0xf]
  %v125 = vld [vmem:[%s1 + $0xec] sm:$0xf]
  %v126 = vld [vmem:[%s1 + $0xf0] sm:$0xf]
  %v127 = vld [vmem:[%s1 + $0xf4] sm:$0xf]
  %v128 = vld [vmem:[%s1 + $0xf8] sm:$0xf]
  %v129 = vld [vmem:[%s1 + $0xfc] sm:$0xf]
  %v130 = vld [vmem:[%s1 + $0x100] sm:$0xf]
  %v131 = vld [vmem:[%s1 + $0x104] sm:$0xf]
  %v132 = vld [vmem:[%s1 + $0x108] sm:$0xf]
  %v133 = vld [vmem:[%s1 + $0x10c] sm:$0xf]
  %v134 = vld [vmem:[%s1 + $0x110] sm:$0xf]
  %v135 = vld [vmem:[%s1 + $0x114] sm:$0xf]
  %v136 = vld [vmem:[%s1 + $0x118] sm:$0xf]
  %v137 = vld [vmem:[%s1 + $0x11c] sm:$0xf]
  %v138 = vld [vmem:[%s1 + $0x120] sm:$0xf]
  %v139 = vld [vmem:[%s1 + $0x124] sm:$0xf]
  %v140 = vld [vmem:[%s1 + $0x128] sm:$0xf]
  %v141 = vld [vmem:[%s1 + $0x12c] sm:$0xf]
  %v142 = vld [vmem:[%s1 + $0x130] sm:$0xf]
  %v143 = vld [vmem:[%s1 + $0x134] sm:$0xf]
  %v144 = vld [vmem:[%s1 + $0x138] sm:$0xf]
  %v145 = vld [vmem:[%s1 + $0x13c] sm:$0xf]
  %v194 = vunpack.c.l.b16 %v18
  %v195 = vunpack.c.h.b16 %v18
  %v196 = vunpack.c.l.b16 %v19
  %v197 = vunpack.c.h.b16 %v19
  %v198 = vunpack.c.l.b16 %v20
  %v199 = vunpack.c.l.b16 %v21
  %v200 = vunpack.c.h.b16 %v21
  %v201 = vunpack.c.l.b16 %v22
  %v202 = vunpack.c.h.b16 %v22
  %v203 = vunpack.c.l.b16 %v23
  %v204 = vunpack.c.l.b16 %v24
  %v205 = vunpack.c.h.b16 %v24
  %v206 = vunpack.c.l.b16 %v25
  %v207 = vunpack.c.h.b16 %v25
  %v208 = vunpack.c.l.b16 %v26
  %v209 = vunpack.c.l.b16 %v27
  %v210 = vunpack.c.h.b16 %v27
  %v211 = vunpack.c.l.b16 %v28
  %v212 = vunpack.c.h.b16 %v28
  %v213 = vunpack.c.l.b16 %v29
  %v214 = vunpack.c.l.b16 %v30
  %v215 = vunpack.c.h.b16 %v30
  %v216 = vunpack.c.l.b16 %v31
  %v217 = vunpack.c.h.b16 %v31
  %v218 = vunpack.c.l.b16 %v32
  %v219 = vunpack.c.l.b16 %v33
  %v220 = vunpack.c.h.b16 %v33
  %v221 = vunpack.c.l.b16 %v34
  %v222 = vunpack.c.h.b16 %v34
  %v223 = vunpack.c.l.b16 %v35
  %v224 = vunpack.c.l.b16 %v36
  %v225 = vunpack.c.h.b16 %v36
  %v226 = vunpack.c.l.b16 %v37
  %v227 = vunpack.c.h.b16 %v37
  %v228 = vunpack.c.l.b16 %v38
  %v229 = vunpack.c.l.b16 %v39
  %v230 = vunpack.c.h.b16 %v39
  %v231 = vunpack.c.l.b16 %v40
  %v232 = vunpack.c.h.b16 %v40
  %v233 = vunpack.c.l.b16 %v41
  %v234 = vunpack.c.l.b16 %v42
  %v235 = vunpack.c.h.b16 %v42
  %v236 = vunpack.c.l.b16 %v43
  %v237 = vunpack.c.h.b16 %v43
  %v238 = vunpack.c.l.b16 %v44
  %v239 = vunpack.c.l.b16 %v45
  %v240 = vunpack.c.h.b16 %v45
  %v241 = vunpack.c.l.b16 %v46
  %v242 = vunpack.c.h.b16 %v46
  %v243 = vunpack.c.l.b16 %v47
  %v244 = vunpack.c.l.b16 %v48
  %v245 = vunpack.c.h.b16 %v48
  %v246 = vunpack.c.l.b16 %v49
  %v247 = vunpack.c.h.b16 %v49
  %v248 = vunpack.c.l.b16 %v50
  %v249 = vunpack.c.l.b16 %v51
  %v250 = vunpack.c.h.b16 %v51
  %v251 = vunpack.c.l.b16 %v52
  %v252 = vunpack.c.h.b16 %v52
  %v253 = vunpack.c.l.b16 %v53
  %v254 = vunpack.c.l.b16 %v54
  %v255 = vunpack.c.h.b16 %v54
  %v256 = vunpack.c.l.b16 %v55
  %v257 = vunpack.c.h.b16 %v55
  %v258 = vunpack.c.l.b16 %v56
  %v259 = vunpack.c.l.b16 %v57
  %v260 = vunpack.c.h.b16 %v57
  %v261 = vunpack.c.l.b16 %v58
  %v262 = vunpack.c.h.b16 %v58
  %v263 = vunpack.c.l.b16 %v59
  %v264 = vunpack.c.l.b16 %v60
  %v265 = vunpack.c.h.b16 %v60
  %v266 = vunpack.c.l.b16 %v61
  %v267 = vunpack.c.h.b16 %v61
  %v268 = vunpack.c.l.b16 %v62
  %v269 = vunpack.c.l.b16 %v63
  %v270 = vunpack.c.h.b16 %v63
  %v271 = vunpack.c.l.b16 %v64
  %v272 = vunpack.c.h.b16 %v64
  %v273 = vunpack.c.l.b16 %v65
  %v274 = vpack.c.b16 %v199, %v194
  %v275 = vpack.c.b16 %v200, %v195
  %v276 = vpack.c.b16 %v201, %v196
  %v277 = vpack.c.b16 %v202, %v197
  %v278 = vpack.c.b16 %v203, %v198
  %v279 = vpack.c.b16 %v209, %v204
  %v280 = vpack.c.b16 %v210, %v205
  %v281 = vpack.c.b16 %v211, %v206
  %v282 = vpack.c.b16 %v212, %v207
  %v283 = vpack.c.b16 %v213, %v208
  %v284 = vpack.c.b16 %v219, %v214
  %v285 = vpack.c.b16 %v220, %v215
  %v286 = vpack.c.b16 %v221, %v216
  %v287 = vpack.c.b16 %v222, %v217
  %v288 = vpack.c.b16 %v223, %v218
  %v289 = vpack.c.b16 %v229, %v224
  %v290 = vpack.c.b16 %v230, %v225
  %v291 = vpack.c.b16 %v231, %v226
  %v292 = vpack.c.b16 %v232, %v227
  %v293 = vpack.c.b16 %v233, %v228
  %v294 = vpack.c.b16 %v239, %v234
  %v295 = vpack.c.b16 %v240, %v235
  %v296 = vpack.c.b16 %v241, %v236
  %v297 = vpack.c.b16 %v242, %v237
  %v298 = vpack.c.b16 %v243, %v238
  %v299 = vpack.c.b16 %v249, %v244
  %v300 = vpack.c.b16 %v250, %v245
  %v301 = vpack.c.b16 %v251, %v246
  %v302 = vpack.c.b16 %v252, %v247
  %v303 = vpack.c.b16 %v253, %v248
  %v304 = vpack.c.b16 %v259, %v254
  %v305 = vpack.c.b16 %v260, %v255
  %v306 = vpack.c.b16 %v261, %v256
  %v307 = vpack.c.b16 %v262, %v257
  %v308 = vpack.c.b16 %v263, %v258
  %v309 = vpack.c.b16 %v269, %v264
  %v310 = vpack.c.b16 %v270, %v265
  %v311 = vpack.c.b16 %v271, %v266
  %v312 = vpack.c.b16 %v272, %v267
  %v313 = vpack.c.b16 %v273, %v268
  %v434 = vunpack.c.l.b16 %v66
  %v435 = vunpack.c.l.b16 %v67
  %v436 = vunpack.c.l.b16 %v68
  %v437 = vunpack.c.l.b16 %v69
  %v438 = vunpack.c.l.b16 %v70
  %v439 = vunpack.c.l.b16 %v71
  %v440 = vunpack.c.l.b16 %v72
  %v441 = vunpack.c.l.b16 %v73
  %v442 = vunpack.c.l.b16 %v74
  %v443 = vunpack.c.l.b16 %v75
  %v444 = vunpack.c.l.b16 %v76
  %v445 = vunpack.c.l.b16 %v77
  %v446 = vunpack.c.l.b16 %v78
  %v447 = vunpack.c.l.b16 %v79
  %v448 = vunpack.c.l.b16 %v80
  %v449 = vunpack.c.l.b16 %v81
  %v450 = vunpack.c.l.b16 %v82
  %v451 = vunpack.c.l.b16 %v83
  %v452 = vunpack.c.l.b16 %v84
  %v453 = vunpack.c.l.b16 %v85
  %v454 = vunpack.c.l.b16 %v86
  %v455 = vunpack.c.l.b16 %v87
  %v456 = vunpack.c.l.b16 %v88
  %v457 = vunpack.c.l.b16 %v89
  %v458 = vunpack.c.l.b16 %v90
  %v459 = vunpack.c.l.b16 %v91
  %v460 = vunpack.c.l.b16 %v92
  %v461 = vunpack.c.l.b16 %v93
  %v462 = vunpack.c.l.b16 %v94
  %v463 = vunpack.c.l.b16 %v95
  %v464 = vunpack.c.l.b16 %v96
  %v465 = vunpack.c.l.b16 %v97
  %v466 = vunpack.c.l.b16 %v98
  %v467 = vunpack.c.l.b16 %v99
  %v468 = vunpack.c.l.b16 %v100
  %v469 = vunpack.c.l.b16 %v101
  %v470 = vunpack.c.l.b16 %v102
  %v471 = vunpack.c.l.b16 %v103
  %v472 = vunpack.c.l.b16 %v104
  %v473 = vunpack.c.l.b16 %v105
  %v474 = vunpack.c.l.b16 %v106
  %v475 = vunpack.c.l.b16 %v107
  %v476 = vunpack.c.l.b16 %v108
  %v477 = vunpack.c.l.b16 %v109
  %v478 = vunpack.c.l.b16 %v110
  %v479 = vunpack.c.l.b16 %v111
  %v480 = vunpack.c.l.b16 %v112
  %v481 = vunpack.c.l.b16 %v113
  %v482 = vunpack.c.l.b16 %v114
  %v483 = vunpack.c.l.b16 %v115
  %v484 = vunpack.c.l.b16 %v116
  %v485 = vunpack.c.l.b16 %v117
  %v486 = vunpack.c.l.b16 %v118
  %v487 = vunpack.c.l.b16 %v119
  %v488 = vunpack.c.l.b16 %v120
  %v489 = vunpack.c.l.b16 %v121
  %v490 = vunpack.c.l.b16 %v122
  %v491 = vunpack.c.l.b16 %v123
  %v492 = vunpack.c.l.b16 %v124
  %v493 = vunpack.c.l.b16 %v125
  %v494 = vunpack.c.l.b16 %v126
  %v495 = vunpack.c.l.b16 %v127
  %v496 = vunpack.c.l.b16 %v128
  %v497 = vunpack.c.l.b16 %v129
  %v498 = vunpack.c.l.b16 %v130
  %v499 = vunpack.c.l.b16 %v131
  %v500 = vunpack.c.l.b16 %v132
  %v501 = vunpack.c.l.b16 %v133
  %v502 = vunpack.c.l.b16 %v134
  %v503 = vunpack.c.l.b16 %v135
  %v504 = vunpack.c.l.b16 %v136
  %v505 = vunpack.c.l.b16 %v137
  %v506 = vunpack.c.l.b16 %v138
  %v507 = vunpack.c.l.b16 %v139
  %v508 = vunpack.c.l.b16 %v140
  %v509 = vunpack.c.l.b16 %v141
  %v510 = vunpack.c.l.b16 %v142
  %v511 = vunpack.c.l.b16 %v143
  %v512 = vunpack.c.l.b16 %v144
  %v513 = vunpack.c.l.b16 %v145
  %v514 = vpack.c.b16 %v435, %v434
  %v515 = vpack.c.b16 %v437, %v436
  %v516 = vpack.c.b16 %v439, %v438
  %v517 = vpack.c.b16 %v441, %v440
  %v518 = vpack.c.b16 %v443, %v442
  %v519 = vpack.c.b16 %v445, %v444
  %v520 = vpack.c.b16 %v447, %v446
  %v521 = vpack.c.b16 %v449, %v448
  %v522 = vpack.c.b16 %v451, %v450
  %v523 = vpack.c.b16 %v453, %v452
  %v524 = vpack.c.b16 %v455, %v454
  %v525 = vpack.c.b16 %v457, %v456
  %v526 = vpack.c.b16 %v459, %v458
  %v527 = vpack.c.b16 %v461, %v460
  %v528 = vpack.c.b16 %v463, %v462
  %v529 = vpack.c.b16 %v465, %v464
  %v530 = vpack.c.b16 %v467, %v466
  %v531 = vpack.c.b16 %v469, %v468
  %v532 = vpack.c.b16 %v471, %v470
  %v533 = vpack.c.b16 %v473, %v472
  %v534 = vpack.c.b16 %v475, %v474
  %v535 = vpack.c.b16 %v477, %v476
  %v536 = vpack.c.b16 %v479, %v478
  %v537 = vpack.c.b16 %v481, %v480
  %v538 = vpack.c.b16 %v483, %v482
  %v539 = vpack.c.b16 %v485, %v484
  %v540 = vpack.c.b16 %v487, %v486
  %v541 = vpack.c.b16 %v489, %v488
  %v542 = vpack.c.b16 %v491, %v490
  %v543 = vpack.c.b16 %v493, %v492
  %v544 = vpack.c.b16 %v495, %v494
  %v545 = vpack.c.b16 %v497, %v496
  %v546 = vpack.c.b16 %v499, %v498
  %v547 = vpack.c.b16 %v501, %v500
  %v548 = vpack.c.b16 %v503, %v502
  %v549 = vpack.c.b16 %v505, %v504
  %v550 = vpack.c.b16 %v507, %v506
  %v551 = vpack.c.b16 %v509, %v508
  %v552 = vpack.c.b16 %v511, %v510
  %v553 = vpack.c.b16 %v513, %v512
  %594 = vmatprep.subr.bf16.mxu0 0
  %595 = vmatpush1.bf16.msra.mxu0 %v514
  %596 = vmatprep.subr.bf16.mxu0 0
  %597 = vmatpush1.bf16.msra.mxu0 %v515
  %598 = vmatprep.subr.bf16.mxu0 0
  %599 = vmatpush1.bf16.msra.mxu0 %v516
  %600 = vmatprep.subr.bf16.mxu0 0
  %601 = vmatpush1.bf16.msra.mxu0 %v517
  %602 = vmatprep.subr.bf16.mxu0 0
  %603 = vmatpush1.bf16.msra.mxu0 %v518
  %604 = vmatprep.subr.bf16.mxu0 0
  %605 = vmatpush1.bf16.msra.mxu0 %v519
  %606 = vmatprep.subr.bf16.mxu0 0
  %607 = vmatpush1.bf16.msra.mxu0 %v520
  %608 = vmatprep.subr.bf16.mxu0 0
  %609 = vmatpush1.bf16.msra.mxu0 %v521
  %610 = vmatprep.subr.bf16.mxu0 0
  %611 = vmatpush1.bf16.msra.mxu0 %v522
  %612 = vmatprep.subr.bf16.mxu0 0
  %613 = vmatpush1.bf16.msra.mxu0 %v523
  %614 = vmatprep.subr.bf16.mxu0 0
  %615 = vmatpush1.bf16.msra.mxu0 %v524
  %616 = vmatprep.subr.bf16.mxu0 0
  %617 = vmatpush1.bf16.msra.mxu0 %v525
  %618 = vmatprep.subr.bf16.mxu0 0
  %619 = vmatpush1.bf16.msra.mxu0 %v526
  %620 = vmatprep.subr.bf16.mxu0 0
  %621 = vmatpush1.bf16.msra.mxu0 %v527
  %622 = vmatprep.subr.bf16.mxu0 0
  %623 = vmatpush1.bf16.msra.mxu0 %v528
  %624 = vmatprep.subr.bf16.mxu0 0
  %625 = vmatpush1.bf16.msra.mxu0 %v529
  %626 = vmatprep.mubr.bf16.mxu0 %v275
  %627 = vmatmul.mubr.bf16.gmra.mrb[0].mxu0 %v274
  %v628 = vpop.f32.mrb[0].mxu0
  %v629 = vadd.f32 0.0, %v628
  %v630 = vpop.f32.mrb[0].mxu0
  %v631 = vpop.f32.mrb[0].mxu0
  %v632 = vadd.f32 0.0, %v631
  %v633 = vpop.f32.mrb[0].mxu0
  %634 = vmatprep.mubr.bf16.mxu0 %v280
  %635 = vmatmul.mubr.bf16.gmra.mrb[0].mxu0 %v279
  %v636 = vpop.f32.mrb[0].mxu0
  %v637 = vadd.f32 0.0, %v636
  %v638 = vpop.f32.mrb[0].mxu0
  %v639 = vpop.f32.mrb[0].mxu0
  %v640 = vadd.f32 0.0, %v639
  %v641 = vpop.f32.mrb[0].mxu0
  %642 = vmatprep.mubr.bf16.mxu0 %v285
  %643 = vmatmul.mubr.bf16.gmra.mrb[0].mxu0 %v284
  %v644 = vpop.f32.mrb[0].mxu0
  %v645 = vadd.f32 0.0, %v644
  %v646 = vpop.f32.mrb[0].mxu0
  %v647 = vpop.f32.mrb[0].mxu0
  %v648 = vadd.f32 0.0, %v647
  %v649 = vpop.f32.mrb[0].mxu0
  %650 = vmatprep.mubr.bf16.mxu0 %v290
  %651 = vmatmul.mubr.bf16.gmra.mrb[0].mxu0 %v289
  %v652 = vpop.f32.mrb[0].mxu0
  %v653 = vadd.f32 0.0, %v652
  %v654 = vpop.f32.mrb[0].mxu0
  %v655 = vpop.f32.mrb[0].mxu0
  %v656 = vadd.f32 0.0, %v655
  %v657 = vpop.f32.mrb[0].mxu0
  %658 = vmatprep.mubr.bf16.mxu0 %v295
  %659 = vmatmul.mubr.bf16.gmra.mrb[0].mxu0 %v294
  %v660 = vpop.f32.mrb[0].mxu0
  %v661 = vadd.f32 0.0, %v660
  %v662 = vpop.f32.mrb[0].mxu0
  %v663 = vpop.f32.mrb[0].mxu0
  %v664 = vadd.f32 0.0, %v663
  %v665 = vpop.f32.mrb[0].mxu0
  %666 = vmatprep.mubr.bf16.mxu0 %v300
  %667 = vmatmul.mubr.bf16.gmra.mrb[0].mxu0 %v299
  %v668 = vpop.f32.mrb[0].mxu0
  %v669 = vadd.f32 0.0, %v668
  %v670 = vpop.f32.mrb[0].mxu0
  %v671 = vpop.f32.mrb[0].mxu0
  %v672 = vadd.f32 0.0, %v671
  %v673 = vpop.f32.mrb[0].mxu0
  %674 = vmatprep.mubr.bf16.mxu0 %v305
  %675 = vmatmul.mubr.bf16.gmra.mrb[0].mxu0 %v304
  %v676 = vpop.f32.mrb[0].mxu0
  %v677 = vadd.f32 0.0, %v676
  %v678 = vpop.f32.mrb[0].mxu0
  %v679 = vpop.f32.mrb[0].mxu0
  %v680 = vadd.f32 0.0, %v679
  %v681 = vpop.f32.mrb[0].mxu0
  %682 = vmatprep.mubr.bf16.mxu0 %v310
  %683 = vmatmul.mubr.bf16.gmra.mrb[0].mxu0 %v309
  %v684 = vpop.f32.mrb[0].mxu0
  %v685 = vadd.f32 0.0, %v684
  %v686 = vpop.f32.mrb[0].mxu0
  %v687 = vpop.f32.mrb[0].mxu0
  %v688 = vadd.f32 0.0, %v687
  %v689 = vpop.f32.mrb[0].mxu0
  %690 = vdwg.mxu0
  %691 = vmatprep.subr.bf16.mxu0 0
  %692 = vmatpush1.bf16.msra.mxu0 %v530
  %693 = vmatprep.subr.bf16.mxu0 0
  %694 = vmatpush1.bf16.msra.mxu0 %v531
  %695 = vmatprep.subr.bf16.mxu0 0
  %696 = vmatpush1.bf16.msra.mxu0 %v532
  %697 = vmatprep.subr.bf16.mxu0 0
  %698 = vmatpush1.bf16.msra.mxu0 %v533
  %699 = vmatprep.subr.bf16.mxu0 0
  %700 = vmatpush1.bf16.msra.mxu0 %v534
  %701 = vmatprep.subr.bf16.mxu0 0
  %702 = vmatpush1.bf16.msra.mxu0 %v535
  %703 = vmatprep.subr.bf16.mxu0 0
  %704 = vmatpush1.bf16.msra.mxu0 %v536
  %705 = vmatprep.subr.bf16.mxu0 0
  %706 = vmatpush1.bf16.msra.mxu0 %v537
  %707 = vmatprep.subr.bf16.mxu0 0
  %708 = vmatpush1.bf16.msra.mxu0 %v538
  %709 = vmatprep.subr.bf16.mxu0 0
  %710 = vmatpush1.bf16.msra.mxu0 %v539
  %711 = vmatprep.subr.bf16.mxu0 0
  %712 = vmatpush1.bf16.msra.mxu0 %v540
  %713 = vmatprep.subr.bf16.mxu0 0
  %714 = vmatpush1.bf16.msra.mxu0 %v541
  %715 = vmatprep.subr.bf16.mxu0 0
  %716 = vmatpush1.bf16.msra.mxu0 %v542
  %717 = vmatprep.subr.bf16.mxu0 0
  %718 = vmatpush1.bf16.msra.mxu0 %v543
  %719 = vmatprep.subr.bf16.mxu0 0
  %720 = vmatpush1.bf16.msra.mxu0 %v544
  %721 = vmatprep.subr.bf16.mxu0 0
  %722 = vmatpush1.bf16.msra.mxu0 %v545
  %723 = vmatprep.mubr.bf16.mxu0 %v277
  %724 = vmatmul.mubr.bf16.gmra.mrb[0].mxu0 %v276
  %v725 = vpop.f32.mrb[0].mxu0
  %v726 = vadd.f32 %v629, %v725
  %v727 = vpop.f32.mrb[0].mxu0
  %v728 = vpop.f32.mrb[0].mxu0
  %v729 = vadd.f32 %v632, %v728
  %v730 = vpop.f32.mrb[0].mxu0
  %731 = vmatprep.mubr.bf16.mxu0 %v282
  %732 = vmatmul.mubr.bf16.gmra.mrb[0].mxu0 %v281
  %v733 = vpop.f32.mrb[0].mxu0
  %v734 = vadd.f32 %v637, %v733
  %v735 = vpop.f32.mrb[0].mxu0
  %v736 = vpop.f32.mrb[0].mxu0
  %v737 = vadd.f32 %v640, %v736
  %v738 = vpop.f32.mrb[0].mxu0
  %739 = vmatprep.mubr.bf16.mxu0 %v287
  %740 = vmatmul.mubr.bf16.gmra.mrb[0].mxu0 %v286
  %v741 = vpop.f32.mrb[0].mxu0
  %v742 = vadd.f32 %v645, %v741
  %v743 = vpop.f32.mrb[0].mxu0
  %v744 = vpop.f32.mrb[0].mxu0
  %v745 = vadd.f32 %v648, %v744
  %v746 = vpop.f32.mrb[0].mxu0
  %747 = vmatprep.mubr.bf16.mxu0 %v292
  %748 = vmatmul.mubr.bf16.gmra.mrb[0].mxu0 %v291
  %v749 = vpop.f32.mrb[0].mxu0
  %v750 = vadd.f32 %v653, %v749
  %v751 = vpop.f32.mrb[0].mxu0
  %v752 = vpop.f32.mrb[0].mxu0
  %v753 = vadd.f32 %v656, %v752
  %v754 = vpop.f32.mrb[0].mxu0
  %755 = vmatprep.mubr.bf16.mxu0 %v297
  %756 = vmatmul.mubr.bf16.gmra.mrb[0].mxu0 %v296
  %v757 = vpop.f32.mrb[0].mxu0
  %v758 = vadd.f32 %v661, %v757
  %v759 = vpop.f32.mrb[0].mxu0
  %v760 = vpop.f32.mrb[0].mxu0
  %v761 = vadd.f32 %v664, %v760
  %v762 = vpop.f32.mrb[0].mxu0
  %763 = vmatprep.mubr.bf16.mxu0 %v302
  %764 = vmatmul.mubr.bf16.gmra.mrb[0].mxu0 %v301
  %v765 = vpop.f32.mrb[0].mxu0
  %v766 = vadd.f32 %v669, %v765
  %v767 = vpop.f32.mrb[0].mxu0
  %v768 = vpop.f32.mrb[0].mxu0
  %v769 = vadd.f32 %v672, %v768
  %v770 = vpop.f32.mrb[0].mxu0
  %771 = vmatprep.mubr.bf16.mxu0 %v307
  %772 = vmatmul.mubr.bf16.gmra.mrb[0].mxu0 %v306
  %v773 = vpop.f32.mrb[0].mxu0
  %v774 = vadd.f32 %v677, %v773
  %v775 = vpop.f32.mrb[0].mxu0
  %v776 = vpop.f32.mrb[0].mxu0
  %v777 = vadd.f32 %v680, %v776
  %v778 = vpop.f32.mrb[0].mxu0
  %779 = vmatprep.mubr.bf16.mxu0 %v312
  %780 = vmatmul.mubr.bf16.gmra.mrb[0].mxu0 %v311
  %v781 = vpop.f32.mrb[0].mxu0
  %v782 = vadd.f32 %v685, %v781
  %v783 = vpop.f32.mrb[0].mxu0
  %v784 = vpop.f32.mrb[0].mxu0
  %v785 = vadd.f32 %v688, %v784
  %v786 = vpop.f32.mrb[0].mxu0
  %787 = vdwg.mxu0
  %788 = vmatprep.subr.bf16.mxu0 0
  %789 = vmatpush1.bf16.msra.mxu0 %v546
  %790 = vmatprep.subr.bf16.mxu0 0
  %791 = vmatpush1.bf16.msra.mxu0 %v547
  %792 = vmatprep.subr.bf16.mxu0 0
  %793 = vmatpush1.bf16.msra.mxu0 %v548
  %794 = vmatprep.subr.bf16.mxu0 0
  %795 = vmatpush1.bf16.msra.mxu0 %v549
  %796 = vmatprep.subr.bf16.mxu0 0
  %797 = vmatpush1.bf16.msra.mxu0 %v550
  %798 = vmatprep.subr.bf16.mxu0 0
  %799 = vmatpush1.bf16.msra.mxu0 %v551
  %800 = vmatprep.subr.bf16.mxu0 0
  %801 = vmatpush1.bf16.msra.mxu0 %v552
  %802 = vmatprep.subr.bf16.mxu0 0
  %803 = vmatpush1.bf16.msra.mxu0 %v553
  %804 = vmatprep.subr.bf16.mxu0 0
  %805 = vmatpush1.bf16.msra.mxu0 0
  %806 = vmatprep.subr.bf16.mxu0 0
  %807 = vmatpush1.bf16.msra.mxu0 0
  %808 = vmatprep.subr.bf16.mxu0 0
  %809 = vmatpush1.bf16.msra.mxu0 0
  %810 = vmatprep.subr.bf16.mxu0 0
  %811 = vmatpush1.bf16.msra.mxu0 0
  %812 = vmatprep.subr.bf16.mxu0 0
  %813 = vmatpush1.bf16.msra.mxu0 0
  %814 = vmatprep.subr.bf16.mxu0 0
  %815 = vmatpush1.bf16.msra.mxu0 0
  %816 = vmatprep.subr.bf16.mxu0 0
  %817 = vmatpush1.bf16.msra.mxu0 0
  %818 = vmatprep.subr.bf16.mxu0 0
  %819 = vmatpush1.bf16.msra.mxu0 0
  %820 = vmatprep.mubr.bf16.mxu0 0
  %821 = vmatmul.mubr.bf16.gmra.mrb[0].mxu0 %v278
  %v822 = vpop.f32.mrb[0].mxu0
  %v823 = vadd.f32 %v726, %v822
  %v824 = vpop.f32.mrb[0].mxu0
  %v825 = vpop.f32.mrb[0].mxu0
  %v826 = vadd.f32 %v729, %v825
  %v827 = vpop.f32.mrb[0].mxu0
  %828 = vmatprep.mubr.bf16.mxu0 0
  %829 = vmatmul.mubr.bf16.gmra.mrb[0].mxu0 %v283
  %v830 = vpop.f32.mrb[0].mxu0
  %v831 = vadd.f32 %v734, %v830
  %v832 = vpop.f32.mrb[0].mxu0
  %v833 = vpop.f32.mrb[0].mxu0
  %v834 = vadd.f32 %v737, %v833
  %v835 = vpop.f32.mrb[0].mxu0
  %836 = vmatprep.mubr.bf16.mxu0 0
  %837 = vmatmul.mubr.bf16.gmra.mrb[0].mxu0 %v288
  %v838 = vpop.f32.mrb[0].mxu0
  %v839 = vadd.f32 %v742, %v838
  %v840 = vpop.f32.mrb[0].mxu0
  %v841 = vpop.f32.mrb[0].mxu0
  %v842 = vadd.f32 %v745, %v841
  %v843 = vpop.f32.mrb[0].mxu0
  %844 = vmatprep.mubr.bf16.mxu0 0
  %845 = vmatmul.mubr.bf16.gmra.mrb[0].mxu0 %v293
  %v846 = vpop.f32.mrb[0].mxu0
  %v847 = vadd.f32 %v750, %v846
  %v848 = vpop.f32.mrb[0].mxu0
  %v849 = vpop.f32.mrb[0].mxu0
  %v850 = vadd.f32 %v753, %v849
  %v851 = vpop.f32.mrb[0].mxu0
  %852 = vmatprep.mubr.bf16.mxu0 0
  %853 = vmatmul.mubr.bf16.gmra.mrb[0].mxu0 %v298
  %v854 = vpop.f32.mrb[0].mxu0
  %v855 = vadd.f32 %v758, %v854
  %v856 = vpop.f32.mrb[0].mxu0
  %v857 = vpop.f32.mrb[0].mxu0
  %v858 = vadd.f32 %v761, %v857
  %v859 = vpop.f32.mrb[0].mxu0
  %860 = vmatprep.mubr.bf16.mxu0 0
  %861 = vmatmul.mubr.bf16.gmra.mrb[0].mxu0 %v303
  %v862 = vpop.f32.mrb[0].mxu0
  %v863 = vadd.f32 %v766, %v862
  %v864 = vpop.f32.mrb[0].mxu0
  %v865 = vpop.f32.mrb[0].mxu0
  %v866 = vadd.f32 %v769, %v865
  %v867 = vpop.f32.mrb[0].mxu0
  %868 = vmatprep.mubr.bf16.mxu0 0
  %869 = vmatmul.mubr.bf16.gmra.mrb[0].mxu0 %v308
  %v870 = vpop.f32.mrb[0].mxu0
  %v871 = vadd.f32 %v774, %v870
  %v872 = vpop.f32.mrb[0].mxu0
  %v873 = vpop.f32.mrb[0].mxu0
  %v874 = vadd.f32 %v777, %v873
  %v875 = vpop.f32.mrb[0].mxu0
  %876 = vmatprep.mubr.bf16.mxu0 0
  %877 = vmatmul.mubr.bf16.gmra.mrb[0].mxu0 %v313
  %v878 = vpop.f32.mrb[0].mxu0
  %v879 = vadd.f32 %v782, %v878
  %v880 = vpop.f32.mrb[0].mxu0
  %v881 = vpop.f32.mrb[0].mxu0
  %v882 = vadd.f32 %v785, %v881
  %v883 = vpop.f32.mrb[0].mxu0
  %884 = vdwg.mxu0
  %v885 = vld [vmem:[%s2] sm:$0x1]
  %v887 = vlaneseq
  %v888 = vshrl.u32 %v887, 7
  %v889 = vsub.s32 0, %v888
  %v890 = vrot.slane %v885, %v889
  %v892 = vmul.f32 %v823, %v890
  %v893 = vmul.f32 %v826, %v890
  %v894 = vmul.f32 %v831, %v890
  %v895 = vmul.f32 %v834, %v890
  %v896 = vmul.f32 %v839, %v890
  %v897 = vmul.f32 %v842, %v890
  %v898 = vmul.f32 %v847, %v890
  %v899 = vmul.f32 %v850, %v890
  %v900 = vmul.f32 %v855, %v890
  %v901 = vmul.f32 %v858, %v890
  %v902 = vmul.f32 %v863, %v890
  %v903 = vmul.f32 %v866, %v890
  %v904 = vmul.f32 %v871, %v890
  %v905 = vmul.f32 %v874, %v890
  %v906 = vmul.f32 %v879, %v890
  %v907 = vmul.f32 %v882, %v890
  %v908 = vld [vmem:[%s3] sm:$0x1]
  %v910 = vlaneseq
  %v911 = vshrl.u32 %v910, 7
  %v912 = vsub.s32 0, %v911
  %v913 = vrot.slane %v908, %v912
  %v915 = vadd.f32 %v892, %v913
  %v916 = vadd.f32 %v893, %v913
  %v917 = vadd.f32 %v894, %v913
  %v918 = vadd.f32 %v895, %v913
  %v919 = vadd.f32 %v896, %v913
  %v920 = vadd.f32 %v897, %v913
  %v921 = vadd.f32 %v898, %v913
  %v922 = vadd.f32 %v899, %v913
  %v923 = vadd.f32 %v900, %v913
  %v924 = vadd.f32 %v901, %v913
  %v925 = vadd.f32 %v902, %v913
  %v926 = vadd.f32 %v903, %v913
  %v927 = vadd.f32 %v904, %v913
  %v928 = vadd.f32 %v905, %v913
  %v929 = vadd.f32 %v906, %v913
  %v930 = vadd.f32 %v907, %v913
  %v931 = vmax.f32 %v915, 0.0
  %v932 = vmax.f32 %v916, 0.0
  %v933 = vmax.f32 %v917, 0.0
  %v934 = vmax.f32 %v918, 0.0
  %v935 = vmax.f32 %v919, 0.0
  %v936 = vmax.f32 %v920, 0.0
  %v937 = vmax.f32 %v921, 0.0
  %v938 = vmax.f32 %v922, 0.0
  %v939 = vmax.f32 %v923, 0.0
  %v940 = vmax.f32 %v924, 0.0
  %v941 = vmax.f32 %v925, 0.0
  %v942 = vmax.f32 %v926, 0.0
  %v943 = vmax.f32 %v927, 0.0
  %v944 = vmax.f32 %v928, 0.0
  %v945 = vmax.f32 %v929, 0.0
  %v946 = vmax.f32 %v930, 0.0
  %v947 = vpack.c.bf16 %v932, %v931
  %v948 = vpack.c.bf16 %v934, %v933
  %v949 = vpack.c.bf16 %v936, %v935
  %v950 = vpack.c.bf16 %v938, %v937
  %v951 = vpack.c.bf16 %v940, %v939
  %v952 = vpack.c.bf16 %v942, %v941
  %v953 = vpack.c.bf16 %v944, %v943
  %v954 = vpack.c.bf16 %v946, %v945
  %v963 = vunpack.c.l.b16 %v947
  %v964 = vunpack.c.h.b16 %v947
  %v965 = vunpack.c.l.b16 %v948
  %v966 = vunpack.c.h.b16 %v948
  %v967 = vunpack.c.l.b16 %v949
  %v968 = vunpack.c.h.b16 %v949
  %v969 = vunpack.c.l.b16 %v950
  %v970 = vunpack.c.h.b16 %v950
  %v971 = vunpack.c.l.b16 %v951
  %v972 = vunpack.c.h.b16 %v951
  %v973 = vunpack.c.l.b16 %v952
  %v974 = vunpack.c.h.b16 %v952
  %v975 = vunpack.c.l.b16 %v953
  %v976 = vunpack.c.h.b16 %v953
  %v977 = vunpack.c.l.b16 %v954
  %v978 = vunpack.c.h.b16 %v954
  %v979 = vpack.c.b16 %v963, %v963
  %v980 = vpack.c.b16 %v964, %v964
  %v981 = vpack.c.b16 %v965, %v965
  %v982 = vpack.c.b16 %v966, %v966
  %v983 = vpack.c.b16 %v967, %v967
  %v984 = vpack.c.b16 %v968, %v968
  %v985 = vpack.c.b16 %v969, %v969
  %v986 = vpack.c.b16 %v970, %v970
  %v987 = vpack.c.b16 %v971, %v971
  %v988 = vpack.c.b16 %v972, %v972
  %v989 = vpack.c.b16 %v973, %v973
  %v990 = vpack.c.b16 %v974, %v974
  %v991 = vpack.c.b16 %v975, %v975
  %v992 = vpack.c.b16 %v976, %v976
  %v993 = vpack.c.b16 %v977, %v977
  %v994 = vpack.c.b16 %v978, %v978
  %1011 = vst [vmem:[%s4] sm:$0xf] %v979
  %1012 = vst [vmem:[%s4 + $0x4] sm:$0xf] %v980
  %1013 = vst [vmem:[%s4 + $0x8] sm:$0xf] %v981
  %1014 = vst [vmem:[%s4 + $0xc] sm:$0xf] %v982
  %1015 = vst [vmem:[%s4 + $0x10] sm:$0xf] %v983
  %1016 = vst [vmem:[%s4 + $0x14] sm:$0xf] %v984
  %1017 = vst [vmem:[%s4 + $0x18] sm:$0xf] %v985
  %1018 = vst [vmem:[%s4 + $0x1c] sm:$0xf] %v986
  %1019 = vst [vmem:[%s4 + $0x20] sm:$0xf] %v987
  %1020 = vst [vmem:[%s4 + $0x24] sm:$0xf] %v988
  %1021 = vst [vmem:[%s4 + $0x28] sm:$0xf] %v989
  %1022 = vst [vmem:[%s4 + $0x2c] sm:$0xf] %v990
  %1023 = vst [vmem:[%s4 + $0x30] sm:$0xf] %v991
  %1024 = vst [vmem:[%s4 + $0x34] sm:$0xf] %v992
  %1025 = vst [vmem:[%s4 + $0x38] sm:$0xf] %v993
  %1026 = vst [vmem:[%s4 + $0x3c] sm:$0xf] %v994
  // Predicated region
  $region18: #{deeplabv3plus_forward.21} parent=0 // pred_check
    _
  $region19: #{deeplabv3plus_forward.21} parent=0 // pred_check_branch
    %1028 = sbr.rel (0) target = $region21
  $region20: #{deeplabv3plus_forward.21} parent=0 // pred_region
    _
  $region21: #{deeplabv3plus_forward.21} parent=0 // pred_fallthru
    _
  // Predicated region
  $region22: #{deeplabv3plus_forward.21} parent=0 // pred_check
    _
  $region23: #{deeplabv3plus_forward.21} parent=0 // pred_check_branch
    %1030 = sbr.rel (0) target = $region25
  $region24: #{deeplabv3plus_forward.21} parent=0 // pred_region
    _
  $region25: #{deeplabv3plus_forward.21} parent=0 // pred_fallthru
    _

// kernel: deeplabv3plus_forward.26
$region0: #{deeplabv3plus_forward.26}
  #allocation0 [shape = 'u32[]', space=smem, size = 0x4, offset = 0x4, fixed_abs, tag = 'smem constant byte address 0x4 - core index']
  #allocation1 [shape = 'u32[144,128]{1,0:T(1,128)}', space=vmem, size = 0x12000, scoped, tag = 'internal scratch']
  %s0 = inlined_call_operand.vmem [shape: bf16[256,128], index: 0, kind: input, shape index: {}]
  %s1 = inlined_call_operand.vmem [shape: bf16[128,128], index: 1, kind: input, shape index: {}]
  %s2 = inlined_call_operand.vmem [shape: f32[1,128], index: 2, kind: input, shape index: {}]
  %s3 = inlined_call_operand.vmem [shape: f32[1,128], index: 3, kind: input, shape index: {}]
  %s4 = inlined_call_operand.vmem [shape: bf16[256,128], index: 4, kind: output, shape index: {}]
  %s5 = sld [smem:[#allocation0]]
  $region49: #{deeplabv3plus_forward.26} parent=0
    _
  %s7 = ssub.s32 1, %s5
  %s8 = scalar_select 0, %s7, %s5
  loop: start=0, step=1, limit=4
  $region2: #{deeplabv3plus_forward.26} parent=0 // loop_pre_header
    _
  $region3: #{deeplabv3plus_forward.26} parent=0 // loop_header
    %s10 = sphi 0, %s14
    %p11 = scmp.ge.s32.totalorder %s10, 4
    %s17 = sphi 0, %s29
    %s18 = sphi 0, %s25
    %s19 = sphi 0, %s17
    %s20 = sphi 0, %s18
    %s21 = sphi 0, %s19
    %s22 = sphi 0, %s20
    %s32 = sphi 0, %s34
    %s35 = sphi 0, %s32
    %s36 = sphi 0, %s35
    %s52 = sphi 0, %s36
    %s58 = sphi 0, %s60
    %s61 = sphi 0, %s58
    %s62 = sphi 0, %s61
    %s78 = sphi 0, %s62
    %s84 = sphi 0, %s86
    %s87 = sphi 0, %s84
    %s88 = sphi 0, %s87
    %s104 = sphi 0, %s88
    %s110 = sphi 0, %s112
    %s113 = sphi 0, %s110
    %s114 = sphi 0, %s113
    %s130 = sphi 0, %s114
    %s138 = sphi 0, %s140
    %s141 = sphi 0, %s138
    %s142 = sphi 0, %s141
    %s158 = sphi 0, %s142
  $region4: #{deeplabv3plus_forward.26} parent=0 // loop_header_branch
    %13 = sbr.rel (%p11) target = $region8
  $region5: #{deeplabv3plus_forward.26} parent=0 // loop_body
    %s15 = ssub.s32 %s10, 1
    %s16 = ssub.s32 %s10, 2
    %s23 = sadd.s32 1, %s18
    %p24 = scmp.ge.s32.totalorder %s23, 1
    %s25 = scalar_select %p24, 0, %s23
    %s26 = sadd.s32 1, %s17
    %s27 = scalar_select %p24, %s26, %s17
    %p28 = scmp.ge.s32.totalorder %s27, 2
    %s29 = scalar_select %p28, 0, %s27
    %s30 = ssub.s32 %s17, %s29
    %p31 = scmp.eq.s32.totalorder %s30, 0
    %s33 = sadd.s32 %s32, 1
    %s34 = scalar_select %p31, %s32, %s33
    %p37 = pneg %p31
    %p38 = scmp.eq.s32.totalorder %s10, 1
    %p39 = por %p37, %p38
    %p40 = scmp.ne.s32.totalorder %s32, %s35
    %p41 = scmp.eq.s32.totalorder %s10, 0
    %p42 = por %p40, %p41
    %p43 = scmp.ne.s32.totalorder %s32, %s35
    %p44 = scmp.eq.s32.totalorder %s15, 1
    %p45 = por %p43, %p44
    %p46 = scmp.ne.s32.totalorder %s35, %s36
    %p47 = scmp.eq.s32.totalorder %s15, 0
    %p48 = por %p46, %p47
    %p49 = scmp.ne.s32.totalorder %s35, %s36
    %p50 = scmp.eq.s32.totalorder %s16, 1
    %p51 = por %p49, %p50
    %p53 = scmp.ne.s32.totalorder %s36, %s52
    %p54 = scmp.eq.s32.totalorder %s16, 0
    %p55 = por %p53, %p54
    %s56 = ssub.s32 %s18, %s25
    %p57 = scmp.eq.s32.totalorder %s56, 0
    %s59 = sadd.s32 %s58, 1
    %s60 = scalar_select %p57, %s58, %s59
    %p63 = pneg %p57
    %p64 = scmp.eq.s32.totalorder %s10, 1
    %p65 = por %p63, %p64
    %p66 = scmp.ne.s32.totalorder %s58, %s61
    %p67 = scmp.eq.s32.totalorder %s10, 0
    %p68 = por %p66, %p67
    %p69 = scmp.ne.s32.totalorder %s58, %s61
    %p70 = scmp.eq.s32.totalorder %s15, 1
    %p71 = por %p69, %p70
    %p72 = scmp.ne.s32.totalorder %s61, %s62
    %p73 = scmp.eq.s32.totalorder %s15, 0
    %p74 = por %p72, %p73
    %p75 = scmp.ne.s32.totalorder %s61, %s62
    %p76 = scmp.eq.s32.totalorder %s16, 1
    %p77 = por %p75, %p76
    %p79 = scmp.ne.s32.totalorder %s62, %s78
    %p80 = scmp.eq.s32.totalorder %s16, 0
    %p81 = por %p79, %p80
    %s82 = ssub.s32 %s18, %s25
    %p83 = scmp.eq.s32.totalorder %s82, 0
    %s85 = sadd.s32 %s84, 1
    %s86 = scalar_select %p83, %s84, %s85
    %p89 = pneg %p83
    %p90 = scmp.eq.s32.totalorder %s10, 1
    %p91 = por %p89, %p90
    %p92 = scmp.ne.s32.totalorder %s84, %s87
    %p93 = scmp.eq.s32.totalorder %s10, 0
    %p94 = por %p92, %p93
    %p95 = scmp.ne.s32.totalorder %s84, %s87
    %p96 = scmp.eq.s32.totalorder %s15, 1
    %p97 = por %p95, %p96
    %p98 = scmp.ne.s32.totalorder %s87, %s88
    %p99 = scmp.eq.s32.totalorder %s15, 0
    %p100 = por %p98, %p99
    %p101 = scmp.ne.s32.totalorder %s87, %s88
    %p102 = scmp.eq.s32.totalorder %s16, 1
    %p103 = por %p101, %p102
    %p105 = scmp.ne.s32.totalorder %s88, %s104
    %p106 = scmp.eq.s32.totalorder %s16, 0
    %p107 = por %p105, %p106
    %s108 = ssub.s32 %s18, %s25
    %p109 = scmp.eq.s32.totalorder %s108, 0
    %s111 = sadd.s32 %s110, 1
    %s112 = scalar_select %p109, %s110, %s111
    %p115 = pneg %p109
    %p116 = scmp.eq.s32.totalorder %s10, 1
    %p117 = por %p115, %p116
    %p118 = scmp.ne.s32.totalorder %s110, %s113
    %p119 = scmp.eq.s32.totalorder %s10, 0
    %p120 = por %p118, %p119
    %p121 = scmp.ne.s32.totalorder %s110, %s113
    %p122 = scmp.eq.s32.totalorder %s15, 1
    %p123 = por %p121, %p122
    %p124 = scmp.ne.s32.totalorder %s113, %s114
    %p125 = scmp.eq.s32.totalorder %s15, 0
    %p126 = por %p124, %p125
    %p127 = scmp.ne.s32.totalorder %s113, %s114
    %p128 = scmp.eq.s32.totalorder %s16, 1
    %p129 = por %p127, %p128
    %p131 = scmp.ne.s32.totalorder %s114, %s130
    %p132 = scmp.eq.s32.totalorder %s16, 0
    %p133 = por %p131, %p132
    %s134 = ssub.s32 %s17, %s29
    %s135 = ssub.s32 %s18, %s25
    %s136 = sor.u32 %s134, %s135
    %p137 = scmp.eq.s32.totalorder %s136, 0
    %s139 = sadd.s32 %s138, 1
    %s140 = scalar_select %p137, %s138, %s139
    %p143 = pneg %p137
    %p144 = scmp.eq.s32.totalorder %s10, 1
    %p145 = por %p143, %p144
    %p146 = scmp.ne.s32.totalorder %s138, %s141
    %p147 = scmp.eq.s32.totalorder %s10, 0
    %p148 = por %p146, %p147
    %p149 = scmp.ne.s32.totalorder %s138, %s141
    %p150 = scmp.eq.s32.totalorder %s15, 1
    %p151 = por %p149, %p150
    %p152 = scmp.ne.s32.totalorder %s141, %s142
    %p153 = scmp.eq.s32.totalorder %s15, 0
    %p154 = por %p152, %p153
    %p155 = scmp.ne.s32.totalorder %s141, %s142
    %p156 = scmp.eq.s32.totalorder %s16, 1
    %p157 = por %p155, %p156
    %p159 = scmp.ne.s32.totalorder %s142, %s158
    %p160 = scmp.eq.s32.totalorder %s16, 0
    %p161 = por %p159, %p160
    %p162 = scmp.le.s32.totalorder 1, %s10
    %p163 = scmp.lt.s32.totalorder %s10, 3
    %p164 = pnand %p162, %p163
    %p165 = pneg %p164
    // Predicated region
    $region9: #{deeplabv3plus_forward.26} parent=5 // pred_check
      _
    $region10: #{deeplabv3plus_forward.26} parent=5 // pred_check_branch
      %167 = sbr.rel (%p164) target = $region12
    $region11: #{deeplabv3plus_forward.26} parent=5 // pred_region
      %s168 = ssub.s32 %s10, 1
      // Predicated region
      $region13: #{deeplabv3plus_forward.26} parent=11 // pred_check
        %p169 = pneg %p74
      $region14: #{deeplabv3plus_forward.26} parent=11 // pred_check_branch
        %171 = sbr.rel (%p169) target = $region16
      $region15: #{deeplabv3plus_forward.26} parent=11 // pred_region
        %p172 = scmp.lt.s32.totalorder %s20, 0
        %s173 = scalar_select %p172, %s20, 0
        %s174 = smul.addr %s173, 4
        %s175 = scalar_lea.vmem %s1, %s174
      $region16: #{deeplabv3plus_forward.26} parent=11 // pred_fallthru
        _
      // Predicated region
      $region17: #{deeplabv3plus_forward.26} parent=11 // pred_check
        %p176 = pneg %p100
      $region18: #{deeplabv3plus_forward.26} parent=11 // pred_check_branch
        %178 = sbr.rel (%p176) target = $region20
      $region19: #{deeplabv3plus_forward.26} parent=11 // pred_region
        %p179 = scmp.lt.s32.totalorder %s20, 0
        %s180 = scalar_select %p179, %s20, 0
        %s181 = scalar_lea.vmem %s2, %s180
      $region20: #{deeplabv3plus_forward.26} parent=11 // pred_fallthru
        _
      // Predicated region
      $region21: #{deeplabv3plus_forward.26} parent=11 // pred_check
        %p182 = pneg %p126
      $region22: #{deeplabv3plus_forward.26} parent=11 // pred_check_branch
        %184 = sbr.rel (%p182) target = $region24
      $region23: #{deeplabv3plus_forward.26} parent=11 // pred_region
        %p185 = scmp.lt.s32.totalorder %s20, 0
        %s186 = scalar_select %p185, %s20, 0
        %s187 = scalar_lea.vmem %s3, %s186
      $region24: #{deeplabv3plus_forward.26} parent=11 // pred_fallthru
        _
    $region12: #{deeplabv3plus_forward.26} parent=5 // pred_fallthru
      _
    %p188 = scmp.lt.s32.totalorder %s10, 2
    // Predicated region
    $region25: #{deeplabv3plus_forward.26} parent=5 // pred_check
      %p189 = pneg %p188
    $region26: #{deeplabv3plus_forward.26} parent=5 // pred_check_branch
      %191 = sbr.rel (%p189) target = $region28
    $region27: #{deeplabv3plus_forward.26} parent=5 // pred_region
      // Predicated region
      $region29: #{deeplabv3plus_forward.26} parent=27 // pred_check
        %p192 = pneg %p42
      $region30: #{deeplabv3plus_forward.26} parent=27 // pred_check_branch
        %194 = sbr.rel (%p192) target = $region32
      $region31: #{deeplabv3plus_forward.26} parent=27 // pred_region
        %s195 = smul.u32 16, %s17
        %p196 = scmp.lt.s32.totalorder %s195, 31
        %s197 = scalar_select %p196, %s195, 31
        %s198 = smul.addr %s197, 4
        %s199 = scalar_lea.vmem %s0, %s198
        %s200 = smul.u32 16, %s17
      $region32: #{deeplabv3plus_forward.26} parent=27 // pred_fallthru
        _
    $region28: #{deeplabv3plus_forward.26} parent=5 // pred_fallthru
      _
    %p201 = scmp.le.s32.totalorder 1, %s10
    %p202 = scmp.lt.s32.totalorder %s10, 3
    %p203 = pnand %p201, %p202
    %p204 = pneg %p203
    // Predicated region
    $region33: #{deeplabv3plus_forward.26} parent=5 // pred_check
      _
    $region34: #{deeplabv3plus_forward.26} parent=5 // pred_check_branch
      %206 = sbr.rel (%p203) target = $region36
    $region35: #{deeplabv3plus_forward.26} parent=5 // pred_region
      %s207 = ssub.s32 %s10, 1
      %s208 = smul.u32 16, %s19
      %p209 = scmp.lt.s32.totalorder %s208, 31
      %s210 = scalar_select %p209, %s208, 31
      %s211 = smul.addr %s210, 4
      %s212 = scalar_lea.vmem %s0, %s211
      %p213 = pneg %p48
      %p214 = pneg %p45
      %p215 = scmp.lt.s32.totalorder %s20, 0
      %s216 = scalar_select %p215, %s20, 0
      %s217 = smul.addr %s216, 4
      %s218 = scalar_lea.vmem %s1, %s217
      %p219 = pneg %p74
      %p220 = pneg %p71
      %p221 = scmp.lt.s32.totalorder %s20, 0
      %s222 = scalar_select %p221, %s20, 0
      %s223 = scalar_lea.vmem %s2, %s222
      %p224 = pneg %p100
      %p225 = pneg %p97
      %p226 = scmp.lt.s32.totalorder %s20, 0
      %s227 = scalar_select %p226, %s20, 0
      %s228 = scalar_lea.vmem %s3, %s227
      %p229 = pneg %p126
      %p230 = pneg %p123
      %p231 = pneg %p154
      %p232 = pneg %p151
      %s233 = smul.u32 16, %s19
      %p234 = scmp.lt.s32.totalorder %s233, 31
      %s235 = scalar_select %p234, %s233, 31
      %p236 = scmp.lt.s32.totalorder %s20, 0
      %s237 = scalar_select %p236, %s20, 0
      %s238 = sadd.s32 %s237, %s235
      %s239 = smul.addr %s238, 4
      %s240 = scalar_lea.vmem %s4, %s239
      %s241 = smul.u32 16, %s19
      %p242 = scmp.lt.s32.totalorder %s241, 31
      %s243 = scalar_select %p242, %s241, 31
      %s244 = smul.addr %s243, 4
      %s245 = scalar_lea.vmem %s0, %s244
      %s246 = smul.u32 16, %s19
      %p247 = scmp.lt.s32.totalorder %s20, 0
      %s248 = scalar_select %p247, %s20, 0
      %s249 = smul.addr %s248, 4
      %s250 = scalar_lea.vmem %s1, %s249
      %p251 = scmp.lt.s32.totalorder %s20, 0
      %s252 = scalar_select %p251, %s20, 0
      %s253 = scalar_lea.vmem %s2, %s252
      %p254 = scmp.lt.s32.totalorder %s20, 0
      %s255 = scalar_select %p254, %s20, 0
      %s256 = scalar_lea.vmem %s3, %s255
      %s257 = smul.u32 16, %s19
      %p258 = scmp.lt.s32.totalorder %s257, 31
      %s259 = scalar_select %p258, %s257, 31
      %p260 = scmp.lt.s32.totalorder %s20, 0
      %s261 = scalar_select %p260, %s20, 0
      %s262 = sadd.s32 %s261, %s259
      %s263 = smul.addr %s262, 4
      %s264 = scalar_lea.vmem %s4, %s263
      %s265 = smul.u32 16, %s19
      %v267 = vld [vmem:[%s245] sm:$0xf]
      %v268 = vld [vmem:[%s245 + $0x4] sm:$0xf]
      %v269 = vld [vmem:[%s245 + $0x8] sm:$0xf]
      %v270 = vld [vmem:[%s245 + $0xc] sm:$0xf]
      %v271 = vld [vmem:[%s245 + $0x10] sm:$0xf]
      %v272 = vld [vmem:[%s245 + $0x14] sm:$0xf]
      %v273 = vld [vmem:[%s245 + $0x18] sm:$0xf]
      %v274 = vld [vmem:[%s245 + $0x1c] sm:$0xf]
      %v275 = vld [vmem:[%s245 + $0x20] sm:$0xf]
      %v276 = vld [vmem:[%s245 + $0x24] sm:$0xf]
      %v277 = vld [vmem:[%s245 + $0x28] sm:$0xf]
      %v278 = vld [vmem:[%s245 + $0x2c] sm:$0xf]
      %v279 = vld [vmem:[%s245 + $0x30] sm:$0xf]
      %v280 = vld [vmem:[%s245 + $0x34] sm:$0xf]
      %v281 = vld [vmem:[%s245 + $0x38] sm:$0xf]
      %v282 = vld [vmem:[%s245 + $0x3c] sm:$0xf]
      %v283 = vld [vmem:[%s250] sm:$0xf]
      %v284 = vld [vmem:[%s250 + $0x4] sm:$0xf]
      %v285 = vld [vmem:[%s250 + $0x8] sm:$0xf]
      %v286 = vld [vmem:[%s250 + $0xc] sm:$0xf]
      %v287 = vld [vmem:[%s250 + $0x10] sm:$0xf]
      %v288 = vld [vmem:[%s250 + $0x14] sm:$0xf]
      %v289 = vld [vmem:[%s250 + $0x18] sm:$0xf]
      %v290 = vld [vmem:[%s250 + $0x1c] sm:$0xf]
      %v291 = vld [vmem:[%s250 + $0x20] sm:$0xf]
      %v292 = vld [vmem:[%s250 + $0x24] sm:$0xf]
      %v293 = vld [vmem:[%s250 + $0x28] sm:$0xf]
      %v294 = vld [vmem:[%s250 + $0x2c] sm:$0xf]
      %v295 = vld [vmem:[%s250 + $0x30] sm:$0xf]
      %v296 = vld [vmem:[%s250 + $0x34] sm:$0xf]
      %v297 = vld [vmem:[%s250 + $0x38] sm:$0xf]
      %v298 = vld [vmem:[%s250 + $0x3c] sm:$0xf]
      %v315 = vunpack.c.l.b16 %v267
      %v316 = vunpack.c.l.b16 %v268
      %v317 = vunpack.c.l.b16 %v269
      %v318 = vunpack.c.l.b16 %v270
      %v319 = vunpack.c.l.b16 %v271
      %v320 = vunpack.c.l.b16 %v272
      %v321 = vunpack.c.l.b16 %v273
      %v322 = vunpack.c.l.b16 %v274
      %v323 = vunpack.c.l.b16 %v275
      %v324 = vunpack.c.l.b16 %v276
      %v325 = vunpack.c.l.b16 %v277
      %v326 = vunpack.c.l.b16 %v278
      %v327 = vunpack.c.l.b16 %v279
      %v328 = vunpack.c.l.b16 %v280
      %v329 = vunpack.c.l.b16 %v281
      %v330 = vunpack.c.l.b16 %v282
      %v331 = vpack.c.b16 %v316, %v315
      %v332 = vpack.c.b16 %v318, %v317
      %v333 = vpack.c.b16 %v320, %v319
      %v334 = vpack.c.b16 %v322, %v321
      %v335 = vpack.c.b16 %v324, %v323
      %v336 = vpack.c.b16 %v326, %v325
      %v337 = vpack.c.b16 %v328, %v327
      %v338 = vpack.c.b16 %v330, %v329
      %v363 = vunpack.c.l.b16 %v283
      %v364 = vunpack.c.l.b16 %v284
      %v365 = vunpack.c.l.b16 %v285
      %v366 = vunpack.c.l.b16 %v286
      %v367 = vunpack.c.l.b16 %v287
      %v368 = vunpack.c.l.b16 %v288
      %v369 = vunpack.c.l.b16 %v289
      %v370 = vunpack.c.l.b16 %v290
      %v371 = vunpack.c.l.b16 %v291
      %v372 = vunpack.c.l.b16 %v292
      %v373 = vunpack.c.l.b16 %v293
      %v374 = vunpack.c.l.b16 %v294
      %v375 = vunpack.c.l.b16 %v295
      %v376 = vunpack.c.l.b16 %v296
      %v377 = vunpack.c.l.b16 %v297
      %v378 = vunpack.c.l.b16 %v298
      %v379 = vpack.c.b16 %v364, %v363
      %v380 = vpack.c.b16 %v366, %v365
      %v381 = vpack.c.b16 %v368, %v367
      %v382 = vpack.c.b16 %v370, %v369
      %v383 = vpack.c.b16 %v372, %v371
      %v384 = vpack.c.b16 %v374, %v373
      %v385 = vpack.c.b16 %v376, %v375
      %v386 = vpack.c.b16 %v378, %v377
      %395 = vmatprep.subr.bf16.mxu0 0
      %396 = vmatpush1.bf16.msra.mxu0 %v379
      %397 = vmatprep.subr.bf16.mxu0 0
      %398 = vmatpush1.bf16.msra.mxu0 %v380
      %399 = vmatprep.subr.bf16.mxu0 0
      %400 = vmatpush1.bf16.msra.mxu0 %v381
      %401 = vmatprep.subr.bf16.mxu0 0
      %402 = vmatpush1.bf16.msra.mxu0 %v382
      %403 = vmatprep.subr.bf16.mxu0 0
      %404 = vmatpush1.bf16.msra.mxu0 %v383
      %405 = vmatprep.subr.bf16.mxu0 0
      %406 = vmatpush1.bf16.msra.mxu0 %v384
      %407 = vmatprep.subr.bf16.mxu0 0
      %408 = vmatpush1.bf16.msra.mxu0 %v385
      %409 = vmatprep.subr.bf16.mxu0 0
      %410 = vmatpush1.bf16.msra.mxu0 %v386
      %411 = vmatprep.subr.bf16.mxu0 0
      %412 = vmatpush1.bf16.msra.mxu0 0
      %413 = vmatprep.subr.bf16.mxu0 0
      %414 = vmatpush1.bf16.msra.mxu0 0
      %415 = vmatprep.subr.bf16.mxu0 0
      %416 = vmatpush1.bf16.msra.mxu0 0
      %417 = vmatprep.subr.bf16.mxu0 0
      %418 = vmatpush1.bf16.msra.mxu0 0
      %419 = vmatprep.subr.bf16.mxu0 0
      %420 = vmatpush1.bf16.msra.mxu0 0
      %421 = vmatprep.subr.bf16.mxu0 0
      %422 = vmatpush1.bf16.msra.mxu0 0
      %423 = vmatprep.subr.bf16.mxu0 0
      %424 = vmatpush1.bf16.msra.mxu0 0
      %425 = vmatprep.subr.bf16.mxu0 0
      %426 = vmatpush1.bf16.msra.mxu0 0
      %427 = vmatprep.mubr.bf16.mxu0 0
      %428 = vmatmul.mubr.bf16.gmra.mrb[0].mxu0 %v331
      %v429 = vpop.f32.mrb[0].mxu0
      %v430 = vadd.f32 0.0, %v429
      %v431 = vpop.f32.mrb[0].mxu0
      %v432 = vpop.f32.mrb[0].mxu0
      %v433 = vadd.f32 0.0, %v432
      %v434 = vpop.f32.mrb[0].mxu0
      %435 = vmatprep.mubr.bf16.mxu0 0
      %436 = vmatmul.mubr.bf16.gmra.mrb[0].mxu0 %v332
      %v437 = vpop.f32.mrb[0].mxu0
      %v438 = vadd.f32 0.0, %v437
      %v439 = vpop.f32.mrb[0].mxu0
      %v440 = vpop.f32.mrb[0].mxu0
      %v441 = vadd.f32 0.0, %v440
      %v442 = vpop.f32.mrb[0].mxu0
      %443 = vmatprep.mubr.bf16.mxu0 0
      %444 = vmatmul.mubr.bf16.gmra.mrb[0].mxu0 %v333
      %v445 = vpop.f32.mrb[0].mxu0
      %v446 = vadd.f32 0.0, %v445
      %v447 = vpop.f32.mrb[0].mxu0
      %v448 = vpop.f32.mrb[0].mxu0
      %v449 = vadd.f32 0.0, %v448
      %v450 = vpop.f32.mrb[0].mxu0
      %451 = vmatprep.mubr.bf16.mxu0 0
      %452 = vmatmul.mubr.bf16.gmra.mrb[0].mxu0 %v334
      %v453 = vpop.f32.mrb[0].mxu0
      %v454 = vadd.f32 0.0, %v453
      %v455 = vpop.f32.mrb[0].mxu0
      %v456 = vpop.f32.mrb[0].mxu0
      %v457 = vadd.f32 0.0, %v456
      %v458 = vpop.f32.mrb[0].mxu0
      %459 = vmatprep.mubr.bf16.mxu0 0
      %460 = vmatmul.mubr.bf16.gmra.mrb[0].mxu0 %v335
      %v461 = vpop.f32.mrb[0].mxu0
      %v462 = vadd.f32 0.0, %v461
      %v463 = vpop.f32.mrb[0].mxu0
      %v464 = vpop.f32.mrb[0].mxu0
      %v465 = vadd.f32 0.0, %v464
      %v466 = vpop.f32.mrb[0].mxu0
      %467 = vmatprep.mubr.bf16.mxu0 0
      %468 = vmatmul.mubr.bf16.gmra.mrb[0].mxu0 %v336
      %v469 = vpop.f32.mrb[0].mxu0
      %v470 = vadd.f32 0.0, %v469
      %v471 = vpop.f32.mrb[0].mxu0
      %v472 = vpop.f32.mrb[0].mxu0
      %v473 = vadd.f32 0.0, %v472
      %v474 = vpop.f32.mrb[0].mxu0
      %475 = vmatprep.mubr.bf16.mxu0 0
      %476 = vmatmul.mubr.bf16.gmra.mrb[0].mxu0 %v337
      %v477 = vpop.f32.mrb[0].mxu0
      %v478 = vadd.f32 0.0, %v477
      %v479 = vpop.f32.mrb[0].mxu0
      %v480 = vpop.f32.mrb[0].mxu0
      %v481 = vadd.f32 0.0, %v480
      %v482 = vpop.f32.mrb[0].mxu0
      %483 = vmatprep.mubr.bf16.mxu0 0
      %484 = vmatmul.mubr.bf16.gmra.mrb[0].mxu0 %v338
      %v485 = vpop.f32.mrb[0].mxu0
      %v486 = vadd.f32 0.0, %v485
      %v487 = vpop.f32.mrb[0].mxu0
      %v488 = vpop.f32.mrb[0].mxu0
      %v489 = vadd.f32 0.0, %v488
      %v490 = vpop.f32.mrb[0].mxu0
      %491 = vdwg.mxu0
      %v492 = vld [vmem:[%s253] sm:$0x1]
      %v494 = vlaneseq
      %v495 = vshrl.u32 %v494, 7
      %v496 = vsub.s32 0, %v495
      %v497 = vrot.slane %v492, %v496
      %v499 = vmul.f32 %v430, %v497
      %v500 = vmul.f32 %v433, %v497
      %v501 = vmul.f32 %v438, %v497
      %v502 = vmul.f32 %v441, %v497
      %v503 = vmul.f32 %v446, %v497
      %v504 = vmul.f32 %v449, %v497
      %v505 = vmul.f32 %v454, %v497
      %v506 = vmul.f32 %v457, %v497
      %v507 = vmul.f32 %v462, %v497
      %v508 = vmul.f32 %v465, %v497
      %v509 = vmul.f32 %v470, %v497
      %v510 = vmul.f32 %v473, %v497
      %v511 = vmul.f32 %v478, %v497
      %v512 = vmul.f32 %v481, %v497
      %v513 = vmul.f32 %v486, %v497
      %v514 = vmul.f32 %v489, %v497
      %v515 = vld [vmem:[%s256] sm:$0x1]
      %v517 = vlaneseq
      %v518 = vshrl.u32 %v517, 7
      %v519 = vsub.s32 0, %v518
      %v520 = vrot.slane %v515, %v519
      %v522 = vadd.f32 %v499, %v520
      %v523 = vadd.f32 %v500, %v520
      %v524 = vadd.f32 %v501, %v520
      %v525 = vadd.f32 %v502, %v520
      %v526 = vadd.f32 %v503, %v520
      %v527 = vadd.f32 %v504, %v520
      %v528 = vadd.f32 %v505, %v520
      %v529 = vadd.f32 %v506, %v520
      %v530 = vadd.f32 %v507, %v520
      %v531 = vadd.f32 %v508, %v520
      %v532 = vadd.f32 %v509, %v520
      %v533 = vadd.f32 %v510, %v520
      %v534 = vadd.f32 %v511, %v520
      %v535 = vadd.f32 %v512, %v520
      %v536 = vadd.f32 %v513, %v520
      %v537 = vadd.f32 %v514, %v520
      %v538 = vpack.c.bf16 %v523, %v522
      %v539 = vpack.c.bf16 %v525, %v524
      %v540 = vpack.c.bf16 %v527, %v526
      %v541 = vpack.c.bf16 %v529, %v528
      %v542 = vpack.c.bf16 %v531, %v530
      %v543 = vpack.c.bf16 %v533, %v532
      %v544 = vpack.c.bf16 %v535, %v534
      %v545 = vpack.c.bf16 %v537, %v536
      %v554 = vunpack.c.l.b16 %v538
      %v555 = vunpack.c.h.b16 %v538
      %v556 = vunpack.c.l.b16 %v539
      %v557 = vunpack.c.h.b16 %v539
      %v558 = vunpack.c.l.b16 %v540
      %v559 = vunpack.c.h.b16 %v540
      %v560 = vunpack.c.l.b16 %v541
      %v561 = vunpack.c.h.b16 %v541
      %v562 = vunpack.c.l.b16 %v542
      %v563 = vunpack.c.h.b16 %v542
      %v564 = vunpack.c.l.b16 %v543
      %v565 = vunpack.c.h.b16 %v543
      %v566 = vunpack.c.l.b16 %v544
      %v567 = vunpack.c.h.b16 %v544
      %v568 = vunpack.c.l.b16 %v545
      %v569 = vunpack.c.h.b16 %v545
      %v570 = vpack.c.b16 %v554, %v554
      %v571 = vpack.c.b16 %v555, %v555
      %v572 = vpack.c.b16 %v556, %v556
      %v573 = vpack.c.b16 %v557, %v557
      %v574 = vpack.c.b16 %v558, %v558
      %v575 = vpack.c.b16 %v559, %v559
      %v576 = vpack.c.b16 %v560, %v560
      %v577 = vpack.c.b16 %v561, %v561
      %v578 = vpack.c.b16 %v562, %v562
      %v579 = vpack.c.b16 %v563, %v563
      %v580 = vpack.c.b16 %v564, %v564
      %v581 = vpack.c.b16 %v565, %v565
      %v582 = vpack.c.b16 %v566, %v566
      %v583 = vpack.c.b16 %v567, %v567
      %v584 = vpack.c.b16 %v568, %v568
      %v585 = vpack.c.b16 %v569, %v569
      %602 = vst [vmem:[%s264] sm:$0xf] %v570
      %603 = vst [vmem:[%s264 + $0x4] sm:$0xf] %v571
      %604 = vst [vmem:[%s264 + $0x8] sm:$0xf] %v572
      %605 = vst [vmem:[%s264 + $0xc] sm:$0xf] %v573
      %606 = vst [vmem:[%s264 + $0x10] sm:$0xf] %v574
      %607 = vst [vmem:[%s264 + $0x14] sm:$0xf] %v575
      %608 = vst [vmem:[%s264 + $0x18] sm:$0xf] %v576
      %609 = vst [vmem:[%s264 + $0x1c] sm:$0xf] %v577
      %610 = vst [vmem:[%s264 + $0x20] sm:$0xf] %v578
      %611 = vst [vmem:[%s264 + $0x24] sm:$0xf] %v579
      %612 = vst [vmem:[%s264 + $0x28] sm:$0xf] %v580
      %613 = vst [vmem:[%s264 + $0x2c] sm:$0xf] %v581
      %614 = vst [vmem:[%s264 + $0x30] sm:$0xf] %v582
      %615 = vst [vmem:[%s264 + $0x34] sm:$0xf] %v583
      %616 = vst [vmem:[%s264 + $0x38] sm:$0xf] %v584
      %617 = vst [vmem:[%s264 + $0x3c] sm:$0xf] %v585
      %s618 = smul.u32 16, %s19
      %p619 = scmp.lt.s32.totalorder %s618, 31
      %s620 = scalar_select %p619, %s618, 31
      %p621 = scmp.lt.s32.totalorder %s20, 0
      %s622 = scalar_select %p621, %s20, 0
      %s623 = sadd.s32 %s622, %s620
      %s624 = smul.addr %s623, 4
      %s625 = scalar_lea.vmem %s4, %s624
      // Predicated region
      $region37: #{deeplabv3plus_forward.26} parent=35 // pred_check
        %p626 = pneg %p151
      $region38: #{deeplabv3plus_forward.26} parent=35 // pred_check_branch
        %628 = sbr.rel (%p626) target = $region40
      $region39: #{deeplabv3plus_forward.26} parent=35 // pred_region
        %s629 = smul.u32 16, %s19
      $region40: #{deeplabv3plus_forward.26} parent=35 // pred_fallthru
        _
    $region36: #{deeplabv3plus_forward.26} parent=5 // pred_fallthru
      _
    %p630 = scmp.le.s32.totalorder 2, %s10
    // Predicated region
    $region41: #{deeplabv3plus_forward.26} parent=5 // pred_check
      %p631 = pneg %p630
    $region42: #{deeplabv3plus_forward.26} parent=5 // pred_check_branch
      %633 = sbr.rel (%p631) target = $region44
    $region43: #{deeplabv3plus_forward.26} parent=5 // pred_region
      %s634 = ssub.s32 %s10, 2
      // Predicated region
      $region45: #{deeplabv3plus_forward.26} parent=43 // pred_check
        %p635 = pneg %p157
      $region46: #{deeplabv3plus_forward.26} parent=43 // pred_check_branch
        %637 = sbr.rel (%p635) target = $region48
      $region47: #{deeplabv3plus_forward.26} parent=43 // pred_region
        %s638 = smul.u32 16, %s21
        %p639 = scmp.lt.s32.totalorder %s638, 31
        %s640 = scalar_select %p639, %s638, 31
        %p641 = scmp.lt.s32.totalorder %s22, 0
        %s642 = scalar_select %p641, %s22, 0
        %s643 = sadd.s32 %s642, %s640
        %s644 = smul.addr %s643, 4
        %s645 = scalar_lea.vmem %s4, %s644
      $region48: #{deeplabv3plus_forward.26} parent=43 // pred_fallthru
        _
    $region44: #{deeplabv3plus_forward.26} parent=5 // pred_fallthru
      _
  $region6: #{deeplabv3plus_forward.26} parent=0 // loop_footer
    %s14 = sadd.s32 1, %s10
  $region7: #{deeplabv3plus_forward.26} parent=0 // loop_footer_branch
    %9 = sbr.rel target = $region3
  $region8: #{deeplabv3plus_forward.26} parent=0 // loop_exit
    _

// kernel: deeplabv3plus_forward.28
$region0: #{deeplabv3plus_forward.28}
  #allocation0 [shape = 'u32[]', space=smem, size = 0x4, offset = 0x4, fixed_abs, tag = 'smem constant byte address 0x4 - core index']
  #allocation1 [shape = 'u32[144,128]{1,0:T(1,128)}', space=vmem, size = 0x12000, scoped, tag = 'internal scratch']
  %s0 = inlined_call_operand.vmem [shape: bf16[512,768], index: 0, kind: input, shape index: {}]
  %s1 = inlined_call_operand.vmem [shape: bf16[768,128], index: 1, kind: input, shape index: {}]
  %s2 = inlined_call_operand.vmem [shape: f32[1,128], index: 2, kind: input, shape index: {}]
  %s3 = inlined_call_operand.vmem [shape: f32[1,128], index: 3, kind: input, shape index: {}]
  %s4 = inlined_call_operand.vmem [shape: bf16[512,128], index: 4, kind: output, shape index: {}]
  %s5 = sld [smem:[#allocation0]]
  $region49: #{deeplabv3plus_forward.28} parent=0
    _
  %s7 = ssub.s32 1, %s5
  %s8 = scalar_select 0, %s7, %s5
  loop: start=0, step=1, limit=4
  $region2: #{deeplabv3plus_forward.28} parent=0 // loop_pre_header
    _
  $region3: #{deeplabv3plus_forward.28} parent=0 // loop_header
    %s10 = sphi 0, %s14
    %p11 = scmp.ge.s32.totalorder %s10, 4
    %s17 = sphi 0, %s29
    %s18 = sphi 0, %s25
    %s19 = sphi 0, %s17
    %s20 = sphi 0, %s18
    %s21 = sphi 0, %s19
    %s22 = sphi 0, %s20
    %s32 = sphi 0, %s34
    %s35 = sphi 0, %s32
    %s36 = sphi 0, %s35
    %s52 = sphi 0, %s36
    %s58 = sphi 0, %s60
    %s61 = sphi 0, %s58
    %s62 = sphi 0, %s61
    %s78 = sphi 0, %s62
    %s84 = sphi 0, %s86
    %s87 = sphi 0, %s84
    %s88 = sphi 0, %s87
    %s104 = sphi 0, %s88
    %s110 = sphi 0, %s112
    %s113 = sphi 0, %s110
    %s114 = sphi 0, %s113
    %s130 = sphi 0, %s114
    %s138 = sphi 0, %s140
    %s141 = sphi 0, %s138
    %s142 = sphi 0, %s141
    %s158 = sphi 0, %s142
  $region4: #{deeplabv3plus_forward.28} parent=0 // loop_header_branch
    %13 = sbr.rel (%p11) target = $region8
  $region5: #{deeplabv3plus_forward.28} parent=0 // loop_body
    %s15 = ssub.s32 %s10, 1
    %s16 = ssub.s32 %s10, 2
    %s23 = sadd.s32 1, %s18
    %p24 = scmp.ge.s32.totalorder %s23, 1
    %s25 = scalar_select %p24, 0, %s23
    %s26 = sadd.s32 1, %s17
    %s27 = scalar_select %p24, %s26, %s17
    %p28 = scmp.ge.s32.totalorder %s27, 2
    %s29 = scalar_select %p28, 0, %s27
    %s30 = ssub.s32 %s17, %s29
    %p31 = scmp.eq.s32.totalorder %s30, 0
    %s33 = sadd.s32 %s32, 1
    %s34 = scalar_select %p31, %s32, %s33
    %p37 = pneg %p31
    %p38 = scmp.eq.s32.totalorder %s10, 1
    %p39 = por %p37, %p38
    %p40 = scmp.ne.s32.totalorder %s32, %s35
    %p41 = scmp.eq.s32.totalorder %s10, 0
    %p42 = por %p40, %p41
    %p43 = scmp.ne.s32.totalorder %s32, %s35
    %p44 = scmp.eq.s32.totalorder %s15, 1
    %p45 = por %p43, %p44
    %p46 = scmp.ne.s32.totalorder %s35, %s36
    %p47 = scmp.eq.s32.totalorder %s15, 0
    %p48 = por %p46, %p47
    %p49 = scmp.ne.s32.totalorder %s35, %s36
    %p50 = scmp.eq.s32.totalorder %s16, 1
    %p51 = por %p49, %p50
    %p53 = scmp.ne.s32.totalorder %s36, %s52
    %p54 = scmp.eq.s32.totalorder %s16, 0
    %p55 = por %p53, %p54
    %s56 = ssub.s32 %s18, %s25
    %p57 = scmp.eq.s32.totalorder %s56, 0
    %s59 = sadd.s32 %s58, 1
    %s60 = scalar_select %p57, %s58, %s59
    %p63 = pneg %p57
    %p64 = scmp.eq.s32.totalorder %s10, 1
    %p65 = por %p63, %p64
    %p66 = scmp.ne.s32.totalorder %s58, %s61
    %p67 = scmp.eq.s32.totalorder %s10, 0
    %p68 = por %p66, %p67
    %p69 = scmp.ne.s32.totalorder %s58, %s61
    %p70 = scmp.eq.s32.totalorder %s15, 1
    %p71 = por %p69, %p70
    %p72 = scmp.ne.s32.totalorder %s61, %s62
    %p73 = scmp.eq.s32.totalorder %s15, 0
    %p74 = por %p72, %p73
    %p75 = scmp.ne.s32.totalorder %s61, %s62
    %p76 = scmp.eq.s32.totalorder %s16, 1
    %p77 = por %p75, %p76
    %p79 = scmp.ne.s32.totalorder %s62, %s78
    %p80 = scmp.eq.s32.totalorder %s16, 0
    %p81 = por %p79, %p80
    %s82 = ssub.s32 %s18, %s25
    %p83 = scmp.eq.s32.totalorder %s82, 0
    %s85 = sadd.s32 %s84, 1
    %s86 = scalar_select %p83, %s84, %s85
    %p89 = pneg %p83
    %p90 = scmp.eq.s32.totalorder %s10, 1
    %p91 = por %p89, %p90
    %p92 = scmp.ne.s32.totalorder %s84, %s87
    %p93 = scmp.eq.s32.totalorder %s10, 0
    %p94 = por %p92, %p93
    %p95 = scmp.ne.s32.totalorder %s84, %s87
    %p96 = scmp.eq.s32.totalorder %s15, 1
    %p97 = por %p95, %p96
    %p98 = scmp.ne.s32.totalorder %s87, %s88
    %p99 = scmp.eq.s32.totalorder %s15, 0
    %p100 = por %p98, %p99
    %p101 = scmp.ne.s32.totalorder %s87, %s88
    %p102 = scmp.eq.s32.totalorder %s16, 1
    %p103 = por %p101, %p102
    %p105 = scmp.ne.s32.totalorder %s88, %s104
    %p106 = scmp.eq.s32.totalorder %s16, 0
    %p107 = por %p105, %p106
    %s108 = ssub.s32 %s18, %s25
    %p109 = scmp.eq.s32.totalorder %s108, 0
    %s111 = sadd.s32 %s110, 1
    %s112 = scalar_select %p109, %s110, %s111
    %p115 = pneg %p109
    %p116 = scmp.eq.s32.totalorder %s10, 1
    %p117 = por %p115, %p116
    %p118 = scmp.ne.s32.totalorder %s110, %s113
    %p119 = scmp.eq.s32.totalorder %s10, 0
    %p120 = por %p118, %p119
    %p121 = scmp.ne.s32.totalorder %s110, %s113
    %p122 = scmp.eq.s32.totalorder %s15, 1
    %p123 = por %p121, %p122
    %p124 = scmp.ne.s32.totalorder %s113, %s114
    %p125 = scmp.eq.s32.totalorder %s15, 0
    %p126 = por %p124, %p125
    %p127 = scmp.ne.s32.totalorder %s113, %s114
    %p128 = scmp.eq.s32.totalorder %s16, 1
    %p129 = por %p127, %p128
    %p131 = scmp.ne.s32.totalorder %s114, %s130
    %p132 = scmp.eq.s32.totalorder %s16, 0
    %p133 = por %p131, %p132
    %s134 = ssub.s32 %s17, %s29
    %s135 = ssub.s32 %s18, %s25
    %s136 = sor.u32 %s134, %s135
    %p137 = scmp.eq.s32.totalorder %s136, 0
    %s139 = sadd.s32 %s138, 1
    %s140 = scalar_select %p137, %s138, %s139
    %p143 = pneg %p137
    %p144 = scmp.eq.s32.totalorder %s10, 1
    %p145 = por %p143, %p144
    %p146 = scmp.ne.s32.totalorder %s138, %s141
    %p147 = scmp.eq.s32.totalorder %s10, 0
    %p148 = por %p146, %p147
    %p149 = scmp.ne.s32.totalorder %s138, %s141
    %p150 = scmp.eq.s32.totalorder %s15, 1
    %p151 = por %p149, %p150
    %p152 = scmp.ne.s32.totalorder %s141, %s142
    %p153 = scmp.eq.s32.totalorder %s15, 0
    %p154 = por %p152, %p153
    %p155 = scmp.ne.s32.totalorder %s141, %s142
    %p156 = scmp.eq.s32.totalorder %s16, 1
    %p157 = por %p155, %p156
    %p159 = scmp.ne.s32.totalorder %s142, %s158
    %p160 = scmp.eq.s32.totalorder %s16, 0
    %p161 = por %p159, %p160
    %p162 = scmp.le.s32.totalorder 1, %s10
    %p163 = scmp.lt.s32.totalorder %s10, 3
    %p164 = pnand %p162, %p163
    %p165 = pneg %p164
    // Predicated region
    $region9: #{deeplabv3plus_forward.28} parent=5 // pred_check
      _
    $region10: #{deeplabv3plus_forward.28} parent=5 // pred_check_branch
      %167 = sbr.rel (%p164) target = $region12
    $region11: #{deeplabv3plus_forward.28} parent=5 // pred_region
      %s168 = ssub.s32 %s10, 1
      // Predicated region
      $region13: #{deeplabv3plus_forward.28} parent=11 // pred_check
        %p169 = pneg %p74
      $region14: #{deeplabv3plus_forward.28} parent=11 // pred_check_branch
        %171 = sbr.rel (%p169) target = $region16
      $region15: #{deeplabv3plus_forward.28} parent=11 // pred_region
        %p172 = scmp.lt.s32.totalorder %s20, 0
        %s173 = scalar_select %p172, %s20, 0
        %s174 = smul.addr %s173, 4
        %s175 = scalar_lea.vmem %s1, %s174
      $region16: #{deeplabv3plus_forward.28} parent=11 // pred_fallthru
        _
      // Predicated region
      $region17: #{deeplabv3plus_forward.28} parent=11 // pred_check
        %p176 = pneg %p100
      $region18: #{deeplabv3plus_forward.28} parent=11 // pred_check_branch
        %178 = sbr.rel (%p176) target = $region20
      $region19: #{deeplabv3plus_forward.28} parent=11 // pred_region
        %p179 = scmp.lt.s32.totalorder %s20, 0
        %s180 = scalar_select %p179, %s20, 0
        %s181 = scalar_lea.vmem %s2, %s180
      $region20: #{deeplabv3plus_forward.28} parent=11 // pred_fallthru
        _
      // Predicated region
      $region21: #{deeplabv3plus_forward.28} parent=11 // pred_check
        %p182 = pneg %p126
      $region22: #{deeplabv3plus_forward.28} parent=11 // pred_check_branch
        %184 = sbr.rel (%p182) target = $region24
      $region23: #{deeplabv3plus_forward.28} parent=11 // pred_region
        %p185 = scmp.lt.s32.totalorder %s20, 0
        %s186 = scalar_select %p185, %s20, 0
        %s187 = scalar_lea.vmem %s3, %s186
      $region24: #{deeplabv3plus_forward.28} parent=11 // pred_fallthru
        _
    $region12: #{deeplabv3plus_forward.28} parent=5 // pred_fallthru
      _
    %p188 = scmp.lt.s32.totalorder %s10, 2
    // Predicated region
    $region25: #{deeplabv3plus_forward.28} parent=5 // pred_check
      %p189 = pneg %p188
    $region26: #{deeplabv3plus_forward.28} parent=5 // pred_check_branch
      %191 = sbr.rel (%p189) target = $region28
    $region27: #{deeplabv3plus_forward.28} parent=5 // pred_region
      // Predicated region
      $region29: #{deeplabv3plus_forward.28} parent=27 // pred_check
        %p192 = pneg %p42
      $region30: #{deeplabv3plus_forward.28} parent=27 // pred_check_branch
        %194 = sbr.rel (%p192) target = $region32
      $region31: #{deeplabv3plus_forward.28} parent=27 // pred_region
        %s195 = smul.u32 32, %s17
        %p196 = scmp.lt.s32.totalorder %s195, 63
        %s197 = scalar_select %p196, %s195, 63
        %s198 = smul.addr %s197, 6
        %s199 = smul.addr %s198, 4
        %s200 = scalar_lea.vmem %s0, %s199
        %s201 = smul.u32 32, %s17
      $region32: #{deeplabv3plus_forward.28} parent=27 // pred_fallthru
        _
    $region28: #{deeplabv3plus_forward.28} parent=5 // pred_fallthru
      _
    %p202 = scmp.le.s32.totalorder 1, %s10
    %p203 = scmp.lt.s32.totalorder %s10, 3
    %p204 = pnand %p202, %p203
    %p205 = pneg %p204
    // Predicated region
    $region33: #{deeplabv3plus_forward.28} parent=5 // pred_check
      _
    $region34: #{deeplabv3plus_forward.28} parent=5 // pred_check_branch
      %207 = sbr.rel (%p204) target = $region36
    $region35: #{deeplabv3plus_forward.28} parent=5 // pred_region
      %s208 = ssub.s32 %s10, 1
      %s209 = smul.u32 32, %s19
      %p210 = scmp.lt.s32.totalorder %s209, 63
      %s211 = scalar_select %p210, %s209, 63
      %s212 = smul.addr %s211, 6
      %s213 = smul.addr %s212, 4
      %s214 = scalar_lea.vmem %s0, %s213
      %p215 = pneg %p48
      %p216 = pneg %p45
      %p217 = scmp.lt.s32.totalorder %s20, 0
      %s218 = scalar_select %p217, %s20, 0
      %s219 = smul.addr %s218, 4
      %s220 = scalar_lea.vmem %s1, %s219
      %p221 = pneg %p74
      %p222 = pneg %p71
      %p223 = scmp.lt.s32.totalorder %s20, 0
      %s224 = scalar_select %p223, %s20, 0
      %s225 = scalar_lea.vmem %s2, %s224
      %p226 = pneg %p100
      %p227 = pneg %p97
      %p228 = scmp.lt.s32.totalorder %s20, 0
      %s229 = scalar_select %p228, %s20, 0
      %s230 = scalar_lea.vmem %s3, %s229
      %p231 = pneg %p126
      %p232 = pneg %p123
      %p233 = pneg %p154
      %p234 = pneg %p151
      %s235 = smul.u32 32, %s19
      %p236 = scmp.lt.s32.totalorder %s235, 63
      %s237 = scalar_select %p236, %s235, 63
      %p238 = scmp.lt.s32.totalorder %s20, 0
      %s239 = scalar_select %p238, %s20, 0
      %s240 = sadd.s32 %s239, %s237
      %s241 = smul.addr %s240, 4
      %s242 = scalar_lea.vmem %s4, %s241
      %s243 = smul.u32 32, %s19
      %p244 = scmp.lt.s32.totalorder %s243, 63
      %s245 = scalar_select %p244, %s243, 63
      %s246 = smul.addr %s245, 6
      %s247 = smul.addr %s246, 4
      %s248 = scalar_lea.vmem %s0, %s247
      %s249 = smul.u32 32, %s19
      %p250 = scmp.lt.s32.totalorder %s20, 0
      %s251 = scalar_select %p250, %s20, 0
      %s252 = smul.addr %s251, 4
      %s253 = scalar_lea.vmem %s1, %s252
      %p254 = scmp.lt.s32.totalorder %s20, 0
      %s255 = scalar_select %p254, %s20, 0
      %s256 = scalar_lea.vmem %s2, %s255
      %p257 = scmp.lt.s32.totalorder %s20, 0
      %s258 = scalar_select %p257, %s20, 0
      %s259 = scalar_lea.vmem %s3, %s258
      %s260 = smul.u32 32, %s19
      %p261 = scmp.lt.s32.totalorder %s260, 63
      %s262 = scalar_select %p261, %s260, 63
      %p263 = scmp.lt.s32.totalorder %s20, 0
      %s264 = scalar_select %p263, %s20, 0
      %s265 = sadd.s32 %s264, %s262
      %s266 = smul.addr %s265, 4
      %s267 = scalar_lea.vmem %s4, %s266
      %s268 = smul.u32 32, %s19
      %v270 = vld [vmem:[%s248] sm:$0xff]
      %v271 = vld [vmem:[%s248 + $0x8] sm:$0xff]
      %v272 = vld [vmem:[%s248 + $0x10] sm:$0xff]
      %v273 = vld [vmem:[%s248 + $0x18] sm:$0xff]
      %v274 = vld [vmem:[%s248 + $0x20] sm:$0xff]
      %v275 = vld [vmem:[%s248 + $0x28] sm:$0xff]
      %v276 = vld [vmem:[%s248 + $0x30] sm:$0xff]
      %v277 = vld [vmem:[%s248 + $0x38] sm:$0xff]
      %v278 = vld [vmem:[%s248 + $0x40] sm:$0xff]
      %v279 = vld [vmem:[%s248 + $0x48] sm:$0xff]
      %v280 = vld [vmem:[%s248 + $0x50] sm:$0xff]
      %v281 = vld [vmem:[%s248 + $0x58] sm:$0xff]
      %v282 = vld [vmem:[%s248 + $0x60] sm:$0xff]
      %v283 = vld [vmem:[%s248 + $0x68] sm:$0xff]
      %v284 = vld [vmem:[%s248 + $0x70] sm:$0xff]
      %v285 = vld [vmem:[%s248 + $0x78] sm:$0xff]
      %v286 = vld [vmem:[%s248 + $0x80] sm:$0xff]
      %v287 = vld [vmem:[%s248 + $0x88] sm:$0xff]
      %v288 = vld [vmem:[%s248 + $0x90] sm:$0xff]
      %v289 = vld [vmem:[%s248 + $0x98] sm:$0xff]
      %v290 = vld [vmem:[%s248 + $0xa0] sm:$0xff]
      %v291 = vld [vmem:[%s248 + $0xa8] sm:$0xff]
      %v292 = vld [vmem:[%s248 + $0xb0] sm:$0xff]
      %v293 = vld [vmem:[%s248 + $0xb8] sm:$0xff]
      %v294 = vld [vmem:[%s248 + $0xc0] sm:$0xff]
      %v295 = vld [vmem:[%s248 + $0xc8] sm:$0xff]
      %v296 = vld [vmem:[%s248 + $0xd0] sm:$0xff]
      %v297 = vld [vmem:[%s248 + $0xd8] sm:$0xff]
      %v298 = vld [vmem:[%s248 + $0xe0] sm:$0xff]
      %v299 = vld [vmem:[%s248 + $0xe8] sm:$0xff]
      %v300 = vld [vmem:[%s248 + $0xf0] sm:$0xff]
      %v301 = vld [vmem:[%s248 + $0xf8] sm:$0xff]
      %v302 = vld [vmem:[%s248 + $0x100] sm:$0xff]
      %v303 = vld [vmem:[%s248 + $0x108] sm:$0xff]
      %v304 = vld [vmem:[%s248 + $0x110] sm:$0xff]
      %v305 = vld [vmem:[%s248 + $0x118] sm:$0xff]
      %v306 = vld [vmem:[%s248 + $0x120] sm:$0xff]
      %v307 = vld [vmem:[%s248 + $0x128] sm:$0xff]
      %v308 = vld [vmem:[%s248 + $0x130] sm:$0xff]
      %v309 = vld [vmem:[%s248 + $0x138] sm:$0xff]
      %v310 = vld [vmem:[%s248 + $0x140] sm:$0xff]
      %v311 = vld [vmem:[%s248 + $0x148] sm:$0xff]
      %v312 = vld [vmem:[%s248 + $0x150] sm:$0xff]
      %v313 = vld [vmem:[%s248 + $0x158] sm:$0xff]
      %v314 = vld [vmem:[%s248 + $0x160] sm:$0xff]
      %v315 = vld [vmem:[%s248 + $0x168] sm:$0xff]
      %v316 = vld [vmem:[%s248 + $0x170] sm:$0xff]
      %v317 = vld [vmem:[%s248 + $0x178] sm:$0xff]
      %v318 = vld [vmem:[%s248 + $0x180] sm:$0xff]
      %v319 = vld [vmem:[%s248 + $0x188] sm:$0xff]
      %v320 = vld [vmem:[%s248 + $0x190] sm:$0xff]
      %v321 = vld [vmem:[%s248 + $0x198] sm:$0xff]
      %v322 = vld [vmem:[%s248 + $0x1a0] sm:$0xff]
      %v323 = vld [vmem:[%s248 + $0x1a8] sm:$0xff]
      %v324 = vld [vmem:[%s248 + $0x1b0] sm:$0xff]
      %v325 = vld [vmem:[%s248 + $0x1b8] sm:$0xff]
      %v326 = vld [vmem:[%s248 + $0x1c0] sm:$0xff]
      %v327 = vld [vmem:[%s248 + $0x1c8] sm:$0xff]
      %v328 = vld [vmem:[%s248 + $0x1d0] sm:$0xff]
      %v329 = vld [vmem:[%s248 + $0x1d8] sm:$0xff]
      %v330 = vld [vmem:[%s248 + $0x1e0] sm:$0xff]
      %v331 = vld [vmem:[%s248 + $0x1e8] sm:$0xff]
      %v332 = vld [vmem:[%s248 + $0x1f0] sm:$0xff]
      %v333 = vld [vmem:[%s248 + $0x1f8] sm:$0xff]
      %v334 = vld [vmem:[%s248 + $0x200] sm:$0xff]
      %v335 = vld [vmem:[%s248 + $0x208] sm:$0xff]
      %v336 = vld [vmem:[%s248 + $0x210] sm:$0xff]
      %v337 = vld [vmem:[%s248 + $0x218] sm:$0xff]
      %v338 = vld [vmem:[%s248 + $0x220] sm:$0xff]
      %v339 = vld [vmem:[%s248 + $0x228] sm:$0xff]
      %v340 = vld [vmem:[%s248 + $0x230] sm:$0xff]
      %v341 = vld [vmem:[%s248 + $0x238] sm:$0xff]
      %v342 = vld [vmem:[%s248 + $0x240] sm:$0xff]
      %v343 = vld [vmem:[%s248 + $0x248] sm:$0xff]
      %v344 = vld [vmem:[%s248 + $0x250] sm:$0xff]
      %v345 = vld [vmem:[%s248 + $0x258] sm:$0xff]
      %v346 = vld [vmem:[%s248 + $0x260] sm:$0xff]
      %v347 = vld [vmem:[%s248 + $0x268] sm:$0xff]
      %v348 = vld [vmem:[%s248 + $0x270] sm:$0xff]
      %v349 = vld [vmem:[%s248 + $0x278] sm:$0xff]
      %v350 = vld [vmem:[%s248 + $0x280] sm:$0xff]
      %v351 = vld [vmem:[%s248 + $0x288] sm:$0xff]
      %v352 = vld [vmem:[%s248 + $0x290] sm:$0xff]
      %v353 = vld [vmem:[%s248 + $0x298] sm:$0xff]
      %v354 = vld [vmem:[%s248 + $0x2a0] sm:$0xff]
      %v355 = vld [vmem:[%s248 + $0x2a8] sm:$0xff]
      %v356 = vld [vmem:[%s248 + $0x2b0] sm:$0xff]
      %v357 = vld [vmem:[%s248 + $0x2b8] sm:$0xff]
      %v358 = vld [vmem:[%s248 + $0x2c0] sm:$0xff]
      %v359 = vld [vmem:[%s248 + $0x2c8] sm:$0xff]
      %v360 = vld [vmem:[%s248 + $0x2d0] sm:$0xff]
      %v361 = vld [vmem:[%s248 + $0x2d8] sm:$0xff]
      %v362 = vld [vmem:[%s248 + $0x2e0] sm:$0xff]
      %v363 = vld [vmem:[%s248 + $0x2e8] sm:$0xff]
      %v364 = vld [vmem:[%s248 + $0x2f0] sm:$0xff]
      %v365 = vld [vmem:[%s248 + $0x2f8] sm:$0xff]
      %v366 = vld [vmem:[%s253] sm:$0xf]
      %v367 = vld [vmem:[%s253 + $0x4] sm:$0xf]
      %v368 = vld [vmem:[%s253 + $0x8] sm:$0xf]
      %v369 = vld [vmem:[%s253 + $0xc] sm:$0xf]
      %v370 = vld [vmem:[%s253 + $0x10] sm:$0xf]
      %v371 = vld [vmem:[%s253 + $0x14] sm:$0xf]
      %v372 = vld [vmem:[%s253 + $0x18] sm:$0xf]
      %v373 = vld [vmem:[%s253 + $0x1c] sm:$0xf]
      %v374 = vld [vmem:[%s253 + $0x20] sm:$0xf]
      %v375 = vld [vmem:[%s253 + $0x24] sm:$0xf]
      %v376 = vld [vmem:[%s253 + $0x28] sm:$0xf]
      %v377 = vld [vmem:[%s253 + $0x2c] sm:$0xf]
      %v378 = vld [vmem:[%s253 + $0x30] sm:$0xf]
      %v379 = vld [vmem:[%s253 + $0x34] sm:$0xf]
      %v380 = vld [vmem:[%s253 + $0x38] sm:$0xf]
      %v381 = vld [vmem:[%s253 + $0x3c] sm:$0xf]
      %v382 = vld [vmem:[%s253 + $0x40] sm:$0xf]
      %v383 = vld [vmem:[%s253 + $0x44] sm:$0xf]
      %v384 = vld [vmem:[%s253 + $0x48] sm:$0xf]
      %v385 = vld [vmem:[%s253 + $0x4c] sm:$0xf]
      %v386 = vld [vmem:[%s253 + $0x50] sm:$0xf]
      %v387 = vld [vmem:[%s253 + $0x54] sm:$0xf]
      %v388 = vld [vmem:[%s253 + $0x58] sm:$0xf]
      %v389 = vld [vmem:[%s253 + $0x5c] sm:$0xf]
      %v390 = vld [vmem:[%s253 + $0x60] sm:$0xf]
      %v391 = vld [vmem:[%s253 + $0x64] sm:$0xf]
      %v392 = vld [vmem:[%s253 + $0x68] sm:$0xf]
      %v393 = vld [vmem:[%s253 + $0x6c] sm:$0xf]
      %v394 = vld [vmem:[%s253 + $0x70] sm:$0xf]
      %v395 = vld [vmem:[%s253 + $0x74] sm:$0xf]
      %v396 = vld [vmem:[%s253 + $0x78] sm:$0xf]
      %v397 = vld [vmem:[%s253 + $0x7c] sm:$0xf]
      %v398 = vld [vmem:[%s253 + $0x80] sm:$0xf]
      %v399 = vld [vmem:[%s253 + $0x84] sm:$0xf]
      %v400 = vld [vmem:[%s253 + $0x88] sm:$0xf]
      %v401 = vld [vmem:[%s253 + $0x8c] sm:$0xf]
      %v402 = vld [vmem:[%s253 + $0x90] sm:$0xf]
      %v403 = vld [vmem:[%s253 + $0x94] sm:$0xf]
      %v404 = vld [vmem:[%s253 + $0x98] sm:$0xf]
      %v405 = vld [vmem:[%s253 + $0x9c] sm:$0xf]
      %v406 = vld [vmem:[%s253 + $0xa0] sm:$0xf]
      %v407 = vld [vmem:[%s253 + $0xa4] sm:$0xf]
      %v408 = vld [vmem:[%s253 + $0xa8] sm:$0xf]
      %v409 = vld [vmem:[%s253 + $0xac] sm:$0xf]
      %v410 = vld [vmem:[%s253 + $0xb0] sm:$0xf]
      %v411 = vld [vmem:[%s253 + $0xb4] sm:$0xf]
      %v412 = vld [vmem:[%s253 + $0xb8] sm:$0xf]
      %v413 = vld [vmem:[%s253 + $0xbc] sm:$0xf]
      %v414 = vld [vmem:[%s253 + $0xc0] sm:$0xf]
      %v415 = vld [vmem:[%s253 + $0xc4] sm:$0xf]
      %v416 = vld [vmem:[%s253 + $0xc8] sm:$0xf]
      %v417 = vld [vmem:[%s253 + $0xcc] sm:$0xf]
      %v418 = vld [vmem:[%s253 + $0xd0] sm:$0xf]
      %v419 = vld [vmem:[%s253 + $0xd4] sm:$0xf]
      %v420 = vld [vmem:[%s253 + $0xd8] sm:$0xf]
      %v421 = vld [vmem:[%s253 + $0xdc] sm:$0xf]
      %v422 = vld [vmem:[%s253 + $0xe0] sm:$0xf]
      %v423 = vld [vmem:[%s253 + $0xe4] sm:$0xf]
      %v424 = vld [vmem:[%s253 + $0xe8] sm:$0xf]
      %v425 = vld [vmem:[%s253 + $0xec] sm:$0xf]
      %v426 = vld [vmem:[%s253 + $0xf0] sm:$0xf]
      %v427 = vld [vmem:[%s253 + $0xf4] sm:$0xf]
      %v428 = vld [vmem:[%s253 + $0xf8] sm:$0xf]
      %v429 = vld [vmem:[%s253 + $0xfc] sm:$0xf]
      %v430 = vld [vmem:[%s253 + $0x100] sm:$0xf]
      %v431 = vld [vmem:[%s253 + $0x104] sm:$0xf]
      %v432 = vld [vmem:[%s253 + $0x108] sm:$0xf]
      %v433 = vld [vmem:[%s253 + $0x10c] sm:$0xf]
      %v434 = vld [vmem:[%s253 + $0x110] sm:$0xf]
      %v435 = vld [vmem:[%s253 + $0x114] sm:$0xf]
      %v436 = vld [vmem:[%s253 + $0x118] sm:$0xf]
      %v437 = vld [vmem:[%s253 + $0x11c] sm:$0xf]
      %v438 = vld [vmem:[%s253 + $0x120] sm:$0xf]
      %v439 = vld [vmem:[%s253 + $0x124] sm:$0xf]
      %v440 = vld [vmem:[%s253 + $0x128] sm:$0xf]
      %v441 = vld [vmem:[%s253 + $0x12c] sm:$0xf]
      %v442 = vld [vmem:[%s253 + $0x130] sm:$0xf]
      %v443 = vld [vmem:[%s253 + $0x134] sm:$0xf]
      %v444 = vld [vmem:[%s253 + $0x138] sm:$0xf]
      %v445 = vld [vmem:[%s253 + $0x13c] sm:$0xf]
      %v446 = vld [vmem:[%s253 + $0x140] sm:$0xf]
      %v447 = vld [vmem:[%s253 + $0x144] sm:$0xf]
      %v448 = vld [vmem:[%s253 + $0x148] sm:$0xf]
      %v449 = vld [vmem:[%s253 + $0x14c] sm:$0xf]
      %v450 = vld [vmem:[%s253 + $0x150] sm:$0xf]
      %v451 = vld [vmem:[%s253 + $0x154] sm:$0xf]
      %v452 = vld [vmem:[%s253 + $0x158] sm:$0xf]
      %v453 = vld [vmem:[%s253 + $0x15c] sm:$0xf]
      %v454 = vld [vmem:[%s253 + $0x160] sm:$0xf]
      %v455 = vld [vmem:[%s253 + $0x164] sm:$0xf]
      %v456 = vld [vmem:[%s253 + $0x168] sm:$0xf]
      %v457 = vld [vmem:[%s253 + $0x16c] sm:$0xf]
      %v458 = vld [vmem:[%s253 + $0x170] sm:$0xf]
      %v459 = vld [vmem:[%s253 + $0x174] sm:$0xf]
      %v460 = vld [vmem:[%s253 + $0x178] sm:$0xf]
      %v461 = vld [vmem:[%s253 + $0x17c] sm:$0xf]
      %v558 = vunpack.c.l.b16 %v270
      %v559 = vunpack.c.h.b16 %v270
      %v560 = vunpack.c.l.b16 %v271
      %v561 = vunpack.c.h.b16 %v271
      %v562 = vunpack.c.l.b16 %v272
      %v563 = vunpack.c.h.b16 %v272
      %v564 = vunpack.c.l.b16 %v273
      %v565 = vunpack.c.h.b16 %v273
      %v566 = vunpack.c.l.b16 %v274
      %v567 = vunpack.c.h.b16 %v274
      %v568 = vunpack.c.l.b16 %v275
      %v569 = vunpack.c.h.b16 %v275
      %v570 = vunpack.c.l.b16 %v276
      %v571 = vunpack.c.h.b16 %v276
      %v572 = vunpack.c.l.b16 %v277
      %v573 = vunpack.c.h.b16 %v277
      %v574 = vunpack.c.l.b16 %v278
      %v575 = vunpack.c.h.b16 %v278
      %v576 = vunpack.c.l.b16 %v279
      %v577 = vunpack.c.h.b16 %v279
      %v578 = vunpack.c.l.b16 %v280
      %v579 = vunpack.c.h.b16 %v280
      %v580 = vunpack.c.l.b16 %v281
      %v581 = vunpack.c.h.b16 %v281
      %v582 = vunpack.c.l.b16 %v282
      %v583 = vunpack.c.h.b16 %v282
      %v584 = vunpack.c.l.b16 %v283
      %v585 = vunpack.c.h.b16 %v283
      %v586 = vunpack.c.l.b16 %v284
      %v587 = vunpack.c.h.b16 %v284
      %v588 = vunpack.c.l.b16 %v285
      %v589 = vunpack.c.h.b16 %v285
      %v590 = vunpack.c.l.b16 %v286
      %v591 = vunpack.c.h.b16 %v286
      %v592 = vunpack.c.l.b16 %v287
      %v593 = vunpack.c.h.b16 %v287
      %v594 = vunpack.c.l.b16 %v288
      %v595 = vunpack.c.h.b16 %v288
      %v596 = vunpack.c.l.b16 %v289
      %v597 = vunpack.c.h.b16 %v289
      %v598 = vunpack.c.l.b16 %v290
      %v599 = vunpack.c.h.b16 %v290
      %v600 = vunpack.c.l.b16 %v291
      %v601 = vunpack.c.h.b16 %v291
      %v602 = vunpack.c.l.b16 %v292
      %v603 = vunpack.c.h.b16 %v292
      %v604 = vunpack.c.l.b16 %v293
      %v605 = vunpack.c.h.b16 %v293
      %v606 = vunpack.c.l.b16 %v294
      %v607 = vunpack.c.h.b16 %v294
      %v608 = vunpack.c.l.b16 %v295
      %v609 = vunpack.c.h.b16 %v295
      %v610 = vunpack.c.l.b16 %v296
      %v611 = vunpack.c.h.b16 %v296
      %v612 = vunpack.c.l.b16 %v297
      %v613 = vunpack.c.h.b16 %v297
      %v614 = vunpack.c.l.b16 %v298
      %v615 = vunpack.c.h.b16 %v298
      %v616 = vunpack.c.l.b16 %v299
      %v617 = vunpack.c.h.b16 %v299
      %v618 = vunpack.c.l.b16 %v300
      %v619 = vunpack.c.h.b16 %v300
      %v620 = vunpack.c.l.b16 %v301
      %v621 = vunpack.c.h.b16 %v301
      %v622 = vunpack.c.l.b16 %v302
      %v623 = vunpack.c.h.b16 %v302
      %v624 = vunpack.c.l.b16 %v303
      %v625 = vunpack.c.h.b16 %v303
      %v626 = vunpack.c.l.b16 %v304
      %v627 = vunpack.c.h.b16 %v304
      %v628 = vunpack.c.l.b16 %v305
      %v629 = vunpack.c.h.b16 %v305
      %v630 = vunpack.c.l.b16 %v306
      %v631 = vunpack.c.h.b16 %v306
      %v632 = vunpack.c.l.b16 %v307
      %v633 = vunpack.c.h.b16 %v307
      %v634 = vunpack.c.l.b16 %v308
      %v635 = vunpack.c.h.b16 %v308
      %v636 = vunpack.c.l.b16 %v309
      %v637 = vunpack.c.h.b16 %v309
      %v638 = vunpack.c.l.b16 %v310
      %v639 = vunpack.c.h.b16 %v310
      %v640 = vunpack.c.l.b16 %v311
      %v641 = vunpack.c.h.b16 %v311
      %v642 = vunpack.c.l.b16 %v312
      %v643 = vunpack.c.h.b16 %v312
      %v644 = vunpack.c.l.b16 %v313
      %v645 = vunpack.c.h.b16 %v313
      %v646 = vunpack.c.l.b16 %v314
      %v647 = vunpack.c.h.b16 %v314
      %v648 = vunpack.c.l.b16 %v315
      %v649 = vunpack.c.h.b16 %v315
      %v650 = vunpack.c.l.b16 %v316
      %v651 = vunpack.c.h.b16 %v316
      %v652 = vunpack.c.l.b16 %v317
      %v653 = vunpack.c.h.b16 %v317
      %v654 = vunpack.c.l.b16 %v318
      %v655 = vunpack.c.h.b16 %v318
      %v656 = vunpack.c.l.b16 %v319
      %v657 = vunpack.c.h.b16 %v319
      %v658 = vunpack.c.l.b16 %v320
      %v659 = vunpack.c.h.b16 %v320
      %v660 = vunpack.c.l.b16 %v321
      %v661 = vunpack.c.h.b16 %v321
      %v662 = vunpack.c.l.b16 %v322
      %v663 = vunpack.c.h.b16 %v322
      %v664 = vunpack.c.l.b16 %v323
      %v665 = vunpack.c.h.b16 %v323
      %v666 = vunpack.c.l.b16 %v324
      %v667 = vunpack.c.h.b16 %v324
      %v668 = vunpack.c.l.b16 %v325
      %v669 = vunpack.c.h.b16 %v325
      %v670 = vunpack.c.l.b16 %v326
      %v671 = vunpack.c.h.b16 %v326
      %v672 = vunpack.c.l.b16 %v327
      %v673 = vunpack.c.h.b16 %v327
      %v674 = vunpack.c.l.b16 %v328
      %v675 = vunpack.c.h.b16 %v328
      %v676 = vunpack.c.l.b16 %v329
      %v677 = vunpack.c.h.b16 %v329
      %v678 = vunpack.c.l.b16 %v330
      %v679 = vunpack.c.h.b16 %v330
      %v680 = vunpack.c.l.b16 %v331
      %v681 = vunpack.c.h.b16 %v331
      %v682 = vunpack.c.l.b16 %v332
      %v683 = vunpack.c.h.b16 %v332
      %v684 = vunpack.c.l.b16 %v333
      %v685 = vunpack.c.h.b16 %v333
      %v686 = vunpack.c.l.b16 %v334
      %v687 = vunpack.c.h.b16 %v334
      %v688 = vunpack.c.l.b16 %v335
      %v689 = vunpack.c.h.b16 %v335
      %v690 = vunpack.c.l.b16 %v336
      %v691 = vunpack.c.h.b16 %v336
      %v692 = vunpack.c.l.b16 %v337
      %v693 = vunpack.c.h.b16 %v337
      %v694 = vunpack.c.l.b16 %v338
      %v695 = vunpack.c.h.b16 %v338
      %v696 = vunpack.c.l.b16 %v339
      %v697 = vunpack.c.h.b16 %v339
      %v698 = vunpack.c.l.b16 %v340
      %v699 = vunpack.c.h.b16 %v340
      %v700 = vunpack.c.l.b16 %v341
      %v701 = vunpack.c.h.b16 %v341
      %v702 = vunpack.c.l.b16 %v342
      %v703 = vunpack.c.h.b16 %v342
      %v704 = vunpack.c.l.b16 %v343
      %v705 = vunpack.c.h.b16 %v343
      %v706 = vunpack.c.l.b16 %v344
      %v707 = vunpack.c.h.b16 %v344
      %v708 = vunpack.c.l.b16 %v345
      %v709 = vunpack.c.h.b16 %v345
      %v710 = vunpack.c.l.b16 %v346
      %v711 = vunpack.c.h.b16 %v346
      %v712 = vunpack.c.l.b16 %v347
      %v713 = vunpack.c.h.b16 %v347
      %v714 = vunpack.c.l.b16 %v348
      %v715 = vunpack.c.h.b16 %v348
      %v716 = vunpack.c.l.b16 %v349
      %v717 = vunpack.c.h.b16 %v349
      %v718 = vunpack.c.l.b16 %v350
      %v719 = vunpack.c.h.b16 %v350
      %v720 = vunpack.c.l.b16 %v351
      %v721 = vunpack.c.h.b16 %v351
      %v722 = vunpack.c.l.b16 %v352
      %v723 = vunpack.c.h.b16 %v352
      %v724 = vunpack.c.l.b16 %v353
      %v725 = vunpack.c.h.b16 %v353
      %v726 = vunpack.c.l.b16 %v354
      %v727 = vunpack.c.h.b16 %v354
      %v728 = vunpack.c.l.b16 %v355
      %v729 = vunpack.c.h.b16 %v355
      %v730 = vunpack.c.l.b16 %v356
      %v731 = vunpack.c.h.b16 %v356
      %v732 = vunpack.c.l.b16 %v357
      %v733 = vunpack.c.h.b16 %v357
      %v734 = vunpack.c.l.b16 %v358
      %v735 = vunpack.c.h.b16 %v358
      %v736 = vunpack.c.l.b16 %v359
      %v737 = vunpack.c.h.b16 %v359
      %v738 = vunpack.c.l.b16 %v360
      %v739 = vunpack.c.h.b16 %v360
      %v740 = vunpack.c.l.b16 %v361
      %v741 = vunpack.c.h.b16 %v361
      %v742 = vunpack.c.l.b16 %v362
      %v743 = vunpack.c.h.b16 %v362
      %v744 = vunpack.c.l.b16 %v363
      %v745 = vunpack.c.h.b16 %v363
      %v746 = vunpack.c.l.b16 %v364
      %v747 = vunpack.c.h.b16 %v364
      %v748 = vunpack.c.l.b16 %v365
      %v749 = vunpack.c.h.b16 %v365
      %v750 = vpack.c.b16 %v564, %v558
      %v751 = vpack.c.b16 %v565, %v559
      %v752 = vpack.c.b16 %v566, %v560
      %v753 = vpack.c.b16 %v567, %v561
      %v754 = vpack.c.b16 %v568, %v562
      %v755 = vpack.c.b16 %v569, %v563
      %v756 = vpack.c.b16 %v576, %v570
      %v757 = vpack.c.b16 %v577, %v571
      %v758 = vpack.c.b16 %v578, %v572
      %v759 = vpack.c.b16 %v579, %v573
      %v760 = vpack.c.b16 %v580, %v574
      %v761 = vpack.c.b16 %v581, %v575
      %v762 = vpack.c.b16 %v588, %v582
      %v763 = vpack.c.b16 %v589, %v583
      %v764 = vpack.c.b16 %v590, %v584
      %v765 = vpack.c.b16 %v591, %v585
      %v766 = vpack.c.b16 %v592, %v586
      %v767 = vpack.c.b16 %v593, %v587
      %v768 = vpack.c.b16 %v600, %v594
      %v769 = vpack.c.b16 %v601, %v595
      %v770 = vpack.c.b16 %v602, %v596
      %v771 = vpack.c.b16 %v603, %v597
      %v772 = vpack.c.b16 %v604, %v598
      %v773 = vpack.c.b16 %v605, %v599
      %v774 = vpack.c.b16 %v612, %v606
      %v775 = vpack.c.b16 %v613, %v607
      %v776 = vpack.c.b16 %v614, %v608
      %v777 = vpack.c.b16 %v615, %v609
      %v778 = vpack.c.b16 %v616, %v610
      %v779 = vpack.c.b16 %v617, %v611
      %v780 = vpack.c.b16 %v624, %v618
      %v781 = vpack.c.b16 %v625, %v619
      %v782 = vpack.c.b16 %v626, %v620
      %v783 = vpack.c.b16 %v627, %v621
      %v784 = vpack.c.b16 %v628, %v622
      %v785 = vpack.c.b16 %v629, %v623
      %v786 = vpack.c.b16 %v636, %v630
      %v787 = vpack.c.b16 %v637, %v631
      %v788 = vpack.c.b16 %v638, %v632
      %v789 = vpack.c.b16 %v639, %v633
      %v790 = vpack.c.b16 %v640, %v634
      %v791 = vpack.c.b16 %v641, %v635
      %v792 = vpack.c.b16 %v648, %v642
      %v793 = vpack.c.b16 %v649, %v643
      %v794 = vpack.c.b16 %v650, %v644
      %v795 = vpack.c.b16 %v651, %v645
      %v796 = vpack.c.b16 %v652, %v646
      %v797 = vpack.c.b16 %v653, %v647
      %v798 = vpack.c.b16 %v660, %v654
      %v799 = vpack.c.b16 %v661, %v655
      %v800 = vpack.c.b16 %v662, %v656
      %v801 = vpack.c.b16 %v663, %v657
      %v802 = vpack.c.b16 %v664, %v658
      %v803 = vpack.c.b16 %v665, %v659
      %v804 = vpack.c.b16 %v672, %v666
      %v805 = vpack.c.b16 %v673, %v667
      %v806 = vpack.c.b16 %v674, %v668
      %v807 = vpack.c.b16 %v675, %v669
      %v808 = vpack.c.b16 %v676, %v670
      %v809 = vpack.c.b16 %v677, %v671
      %v810 = vpack.c.b16 %v684, %v678
      %v811 = vpack.c.b16 %v685, %v679
      %v812 = vpack.c.b16 %v686, %v680
      %v813 = vpack.c.b16 %v687, %v681
      %v814 = vpack.c.b16 %v688, %v682
      %v815 = vpack.c.b16 %v689, %v683
      %v816 = vpack.c.b16 %v696, %v690
      %v817 = vpack.c.b16 %v697, %v691
      %v818 = vpack.c.b16 %v698, %v692
      %v819 = vpack.c.b16 %v699, %v693
      %v820 = vpack.c.b16 %v700, %v694
      %v821 = vpack.c.b16 %v701, %v695
      %v822 = vpack.c.b16 %v708, %v702
      %v823 = vpack.c.b16 %v709, %v703
      %v824 = vpack.c.b16 %v710, %v704
      %v825 = vpack.c.b16 %v711, %v705
      %v826 = vpack.c.b16 %v712, %v706
      %v827 = vpack.c.b16 %v713, %v707
      %v828 = vpack.c.b16 %v720, %v714
      %v829 = vpack.c.b16 %v721, %v715
      %v830 = vpack.c.b16 %v722, %v716
      %v831 = vpack.c.b16 %v723, %v717
      %v832 = vpack.c.b16 %v724, %v718
      %v833 = vpack.c.b16 %v725, %v719
      %v834 = vpack.c.b16 %v732, %v726
      %v835 = vpack.c.b16 %v733, %v727
      %v836 = vpack.c.b16 %v734, %v728
      %v837 = vpack.c.b16 %v735, %v729
      %v838 = vpack.c.b16 %v736, %v730
      %v839 = vpack.c.b16 %v737, %v731
      %v840 = vpack.c.b16 %v744, %v738
      %v841 = vpack.c.b16 %v745, %v739
      %v842 = vpack.c.b16 %v746, %v740
      %v843 = vpack.c.b16 %v747, %v741
      %v844 = vpack.c.b16 %v748, %v742
      %v845 = vpack.c.b16 %v749, %v743
      %v1038 = vunpack.c.l.b16 %v366
      %v1039 = vunpack.c.l.b16 %v367
      %v1040 = vunpack.c.l.b16 %v368
      %v1041 = vunpack.c.l.b16 %v369
      %v1042 = vunpack.c.l.b16 %v370
      %v1043 = vunpack.c.l.b16 %v371
      %v1044 = vunpack.c.l.b16 %v372
      %v1045 = vunpack.c.l.b16 %v373
      %v1046 = vunpack.c.l.b16 %v374
      %v1047 = vunpack.c.l.b16 %v375
      %v1048 = vunpack.c.l.b16 %v376
      %v1049 = vunpack.c.l.b16 %v377
      %v1050 = vunpack.c.l.b16 %v378
      %v1051 = vunpack.c.l.b16 %v379
      %v1052 = vunpack.c.l.b16 %v380
      %v1053 = vunpack.c.l.b16 %v381
      %v1054 = vunpack.c.l.b16 %v382
      %v1055 = vunpack.c.l.b16 %v383
      %v1056 = vunpack.c.l.b16 %v384
      %v1057 = vunpack.c.l.b16 %v385
      %v1058 = vunpack.c.l.b16 %v386
      %v1059 = vunpack.c.l.b16 %v387
      %v1060 = vunpack.c.l.b16 %v388
      %v1061 = vunpack.c.l.b16 %v389
      %v1062 = vunpack.c.l.b16 %v390
      %v1063 = vunpack.c.l.b16 %v391
      %v1064 = vunpack.c.l.b16 %v392
      %v1065 = vunpack.c.l.b16 %v393
      %v1066 = vunpack.c.l.b16 %v394
      %v1067 = vunpack.c.l.b16 %v395
      %v1068 = vunpack.c.l.b16 %v396
      %v1069 = vunpack.c.l.b16 %v397
      %v1070 = vunpack.c.l.b16 %v398
      %v1071 = vunpack.c.l.b16 %v399
      %v1072 = vunpack.c.l.b16 %v400
      %v1073 = vunpack.c.l.b16 %v401
      %v1074 = vunpack.c.l.b16 %v402
      %v1075 = vunpack.c.l.b16 %v403
      %v1076 = vunpack.c.l.b16 %v404
      %v1077 = vunpack.c.l.b16 %v405
      %v1078 = vunpack.c.l.b16 %v406
      %v1079 = vunpack.c.l.b16 %v407
      %v1080 = vunpack.c.l.b16 %v408
      %v1081 = vunpack.c.l.b16 %v409
      %v1082 = vunpack.c.l.b16 %v410
      %v1083 = vunpack.c.l.b16 %v411
      %v1084 = vunpack.c.l.b16 %v412
      %v1085 = vunpack.c.l.b16 %v413
      %v1086 = vunpack.c.l.b16 %v414
      %v1087 = vunpack.c.l.b16 %v415
      %v1088 = vunpack.c.l.b16 %v416
      %v1089 = vunpack.c.l.b16 %v417
      %v1090 = vunpack.c.l.b16 %v418
      %v1091 = vunpack.c.l.b16 %v419
      %v1092 = vunpack.c.l.b16 %v420
      %v1093 = vunpack.c.l.b16 %v421
      %v1094 = vunpack.c.l.b16 %v422
      %v1095 = vunpack.c.l.b16 %v423
      %v1096 = vunpack.c.l.b16 %v424
      %v1097 = vunpack.c.l.b16 %v425
      %v1098 = vunpack.c.l.b16 %v426
      %v1099 = vunpack.c.l.b16 %v427
      %v1100 = vunpack.c.l.b16 %v428
      %v1101 = vunpack.c.l.b16 %v429
      %v1102 = vunpack.c.l.b16 %v430
      %v1103 = vunpack.c.l.b16 %v431
      %v1104 = vunpack.c.l.b16 %v432
      %v1105 = vunpack.c.l.b16 %v433
      %v1106 = vunpack.c.l.b16 %v434
      %v1107 = vunpack.c.l.b16 %v435
      %v1108 = vunpack.c.l.b16 %v436
      %v1109 = vunpack.c.l.b16 %v437
      %v1110 = vunpack.c.l.b16 %v438
      %v1111 = vunpack.c.l.b16 %v439
      %v1112 = vunpack.c.l.b16 %v440
      %v1113 = vunpack.c.l.b16 %v441
      %v1114 = vunpack.c.l.b16 %v442
      %v1115 = vunpack.c.l.b16 %v443
      %v1116 = vunpack.c.l.b16 %v444
      %v1117 = vunpack.c.l.b16 %v445
      %v1118 = vunpack.c.l.b16 %v446
      %v1119 = vunpack.c.l.b16 %v447
      %v1120 = vunpack.c.l.b16 %v448
      %v1121 = vunpack.c.l.b16 %v449
      %v1122 = vunpack.c.l.b16 %v450
      %v1123 = vunpack.c.l.b16 %v451
      %v1124 = vunpack.c.l.b16 %v452
      %v1125 = vunpack.c.l.b16 %v453
      %v1126 = vunpack.c.l.b16 %v454
      %v1127 = vunpack.c.l.b16 %v455
      %v1128 = vunpack.c.l.b16 %v456
      %v1129 = vunpack.c.l.b16 %v457
      %v1130 = vunpack.c.l.b16 %v458
      %v1131 = vunpack.c.l.b16 %v459
      %v1132 = vunpack.c.l.b16 %v460
      %v1133 = vunpack.c.l.b16 %v461
      %v1134 = vpack.c.b16 %v1039, %v1038
      %v1135 = vpack.c.b16 %v1041, %v1040
      %v1136 = vpack.c.b16 %v1043, %v1042
      %v1137 = vpack.c.b16 %v1045, %v1044
      %v1138 = vpack.c.b16 %v1047, %v1046
      %v1139 = vpack.c.b16 %v1049, %v1048
      %v1140 = vpack.c.b16 %v1051, %v1050
      %v1141 = vpack.c.b16 %v1053, %v1052
      %v1142 = vpack.c.b16 %v1055, %v1054
      %v1143 = vpack.c.b16 %v1057, %v1056
      %v1144 = vpack.c.b16 %v1059, %v1058
      %v1145 = vpack.c.b16 %v1061, %v1060
      %v1146 = vpack.c.b16 %v1063, %v1062
      %v1147 = vpack.c.b16 %v1065, %v1064
      %v1148 = vpack.c.b16 %v1067, %v1066
      %v1149 = vpack.c.b16 %v1069, %v1068
      %v1150 = vpack.c.b16 %v1071, %v1070
      %v1151 = vpack.c.b16 %v1073, %v1072
      %v1152 = vpack.c.b16 %v1075, %v1074
      %v1153 = vpack.c.b16 %v1077, %v1076
      %v1154 = vpack.c.b16 %v1079, %v1078
      %v1155 = vpack.c.b16 %v1081, %v1080
      %v1156 = vpack.c.b16 %v1083, %v1082
      %v1157 = vpack.c.b16 %v1085, %v1084
      %v1158 = vpack.c.b16 %v1087, %v1086
      %v1159 = vpack.c.b16 %v1089, %v1088
      %v1160 = vpack.c.b16 %v1091, %v1090
      %v1161 = vpack.c.b16 %v1093, %v1092
      %v1162 = vpack.c.b16 %v1095, %v1094
      %v1163 = vpack.c.b16 %v1097, %v1096
      %v1164 = vpack.c.b16 %v1099, %v1098
      %v1165 = vpack.c.b16 %v1101, %v1100
      %v1166 = vpack.c.b16 %v1103, %v1102
      %v1167 = vpack.c.b16 %v1105, %v1104
      %v1168 = vpack.c.b16 %v1107, %v1106
      %v1169 = vpack.c.b16 %v1109, %v1108
      %v1170 = vpack.c.b16 %v1111, %v1110
      %v1171 = vpack.c.b16 %v1113, %v1112
      %v1172 = vpack.c.b16 %v1115, %v1114
      %v1173 = vpack.c.b16 %v1117, %v1116
      %v1174 = vpack.c.b16 %v1119, %v1118
      %v1175 = vpack.c.b16 %v1121, %v1120
      %v1176 = vpack.c.b16 %v1123, %v1122
      %v1177 = vpack.c.b16 %v1125, %v1124
      %v1178 = vpack.c.b16 %v1127, %v1126
      %v1179 = vpack.c.b16 %v1129, %v1128
      %v1180 = vpack.c.b16 %v1131, %v1130
      %v1181 = vpack.c.b16 %v1133, %v1132
      %1230 = vmatprep.subr.bf16.mxu0 0
      %1231 = vmatpush1.bf16.msra.mxu0 %v1134
      %1232 = vmatprep.subr.bf16.mxu0 0
      %1233 = vmatpush1.bf16.msra.mxu0 %v1135
      %1234 = vmatprep.subr.bf16.mxu0 0
      %1235 = vmatpush1.bf16.msra.mxu0 %v1136
      %1236 = vmatprep.subr.bf16.mxu0 0
      %1237 = vmatpush1.bf16.msra.mxu0 %v1137
      %1238 = vmatprep.subr.bf16.mxu0 0
      %1239 = vmatpush1.bf16.msra.mxu0 %v1138
      %1240 = vmatprep.subr.bf16.mxu0 0
      %1241 = vmatpush1.bf16.msra.mxu0 %v1139
      %1242 = vmatprep.subr.bf16.mxu0 0
      %1243 = vmatpush1.bf16.msra.mxu0 %v1140
      %1244 = vmatprep.subr.bf16.mxu0 0
      %1245 = vmatpush1.bf16.msra.mxu0 %v1141
      %1246 = vmatprep.subr.bf16.mxu0 0
      %1247 = vmatpush1.bf16.msra.mxu0 %v1142
      %1248 = vmatprep.subr.bf16.mxu0 0
      %1249 = vmatpush1.bf16.msra.mxu0 %v1143
      %1250 = vmatprep.subr.bf16.mxu0 0
      %1251 = vmatpush1.bf16.msra.mxu0 %v1144
      %1252 = vmatprep.subr.bf16.mxu0 0
      %1253 = vmatpush1.bf16.msra.mxu0 %v1145
      %1254 = vmatprep.subr.bf16.mxu0 0
      %1255 = vmatpush1.bf16.msra.mxu0 %v1146
      %1256 = vmatprep.subr.bf16.mxu0 0
      %1257 = vmatpush1.bf16.msra.mxu0 %v1147
      %1258 = vmatprep.subr.bf16.mxu0 0
      %1259 = vmatpush1.bf16.msra.mxu0 %v1148
      %1260 = vmatprep.subr.bf16.mxu0 0
      %1261 = vmatpush1.bf16.msra.mxu0 %v1149
      %1262 = vmatprep.mubr.bf16.mxu0 %v751
      %1263 = vmatmul.mubr.bf16.gmra.mrb[0].mxu0 %v750
      %v1264 = vpop.f32.mrb[0].mxu0
      %v1265 = vadd.f32 0.0, %v1264
      %v1266 = vpop.f32.mrb[0].mxu0
      %v1267 = vpop.f32.mrb[0].mxu0
      %v1268 = vadd.f32 0.0, %v1267
      %v1269 = vpop.f32.mrb[0].mxu0
      %1270 = vmatprep.mubr.bf16.mxu0 %v757
      %1271 = vmatmul.mubr.bf16.gmra.mrb[0].mxu0 %v756
      %v1272 = vpop.f32.mrb[0].mxu0
      %v1273 = vadd.f32 0.0, %v1272
      %v1274 = vpop.f32.mrb[0].mxu0
      %v1275 = vpop.f32.mrb[0].mxu0
      %v1276 = vadd.f32 0.0, %v1275
      %v1277 = vpop.f32.mrb[0].mxu0
      %1278 = vmatprep.mubr.bf16.mxu0 %v763
      %1279 = vmatmul.mubr.bf16.gmra.mrb[0].mxu0 %v762
      %v1280 = vpop.f32.mrb[0].mxu0
      %v1281 = vadd.f32 0.0, %v1280
      %v1282 = vpop.f32.mrb[0].mxu0
      %v1283 = vpop.f32.mrb[0].mxu0
      %v1284 = vadd.f32 0.0, %v1283
      %v1285 = vpop.f32.mrb[0].mxu0
      %1286 = vmatprep.mubr.bf16.mxu0 %v769
      %1287 = vmatmul.mubr.bf16.gmra.mrb[0].mxu0 %v768
      %v1288 = vpop.f32.mrb[0].mxu0
      %v1289 = vadd.f32 0.0, %v1288
      %v1290 = vpop.f32.mrb[0].mxu0
      %v1291 = vpop.f32.mrb[0].mxu0
      %v1292 = vadd.f32 0.0, %v1291
      %v1293 = vpop.f32.mrb[0].mxu0
      %1294 = vmatprep.mubr.bf16.mxu0 %v775
      %1295 = vmatmul.mubr.bf16.gmra.mrb[0].mxu0 %v774
      %v1296 = vpop.f32.mrb[0].mxu0
      %v1297 = vadd.f32 0.0, %v1296
      %v1298 = vpop.f32.mrb[0].mxu0
      %v1299 = vpop.f32.mrb[0].mxu0
      %v1300 = vadd.f32 0.0, %v1299
      %v1301 = vpop.f32.mrb[0].mxu0
      %1302 = vmatprep.mubr.bf16.mxu0 %v781
      %1303 = vmatmul.mubr.bf16.gmra.mrb[0].mxu0 %v780
      %v1304 = vpop.f32.mrb[0].mxu0
      %v1305 = vadd.f32 0.0, %v1304
      %v1306 = vpop.f32.mrb[0].mxu0
      %v1307 = vpop.f32.mrb[0].mxu0
      %v1308 = vadd.f32 0.0, %v1307
      %v1309 = vpop.f32.mrb[0].mxu0
      %1310 = vmatprep.mubr.bf16.mxu0 %v787
      %1311 = vmatmul.mubr.bf16.gmra.mrb[0].mxu0 %v786
      %v1312 = vpop.f32.mrb[0].mxu0
      %v1313 = vadd.f32 0.0, %v1312
      %v1314 = vpop.f32.mrb[0].mxu0
      %v1315 = vpop.f32.mrb[0].mxu0
      %v1316 = vadd.f32 0.0, %v1315
      %v1317 = vpop.f32.mrb[0].mxu0
      %1318 = vmatprep.mubr.bf16.mxu0 %v793
      %1319 = vmatmul.mubr.bf16.gmra.mrb[0].mxu0 %v792
      %v1320 = vpop.f32.mrb[0].mxu0
      %v1321 = vadd.f32 0.0, %v1320
      %v1322 = vpop.f32.mrb[0].mxu0
      %v1323 = vpop.f32.mrb[0].mxu0
      %v1324 = vadd.f32 0.0, %v1323
      %v1325 = vpop.f32.mrb[0].mxu0
      %1326 = vmatprep.mubr.bf16.mxu0 %v799
      %1327 = vmatmul.mubr.bf16.gmra.mrb[0].mxu0 %v798
      %v1328 = vpop.f32.mrb[0].mxu0
      %v1329 = vadd.f32 0.0, %v1328
      %v1330 = vpop.f32.mrb[0].mxu0
      %v1331 = vpop.f32.mrb[0].mxu0
      %v1332 = vadd.f32 0.0, %v1331
      %v1333 = vpop.f32.mrb[0].mxu0
      %1334 = vmatprep.mubr.bf16.mxu0 %v805
      %1335 = vmatmul.mubr.bf16.gmra.mrb[0].mxu0 %v804
      %v1336 = vpop.f32.mrb[0].mxu0
      %v1337 = vadd.f32 0.0, %v1336
      %v1338 = vpop.f32.mrb[0].mxu0
      %v1339 = vpop.f32.mrb[0].mxu0
      %v1340 = vadd.f32 0.0, %v1339
      %v1341 = vpop.f32.mrb[0].mxu0
      %1342 = vmatprep.mubr.bf16.mxu0 %v811
      %1343 = vmatmul.mubr.bf16.gmra.mrb[0].mxu0 %v810
      %v1344 = vpop.f32.mrb[0].mxu0
      %v1345 = vadd.f32 0.0, %v1344
      %v1346 = vpop.f32.mrb[0].mxu0
      %v1347 = vpop.f32.mrb[0].mxu0
      %v1348 = vadd.f32 0.0, %v1347
      %v1349 = vpop.f32.mrb[0].mxu0
      %1350 = vmatprep.mubr.bf16.mxu0 %v817
      %1351 = vmatmul.mubr.bf16.gmra.mrb[0].mxu0 %v816
      %v1352 = vpop.f32.mrb[0].mxu0
      %v1353 = vadd.f32 0.0, %v1352
      %v1354 = vpop.f32.mrb[0].mxu0
      %v1355 = vpop.f32.mrb[0].mxu0
      %v1356 = vadd.f32 0.0, %v1355
      %v1357 = vpop.f32.mrb[0].mxu0
      %1358 = vmatprep.mubr.bf16.mxu0 %v823
      %1359 = vmatmul.mubr.bf16.gmra.mrb[0].mxu0 %v822
      %v1360 = vpop.f32.mrb[0].mxu0
      %v1361 = vadd.f32 0.0, %v1360
      %v1362 = vpop.f32.mrb[0].mxu0
      %v1363 = vpop.f32.mrb[0].mxu0
      %v1364 = vadd.f32 0.0, %v1363
      %v1365 = vpop.f32.mrb[0].mxu0
      %1366 = vmatprep.mubr.bf16.mxu0 %v829
      %1367 = vmatmul.mubr.bf16.gmra.mrb[0].mxu0 %v828
      %v1368 = vpop.f32.mrb[0].mxu0
      %v1369 = vadd.f32 0.0, %v1368
      %v1370 = vpop.f32.mrb[0].mxu0
      %v1371 = vpop.f32.mrb[0].mxu0
      %v1372 = vadd.f32 0.0, %v1371
      %v1373 = vpop.f32.mrb[0].mxu0
      %1374 = vmatprep.mubr.bf16.mxu0 %v835
      %1375 = vmatmul.mubr.bf16.gmra.mrb[0].mxu0 %v834
      %v1376 = vpop.f32.mrb[0].mxu0
      %v1377 = vadd.f32 0.0, %v1376
      %v1378 = vpop.f32.mrb[0].mxu0
      %v1379 = vpop.f32.mrb[0].mxu0
      %v1380 = vadd.f32 0.0, %v1379
      %v1381 = vpop.f32.mrb[0].mxu0
      %1382 = vmatprep.mubr.bf16.mxu0 %v841
      %1383 = vmatmul.mubr.bf16.gmra.mrb[0].mxu0 %v840
      %v1384 = vpop.f32.mrb[0].mxu0
      %v1385 = vadd.f32 0.0, %v1384
      %v1386 = vpop.f32.mrb[0].mxu0
      %v1387 = vpop.f32.mrb[0].mxu0
      %v1388 = vadd.f32 0.0, %v1387
      %v1389 = vpop.f32.mrb[0].mxu0
      %1390 = vdwg.mxu0
      %1391 = vmatprep.subr.bf16.mxu0 0
      %1392 = vmatpush1.bf16.msra.mxu0 %v1150
      %1393 = vmatprep.subr.bf16.mxu0 0
      %1394 = vmatpush1.bf16.msra.mxu0 %v1151
      %1395 = vmatprep.subr.bf16.mxu0 0
      %1396 = vmatpush1.bf16.msra.mxu0 %v1152
      %1397 = vmatprep.subr.bf16.mxu0 0
      %1398 = vmatpush1.bf16.msra.mxu0 %v1153
      %1399 = vmatprep.subr.bf16.mxu0 0
      %1400 = vmatpush1.bf16.msra.mxu0 %v1154
      %1401 = vmatprep.subr.bf16.mxu0 0
      %1402 = vmatpush1.bf16.msra.mxu0 %v1155
      %1403 = vmatprep.subr.bf16.mxu0 0
      %1404 = vmatpush1.bf16.msra.mxu0 %v1156
      %1405 = vmatprep.subr.bf16.mxu0 0
      %1406 = vmatpush1.bf16.msra.mxu0 %v1157
      %1407 = vmatprep.subr.bf16.mxu0 0
      %1408 = vmatpush1.bf16.msra.mxu0 %v1158
      %1409 = vmatprep.subr.bf16.mxu0 0
      %1410 = vmatpush1.bf16.msra.mxu0 %v1159
      %1411 = vmatprep.subr.bf16.mxu0 0
      %1412 = vmatpush1.bf16.msra.mxu0 %v1160
      %1413 = vmatprep.subr.bf16.mxu0 0
      %1414 = vmatpush1.bf16.msra.mxu0 %v1161
      %1415 = vmatprep.subr.bf16.mxu0 0
      %1416 = vmatpush1.bf16.msra.mxu0 %v1162
      %1417 = vmatprep.subr.bf16.mxu0 0
      %1418 = vmatpush1.bf16.msra.mxu0 %v1163
      %1419 = vmatprep.subr.bf16.mxu0 0
      %1420 = vmatpush1.bf16.msra.mxu0 %v1164
      %1421 = vmatprep.subr.bf16.mxu0 0
      %1422 = vmatpush1.bf16.msra.mxu0 %v1165
      %1423 = vmatprep.mubr.bf16.mxu0 %v753
      %1424 = vmatmul.mubr.bf16.gmra.mrb[0].mxu0 %v752
      %v1425 = vpop.f32.mrb[0].mxu0
      %v1426 = vadd.f32 %v1265, %v1425
      %v1427 = vpop.f32.mrb[0].mxu0
      %v1428 = vpop.f32.mrb[0].mxu0
      %v1429 = vadd.f32 %v1268, %v1428
      %v1430 = vpop.f32.mrb[0].mxu0
      %1431 = vmatprep.mubr.bf16.mxu0 %v759
      %1432 = vmatmul.mubr.bf16.gmra.mrb[0].mxu0 %v758
      %v1433 = vpop.f32.mrb[0].mxu0
      %v1434 = vadd.f32 %v1273, %v1433
      %v1435 = vpop.f32.mrb[0].mxu0
      %v1436 = vpop.f32.mrb[0].mxu0
      %v1437 = vadd.f32 %v1276, %v1436
      %v1438 = vpop.f32.mrb[0].mxu0
      %1439 = vmatprep.mubr.bf16.mxu0 %v765
      %1440 = vmatmul.mubr.bf16.gmra.mrb[0].mxu0 %v764
      %v1441 = vpop.f32.mrb[0].mxu0
      %v1442 = vadd.f32 %v1281, %v1441
      %v1443 = vpop.f32.mrb[0].mxu0
      %v1444 = vpop.f32.mrb[0].mxu0
      %v1445 = vadd.f32 %v1284, %v1444
      %v1446 = vpop.f32.mrb[0].mxu0
      %1447 = vmatprep.mubr.bf16.mxu0 %v771
      %1448 = vmatmul.mubr.bf16.gmra.mrb[0].mxu0 %v770
      %v1449 = vpop.f32.mrb[0].mxu0
      %v1450 = vadd.f32 %v1289, %v1449
      %v1451 = vpop.f32.mrb[0].mxu0
      %v1452 = vpop.f32.mrb[0].mxu0
      %v1453 = vadd.f32 %v1292, %v1452
      %v1454 = vpop.f32.mrb[0].mxu0
      %1455 = vmatprep.mubr.bf16.mxu0 %v777
      %1456 = vmatmul.mubr.bf16.gmra.mrb[0].mxu0 %v776
      %v1457 = vpop.f32.mrb[0].mxu0
      %v1458 = vadd.f32 %v1297, %v1457
      %v1459 = vpop.f32.mrb[0].mxu0
      %v1460 = vpop.f32.mrb[0].mxu0
      %v1461 = vadd.f32 %v1300, %v1460
      %v1462 = vpop.f32.mrb[0].mxu0
      %1463 = vmatprep.mubr.bf16.mxu0 %v783
      %1464 = vmatmul.mubr.bf16.gmra.mrb[0].mxu0 %v782
      %v1465 = vpop.f32.mrb[0].mxu0
      %v1466 = vadd.f32 %v1305, %v1465
      %v1467 = vpop.f32.mrb[0].mxu0
      %v1468 = vpop.f32.mrb[0].mxu0
      %v1469 = vadd.f32 %v1308, %v1468
      %v1470 = vpop.f32.mrb[0].mxu0
      %1471 = vmatprep.mubr.bf16.mxu0 %v789
      %1472 = vmatmul.mubr.bf16.gmra.mrb[0].mxu0 %v788
      %v1473 = vpop.f32.mrb[0].mxu0
      %v1474 = vadd.f32 %v1313, %v1473
      %v1475 = vpop.f32.mrb[0].mxu0
      %v1476 = vpop.f32.mrb[0].mxu0
      %v1477 = vadd.f32 %v1316, %v1476
      %v1478 = vpop.f32.mrb[0].mxu0
      %1479 = vmatprep.mubr.bf16.mxu0 %v795
      %1480 = vmatmul.mubr.bf16.gmra.mrb[0].mxu0 %v794
      %v1481 = vpop.f32.mrb[0].mxu0
      %v1482 = vadd.f32 %v1321, %v1481
      %v1483 = vpop.f32.mrb[0].mxu0
      %v1484 = vpop.f32.mrb[0].mxu0
      %v1485 = vadd.f32 %v1324, %v1484
      %v1486 = vpop.f32.mrb[0].mxu0
      %1487 = vmatprep.mubr.bf16.mxu0 %v801
      %1488 = vmatmul.mubr.bf16.gmra.mrb[0].mxu0 %v800
      %v1489 = vpop.f32.mrb[0].mxu0
      %v1490 = vadd.f32 %v1329, %v1489
      %v1491 = vpop.f32.mrb[0].mxu0
      %v1492 = vpop.f32.mrb[0].mxu0
      %v1493 = vadd.f32 %v1332, %v1492
      %v1494 = vpop.f32.mrb[0].mxu0
      %1495 = vmatprep.mubr.bf16.mxu0 %v807
      %1496 = vmatmul.mubr.bf16.gmra.mrb[0].mxu0 %v806
      %v1497 = vpop.f32.mrb[0].mxu0
      %v1498 = vadd.f32 %v1337, %v1497
      %v1499 = vpop.f32.mrb[0].mxu0
      %v1500 = vpop.f32.mrb[0].mxu0
      %v1501 = vadd.f32 %v1340, %v1500
      %v1502 = vpop.f32.mrb[0].mxu0
      %1503 = vmatprep.mubr.bf16.mxu0 %v813
      %1504 = vmatmul.mubr.bf16.gmra.mrb[0].mxu0 %v812
      %v1505 = vpop.f32.mrb[0].mxu0
      %v1506 = vadd.f32 %v1345, %v1505
      %v1507 = vpop.f32.mrb[0].mxu0
      %v1508 = vpop.f32.mrb[0].mxu0
      %v1509 = vadd.f32 %v1348, %v1508
      %v1510 = vpop.f32.mrb[0].mxu0
      %1511 = vmatprep.mubr.bf16.mxu0 %v819
      %1512 = vmatmul.mubr.bf16.gmra.mrb[0].mxu0 %v818
      %v1513 = vpop.f32.mrb[0].mxu0
      %v1514 = vadd.f32 %v1353, %v1513
      %v1515 = vpop.f32.mrb[0].mxu0
      %v1516 = vpop.f32.mrb[0].mxu0
      %v1517 = vadd.f32 %v1356, %v1516
      %v1518 = vpop.f32.mrb[0].mxu0
      %1519 = vmatprep.mubr.bf16.mxu0 %v825
      %1520 = vmatmul.mubr.bf16.gmra.mrb[0].mxu0 %v824
      %v1521 = vpop.f32.mrb[0].mxu0
      %v1522 = vadd.f32 %v1361, %v1521
      %v1523 = vpop.f32.mrb[0].mxu0
      %v1524 = vpop.f32.mrb[0].mxu0
      %v1525 = vadd.f32 %v1364, %v1524
      %v1526 = vpop.f32.mrb[0].mxu0
      %1527 = vmatprep.mubr.bf16.mxu0 %v831
      %1528 = vmatmul.mubr.bf16.gmra.mrb[0].mxu0 %v830
      %v1529 = vpop.f32.mrb[0].mxu0
      %v1530 = vadd.f32 %v1369, %v1529
      %v1531 = vpop.f32.mrb[0].mxu0
      %v1532 = vpop.f32.mrb[0].mxu0
      %v1533 = vadd.f32 %v1372, %v1532
      %v1534 = vpop.f32.mrb[0].mxu0
      %1535 = vmatprep.mubr.bf16.mxu0 %v837
      %1536 = vmatmul.mubr.bf16.gmra.mrb[0].mxu0 %v836
      %v1537 = vpop.f32.mrb[0].mxu0
      %v1538 = vadd.f32 %v1377, %v1537
      %v1539 = vpop.f32.mrb[0].mxu0
      %v1540 = vpop.f32.mrb[0].mxu0
      %v1541 = vadd.f32 %v1380, %v1540
      %v1542 = vpop.f32.mrb[0].mxu0
      %1543 = vmatprep.mubr.bf16.mxu0 %v843
      %1544 = vmatmul.mubr.bf16.gmra.mrb[0].mxu0 %v842
      %v1545 = vpop.f32.mrb[0].mxu0
      %v1546 = vadd.f32 %v1385, %v1545
      %v1547 = vpop.f32.mrb[0].mxu0
      %v1548 = vpop.f32.mrb[0].mxu0
      %v1549 = vadd.f32 %v1388, %v1548
      %v1550 = vpop.f32.mrb[0].mxu0
      %1551 = vdwg.mxu0
      %1552 = vmatprep.subr.bf16.mxu0 0
      %1553 = vmatpush1.bf16.msra.mxu0 %v1166
      %1554 = vmatprep.subr.bf16.mxu0 0
      %1555 = vmatpush1.bf16.msra.mxu0 %v1167
      %1556 = vmatprep.subr.bf16.mxu0 0
      %1557 = vmatpush1.bf16.msra.mxu0 %v1168
      %1558 = vmatprep.subr.bf16.mxu0 0
      %1559 = vmatpush1.bf16.msra.mxu0 %v1169
      %1560 = vmatprep.subr.bf16.mxu0 0
      %1561 = vmatpush1.bf16.msra.mxu0 %v1170
      %1562 = vmatprep.subr.bf16.mxu0 0
      %1563 = vmatpush1.bf16.msra.mxu0 %v1171
      %1564 = vmatprep.subr.bf16.mxu0 0
      %1565 = vmatpush1.bf16.msra.mxu0 %v1172
      %1566 = vmatprep.subr.bf16.mxu0 0
      %1567 = vmatpush1.bf16.msra.mxu0 %v1173
      %1568 = vmatprep.subr.bf16.mxu0 0
      %1569 = vmatpush1.bf16.msra.mxu0 %v1174
      %1570 = vmatprep.subr.bf16.mxu0 0
      %1571 = vmatpush1.bf16.msra.mxu0 %v1175
      %1572 = vmatprep.subr.bf16.mxu0 0
      %1573 = vmatpush1.bf16.msra.mxu0 %v1176
      %1574 = vmatprep.subr.bf16.mxu0 0
      %1575 = vmatpush1.bf16.msra.mxu0 %v1177
      %1576 = vmatprep.subr.bf16.mxu0 0
      %1577 = vmatpush1.bf16.msra.mxu0 %v1178
      %1578 = vmatprep.subr.bf16.mxu0 0
      %1579 = vmatpush1.bf16.msra.mxu0 %v1179
      %1580 = vmatprep.subr.bf16.mxu0 0
      %1581 = vmatpush1.bf16.msra.mxu0 %v1180
      %1582 = vmatprep.subr.bf16.mxu0 0
      %1583 = vmatpush1.bf16.msra.mxu0 %v1181
      %1584 = vmatprep.mubr.bf16.mxu0 %v755
      %1585 = vmatmul.mubr.bf16.gmra.mrb[0].mxu0 %v754
      %v1586 = vpop.f32.mrb[0].mxu0
      %v1587 = vadd.f32 %v1426, %v1586
      %v1588 = vpop.f32.mrb[0].mxu0
      %v1589 = vpop.f32.mrb[0].mxu0
      %v1590 = vadd.f32 %v1429, %v1589
      %v1591 = vpop.f32.mrb[0].mxu0
      %1592 = vmatprep.mubr.bf16.mxu0 %v761
      %1593 = vmatmul.mubr.bf16.gmra.mrb[0].mxu0 %v760
      %v1594 = vpop.f32.mrb[0].mxu0
      %v1595 = vadd.f32 %v1434, %v1594
      %v1596 = vpop.f32.mrb[0].mxu0
      %v1597 = vpop.f32.mrb[0].mxu0
      %v1598 = vadd.f32 %v1437, %v1597
      %v1599 = vpop.f32.mrb[0].mxu0
      %1600 = vmatprep.mubr.bf16.mxu0 %v767
      %1601 = vmatmul.mubr.bf16.gmra.mrb[0].mxu0 %v766
      %v1602 = vpop.f32.mrb[0].mxu0
      %v1603 = vadd.f32 %v1442, %v1602
      %v1604 = vpop.f32.mrb[0].mxu0
      %v1605 = vpop.f32.mrb[0].mxu0
      %v1606 = vadd.f32 %v1445, %v1605
      %v1607 = vpop.f32.mrb[0].mxu0
      %1608 = vmatprep.mubr.bf16.mxu0 %v773
      %1609 = vmatmul.mubr.bf16.gmra.mrb[0].mxu0 %v772
      %v1610 = vpop.f32.mrb[0].mxu0
      %v1611 = vadd.f32 %v1450, %v1610
      %v1612 = vpop.f32.mrb[0].mxu0
      %v1613 = vpop.f32.mrb[0].mxu0
      %v1614 = vadd.f32 %v1453, %v1613
      %v1615 = vpop.f32.mrb[0].mxu0
      %1616 = vmatprep.mubr.bf16.mxu0 %v779
      %1617 = vmatmul.mubr.bf16.gmra.mrb[0].mxu0 %v778
      %v1618 = vpop.f32.mrb[0].mxu0
      %v1619 = vadd.f32 %v1458, %v1618
      %v1620 = vpop.f32.mrb[0].mxu0
      %v1621 = vpop.f32.mrb[0].mxu0
      %v1622 = vadd.f32 %v1461, %v1621
      %v1623 = vpop.f32.mrb[0].mxu0
      %1624 = vmatprep.mubr.bf16.mxu0 %v785
      %1625 = vmatmul.mubr.bf16.gmra.mrb[0].mxu0 %v784
      %v1626 = vpop.f32.mrb[0].mxu0
      %v1627 = vadd.f32 %v1466, %v1626
      %v1628 = vpop.f32.mrb[0].mxu0
      %v1629 = vpop.f32.mrb[0].mxu0
      %v1630 = vadd.f32 %v1469, %v1629
      %v1631 = vpop.f32.mrb[0].mxu0
      %1632 = vmatprep.mubr.bf16.mxu0 %v791
      %1633 = vmatmul.mubr.bf16.gmra.mrb[0].mxu0 %v790
      %v1634 = vpop.f32.mrb[0].mxu0
      %v1635 = vadd.f32 %v1474, %v1634
      %v1636 = vpop.f32.mrb[0].mxu0
      %v1637 = vpop.f32.mrb[0].mxu0
      %v1638 = vadd.f32 %v1477, %v1637
      %v1639 = vpop.f32.mrb[0].mxu0
      %1640 = vmatprep.mubr.bf16.mxu0 %v797
      %1641 = vmatmul.mubr.bf16.gmra.mrb[0].mxu0 %v796
      %v1642 = vpop.f32.mrb[0].mxu0
      %v1643 = vadd.f32 %v1482, %v1642
      %v1644 = vpop.f32.mrb[0].mxu0
      %v1645 = vpop.f32.mrb[0].mxu0
      %v1646 = vadd.f32 %v1485, %v1645
      %v1647 = vpop.f32.mrb[0].mxu0
      %1648 = vmatprep.mubr.bf16.mxu0 %v803
      %1649 = vmatmul.mubr.bf16.gmra.mrb[0].mxu0 %v802
      %v1650 = vpop.f32.mrb[0].mxu0
      %v1651 = vadd.f32 %v1490, %v1650
      %v1652 = vpop.f32.mrb[0].mxu0
      %v1653 = vpop.f32.mrb[0].mxu0
      %v1654 = vadd.f32 %v1493, %v1653
      %v1655 = vpop.f32.mrb[0].mxu0
      %1656 = vmatprep.mubr.bf16.mxu0 %v809
      %1657 = vmatmul.mubr.bf16.gmra.mrb[0].mxu0 %v808
      %v1658 = vpop.f32.mrb[0].mxu0
      %v1659 = vadd.f32 %v1498, %v1658
      %v1660 = vpop.f32.mrb[0].mxu0
      %v1661 = vpop.f32.mrb[0].mxu0
      %v1662 = vadd.f32 %v1501, %v1661
      %v1663 = vpop.f32.mrb[0].mxu0
      %1664 = vmatprep.mubr.bf16.mxu0 %v815
      %1665 = vmatmul.mubr.bf16.gmra.mrb[0].mxu0 %v814
      %v1666 = vpop.f32.mrb[0].mxu0
      %v1667 = vadd.f32 %v1506, %v1666
      %v1668 = vpop.f32.mrb[0].mxu0
      %v1669 = vpop.f32.mrb[0].mxu0
      %v1670 = vadd.f32 %v1509, %v1669
      %v1671 = vpop.f32.mrb[0].mxu0
      %1672 = vmatprep.mubr.bf16.mxu0 %v821
      %1673 = vmatmul.mubr.bf16.gmra.mrb[0].mxu0 %v820
      %v1674 = vpop.f32.mrb[0].mxu0
      %v1675 = vadd.f32 %v1514, %v1674
      %v1676 = vpop.f32.mrb[0].mxu0
      %v1677 = vpop.f32.mrb[0].mxu0
      %v1678 = vadd.f32 %v1517, %v1677
      %v1679 = vpop.f32.mrb[0].mxu0
      %1680 = vmatprep.mubr.bf16.mxu0 %v827
      %1681 = vmatmul.mubr.bf16.gmra.mrb[0].mxu0 %v826
      %v1682 = vpop.f32.mrb[0].mxu0
      %v1683 = vadd.f32 %v1522, %v1682
      %v1684 = vpop.f32.mrb[0].mxu0
      %v1685 = vpop.f32.mrb[0].mxu0
      %v1686 = vadd.f32 %v1525, %v1685
      %v1687 = vpop.f32.mrb[0].mxu0
      %1688 = vmatprep.mubr.bf16.mxu0 %v833
      %1689 = vmatmul.mubr.bf16.gmra.mrb[0].mxu0 %v832
      %v1690 = vpop.f32.mrb[0].mxu0
      %v1691 = vadd.f32 %v1530, %v1690
      %v1692 = vpop.f32.mrb[0].mxu0
      %v1693 = vpop.f32.mrb[0].mxu0
      %v1694 = vadd.f32 %v1533, %v1693
      %v1695 = vpop.f32.mrb[0].mxu0
      %1696 = vmatprep.mubr.bf16.mxu0 %v839
      %1697 = vmatmul.mubr.bf16.gmra.mrb[0].mxu0 %v838
      %v1698 = vpop.f32.mrb[0].mxu0
      %v1699 = vadd.f32 %v1538, %v1698
      %v1700 = vpop.f32.mrb[0].mxu0
      %v1701 = vpop.f32.mrb[0].mxu0
      %v1702 = vadd.f32 %v1541, %v1701
      %v1703 = vpop.f32.mrb[0].mxu0
      %1704 = vmatprep.mubr.bf16.mxu0 %v845
      %1705 = vmatmul.mubr.bf16.gmra.mrb[0].mxu0 %v844
      %v1706 = vpop.f32.mrb[0].mxu0
      %v1707 = vadd.f32 %v1546, %v1706
      %v1708 = vpop.f32.mrb[0].mxu0
      %v1709 = vpop.f32.mrb[0].mxu0
      %v1710 = vadd.f32 %v1549, %v1709
      %v1711 = vpop.f32.mrb[0].mxu0
      %1712 = vdwg.mxu0
      %v1713 = vld [vmem:[%s256] sm:$0x1]
      %v1715 = vlaneseq
      %v1716 = vshrl.u32 %v1715, 7
      %v1717 = vsub.s32 0, %v1716
      %v1718 = vrot.slane %v1713, %v1717
      %v1720 = vmul.f32 %v1587, %v1718
      %v1721 = vmul.f32 %v1590, %v1718
      %v1722 = vmul.f32 %v1595, %v1718
      %v1723 = vmul.f32 %v1598, %v1718
      %v1724 = vmul.f32 %v1603, %v1718
      %v1725 = vmul.f32 %v1606, %v1718
      %v1726 = vmul.f32 %v1611, %v1718
      %v1727 = vmul.f32 %v1614, %v1718
      %v1728 = vmul.f32 %v1619, %v1718
      %v1729 = vmul.f32 %v1622, %v1718
      %v1730 = vmul.f32 %v1627, %v1718
      %v1731 = vmul.f32 %v1630, %v1718
      %v1732 = vmul.f32 %v1635, %v1718
      %v1733 = vmul.f32 %v1638, %v1718
      %v1734 = vmul.f32 %v1643, %v1718
      %v1735 = vmul.f32 %v1646, %v1718
      %v1736 = vmul.f32 %v1651, %v1718
      %v1737 = vmul.f32 %v1654, %v1718
      %v1738 = vmul.f32 %v1659, %v1718
      %v1739 = vmul.f32 %v1662, %v1718
      %v1740 = vmul.f32 %v1667, %v1718
      %v1741 = vmul.f32 %v1670, %v1718
      %v1742 = vmul.f32 %v1675, %v1718
      %v1743 = vmul.f32 %v1678, %v1718
      %v1744 = vmul.f32 %v1683, %v1718
      %v1745 = vmul.f32 %v1686, %v1718
      %v1746 = vmul.f32 %v1691, %v1718
      %v1747 = vmul.f32 %v1694, %v1718
      %v1748 = vmul.f32 %v1699, %v1718
      %v1749 = vmul.f32 %v1702, %v1718
      %v1750 = vmul.f32 %v1707, %v1718
      %v1751 = vmul.f32 %v1710, %v1718
      %v1752 = vld [vmem:[%s259] sm:$0x1]
      %v1754 = vlaneseq
      %v1755 = vshrl.u32 %v1754, 7
      %v1756 = vsub.s32 0, %v1755
      %v1757 = vrot.slane %v1752, %v1756
      %v1759 = vadd.f32 %v1720, %v1757
      %v1760 = vadd.f32 %v1721, %v1757
      %v1761 = vadd.f32 %v1722, %v1757
      %v1762 = vadd.f32 %v1723, %v1757
      %v1763 = vadd.f32 %v1724, %v1757
      %v1764 = vadd.f32 %v1725, %v1757
      %v1765 = vadd.f32 %v1726, %v1757
      %v1766 = vadd.f32 %v1727, %v1757
      %v1767 = vadd.f32 %v1728, %v1757
      %v1768 = vadd.f32 %v1729, %v1757
      %v1769 = vadd.f32 %v1730, %v1757
      %v1770 = vadd.f32 %v1731, %v1757
      %v1771 = vadd.f32 %v1732, %v1757
      %v1772 = vadd.f32 %v1733, %v1757
      %v1773 = vadd.f32 %v1734, %v1757
      %v1774 = vadd.f32 %v1735, %v1757
      %v1775 = vadd.f32 %v1736, %v1757
      %v1776 = vadd.f32 %v1737, %v1757
      %v1777 = vadd.f32 %v1738, %v1757
      %v1778 = vadd.f32 %v1739, %v1757
      %v1779 = vadd.f32 %v1740, %v1757
      %v1780 = vadd.f32 %v1741, %v1757
      %v1781 = vadd.f32 %v1742, %v1757
      %v1782 = vadd.f32 %v1743, %v1757
      %v1783 = vadd.f32 %v1744, %v1757
      %v1784 = vadd.f32 %v1745, %v1757
      %v1785 = vadd.f32 %v1746, %v1757
      %v1786 = vadd.f32 %v1747, %v1757
      %v1787 = vadd.f32 %v1748, %v1757
      %v1788 = vadd.f32 %v1749, %v1757
      %v1789 = vadd.f32 %v1750, %v1757
      %v1790 = vadd.f32 %v1751, %v1757
      %v1791 = vmax.f32 %v1759, 0.0
      %v1792 = vmax.f32 %v1760, 0.0
      %v1793 = vmax.f32 %v1761, 0.0
      %v1794 = vmax.f32 %v1762, 0.0
      %v1795 = vmax.f32 %v1763, 0.0
      %v1796 = vmax.f32 %v1764, 0.0
      %v1797 = vmax.f32 %v1765, 0.0
      %v1798 = vmax.f32 %v1766, 0.0
      %v1799 = vmax.f32 %v1767, 0.0
      %v1800 = vmax.f32 %v1768, 0.0
      %v1801 = vmax.f32 %v1769, 0.0
      %v1802 = vmax.f32 %v1770, 0.0
      %v1803 = vmax.f32 %v1771, 0.0
      %v1804 = vmax.f32 %v1772, 0.0
      %v1805 = vmax.f32 %v1773, 0.0
      %v1806 = vmax.f32 %v1774, 0.0
      %v1807 = vmax.f32 %v1775, 0.0
      %v1808 = vmax.f32 %v1776, 0.0
      %v1809 = vmax.f32 %v1777, 0.0
      %v1810 = vmax.f32 %v1778, 0.0
      %v1811 = vmax.f32 %v1779, 0.0
      %v1812 = vmax.f32 %v1780, 0.0
      %v1813 = vmax.f32 %v1781, 0.0
      %v1814 = vmax.f32 %v1782, 0.0
      %v1815 = vmax.f32 %v1783, 0.0
      %v1816 = vmax.f32 %v1784, 0.0
      %v1817 = vmax.f32 %v1785, 0.0
      %v1818 = vmax.f32 %v1786, 0.0
      %v1819 = vmax.f32 %v1787, 0.0
      %v1820 = vmax.f32 %v1788, 0.0
      %v1821 = vmax.f32 %v1789, 0.0
      %v1822 = vmax.f32 %v1790, 0.0
      %v1823 = vpack.c.bf16 %v1792, %v1791
      %v1824 = vpack.c.bf16 %v1794, %v1793
      %v1825 = vpack.c.bf16 %v1796, %v1795
      %v1826 = vpack.c.bf16 %v1798, %v1797
      %v1827 = vpack.c.bf16 %v1800, %v1799
      %v1828 = vpack.c.bf16 %v1802, %v1801
      %v1829 = vpack.c.bf16 %v1804, %v1803
      %v1830 = vpack.c.bf16 %v1806, %v1805
      %v1831 = vpack.c.bf16 %v1808, %v1807
      %v1832 = vpack.c.bf16 %v1810, %v1809
      %v1833 = vpack.c.bf16 %v1812, %v1811
      %v1834 = vpack.c.bf16 %v1814, %v1813
      %v1835 = vpack.c.bf16 %v1816, %v1815
      %v1836 = vpack.c.bf16 %v1818, %v1817
      %v1837 = vpack.c.bf16 %v1820, %v1819
      %v1838 = vpack.c.bf16 %v1822, %v1821
      %v1855 = vunpack.c.l.b16 %v1823
      %v1856 = vunpack.c.h.b16 %v1823
      %v1857 = vunpack.c.l.b16 %v1824
      %v1858 = vunpack.c.h.b16 %v1824
      %v1859 = vunpack.c.l.b16 %v1825
      %v1860 = vunpack.c.h.b16 %v1825
      %v1861 = vunpack.c.l.b16 %v1826
      %v1862 = vunpack.c.h.b16 %v1826
      %v1863 = vunpack.c.l.b16 %v1827
      %v1864 = vunpack.c.h.b16 %v1827
      %v1865 = vunpack.c.l.b16 %v1828
      %v1866 = vunpack.c.h.b16 %v1828
      %v1867 = vunpack.c.l.b16 %v1829
      %v1868 = vunpack.c.h.b16 %v1829
      %v1869 = vunpack.c.l.b16 %v1830
      %v1870 = vunpack.c.h.b16 %v1830
      %v1871 = vunpack.c.l.b16 %v1831
      %v1872 = vunpack.c.h.b16 %v1831
      %v1873 = vunpack.c.l.b16 %v1832
      %v1874 = vunpack.c.h.b16 %v1832
      %v1875 = vunpack.c.l.b16 %v1833
      %v1876 = vunpack.c.h.b16 %v1833
      %v1877 = vunpack.c.l.b16 %v1834
      %v1878 = vunpack.c.h.b16 %v1834
      %v1879 = vunpack.c.l.b16 %v1835
      %v1880 = vunpack.c.h.b16 %v1835
      %v1881 = vunpack.c.l.b16 %v1836
      %v1882 = vunpack.c.h.b16 %v1836
      %v1883 = vunpack.c.l.b16 %v1837
      %v1884 = vunpack.c.h.b16 %v1837
      %v1885 = vunpack.c.l.b16 %v1838
      %v1886 = vunpack.c.h.b16 %v1838
      %v1887 = vpack.c.b16 %v1855, %v1855
      %v1888 = vpack.c.b16 %v1856, %v1856
      %v1889 = vpack.c.b16 %v1857, %v1857
      %v1890 = vpack.c.b16 %v1858, %v1858
      %v1891 = vpack.c.b16 %v1859, %v1859
      %v1892 = vpack.c.b16 %v1860, %v1860
      %v1893 = vpack.c.b16 %v1861, %v1861
      %v1894 = vpack.c.b16 %v1862, %v1862
      %v1895 = vpack.c.b16 %v1863, %v1863
      %v1896 = vpack.c.b16 %v1864, %v1864
      %v1897 = vpack.c.b16 %v1865, %v1865
      %v1898 = vpack.c.b16 %v1866, %v1866
      %v1899 = vpack.c.b16 %v1867, %v1867
      %v1900 = vpack.c.b16 %v1868, %v1868
      %v1901 = vpack.c.b16 %v1869, %v1869
      %v1902 = vpack.c.b16 %v1870, %v1870
      %v1903 = vpack.c.b16 %v1871, %v1871
      %v1904 = vpack.c.b16 %v1872, %v1872
      %v1905 = vpack.c.b16 %v1873, %v1873
      %v1906 = vpack.c.b16 %v1874, %v1874
      %v1907 = vpack.c.b16 %v1875, %v1875
      %v1908 = vpack.c.b16 %v1876, %v1876
      %v1909 = vpack.c.b16 %v1877, %v1877
      %v1910 = vpack.c.b16 %v1878, %v1878
      %v1911 = vpack.c.b16 %v1879, %v1879
      %v1912 = vpack.c.b16 %v1880, %v1880
      %v1913 = vpack.c.b16 %v1881, %v1881
      %v1914 = vpack.c.b16 %v1882, %v1882
      %v1915 = vpack.c.b16 %v1883, %v1883
      %v1916 = vpack.c.b16 %v1884, %v1884
      %v1917 = vpack.c.b16 %v1885, %v1885
      %v1918 = vpack.c.b16 %v1886, %v1886
      %1951 = vst [vmem:[%s267] sm:$0xf] %v1887
      %1952 = vst [vmem:[%s267 + $0x4] sm:$0xf] %v1888
      %1953 = vst [vmem:[%s267 + $0x8] sm:$0xf] %v1889
      %1954 = vst [vmem:[%s267 + $0xc] sm:$0xf] %v1890
      %1955 = vst [vmem:[%s267 + $0x10] sm:$0xf] %v1891
      %1956 = vst [vmem:[%s267 + $0x14] sm:$0xf] %v1892
      %1957 = vst [vmem:[%s267 + $0x18] sm:$0xf] %v1893
      %1958 = vst [vmem:[%s267 + $0x1c] sm:$0xf] %v1894
      %1959 = vst [vmem:[%s267 + $0x20] sm:$0xf] %v1895
      %1960 = vst [vmem:[%s267 + $0x24] sm:$0xf] %v1896
      %1961 = vst [vmem:[%s267 + $0x28] sm:$0xf] %v1897
      %1962 = vst [vmem:[%s267 + $0x2c] sm:$0xf] %v1898
      %1963 = vst [vmem:[%s267 + $0x30] sm:$0xf] %v1899
      %1964 = vst [vmem:[%s267 + $0x34] sm:$0xf] %v1900
      %1965 = vst [vmem:[%s267 + $0x38] sm:$0xf] %v1901
      %1966 = vst [vmem:[%s267 + $0x3c] sm:$0xf] %v1902
      %1967 = vst [vmem:[%s267 + $0x40] sm:$0xf] %v1903
      %1968 = vst [vmem:[%s267 + $0x44] sm:$0xf] %v1904
      %1969 = vst [vmem:[%s267 + $0x48] sm:$0xf] %v1905
      %1970 = vst [vmem:[%s267 + $0x4c] sm:$0xf] %v1906
      %1971 = vst [vmem:[%s267 + $0x50] sm:$0xf] %v1907
      %1972 = vst [vmem:[%s267 + $0x54] sm:$0xf] %v1908
      %1973 = vst [vmem:[%s267 + $0x58] sm:$0xf] %v1909
      %1974 = vst [vmem:[%s267 + $0x5c] sm:$0xf] %v1910
      %1975 = vst [vmem:[%s267 + $0x60] sm:$0xf] %v1911
      %1976 = vst [vmem:[%s267 + $0x64] sm:$0xf] %v1912
      %1977 = vst [vmem:[%s267 + $0x68] sm:$0xf] %v1913
      %1978 = vst [vmem:[%s267 + $0x6c] sm:$0xf] %v1914
      %1979 = vst [vmem:[%s267 + $0x70] sm:$0xf] %v1915
      %1980 = vst [vmem:[%s267 + $0x74] sm:$0xf] %v1916
      %1981 = vst [vmem:[%s267 + $0x78] sm:$0xf] %v1917
      %1982 = vst [vmem:[%s267 + $0x7c] sm:$0xf] %v1918
      %s1983 = smul.u32 32, %s19
      %p1984 = scmp.lt.s32.totalorder %s1983, 63
      %s1985 = scalar_select %p1984, %s1983, 63
      %p1986 = scmp.lt.s32.totalorder %s20, 0
      %s1987 = scalar_select %p1986, %s20, 0
      %s1988 = sadd.s32 %s1987, %s1985
      %s1989 = smul.addr %s1988, 4
      %s1990 = scalar_lea.vmem %s4, %s1989
      // Predicated region
      $region37: #{deeplabv3plus_forward.28} parent=35 // pred_check
        %p1991 = pneg %p151
      $region38: #{deeplabv3plus_forward.28} parent=35 // pred_check_branch
        %1993 = sbr.rel (%p1991) target = $region40
      $region39: #{deeplabv3plus_forward.28} parent=35 // pred_region
        %s1994 = smul.u32 32, %s19
      $region40: #{deeplabv3plus_forward.28} parent=35 // pred_fallthru
        _
    $region36: #{deeplabv3plus_forward.28} parent=5 // pred_fallthru
      _
    %p1995 = scmp.le.s32.totalorder 2, %s10
    // Predicated region
    $region41: #{deeplabv3plus_forward.28} parent=5 // pred_check
      %p1996 = pneg %p1995
    $region42: #{deeplabv3plus_forward.28} parent=5 // pred_check_branch
      %1998 = sbr.rel (%p1996) target = $region44
    $region43: #{deeplabv3plus_forward.28} parent=5 // pred_region
      %s1999 = ssub.s32 %s10, 2
      // Predicated region
      $region45: #{deeplabv3plus_forward.28} parent=43 // pred_check
        %p2000 = pneg %p157
      $region46: #{deeplabv3plus_forward.28} parent=43 // pred_check_branch
        %2002 = sbr.rel (%p2000) target = $region48
      $region47: #{deeplabv3plus_forward.28} parent=43 // pred_region
        %s2003 = smul.u32 32, %s21
        %p2004 = scmp.lt.s32.totalorder %s2003, 63
        %s2005 = scalar_select %p2004, %s2003, 63
        %p2006 = scmp.lt.s32.totalorder %s22, 0
        %s2007 = scalar_select %p2006, %s22, 0
        %s2008 = sadd.s32 %s2007, %s2005
        %s2009 = smul.addr %s2008, 4
        %s2010 = scalar_lea.vmem %s4, %s2009
      $region48: #{deeplabv3plus_forward.28} parent=43 // pred_fallthru
        _
    $region44: #{deeplabv3plus_forward.28} parent=5 // pred_fallthru
      _
  $region6: #{deeplabv3plus_forward.28} parent=0 // loop_footer
    %s14 = sadd.s32 1, %s10
  $region7: #{deeplabv3plus_forward.28} parent=0 // loop_footer_branch
    %9 = sbr.rel target = $region3
  $region8: #{deeplabv3plus_forward.28} parent=0 // loop_exit
    _

// kernel: deeplabv3plus_forward.29
$region0: #{deeplabv3plus_forward.29}
  #allocation0 [shape = 'u32[]', space=smem, size = 0x4, offset = 0x4, fixed_abs, tag = 'smem constant byte address 0x4 - core index']
  #allocation1 [shape = 'u32[144,128]{1,0:T(1,128)}', space=vmem, size = 0x12000, scoped, tag = 'internal scratch']
  %s0 = inlined_call_operand.vmem [shape: bf16[4096,256], index: 0, kind: input, shape index: {}]
  %s1 = inlined_call_operand.vmem [shape: bf16[256,128], index: 1, kind: input, shape index: {}]
  %s2 = inlined_call_operand.vmem [shape: f32[1,128], index: 2, kind: input, shape index: {}]
  %s3 = inlined_call_operand.vmem [shape: f32[1,128], index: 3, kind: input, shape index: {}]
  %s4 = inlined_call_operand.vmem [shape: f32[4096,128], index: 4, kind: output, shape index: {}]
  %s5 = sld [smem:[#allocation0]]
  $region49: #{deeplabv3plus_forward.29} parent=0
    _
  %s7 = ssub.s32 1, %s5
  %s8 = scalar_select 0, %s7, %s5
  loop: start=0, step=1, limit=10
  $region2: #{deeplabv3plus_forward.29} parent=0 // loop_pre_header
    _
  $region3: #{deeplabv3plus_forward.29} parent=0 // loop_header
    %s10 = sphi 0, %s14
    %p11 = scmp.ge.s32.totalorder %s10, 10
    %s17 = sphi 0, %s29
    %s18 = sphi 0, %s25
    %s19 = sphi 0, %s17
    %s20 = sphi 0, %s18
    %s21 = sphi 0, %s19
    %s22 = sphi 0, %s20
    %s32 = sphi 0, %s34
    %s35 = sphi 0, %s32
    %s36 = sphi 0, %s35
    %s52 = sphi 0, %s36
    %s58 = sphi 0, %s60
    %s61 = sphi 0, %s58
    %s62 = sphi 0, %s61
    %s78 = sphi 0, %s62
    %s84 = sphi 0, %s86
    %s87 = sphi 0, %s84
    %s88 = sphi 0, %s87
    %s104 = sphi 0, %s88
    %s110 = sphi 0, %s112
    %s113 = sphi 0, %s110
    %s114 = sphi 0, %s113
    %s130 = sphi 0, %s114
    %s138 = sphi 0, %s140
    %s141 = sphi 0, %s138
    %s142 = sphi 0, %s141
    %s158 = sphi 0, %s142
  $region4: #{deeplabv3plus_forward.29} parent=0 // loop_header_branch
    %13 = sbr.rel (%p11) target = $region8
  $region5: #{deeplabv3plus_forward.29} parent=0 // loop_body
    %s15 = ssub.s32 %s10, 1
    %s16 = ssub.s32 %s10, 2
    %s23 = sadd.s32 1, %s18
    %p24 = scmp.ge.s32.totalorder %s23, 1
    %s25 = scalar_select %p24, 0, %s23
    %s26 = sadd.s32 1, %s17
    %s27 = scalar_select %p24, %s26, %s17
    %p28 = scmp.ge.s32.totalorder %s27, 8
    %s29 = scalar_select %p28, 0, %s27
    %s30 = ssub.s32 %s17, %s29
    %p31 = scmp.eq.s32.totalorder %s30, 0
    %s33 = sadd.s32 %s32, 1
    %s34 = scalar_select %p31, %s32, %s33
    %p37 = pneg %p31
    %p38 = scmp.eq.s32.totalorder %s10, 7
    %p39 = por %p37, %p38
    %p40 = scmp.ne.s32.totalorder %s32, %s35
    %p41 = scmp.eq.s32.totalorder %s10, 0
    %p42 = por %p40, %p41
    %p43 = scmp.ne.s32.totalorder %s32, %s35
    %p44 = scmp.eq.s32.totalorder %s15, 7
    %p45 = por %p43, %p44
    %p46 = scmp.ne.s32.totalorder %s35, %s36
    %p47 = scmp.eq.s32.totalorder %s15, 0
    %p48 = por %p46, %p47
    %p49 = scmp.ne.s32.totalorder %s35, %s36
    %p50 = scmp.eq.s32.totalorder %s16, 7
    %p51 = por %p49, %p50
    %p53 = scmp.ne.s32.totalorder %s36, %s52
    %p54 = scmp.eq.s32.totalorder %s16, 0
    %p55 = por %p53, %p54
    %s56 = ssub.s32 %s18, %s25
    %p57 = scmp.eq.s32.totalorder %s56, 0
    %s59 = sadd.s32 %s58, 1
    %s60 = scalar_select %p57, %s58, %s59
    %p63 = pneg %p57
    %p64 = scmp.eq.s32.totalorder %s10, 7
    %p65 = por %p63, %p64
    %p66 = scmp.ne.s32.totalorder %s58, %s61
    %p67 = scmp.eq.s32.totalorder %s10, 0
    %p68 = por %p66, %p67
    %p69 = scmp.ne.s32.totalorder %s58, %s61
    %p70 = scmp.eq.s32.totalorder %s15, 7
    %p71 = por %p69, %p70
    %p72 = scmp.ne.s32.totalorder %s61, %s62
    %p73 = scmp.eq.s32.totalorder %s15, 0
    %p74 = por %p72, %p73
    %p75 = scmp.ne.s32.totalorder %s61, %s62
    %p76 = scmp.eq.s32.totalorder %s16, 7
    %p77 = por %p75, %p76
    %p79 = scmp.ne.s32.totalorder %s62, %s78
    %p80 = scmp.eq.s32.totalorder %s16, 0
    %p81 = por %p79, %p80
    %s82 = ssub.s32 %s18, %s25
    %p83 = scmp.eq.s32.totalorder %s82, 0
    %s85 = sadd.s32 %s84, 1
    %s86 = scalar_select %p83, %s84, %s85
    %p89 = pneg %p83
    %p90 = scmp.eq.s32.totalorder %s10, 7
    %p91 = por %p89, %p90
    %p92 = scmp.ne.s32.totalorder %s84, %s87
    %p93 = scmp.eq.s32.totalorder %s10, 0
    %p94 = por %p92, %p93
    %p95 = scmp.ne.s32.totalorder %s84, %s87
    %p96 = scmp.eq.s32.totalorder %s15, 7
    %p97 = por %p95, %p96
    %p98 = scmp.ne.s32.totalorder %s87, %s88
    %p99 = scmp.eq.s32.totalorder %s15, 0
    %p100 = por %p98, %p99
    %p101 = scmp.ne.s32.totalorder %s87, %s88
    %p102 = scmp.eq.s32.totalorder %s16, 7
    %p103 = por %p101, %p102
    %p105 = scmp.ne.s32.totalorder %s88, %s104
    %p106 = scmp.eq.s32.totalorder %s16, 0
    %p107 = por %p105, %p106
    %s108 = ssub.s32 %s18, %s25
    %p109 = scmp.eq.s32.totalorder %s108, 0
    %s111 = sadd.s32 %s110, 1
    %s112 = scalar_select %p109, %s110, %s111
    %p115 = pneg %p109
    %p116 = scmp.eq.s32.totalorder %s10, 7
    %p117 = por %p115, %p116
    %p118 = scmp.ne.s32.totalorder %s110, %s113
    %p119 = scmp.eq.s32.totalorder %s10, 0
    %p120 = por %p118, %p119
    %p121 = scmp.ne.s32.totalorder %s110, %s113
    %p122 = scmp.eq.s32.totalorder %s15, 7
    %p123 = por %p121, %p122
    %p124 = scmp.ne.s32.totalorder %s113, %s114
    %p125 = scmp.eq.s32.totalorder %s15, 0
    %p126 = por %p124, %p125
    %p127 = scmp.ne.s32.totalorder %s113, %s114
    %p128 = scmp.eq.s32.totalorder %s16, 7
    %p129 = por %p127, %p128
    %p131 = scmp.ne.s32.totalorder %s114, %s130
    %p132 = scmp.eq.s32.totalorder %s16, 0
    %p133 = por %p131, %p132
    %s134 = ssub.s32 %s17, %s29
    %s135 = ssub.s32 %s18, %s25
    %s136 = sor.u32 %s134, %s135
    %p137 = scmp.eq.s32.totalorder %s136, 0
    %s139 = sadd.s32 %s138, 1
    %s140 = scalar_select %p137, %s138, %s139
    %p143 = pneg %p137
    %p144 = scmp.eq.s32.totalorder %s10, 7
    %p145 = por %p143, %p144
    %p146 = scmp.ne.s32.totalorder %s138, %s141
    %p147 = scmp.eq.s32.totalorder %s10, 0
    %p148 = por %p146, %p147
    %p149 = scmp.ne.s32.totalorder %s138, %s141
    %p150 = scmp.eq.s32.totalorder %s15, 7
    %p151 = por %p149, %p150
    %p152 = scmp.ne.s32.totalorder %s141, %s142
    %p153 = scmp.eq.s32.totalorder %s15, 0
    %p154 = por %p152, %p153
    %p155 = scmp.ne.s32.totalorder %s141, %s142
    %p156 = scmp.eq.s32.totalorder %s16, 7
    %p157 = por %p155, %p156
    %p159 = scmp.ne.s32.totalorder %s142, %s158
    %p160 = scmp.eq.s32.totalorder %s16, 0
    %p161 = por %p159, %p160
    %p162 = scmp.le.s32.totalorder 1, %s10
    %p163 = scmp.lt.s32.totalorder %s10, 9
    %p164 = pnand %p162, %p163
    %p165 = pneg %p164
    // Predicated region
    $region9: #{deeplabv3plus_forward.29} parent=5 // pred_check
      _
    $region10: #{deeplabv3plus_forward.29} parent=5 // pred_check_branch
      %167 = sbr.rel (%p164) target = $region12
    $region11: #{deeplabv3plus_forward.29} parent=5 // pred_region
      %s168 = ssub.s32 %s10, 1
      // Predicated region
      $region13: #{deeplabv3plus_forward.29} parent=11 // pred_check
        %p169 = pneg %p74
      $region14: #{deeplabv3plus_forward.29} parent=11 // pred_check_branch
        %171 = sbr.rel (%p169) target = $region16
      $region15: #{deeplabv3plus_forward.29} parent=11 // pred_region
        %p172 = scmp.lt.s32.totalorder %s20, 0
        %s173 = scalar_select %p172, %s20, 0
        %s174 = smul.addr %s173, 4
        %s175 = scalar_lea.vmem %s1, %s174
      $region16: #{deeplabv3plus_forward.29} parent=11 // pred_fallthru
        _
      // Predicated region
      $region17: #{deeplabv3plus_forward.29} parent=11 // pred_check
        %p176 = pneg %p100
      $region18: #{deeplabv3plus_forward.29} parent=11 // pred_check_branch
        %178 = sbr.rel (%p176) target = $region20
      $region19: #{deeplabv3plus_forward.29} parent=11 // pred_region
        %p179 = scmp.lt.s32.totalorder %s20, 0
        %s180 = scalar_select %p179, %s20, 0
        %s181 = scalar_lea.vmem %s2, %s180
      $region20: #{deeplabv3plus_forward.29} parent=11 // pred_fallthru
        _
      // Predicated region
      $region21: #{deeplabv3plus_forward.29} parent=11 // pred_check
        %p182 = pneg %p126
      $region22: #{deeplabv3plus_forward.29} parent=11 // pred_check_branch
        %184 = sbr.rel (%p182) target = $region24
      $region23: #{deeplabv3plus_forward.29} parent=11 // pred_region
        %p185 = scmp.lt.s32.totalorder %s20, 0
        %s186 = scalar_select %p185, %s20, 0
        %s187 = scalar_lea.vmem %s3, %s186
      $region24: #{deeplabv3plus_forward.29} parent=11 // pred_fallthru
        _
    $region12: #{deeplabv3plus_forward.29} parent=5 // pred_fallthru
      _
    %p188 = scmp.lt.s32.totalorder %s10, 8
    // Predicated region
    $region25: #{deeplabv3plus_forward.29} parent=5 // pred_check
      %p189 = pneg %p188
    $region26: #{deeplabv3plus_forward.29} parent=5 // pred_check_branch
      %191 = sbr.rel (%p189) target = $region28
    $region27: #{deeplabv3plus_forward.29} parent=5 // pred_region
      // Predicated region
      $region29: #{deeplabv3plus_forward.29} parent=27 // pred_check
        %p192 = pneg %p42
      $region30: #{deeplabv3plus_forward.29} parent=27 // pred_check_branch
        %194 = sbr.rel (%p192) target = $region32
      $region31: #{deeplabv3plus_forward.29} parent=27 // pred_region
        %s195 = smul.u32 64, %s17
        %p196 = scmp.lt.s32.totalorder %s195, 511
        %s197 = scalar_select %p196, %s195, 511
        %s198 = smul.addr %s197, 2
        %s199 = smul.addr %s198, 4
        %s200 = scalar_lea.vmem %s0, %s199
        %s201 = smul.u32 64, %s17
      $region32: #{deeplabv3plus_forward.29} parent=27 // pred_fallthru
        _
    $region28: #{deeplabv3plus_forward.29} parent=5 // pred_fallthru
      _
    %p202 = scmp.le.s32.totalorder 1, %s10
    %p203 = scmp.lt.s32.totalorder %s10, 9
    %p204 = pnand %p202, %p203
    %p205 = pneg %p204
    // Predicated region
    $region33: #{deeplabv3plus_forward.29} parent=5 // pred_check
      _
    $region34: #{deeplabv3plus_forward.29} parent=5 // pred_check_branch
      %207 = sbr.rel (%p204) target = $region36
    $region35: #{deeplabv3plus_forward.29} parent=5 // pred_region
      %s208 = ssub.s32 %s10, 1
      %s209 = smul.u32 64, %s19
      %p210 = scmp.lt.s32.totalorder %s209, 511
      %s211 = scalar_select %p210, %s209, 511
      %s212 = smul.addr %s211, 2
      %s213 = smul.addr %s212, 4
      %s214 = scalar_lea.vmem %s0, %s213
      %p215 = pneg %p48
      %p216 = pneg %p45
      %p217 = scmp.lt.s32.totalorder %s20, 0
      %s218 = scalar_select %p217, %s20, 0
      %s219 = smul.addr %s218, 4
      %s220 = scalar_lea.vmem %s1, %s219
      %p221 = pneg %p74
      %p222 = pneg %p71
      %p223 = scmp.lt.s32.totalorder %s20, 0
      %s224 = scalar_select %p223, %s20, 0
      %s225 = scalar_lea.vmem %s2, %s224
      %p226 = pneg %p100
      %p227 = pneg %p97
      %p228 = scmp.lt.s32.totalorder %s20, 0
      %s229 = scalar_select %p228, %s20, 0
      %s230 = scalar_lea.vmem %s3, %s229
      %p231 = pneg %p126
      %p232 = pneg %p123
      %p233 = pneg %p154
      %p234 = pneg %p151
      %s235 = smul.u32 64, %s19
      %p236 = scmp.lt.s32.totalorder %s235, 511
      %s237 = scalar_select %p236, %s235, 511
      %p238 = scmp.lt.s32.totalorder %s20, 0
      %s239 = scalar_select %p238, %s20, 0
      %s240 = sadd.s32 %s239, %s237
      %s241 = smul.addr %s240, 8
      %s242 = scalar_lea.vmem %s4, %s241
      %s243 = smul.u32 64, %s19
      %p244 = scmp.lt.s32.totalorder %s243, 511
      %s245 = scalar_select %p244, %s243, 511
      %s246 = smul.addr %s245, 2
      %s247 = smul.addr %s246, 4
      %s248 = scalar_lea.vmem %s0, %s247
      %s249 = smul.u32 64, %s19
      %p250 = scmp.lt.s32.totalorder %s20, 0
      %s251 = scalar_select %p250, %s20, 0
      %s252 = smul.addr %s251, 4
      %s253 = scalar_lea.vmem %s1, %s252
      %p254 = scmp.lt.s32.totalorder %s20, 0
      %s255 = scalar_select %p254, %s20, 0
      %s256 = scalar_lea.vmem %s2, %s255
      %p257 = scmp.lt.s32.totalorder %s20, 0
      %s258 = scalar_select %p257, %s20, 0
      %s259 = scalar_lea.vmem %s3, %s258
      %s260 = smul.u32 64, %s19
      %p261 = scmp.lt.s32.totalorder %s260, 511
      %s262 = scalar_select %p261, %s260, 511
      %p263 = scmp.lt.s32.totalorder %s20, 0
      %s264 = scalar_select %p263, %s20, 0
      %s265 = sadd.s32 %s264, %s262
      %s266 = smul.addr %s265, 8
      %s267 = scalar_lea.vmem %s4, %s266
      %s268 = smul.u32 64, %s19
      %v270 = vld [vmem:[%s248] sm:$0xff]
      %v271 = vld [vmem:[%s248 + $0x8] sm:$0xff]
      %v272 = vld [vmem:[%s248 + $0x10] sm:$0xff]
      %v273 = vld [vmem:[%s248 + $0x18] sm:$0xff]
      %v274 = vld [vmem:[%s248 + $0x20] sm:$0xff]
      %v275 = vld [vmem:[%s248 + $0x28] sm:$0xff]
      %v276 = vld [vmem:[%s248 + $0x30] sm:$0xff]
      %v277 = vld [vmem:[%s248 + $0x38] sm:$0xff]
      %v278 = vld [vmem:[%s248 + $0x40] sm:$0xff]
      %v279 = vld [vmem:[%s248 + $0x48] sm:$0xff]
      %v280 = vld [vmem:[%s248 + $0x50] sm:$0xff]
      %v281 = vld [vmem:[%s248 + $0x58] sm:$0xff]
      %v282 = vld [vmem:[%s248 + $0x60] sm:$0xff]
      %v283 = vld [vmem:[%s248 + $0x68] sm:$0xff]
      %v284 = vld [vmem:[%s248 + $0x70] sm:$0xff]
      %v285 = vld [vmem:[%s248 + $0x78] sm:$0xff]
      %v286 = vld [vmem:[%s248 + $0x80] sm:$0xff]
      %v287 = vld [vmem:[%s248 + $0x88] sm:$0xff]
      %v288 = vld [vmem:[%s248 + $0x90] sm:$0xff]
      %v289 = vld [vmem:[%s248 + $0x98] sm:$0xff]
      %v290 = vld [vmem:[%s248 + $0xa0] sm:$0xff]
      %v291 = vld [vmem:[%s248 + $0xa8] sm:$0xff]
      %v292 = vld [vmem:[%s248 + $0xb0] sm:$0xff]
      %v293 = vld [vmem:[%s248 + $0xb8] sm:$0xff]
      %v294 = vld [vmem:[%s248 + $0xc0] sm:$0xff]
      %v295 = vld [vmem:[%s248 + $0xc8] sm:$0xff]
      %v296 = vld [vmem:[%s248 + $0xd0] sm:$0xff]
      %v297 = vld [vmem:[%s248 + $0xd8] sm:$0xff]
      %v298 = vld [vmem:[%s248 + $0xe0] sm:$0xff]
      %v299 = vld [vmem:[%s248 + $0xe8] sm:$0xff]
      %v300 = vld [vmem:[%s248 + $0xf0] sm:$0xff]
      %v301 = vld [vmem:[%s248 + $0xf8] sm:$0xff]
      %v302 = vld [vmem:[%s248 + $0x100] sm:$0xff]
      %v303 = vld [vmem:[%s248 + $0x108] sm:$0xff]
      %v304 = vld [vmem:[%s248 + $0x110] sm:$0xff]
      %v305 = vld [vmem:[%s248 + $0x118] sm:$0xff]
      %v306 = vld [vmem:[%s248 + $0x120] sm:$0xff]
      %v307 = vld [vmem:[%s248 + $0x128] sm:$0xff]
      %v308 = vld [vmem:[%s248 + $0x130] sm:$0xff]
      %v309 = vld [vmem:[%s248 + $0x138] sm:$0xff]
      %v310 = vld [vmem:[%s248 + $0x140] sm:$0xff]
      %v311 = vld [vmem:[%s248 + $0x148] sm:$0xff]
      %v312 = vld [vmem:[%s248 + $0x150] sm:$0xff]
      %v313 = vld [vmem:[%s248 + $0x158] sm:$0xff]
      %v314 = vld [vmem:[%s248 + $0x160] sm:$0xff]
      %v315 = vld [vmem:[%s248 + $0x168] sm:$0xff]
      %v316 = vld [vmem:[%s248 + $0x170] sm:$0xff]
      %v317 = vld [vmem:[%s248 + $0x178] sm:$0xff]
      %v318 = vld [vmem:[%s248 + $0x180] sm:$0xff]
      %v319 = vld [vmem:[%s248 + $0x188] sm:$0xff]
      %v320 = vld [vmem:[%s248 + $0x190] sm:$0xff]
      %v321 = vld [vmem:[%s248 + $0x198] sm:$0xff]
      %v322 = vld [vmem:[%s248 + $0x1a0] sm:$0xff]
      %v323 = vld [vmem:[%s248 + $0x1a8] sm:$0xff]
      %v324 = vld [vmem:[%s248 + $0x1b0] sm:$0xff]
      %v325 = vld [vmem:[%s248 + $0x1b8] sm:$0xff]
      %v326 = vld [vmem:[%s248 + $0x1c0] sm:$0xff]
      %v327 = vld [vmem:[%s248 + $0x1c8] sm:$0xff]
      %v328 = vld [vmem:[%s248 + $0x1d0] sm:$0xff]
      %v329 = vld [vmem:[%s248 + $0x1d8] sm:$0xff]
      %v330 = vld [vmem:[%s248 + $0x1e0] sm:$0xff]
      %v331 = vld [vmem:[%s248 + $0x1e8] sm:$0xff]
      %v332 = vld [vmem:[%s248 + $0x1f0] sm:$0xff]
      %v333 = vld [vmem:[%s248 + $0x1f8] sm:$0xff]
      %v334 = vld [vmem:[%s253] sm:$0xf]
      %v335 = vld [vmem:[%s253 + $0x4] sm:$0xf]
      %v336 = vld [vmem:[%s253 + $0x8] sm:$0xf]
      %v337 = vld [vmem:[%s253 + $0xc] sm:$0xf]
      %v338 = vld [vmem:[%s253 + $0x10] sm:$0xf]
      %v339 = vld [vmem:[%s253 + $0x14] sm:$0xf]
      %v340 = vld [vmem:[%s253 + $0x18] sm:$0xf]
      %v341 = vld [vmem:[%s253 + $0x1c] sm:$0xf]
      %v342 = vld [vmem:[%s253 + $0x20] sm:$0xf]
      %v343 = vld [vmem:[%s253 + $0x24] sm:$0xf]
      %v344 = vld [vmem:[%s253 + $0x28] sm:$0xf]
      %v345 = vld [vmem:[%s253 + $0x2c] sm:$0xf]
      %v346 = vld [vmem:[%s253 + $0x30] sm:$0xf]
      %v347 = vld [vmem:[%s253 + $0x34] sm:$0xf]
      %v348 = vld [vmem:[%s253 + $0x38] sm:$0xf]
      %v349 = vld [vmem:[%s253 + $0x3c] sm:$0xf]
      %v350 = vld [vmem:[%s253 + $0x40] sm:$0xf]
      %v351 = vld [vmem:[%s253 + $0x44] sm:$0xf]
      %v352 = vld [vmem:[%s253 + $0x48] sm:$0xf]
      %v353 = vld [vmem:[%s253 + $0x4c] sm:$0xf]
      %v354 = vld [vmem:[%s253 + $0x50] sm:$0xf]
      %v355 = vld [vmem:[%s253 + $0x54] sm:$0xf]
      %v356 = vld [vmem:[%s253 + $0x58] sm:$0xf]
      %v357 = vld [vmem:[%s253 + $0x5c] sm:$0xf]
      %v358 = vld [vmem:[%s253 + $0x60] sm:$0xf]
      %v359 = vld [vmem:[%s253 + $0x64] sm:$0xf]
      %v360 = vld [vmem:[%s253 + $0x68] sm:$0xf]
      %v361 = vld [vmem:[%s253 + $0x6c] sm:$0xf]
      %v362 = vld [vmem:[%s253 + $0x70] sm:$0xf]
      %v363 = vld [vmem:[%s253 + $0x74] sm:$0xf]
      %v364 = vld [vmem:[%s253 + $0x78] sm:$0xf]
      %v365 = vld [vmem:[%s253 + $0x7c] sm:$0xf]
      %v430 = vunpack.c.l.b16 %v270
      %v431 = vunpack.c.h.b16 %v270
      %v432 = vunpack.c.l.b16 %v271
      %v433 = vunpack.c.h.b16 %v271
      %v434 = vunpack.c.l.b16 %v272
      %v435 = vunpack.c.h.b16 %v272
      %v436 = vunpack.c.l.b16 %v273
      %v437 = vunpack.c.h.b16 %v273
      %v438 = vunpack.c.l.b16 %v274
      %v439 = vunpack.c.h.b16 %v274
      %v440 = vunpack.c.l.b16 %v275
      %v441 = vunpack.c.h.b16 %v275
      %v442 = vunpack.c.l.b16 %v276
      %v443 = vunpack.c.h.b16 %v276
      %v444 = vunpack.c.l.b16 %v277
      %v445 = vunpack.c.h.b16 %v277
      %v446 = vunpack.c.l.b16 %v278
      %v447 = vunpack.c.h.b16 %v278
      %v448 = vunpack.c.l.b16 %v279
      %v449 = vunpack.c.h.b16 %v279
      %v450 = vunpack.c.l.b16 %v280
      %v451 = vunpack.c.h.b16 %v280
      %v452 = vunpack.c.l.b16 %v281
      %v453 = vunpack.c.h.b16 %v281
      %v454 = vunpack.c.l.b16 %v282
      %v455 = vunpack.c.h.b16 %v282
      %v456 = vunpack.c.l.b16 %v283
      %v457 = vunpack.c.h.b16 %v283
      %v458 = vunpack.c.l.b16 %v284
      %v459 = vunpack.c.h.b16 %v284
      %v460 = vunpack.c.l.b16 %v285
      %v461 = vunpack.c.h.b16 %v285
      %v462 = vunpack.c.l.b16 %v286
      %v463 = vunpack.c.h.b16 %v286
      %v464 = vunpack.c.l.b16 %v287
      %v465 = vunpack.c.h.b16 %v287
      %v466 = vunpack.c.l.b16 %v288
      %v467 = vunpack.c.h.b16 %v288
      %v468 = vunpack.c.l.b16 %v289
      %v469 = vunpack.c.h.b16 %v289
      %v470 = vunpack.c.l.b16 %v290
      %v471 = vunpack.c.h.b16 %v290
      %v472 = vunpack.c.l.b16 %v291
      %v473 = vunpack.c.h.b16 %v291
      %v474 = vunpack.c.l.b16 %v292
      %v475 = vunpack.c.h.b16 %v292
      %v476 = vunpack.c.l.b16 %v293
      %v477 = vunpack.c.h.b16 %v293
      %v478 = vunpack.c.l.b16 %v294
      %v479 = vunpack.c.h.b16 %v294
      %v480 = vunpack.c.l.b16 %v295
      %v481 = vunpack.c.h.b16 %v295
      %v482 = vunpack.c.l.b16 %v296
      %v483 = vunpack.c.h.b16 %v296
      %v484 = vunpack.c.l.b16 %v297
      %v485 = vunpack.c.h.b16 %v297
      %v486 = vunpack.c.l.b16 %v298
      %v487 = vunpack.c.h.b16 %v298
      %v488 = vunpack.c.l.b16 %v299
      %v489 = vunpack.c.h.b16 %v299
      %v490 = vunpack.c.l.b16 %v300
      %v491 = vunpack.c.h.b16 %v300
      %v492 = vunpack.c.l.b16 %v301
      %v493 = vunpack.c.h.b16 %v301
      %v494 = vunpack.c.l.b16 %v302
      %v495 = vunpack.c.h.b16 %v302
      %v496 = vunpack.c.l.b16 %v303
      %v497 = vunpack.c.h.b16 %v303
      %v498 = vunpack.c.l.b16 %v304
      %v499 = vunpack.c.h.b16 %v304
      %v500 = vunpack.c.l.b16 %v305
      %v501 = vunpack.c.h.b16 %v305
      %v502 = vunpack.c.l.b16 %v306
      %v503 = vunpack.c.h.b16 %v306
      %v504 = vunpack.c.l.b16 %v307
      %v505 = vunpack.c.h.b16 %v307
      %v506 = vunpack.c.l.b16 %v308
      %v507 = vunpack.c.h.b16 %v308
      %v508 = vunpack.c.l.b16 %v309
      %v509 = vunpack.c.h.b16 %v309
      %v510 = vunpack.c.l.b16 %v310
      %v511 = vunpack.c.h.b16 %v310
      %v512 = vunpack.c.l.b16 %v311
      %v513 = vunpack.c.h.b16 %v311
      %v514 = vunpack.c.l.b16 %v312
      %v515 = vunpack.c.h.b16 %v312
      %v516 = vunpack.c.l.b16 %v313
      %v517 = vunpack.c.h.b16 %v313
      %v518 = vunpack.c.l.b16 %v314
      %v519 = vunpack.c.h.b16 %v314
      %v520 = vunpack.c.l.b16 %v315
      %v521 = vunpack.c.h.b16 %v315
      %v522 = vunpack.c.l.b16 %v316
      %v523 = vunpack.c.h.b16 %v316
      %v524 = vunpack.c.l.b16 %v317
      %v525 = vunpack.c.h.b16 %v317
      %v526 = vunpack.c.l.b16 %v318
      %v527 = vunpack.c.h.b16 %v318
      %v528 = vunpack.c.l.b16 %v319
      %v529 = vunpack.c.h.b16 %v319
      %v530 = vunpack.c.l.b16 %v320
      %v531 = vunpack.c.h.b16 %v320
      %v532 = vunpack.c.l.b16 %v321
      %v533 = vunpack.c.h.b16 %v321
      %v534 = vunpack.c.l.b16 %v322
      %v535 = vunpack.c.h.b16 %v322
      %v536 = vunpack.c.l.b16 %v323
      %v537 = vunpack.c.h.b16 %v323
      %v538 = vunpack.c.l.b16 %v324
      %v539 = vunpack.c.h.b16 %v324
      %v540 = vunpack.c.l.b16 %v325
      %v541 = vunpack.c.h.b16 %v325
      %v542 = vunpack.c.l.b16 %v326
      %v543 = vunpack.c.h.b16 %v326
      %v544 = vunpack.c.l.b16 %v327
      %v545 = vunpack.c.h.b16 %v327
      %v546 = vunpack.c.l.b16 %v328
      %v547 = vunpack.c.h.b16 %v328
      %v548 = vunpack.c.l.b16 %v329
      %v549 = vunpack.c.h.b16 %v329
      %v550 = vunpack.c.l.b16 %v330
      %v551 = vunpack.c.h.b16 %v330
      %v552 = vunpack.c.l.b16 %v331
      %v553 = vunpack.c.h.b16 %v331
      %v554 = vunpack.c.l.b16 %v332
      %v555 = vunpack.c.h.b16 %v332
      %v556 = vunpack.c.l.b16 %v333
      %v557 = vunpack.c.h.b16 %v333
      %v558 = vpack.c.b16 %v432, %v430
      %v559 = vpack.c.b16 %v433, %v431
      %v560 = vpack.c.b16 %v436, %v434
      %v561 = vpack.c.b16 %v437, %v435
      %v562 = vpack.c.b16 %v440, %v438
      %v563 = vpack.c.b16 %v441, %v439
      %v564 = vpack.c.b16 %v444, %v442
      %v565 = vpack.c.b16 %v445, %v443
      %v566 = vpack.c.b16 %v448, %v446
      %v567 = vpack.c.b16 %v449, %v447
      %v568 = vpack.c.b16 %v452, %v450
      %v569 = vpack.c.b16 %v453, %v451
      %v570 = vpack.c.b16 %v456, %v454
      %v571 = vpack.c.b16 %v457, %v455
      %v572 = vpack.c.b16 %v460, %v458
      %v573 = vpack.c.b16 %v461, %v459
      %v574 = vpack.c.b16 %v464, %v462
      %v575 = vpack.c.b16 %v465, %v463
      %v576 = vpack.c.b16 %v468, %v466
      %v577 = vpack.c.b16 %v469, %v467
      %v578 = vpack.c.b16 %v472, %v470
      %v579 = vpack.c.b16 %v473, %v471
      %v580 = vpack.c.b16 %v476, %v474
      %v581 = vpack.c.b16 %v477, %v475
      %v582 = vpack.c.b16 %v480, %v478
      %v583 = vpack.c.b16 %v481, %v479
      %v584 = vpack.c.b16 %v484, %v482
      %v585 = vpack.c.b16 %v485, %v483
      %v586 = vpack.c.b16 %v488, %v486
      %v587 = vpack.c.b16 %v489, %v487
      %v588 = vpack.c.b16 %v492, %v490
      %v589 = vpack.c.b16 %v493, %v491
      %v590 = vpack.c.b16 %v496, %v494
      %v591 = vpack.c.b16 %v497, %v495
      %v592 = vpack.c.b16 %v500, %v498
      %v593 = vpack.c.b16 %v501, %v499
      %v594 = vpack.c.b16 %v504, %v502
      %v595 = vpack.c.b16 %v505, %v503
      %v596 = vpack.c.b16 %v508, %v506
      %v597 = vpack.c.b16 %v509, %v507
      %v598 = vpack.c.b16 %v512, %v510
      %v599 = vpack.c.b16 %v513, %v511
      %v600 = vpack.c.b16 %v516, %v514
      %v601 = vpack.c.b16 %v517, %v515
      %v602 = vpack.c.b16 %v520, %v518
      %v603 = vpack.c.b16 %v521, %v519
      %v604 = vpack.c.b16 %v524, %v522
      %v605 = vpack.c.b16 %v525, %v523
      %v606 = vpack.c.b16 %v528, %v526
      %v607 = vpack.c.b16 %v529, %v527
      %v608 = vpack.c.b16 %v532, %v530
      %v609 = vpack.c.b16 %v533, %v531
      %v610 = vpack.c.b16 %v536, %v534
      %v611 = vpack.c.b16 %v537, %v535
      %v612 = vpack.c.b16 %v540, %v538
      %v613 = vpack.c.b16 %v541, %v539
      %v614 = vpack.c.b16 %v544, %v542
      %v615 = vpack.c.b16 %v545, %v543
      %v616 = vpack.c.b16 %v548, %v546
      %v617 = vpack.c.b16 %v549, %v547
      %v618 = vpack.c.b16 %v552, %v550
      %v619 = vpack.c.b16 %v553, %v551
      %v620 = vpack.c.b16 %v556, %v554
      %v621 = vpack.c.b16 %v557, %v555
      %v718 = vunpack.c.l.b16 %v334
      %v719 = vunpack.c.l.b16 %v335
      %v720 = vunpack.c.l.b16 %v336
      %v721 = vunpack.c.l.b16 %v337
      %v722 = vunpack.c.l.b16 %v338
      %v723 = vunpack.c.l.b16 %v339
      %v724 = vunpack.c.l.b16 %v340
      %v725 = vunpack.c.l.b16 %v341
      %v726 = vunpack.c.l.b16 %v342
      %v727 = vunpack.c.l.b16 %v343
      %v728 = vunpack.c.l.b16 %v344
      %v729 = vunpack.c.l.b16 %v345
      %v730 = vunpack.c.l.b16 %v346
      %v731 = vunpack.c.l.b16 %v347
      %v732 = vunpack.c.l.b16 %v348
      %v733 = vunpack.c.l.b16 %v349
      %v734 = vunpack.c.l.b16 %v350
      %v735 = vunpack.c.l.b16 %v351
      %v736 = vunpack.c.l.b16 %v352
      %v737 = vunpack.c.l.b16 %v353
      %v738 = vunpack.c.l.b16 %v354
      %v739 = vunpack.c.l.b16 %v355
      %v740 = vunpack.c.l.b16 %v356
      %v741 = vunpack.c.l.b16 %v357
      %v742 = vunpack.c.l.b16 %v358
      %v743 = vunpack.c.l.b16 %v359
      %v744 = vunpack.c.l.b16 %v360
      %v745 = vunpack.c.l.b16 %v361
      %v746 = vunpack.c.l.b16 %v362
      %v747 = vunpack.c.l.b16 %v363
      %v748 = vunpack.c.l.b16 %v364
      %v749 = vunpack.c.l.b16 %v365
      %v750 = vpack.c.b16 %v719, %v718
      %v751 = vpack.c.b16 %v721, %v720
      %v752 = vpack.c.b16 %v723, %v722
      %v753 = vpack.c.b16 %v725, %v724
      %v754 = vpack.c.b16 %v727, %v726
      %v755 = vpack.c.b16 %v729, %v728
      %v756 = vpack.c.b16 %v731, %v730
      %v757 = vpack.c.b16 %v733, %v732
      %v758 = vpack.c.b16 %v735, %v734
      %v759 = vpack.c.b16 %v737, %v736
      %v760 = vpack.c.b16 %v739, %v738
      %v761 = vpack.c.b16 %v741, %v740
      %v762 = vpack.c.b16 %v743, %v742
      %v763 = vpack.c.b16 %v745, %v744
      %v764 = vpack.c.b16 %v747, %v746
      %v765 = vpack.c.b16 %v749, %v748
      %782 = vmatprep.subr.bf16.mxu0 0
      %783 = vmatpush1.bf16.msra.mxu0 %v750
      %784 = vmatprep.subr.bf16.mxu0 0
      %785 = vmatpush1.bf16.msra.mxu0 %v751
      %786 = vmatprep.subr.bf16.mxu0 0
      %787 = vmatpush1.bf16.msra.mxu0 %v752
      %788 = vmatprep.subr.bf16.mxu0 0
      %789 = vmatpush1.bf16.msra.mxu0 %v753
      %790 = vmatprep.subr.bf16.mxu0 0
      %791 = vmatpush1.bf16.msra.mxu0 %v754
      %792 = vmatprep.subr.bf16.mxu0 0
      %793 = vmatpush1.bf16.msra.mxu0 %v755
      %794 = vmatprep.subr.bf16.mxu0 0
      %795 = vmatpush1.bf16.msra.mxu0 %v756
      %796 = vmatprep.subr.bf16.mxu0 0
      %797 = vmatpush1.bf16.msra.mxu0 %v757
      %798 = vmatprep.subr.bf16.mxu0 0
      %799 = vmatpush1.bf16.msra.mxu0 %v758
      %800 = vmatprep.subr.bf16.mxu0 0
      %801 = vmatpush1.bf16.msra.mxu0 %v759
      %802 = vmatprep.subr.bf16.mxu0 0
      %803 = vmatpush1.bf16.msra.mxu0 %v760
      %804 = vmatprep.subr.bf16.mxu0 0
      %805 = vmatpush1.bf16.msra.mxu0 %v761
      %806 = vmatprep.subr.bf16.mxu0 0
      %807 = vmatpush1.bf16.msra.mxu0 %v762
      %808 = vmatprep.subr.bf16.mxu0 0
      %809 = vmatpush1.bf16.msra.mxu0 %v763
      %810 = vmatprep.subr.bf16.mxu0 0
      %811 = vmatpush1.bf16.msra.mxu0 %v764
      %812 = vmatprep.subr.bf16.mxu0 0
      %813 = vmatpush1.bf16.msra.mxu0 %v765
      %814 = vmatprep.mubr.bf16.mxu0 %v559
      %815 = vmatmul.mubr.bf16.gmra.mrb[0].mxu0 %v558
      %v816 = vpop.f32.mrb[0].mxu0
      %v817 = vadd.f32 0.0, %v816
      %v818 = vpop.f32.mrb[0].mxu0
      %v819 = vpop.f32.mrb[0].mxu0
      %v820 = vadd.f32 0.0, %v819
      %v821 = vpop.f32.mrb[0].mxu0
      %822 = vmatprep.mubr.bf16.mxu0 %v561
      %823 = vmatmul.mubr.bf16.gmra.mrb[0].mxu0 %v560
      %v824 = vpop.f32.mrb[0].mxu0
      %v825 = vadd.f32 0.0, %v824
      %v826 = vpop.f32.mrb[0].mxu0
      %v827 = vpop.f32.mrb[0].mxu0
      %v828 = vadd.f32 0.0, %v827
      %v829 = vpop.f32.mrb[0].mxu0
      %830 = vmatprep.mubr.bf16.mxu0 %v563
      %831 = vmatmul.mubr.bf16.gmra.mrb[0].mxu0 %v562
      %v832 = vpop.f32.mrb[0].mxu0
      %v833 = vadd.f32 0.0, %v832
      %v834 = vpop.f32.mrb[0].mxu0
      %v835 = vpop.f32.mrb[0].mxu0
      %v836 = vadd.f32 0.0, %v835
      %v837 = vpop.f32.mrb[0].mxu0
      %838 = vmatprep.mubr.bf16.mxu0 %v565
      %839 = vmatmul.mubr.bf16.gmra.mrb[0].mxu0 %v564
      %v840 = vpop.f32.mrb[0].mxu0
      %v841 = vadd.f32 0.0, %v840
      %v842 = vpop.f32.mrb[0].mxu0
      %v843 = vpop.f32.mrb[0].mxu0
      %v844 = vadd.f32 0.0, %v843
      %v845 = vpop.f32.mrb[0].mxu0
      %846 = vmatprep.mubr.bf16.mxu0 %v567
      %847 = vmatmul.mubr.bf16.gmra.mrb[0].mxu0 %v566
      %v848 = vpop.f32.mrb[0].mxu0
      %v849 = vadd.f32 0.0, %v848
      %v850 = vpop.f32.mrb[0].mxu0
      %v851 = vpop.f32.mrb[0].mxu0
      %v852 = vadd.f32 0.0, %v851
      %v853 = vpop.f32.mrb[0].mxu0
      %854 = vmatprep.mubr.bf16.mxu0 %v569
      %855 = vmatmul.mubr.bf16.gmra.mrb[0].mxu0 %v568
      %v856 = vpop.f32.mrb[0].mxu0
      %v857 = vadd.f32 0.0, %v856
      %v858 = vpop.f32.mrb[0].mxu0
      %v859 = vpop.f32.mrb[0].mxu0
      %v860 = vadd.f32 0.0, %v859
      %v861 = vpop.f32.mrb[0].mxu0
      %862 = vmatprep.mubr.bf16.mxu0 %v571
      %863 = vmatmul.mubr.bf16.gmra.mrb[0].mxu0 %v570
      %v864 = vpop.f32.mrb[0].mxu0
      %v865 = vadd.f32 0.0, %v864
      %v866 = vpop.f32.mrb[0].mxu0
      %v867 = vpop.f32.mrb[0].mxu0
      %v868 = vadd.f32 0.0, %v867
      %v869 = vpop.f32.mrb[0].mxu0
      %870 = vmatprep.mubr.bf16.mxu0 %v573
      %871 = vmatmul.mubr.bf16.gmra.mrb[0].mxu0 %v572
      %v872 = vpop.f32.mrb[0].mxu0
      %v873 = vadd.f32 0.0, %v872
      %v874 = vpop.f32.mrb[0].mxu0
      %v875 = vpop.f32.mrb[0].mxu0
      %v876 = vadd.f32 0.0, %v875
      %v877 = vpop.f32.mrb[0].mxu0
      %878 = vmatprep.mubr.bf16.mxu0 %v575
      %879 = vmatmul.mubr.bf16.gmra.mrb[0].mxu0 %v574
      %v880 = vpop.f32.mrb[0].mxu0
      %v881 = vadd.f32 0.0, %v880
      %v882 = vpop.f32.mrb[0].mxu0
      %v883 = vpop.f32.mrb[0].mxu0
      %v884 = vadd.f32 0.0, %v883
      %v885 = vpop.f32.mrb[0].mxu0
      %886 = vmatprep.mubr.bf16.mxu0 %v577
      %887 = vmatmul.mubr.bf16.gmra.mrb[0].mxu0 %v576
      %v888 = vpop.f32.mrb[0].mxu0
      %v889 = vadd.f32 0.0, %v888
      %v890 = vpop.f32.mrb[0].mxu0
      %v891 = vpop.f32.mrb[0].mxu0
      %v892 = vadd.f32 0.0, %v891
      %v893 = vpop.f32.mrb[0].mxu0
      %894 = vmatprep.mubr.bf16.mxu0 %v579
      %895 = vmatmul.mubr.bf16.gmra.mrb[0].mxu0 %v578
      %v896 = vpop.f32.mrb[0].mxu0
      %v897 = vadd.f32 0.0, %v896
      %v898 = vpop.f32.mrb[0].mxu0
      %v899 = vpop.f32.mrb[0].mxu0
      %v900 = vadd.f32 0.0, %v899
      %v901 = vpop.f32.mrb[0].mxu0
      %902 = vmatprep.mubr.bf16.mxu0 %v581
      %903 = vmatmul.mubr.bf16.gmra.mrb[0].mxu0 %v580
      %v904 = vpop.f32.mrb[0].mxu0
      %v905 = vadd.f32 0.0, %v904
      %v906 = vpop.f32.mrb[0].mxu0
      %v907 = vpop.f32.mrb[0].mxu0
      %v908 = vadd.f32 0.0, %v907
      %v909 = vpop.f32.mrb[0].mxu0
      %910 = vmatprep.mubr.bf16.mxu0 %v583
      %911 = vmatmul.mubr.bf16.gmra.mrb[0].mxu0 %v582
      %v912 = vpop.f32.mrb[0].mxu0
      %v913 = vadd.f32 0.0, %v912
      %v914 = vpop.f32.mrb[0].mxu0
      %v915 = vpop.f32.mrb[0].mxu0
      %v916 = vadd.f32 0.0, %v915
      %v917 = vpop.f32.mrb[0].mxu0
      %918 = vmatprep.mubr.bf16.mxu0 %v585
      %919 = vmatmul.mubr.bf16.gmra.mrb[0].mxu0 %v584
      %v920 = vpop.f32.mrb[0].mxu0
      %v921 = vadd.f32 0.0, %v920
      %v922 = vpop.f32.mrb[0].mxu0
      %v923 = vpop.f32.mrb[0].mxu0
      %v924 = vadd.f32 0.0, %v923
      %v925 = vpop.f32.mrb[0].mxu0
      %926 = vmatprep.mubr.bf16.mxu0 %v587
      %927 = vmatmul.mubr.bf16.gmra.mrb[0].mxu0 %v586
      %v928 = vpop.f32.mrb[0].mxu0
      %v929 = vadd.f32 0.0, %v928
      %v930 = vpop.f32.mrb[0].mxu0
      %v931 = vpop.f32.mrb[0].mxu0
      %v932 = vadd.f32 0.0, %v931
      %v933 = vpop.f32.mrb[0].mxu0
      %934 = vmatprep.mubr.bf16.mxu0 %v589
      %935 = vmatmul.mubr.bf16.gmra.mrb[0].mxu0 %v588
      %v936 = vpop.f32.mrb[0].mxu0
      %v937 = vadd.f32 0.0, %v936
      %v938 = vpop.f32.mrb[0].mxu0
      %v939 = vpop.f32.mrb[0].mxu0
      %v940 = vadd.f32 0.0, %v939
      %v941 = vpop.f32.mrb[0].mxu0
      %942 = vmatprep.mubr.bf16.mxu0 %v591
      %943 = vmatmul.mubr.bf16.gmra.mrb[0].mxu0 %v590
      %v944 = vpop.f32.mrb[0].mxu0
      %v945 = vadd.f32 0.0, %v944
      %v946 = vpop.f32.mrb[0].mxu0
      %v947 = vpop.f32.mrb[0].mxu0
      %v948 = vadd.f32 0.0, %v947
      %v949 = vpop.f32.mrb[0].mxu0
      %950 = vmatprep.mubr.bf16.mxu0 %v593
      %951 = vmatmul.mubr.bf16.gmra.mrb[0].mxu0 %v592
      %v952 = vpop.f32.mrb[0].mxu0
      %v953 = vadd.f32 0.0, %v952
      %v954 = vpop.f32.mrb[0].mxu0
      %v955 = vpop.f32.mrb[0].mxu0
      %v956 = vadd.f32 0.0, %v955
      %v957 = vpop.f32.mrb[0].mxu0
      %958 = vmatprep.mubr.bf16.mxu0 %v595
      %959 = vmatmul.mubr.bf16.gmra.mrb[0].mxu0 %v594
      %v960 = vpop.f32.mrb[0].mxu0
      %v961 = vadd.f32 0.0, %v960
      %v962 = vpop.f32.mrb[0].mxu0
      %v963 = vpop.f32.mrb[0].mxu0
      %v964 = vadd.f32 0.0, %v963
      %v965 = vpop.f32.mrb[0].mxu0
      %966 = vmatprep.mubr.bf16.mxu0 %v597
      %967 = vmatmul.mubr.bf16.gmra.mrb[0].mxu0 %v596
      %v968 = vpop.f32.mrb[0].mxu0
      %v969 = vadd.f32 0.0, %v968
      %v970 = vpop.f32.mrb[0].mxu0
      %v971 = vpop.f32.mrb[0].mxu0
      %v972 = vadd.f32 0.0, %v971
      %v973 = vpop.f32.mrb[0].mxu0
      %974 = vmatprep.mubr.bf16.mxu0 %v599
      %975 = vmatmul.mubr.bf16.gmra.mrb[0].mxu0 %v598
      %v976 = vpop.f32.mrb[0].mxu0
      %v977 = vadd.f32 0.0, %v976
      %v978 = vpop.f32.mrb[0].mxu0
      %v979 = vpop.f32.mrb[0].mxu0
      %v980 = vadd.f32 0.0, %v979
      %v981 = vpop.f32.mrb[0].mxu0
      %982 = vmatprep.mubr.bf16.mxu0 %v601
      %983 = vmatmul.mubr.bf16.gmra.mrb[0].mxu0 %v600
      %v984 = vpop.f32.mrb[0].mxu0
      %v985 = vadd.f32 0.0, %v984
      %v986 = vpop.f32.mrb[0].mxu0
      %v987 = vpop.f32.mrb[0].mxu0
      %v988 = vadd.f32 0.0, %v987
      %v989 = vpop.f32.mrb[0].mxu0
      %990 = vmatprep.mubr.bf16.mxu0 %v603
      %991 = vmatmul.mubr.bf16.gmra.mrb[0].mxu0 %v602
      %v992 = vpop.f32.mrb[0].mxu0
      %v993 = vadd.f32 0.0, %v992
      %v994 = vpop.f32.mrb[0].mxu0
      %v995 = vpop.f32.mrb[0].mxu0
      %v996 = vadd.f32 0.0, %v995
      %v997 = vpop.f32.mrb[0].mxu0
      %998 = vmatprep.mubr.bf16.mxu0 %v605
      %999 = vmatmul.mubr.bf16.gmra.mrb[0].mxu0 %v604
      %v1000 = vpop.f32.mrb[0].mxu0
      %v1001 = vadd.f32 0.0, %v1000
      %v1002 = vpop.f32.mrb[0].mxu0
      %v1003 = vpop.f32.mrb[0].mxu0
      %v1004 = vadd.f32 0.0, %v1003
      %v1005 = vpop.f32.mrb[0].mxu0
      %1006 = vmatprep.mubr.bf16.mxu0 %v607
      %1007 = vmatmul.mubr.bf16.gmra.mrb[0].mxu0 %v606
      %v1008 = vpop.f32.mrb[0].mxu0
      %v1009 = vadd.f32 0.0, %v1008
      %v1010 = vpop.f32.mrb[0].mxu0
      %v1011 = vpop.f32.mrb[0].mxu0
      %v1012 = vadd.f32 0.0, %v1011
      %v1013 = vpop.f32.mrb[0].mxu0
      %1014 = vmatprep.mubr.bf16.mxu0 %v609
      %1015 = vmatmul.mubr.bf16.gmra.mrb[0].mxu0 %v608
      %v1016 = vpop.f32.mrb[0].mxu0
      %v1017 = vadd.f32 0.0, %v1016
      %v1018 = vpop.f32.mrb[0].mxu0
      %v1019 = vpop.f32.mrb[0].mxu0
      %v1020 = vadd.f32 0.0, %v1019
      %v1021 = vpop.f32.mrb[0].mxu0
      %1022 = vmatprep.mubr.bf16.mxu0 %v611
      %1023 = vmatmul.mubr.bf16.gmra.mrb[0].mxu0 %v610
      %v1024 = vpop.f32.mrb[0].mxu0
      %v1025 = vadd.f32 0.0, %v1024
      %v1026 = vpop.f32.mrb[0].mxu0
      %v1027 = vpop.f32.mrb[0].mxu0
      %v1028 = vadd.f32 0.0, %v1027
      %v1029 = vpop.f32.mrb[0].mxu0
      %1030 = vmatprep.mubr.bf16.mxu0 %v613
      %1031 = vmatmul.mubr.bf16.gmra.mrb[0].mxu0 %v612
      %v1032 = vpop.f32.mrb[0].mxu0
      %v1033 = vadd.f32 0.0, %v1032
      %v1034 = vpop.f32.mrb[0].mxu0
      %v1035 = vpop.f32.mrb[0].mxu0
      %v1036 = vadd.f32 0.0, %v1035
      %v1037 = vpop.f32.mrb[0].mxu0
      %1038 = vmatprep.mubr.bf16.mxu0 %v615
      %1039 = vmatmul.mubr.bf16.gmra.mrb[0].mxu0 %v614
      %v1040 = vpop.f32.mrb[0].mxu0
      %v1041 = vadd.f32 0.0, %v1040
      %v1042 = vpop.f32.mrb[0].mxu0
      %v1043 = vpop.f32.mrb[0].mxu0
      %v1044 = vadd.f32 0.0, %v1043
      %v1045 = vpop.f32.mrb[0].mxu0
      %1046 = vmatprep.mubr.bf16.mxu0 %v617
      %1047 = vmatmul.mubr.bf16.gmra.mrb[0].mxu0 %v616
      %v1048 = vpop.f32.mrb[0].mxu0
      %v1049 = vadd.f32 0.0, %v1048
      %v1050 = vpop.f32.mrb[0].mxu0
      %v1051 = vpop.f32.mrb[0].mxu0
      %v1052 = vadd.f32 0.0, %v1051
      %v1053 = vpop.f32.mrb[0].mxu0
      %1054 = vmatprep.mubr.bf16.mxu0 %v619
      %1055 = vmatmul.mubr.bf16.gmra.mrb[0].mxu0 %v618
      %v1056 = vpop.f32.mrb[0].mxu0
      %v1057 = vadd.f32 0.0, %v1056
      %v1058 = vpop.f32.mrb[0].mxu0
      %v1059 = vpop.f32.mrb[0].mxu0
      %v1060 = vadd.f32 0.0, %v1059
      %v1061 = vpop.f32.mrb[0].mxu0
      %1062 = vmatprep.mubr.bf16.mxu0 %v621
      %1063 = vmatmul.mubr.bf16.gmra.mrb[0].mxu0 %v620
      %v1064 = vpop.f32.mrb[0].mxu0
      %v1065 = vadd.f32 0.0, %v1064
      %v1066 = vpop.f32.mrb[0].mxu0
      %v1067 = vpop.f32.mrb[0].mxu0
      %v1068 = vadd.f32 0.0, %v1067
      %v1069 = vpop.f32.mrb[0].mxu0
      %1070 = vdwg.mxu0
      %v1071 = vld [vmem:[%s256] sm:$0x1]
      %v1073 = vlaneseq
      %v1074 = vshrl.u32 %v1073, 7
      %v1075 = vsub.s32 0, %v1074
      %v1076 = vrot.slane %v1071, %v1075
      %v1078 = vmul.f32 %v817, %v1076
      %v1079 = vmul.f32 %v820, %v1076
      %v1080 = vmul.f32 %v825, %v1076
      %v1081 = vmul.f32 %v828, %v1076
      %v1082 = vmul.f32 %v833, %v1076
      %v1083 = vmul.f32 %v836, %v1076
      %v1084 = vmul.f32 %v841, %v1076
      %v1085 = vmul.f32 %v844, %v1076
      %v1086 = vmul.f32 %v849, %v1076
      %v1087 = vmul.f32 %v852, %v1076
      %v1088 = vmul.f32 %v857, %v1076
      %v1089 = vmul.f32 %v860, %v1076
      %v1090 = vmul.f32 %v865, %v1076
      %v1091 = vmul.f32 %v868, %v1076
      %v1092 = vmul.f32 %v873, %v1076
      %v1093 = vmul.f32 %v876, %v1076
      %v1094 = vmul.f32 %v881, %v1076
      %v1095 = vmul.f32 %v884, %v1076
      %v1096 = vmul.f32 %v889, %v1076
      %v1097 = vmul.f32 %v892, %v1076
      %v1098 = vmul.f32 %v897, %v1076
      %v1099 = vmul.f32 %v900, %v1076
      %v1100 = vmul.f32 %v905, %v1076
      %v1101 = vmul.f32 %v908, %v1076
      %v1102 = vmul.f32 %v913, %v1076
      %v1103 = vmul.f32 %v916, %v1076
      %v1104 = vmul.f32 %v921, %v1076
      %v1105 = vmul.f32 %v924, %v1076
      %v1106 = vmul.f32 %v929, %v1076
      %v1107 = vmul.f32 %v932, %v1076
      %v1108 = vmul.f32 %v937, %v1076
      %v1109 = vmul.f32 %v940, %v1076
      %v1110 = vmul.f32 %v945, %v1076
      %v1111 = vmul.f32 %v948, %v1076
      %v1112 = vmul.f32 %v953, %v1076
      %v1113 = vmul.f32 %v956, %v1076
      %v1114 = vmul.f32 %v961, %v1076
      %v1115 = vmul.f32 %v964, %v1076
      %v1116 = vmul.f32 %v969, %v1076
      %v1117 = vmul.f32 %v972, %v1076
      %v1118 = vmul.f32 %v977, %v1076
      %v1119 = vmul.f32 %v980, %v1076
      %v1120 = vmul.f32 %v985, %v1076
      %v1121 = vmul.f32 %v988, %v1076
      %v1122 = vmul.f32 %v993, %v1076
      %v1123 = vmul.f32 %v996, %v1076
      %v1124 = vmul.f32 %v1001, %v1076
      %v1125 = vmul.f32 %v1004, %v1076
      %v1126 = vmul.f32 %v1009, %v1076
      %v1127 = vmul.f32 %v1012, %v1076
      %v1128 = vmul.f32 %v1017, %v1076
      %v1129 = vmul.f32 %v1020, %v1076
      %v1130 = vmul.f32 %v1025, %v1076
      %v1131 = vmul.f32 %v1028, %v1076
      %v1132 = vmul.f32 %v1033, %v1076
      %v1133 = vmul.f32 %v1036, %v1076
      %v1134 = vmul.f32 %v1041, %v1076
      %v1135 = vmul.f32 %v1044, %v1076
      %v1136 = vmul.f32 %v1049, %v1076
      %v1137 = vmul.f32 %v1052, %v1076
      %v1138 = vmul.f32 %v1057, %v1076
      %v1139 = vmul.f32 %v1060, %v1076
      %v1140 = vmul.f32 %v1065, %v1076
      %v1141 = vmul.f32 %v1068, %v1076
      %v1142 = vld [vmem:[%s259] sm:$0x1]
      %v1144 = vlaneseq
      %v1145 = vshrl.u32 %v1144, 7
      %v1146 = vsub.s32 0, %v1145
      %v1147 = vrot.slane %v1142, %v1146
      %v1149 = vadd.f32 %v1078, %v1147
      %v1150 = vadd.f32 %v1079, %v1147
      %v1151 = vadd.f32 %v1080, %v1147
      %v1152 = vadd.f32 %v1081, %v1147
      %v1153 = vadd.f32 %v1082, %v1147
      %v1154 = vadd.f32 %v1083, %v1147
      %v1155 = vadd.f32 %v1084, %v1147
      %v1156 = vadd.f32 %v1085, %v1147
      %v1157 = vadd.f32 %v1086, %v1147
      %v1158 = vadd.f32 %v1087, %v1147
      %v1159 = vadd.f32 %v1088, %v1147
      %v1160 = vadd.f32 %v1089, %v1147
      %v1161 = vadd.f32 %v1090, %v1147
      %v1162 = vadd.f32 %v1091, %v1147
      %v1163 = vadd.f32 %v1092, %v1147
      %v1164 = vadd.f32 %v1093, %v1147
      %v1165 = vadd.f32 %v1094, %v1147
      %v1166 = vadd.f32 %v1095, %v1147
      %v1167 = vadd.f32 %v1096, %v1147
      %v1168 = vadd.f32 %v1097, %v1147
      %v1169 = vadd.f32 %v1098, %v1147
      %v1170 = vadd.f32 %v1099, %v1147
      %v1171 = vadd.f32 %v1100, %v1147
      %v1172 = vadd.f32 %v1101, %v1147
      %v1173 = vadd.f32 %v1102, %v1147
      %v1174 = vadd.f32 %v1103, %v1147
      %v1175 = vadd.f32 %v1104, %v1147
      %v1176 = vadd.f32 %v1105, %v1147
      %v1177 = vadd.f32 %v1106, %v1147
      %v1178 = vadd.f32 %v1107, %v1147
      %v1179 = vadd.f32 %v1108, %v1147
      %v1180 = vadd.f32 %v1109, %v1147
      %v1181 = vadd.f32 %v1110, %v1147
      %v1182 = vadd.f32 %v1111, %v1147
      %v1183 = vadd.f32 %v1112, %v1147
      %v1184 = vadd.f32 %v1113, %v1147
      %v1185 = vadd.f32 %v1114, %v1147
      %v1186 = vadd.f32 %v1115, %v1147
      %v1187 = vadd.f32 %v1116, %v1147
      %v1188 = vadd.f32 %v1117, %v1147
      %v1189 = vadd.f32 %v1118, %v1147
      %v1190 = vadd.f32 %v1119, %v1147
      %v1191 = vadd.f32 %v1120, %v1147
      %v1192 = vadd.f32 %v1121, %v1147
      %v1193 = vadd.f32 %v1122, %v1147
      %v1194 = vadd.f32 %v1123, %v1147
      %v1195 = vadd.f32 %v1124, %v1147
      %v1196 = vadd.f32 %v1125, %v1147
      %v1197 = vadd.f32 %v1126, %v1147
      %v1198 = vadd.f32 %v1127, %v1147
      %v1199 = vadd.f32 %v1128, %v1147
      %v1200 = vadd.f32 %v1129, %v1147
      %v1201 = vadd.f32 %v1130, %v1147
      %v1202 = vadd.f32 %v1131, %v1147
      %v1203 = vadd.f32 %v1132, %v1147
      %v1204 = vadd.f32 %v1133, %v1147
      %v1205 = vadd.f32 %v1134, %v1147
      %v1206 = vadd.f32 %v1135, %v1147
      %v1207 = vadd.f32 %v1136, %v1147
      %v1208 = vadd.f32 %v1137, %v1147
      %v1209 = vadd.f32 %v1138, %v1147
      %v1210 = vadd.f32 %v1139, %v1147
      %v1211 = vadd.f32 %v1140, %v1147
      %v1212 = vadd.f32 %v1141, %v1147
      %1213 = vst [vmem:[%s267] sm:$0xff] %v1149
      %1214 = vst [vmem:[%s267 + $0x8] sm:$0xff] %v1150
      %1215 = vst [vmem:[%s267 + $0x10] sm:$0xff] %v1151
      %1216 = vst [vmem:[%s267 + $0x18] sm:$0xff] %v1152
      %1217 = vst [vmem:[%s267 + $0x20] sm:$0xff] %v1153
      %1218 = vst [vmem:[%s267 + $0x28] sm:$0xff] %v1154
      %1219 = vst [vmem:[%s267 + $0x30] sm:$0xff] %v1155
      %1220 = vst [vmem:[%s267 + $0x38] sm:$0xff] %v1156
      %1221 = vst [vmem:[%s267 + $0x40] sm:$0xff] %v1157
      %1222 = vst [vmem:[%s267 + $0x48] sm:$0xff] %v1158
      %1223 = vst [vmem:[%s267 + $0x50] sm:$0xff] %v1159
      %1224 = vst [vmem:[%s267 + $0x58] sm:$0xff] %v1160
      %1225 = vst [vmem:[%s267 + $0x60] sm:$0xff] %v1161
      %1226 = vst [vmem:[%s267 + $0x68] sm:$0xff] %v1162
      %1227 = vst [vmem:[%s267 + $0x70] sm:$0xff] %v1163
      %1228 = vst [vmem:[%s267 + $0x78] sm:$0xff] %v1164
      %1229 = vst [vmem:[%s267 + $0x80] sm:$0xff] %v1165
      %1230 = vst [vmem:[%s267 + $0x88] sm:$0xff] %v1166
      %1231 = vst [vmem:[%s267 + $0x90] sm:$0xff] %v1167
      %1232 = vst [vmem:[%s267 + $0x98] sm:$0xff] %v1168
      %1233 = vst [vmem:[%s267 + $0xa0] sm:$0xff] %v1169
      %1234 = vst [vmem:[%s267 + $0xa8] sm:$0xff] %v1170
      %1235 = vst [vmem:[%s267 + $0xb0] sm:$0xff] %v1171
      %1236 = vst [vmem:[%s267 + $0xb8] sm:$0xff] %v1172
      %1237 = vst [vmem:[%s267 + $0xc0] sm:$0xff] %v1173
      %1238 = vst [vmem:[%s267 + $0xc8] sm:$0xff] %v1174
      %1239 = vst [vmem:[%s267 + $0xd0] sm:$0xff] %v1175
      %1240 = vst [vmem:[%s267 + $0xd8] sm:$0xff] %v1176
      %1241 = vst [vmem:[%s267 + $0xe0] sm:$0xff] %v1177
      %1242 = vst [vmem:[%s267 + $0xe8] sm:$0xff] %v1178
      %1243 = vst [vmem:[%s267 + $0xf0] sm:$0xff] %v1179
      %1244 = vst [vmem:[%s267 + $0xf8] sm:$0xff] %v1180
      %1245 = vst [vmem:[%s267 + $0x100] sm:$0xff] %v1181
      %1246 = vst [vmem:[%s267 + $0x108] sm:$0xff] %v1182
      %1247 = vst [vmem:[%s267 + $0x110] sm:$0xff] %v1183
      %1248 = vst [vmem:[%s267 + $0x118] sm:$0xff] %v1184
      %1249 = vst [vmem:[%s267 + $0x120] sm:$0xff] %v1185
      %1250 = vst [vmem:[%s267 + $0x128] sm:$0xff] %v1186
      %1251 = vst [vmem:[%s267 + $0x130] sm:$0xff] %v1187
      %1252 = vst [vmem:[%s267 + $0x138] sm:$0xff] %v1188
      %1253 = vst [vmem:[%s267 + $0x140] sm:$0xff] %v1189
      %1254 = vst [vmem:[%s267 + $0x148] sm:$0xff] %v1190
      %1255 = vst [vmem:[%s267 + $0x150] sm:$0xff] %v1191
      %1256 = vst [vmem:[%s267 + $0x158] sm:$0xff] %v1192
      %1257 = vst [vmem:[%s267 + $0x160] sm:$0xff] %v1193
      %1258 = vst [vmem:[%s267 + $0x168] sm:$0xff] %v1194
      %1259 = vst [vmem:[%s267 + $0x170] sm:$0xff] %v1195
      %1260 = vst [vmem:[%s267 + $0x178] sm:$0xff] %v1196
      %1261 = vst [vmem:[%s267 + $0x180] sm:$0xff] %v1197
      %1262 = vst [vmem:[%s267 + $0x188] sm:$0xff] %v1198
      %1263 = vst [vmem:[%s267 + $0x190] sm:$0xff] %v1199
      %1264 = vst [vmem:[%s267 + $0x198] sm:$0xff] %v1200
      %1265 = vst [vmem:[%s267 + $0x1a0] sm:$0xff] %v1201
      %1266 = vst [vmem:[%s267 + $0x1a8] sm:$0xff] %v1202
      %1267 = vst [vmem:[%s267 + $0x1b0] sm:$0xff] %v1203
      %1268 = vst [vmem:[%s267 + $0x1b8] sm:$0xff] %v1204
      %1269 = vst [vmem:[%s267 + $0x1c0] sm:$0xff] %v1205
      %1270 = vst [vmem:[%s267 + $0x1c8] sm:$0xff] %v1206
      %1271 = vst [vmem:[%s267 + $0x1d0] sm:$0xff] %v1207
      %1272 = vst [vmem:[%s267 + $0x1d8] sm:$0xff] %v1208
      %1273 = vst [vmem:[%s267 + $0x1e0] sm:$0xff] %v1209
      %1274 = vst [vmem:[%s267 + $0x1e8] sm:$0xff] %v1210
      %1275 = vst [vmem:[%s267 + $0x1f0] sm:$0xff] %v1211
      %1276 = vst [vmem:[%s267 + $0x1f8] sm:$0xff] %v1212
      %s1277 = smul.u32 64, %s19
      %p1278 = scmp.lt.s32.totalorder %s1277, 511
      %s1279 = scalar_select %p1278, %s1277, 511
      %p1280 = scmp.lt.s32.totalorder %s20, 0
      %s1281 = scalar_select %p1280, %s20, 0
      %s1282 = sadd.s32 %s1281, %s1279
      %s1283 = smul.addr %s1282, 8
      %s1284 = scalar_lea.vmem %s4, %s1283
      // Predicated region
      $region37: #{deeplabv3plus_forward.29} parent=35 // pred_check
        %p1285 = pneg %p151
      $region38: #{deeplabv3plus_forward.29} parent=35 // pred_check_branch
        %1287 = sbr.rel (%p1285) target = $region40
      $region39: #{deeplabv3plus_forward.29} parent=35 // pred_region
        %s1288 = smul.u32 64, %s19
      $region40: #{deeplabv3plus_forward.29} parent=35 // pred_fallthru
        _
    $region36: #{deeplabv3plus_forward.29} parent=5 // pred_fallthru
      _
    %p1289 = scmp.le.s32.totalorder 2, %s10
    // Predicated region
    $region41: #{deeplabv3plus_forward.29} parent=5 // pred_check
      %p1290 = pneg %p1289
    $region42: #{deeplabv3plus_forward.29} parent=5 // pred_check_branch
      %1292 = sbr.rel (%p1290) target = $region44
    $region43: #{deeplabv3plus_forward.29} parent=5 // pred_region
      %s1293 = ssub.s32 %s10, 2
      // Predicated region
      $region45: #{deeplabv3plus_forward.29} parent=43 // pred_check
        %p1294 = pneg %p157
      $region46: #{deeplabv3plus_forward.29} parent=43 // pred_check_branch
        %1296 = sbr.rel (%p1294) target = $region48
      $region47: #{deeplabv3plus_forward.29} parent=43 // pred_region
        %s1297 = smul.u32 64, %s21
        %p1298 = scmp.lt.s32.totalorder %s1297, 511
        %s1299 = scalar_select %p1298, %s1297, 511
        %p1300 = scmp.lt.s32.totalorder %s22, 0
        %s1301 = scalar_select %p1300, %s22, 0
        %s1302 = sadd.s32 %s1301, %s1299
        %s1303 = smul.addr %s1302, 8
        %s1304 = scalar_lea.vmem %s4, %s1303
      $region48: #{deeplabv3plus_forward.29} parent=43 // pred_fallthru
        _
    $region44: #{deeplabv3plus_forward.29} parent=5 // pred_fallthru
      _
  $region6: #{deeplabv3plus_forward.29} parent=0 // loop_footer
    %s14 = sadd.s32 1, %s10
  $region7: #{deeplabv3plus_forward.29} parent=0 // loop_footer_branch
    %9 = sbr.rel target = $region3
  $region8: #{deeplabv3plus_forward.29} parent=0 // loop_exit
    _

</llo_original>
